<compile_context>
chip_gen: v7x
topology: tpu7x:2x2x1
jax: 0.10.0
libtpu: 0.0.40
codegen_flags: <defaults>
</compile_context>

<pallas_src>
import numpy as np
import jax
import jax.numpy as jnp
from jax import lax
from jax.experimental import pallas as pl
from jax.experimental.pallas import tpu as pltpu

# ---- model hyper-parameters (match the PyTorch module) ----------------------
NUM_INPUTS = 3          # image channels
NUM_OUTPUTS = 2         # action_map = {0: 2, 1: 3} -> exactly 2 logits
NHML = 32               # model LSTM hidden
NHPL = 16               # policy LSTM hidden
Z_SIZE = 16
NUM_MIX = 2
IMG = 42                # preprocessed frame is 42x42 so the flatten is 32*2*2

# ---- conv layout constants ---------------------------------------------------
# All activations use a flat (rows, 32) layout with channels on lanes and the
# feature-map pixel (i, j) at row PITCH*i + j ("pitch-21" layout).  Rows whose
# index mod 21 >= the valid width are junk and are provably never read back as
# valid pixels by later layers.
PITCH = 21
CONV_N = (20, 9, 4, 2)                              # Ho = Wo per conv layer
CONV_K = (4, 4, 3, 2)                               # kernel sizes
CONV_CIN = (NUM_INPUTS, 32, 32, 32)                 # input channels
CONV_KKC = tuple(k * k * c for k, c in zip(CONV_K, CONV_CIN))   # (48,512,288,128)

# rows of each layer's output / im2col-LHS buffer.  Multiples of 8, and large
# enough that every downstream stride-2 read stays in-bounds:
#   need  22*(K_{l+1}-1) + 2*(R_OUT[l+1]-1) + 1  <=  R_OUT[l]
R_OUT = (456, 192, 72, 24)
for _l in range(1, 4):
    _c0max = (PITCH + 1) * (CONV_K[_l] - 1)
    assert _c0max + 2 * (R_OUT[_l] - 1) + 1 <= R_OUT[_l - 1]
    assert R_OUT[_l] % 8 == 0
    assert R_OUT[_l] >= (PITCH + 1) * CONV_N[_l] - PITCH
assert R_OUT[0] % 8 == 0 and R_OUT[0] >= PITCH * CONV_N[0]

# conv weight slab: (512, 128) f32, one layer per 32-lane group
CW_SLAB_ROWS = 512
CW_LANES = (96, 0, 32, 64)       # lane offset of conv1..conv4 stacked weights

# head-parameter slab: (312, 128) f32, 8-aligned row blocks
WZ_R, WP_R, WM_R, WVA_R, WMDN_R = 0, 128, 192, 248, 264
BZ_R, BP_R, BM_R, BVA_R, BMDN_R = 296, 297, 298, 299, 300
CB_R = 301                        # 4 conv-bias rows: 301..304
PW_ROWS = 312

CONV1_CHUNK = 152                 # 456 = 3 * 152, 152 = 19 * 8
FOLD_CHUNK = 96                   # epilogue chunk for conv2..4


# ---- the fused forward kernel ------------------------------------------------
def model_fwd_kernel(
    # inputs
    x_ref,      # (456, 48)  wrapper-side im2col of the frame (pitch-21 rows)
    cw_ref,     # (512, 128) packed stacked conv weights
    pw_ref,     # (312, 128) packed head weights / biases
    st_ref,     # (8, 128)   uniform sample + hidden state
    # output
    out_ref,    # (8, 128)   packed result slab
    # scratch
    a1_ref, a2_ref, a3_ref, a4_ref,   # conv activations (R_OUT[l], 32)
    lhs_ref,    # (192, 512) shared im2col LHS for conv2..4
    stage_ref,  # (8, 128)   staging rows for fused small matmuls
):
    f32 = jnp.float32

    # ---------------- conv1: single folded matmul over wrapper im2col ---------
    for r0 in range(0, R_OUT[0], CONV1_CHUNK):
        n = min(CONV1_CHUNK, R_OUT[0] - r0)
        y = jnp.dot(x_ref[r0:r0 + n, :],
                    cw_ref[0:CONV_KKC[0], CW_LANES[0]:CW_LANES[0] + 32],
                    preferred_element_type=f32)
        a1_ref[r0:r0 + n, :] = jnp.maximum(y + pw_ref[CB_R:CB_R + 1, 0:32], 0.0)

    # ---------------- conv2..4: in-kernel im2col + one folded matmul each -----
    def conv_fold(in_ref, out_act_ref, layer):
        K = CONV_K[layer]
        R = R_OUT[layer]
        C = CONV_KKC[layer]
        lane0 = CW_LANES[layer]
        # assemble im2col LHS: one stride-2 load + one lane-group store per tap
        for kh in range(K):
            for kw in range(K):
                t = kh * K + kw
                lhs_ref[0:R, t * 32:(t + 1) * 32] = (
                    in_ref[pl.ds(PITCH * kh + kw, R, stride=2), :])
        # one matmul with the stacked (K*K*32, 32) weight; row-chunked epilogue
        for r0 in range(0, R, FOLD_CHUNK):
            n = min(FOLD_CHUNK, R - r0)
            y = jnp.dot(lhs_ref[r0:r0 + n, 0:C],
                        cw_ref[0:C, lane0:lane0 + 32],
                        preferred_element_type=f32)
            out_act_ref[r0:r0 + n, :] = jnp.maximum(
                y + pw_ref[CB_R + layer:CB_R + layer + 1, 0:32], 0.0)

    conv_fold(a1_ref, a2_ref, 1)
    conv_fold(a2_ref, a3_ref, 2)
    conv_fold(a3_ref, a4_ref, 3)

    # ---------------- z = z_fc(flatten(conv4)): staged row + one matmul -------
    # conv4 pixel (h, w) lives at row PITCH*h + w; stage lane group q = 2h + w.
    for q, r in enumerate((0, 1, PITCH, PITCH + 1)):
        stage_ref[2:3, q * 32:(q + 1) * 32] = a4_ref[r:r + 1, :]
    z = (jnp.dot(stage_ref[2:3, :], pw_ref[WZ_R:WZ_R + 128, 0:Z_SIZE],
                 preferred_element_type=f32)
         + pw_ref[BZ_R:BZ_R + 1, 0:Z_SIZE])                                # (1,16)

    u = st_ref[0:1, 0:1]
    h_p = st_ref[2:3, 0:NHPL]
    c_p = st_ref[3:4, 0:NHPL]
    h_m = st_ref[4:5, 0:NHML]
    c_m = st_ref[5:6, 0:NHML]

    # ---------------- policy LSTM: stage concat(z, h_m, h_p), one matmul ------
    stage_ref[0:1, 0:Z_SIZE] = z
    stage_ref[0:1, Z_SIZE:Z_SIZE + NHML] = h_m
    stage_ref[0:1, Z_SIZE + NHML:Z_SIZE + NHML + NHPL] = h_p
    pre_p = (jnp.dot(stage_ref[0:1, 0:Z_SIZE + NHML + NHPL],
                     pw_ref[WP_R:WP_R + 64, 0:4 * NHPL],
                     preferred_element_type=f32)
             + pw_ref[BP_R:BP_R + 1, 0:4 * NHPL])                          # (1,64)
    i_p = jax.nn.sigmoid(pre_p[:, 0:NHPL])
    f_p = jax.nn.sigmoid(pre_p[:, NHPL:2 * NHPL])
    g_p = jnp.tanh(pre_p[:, 2 * NHPL:3 * NHPL])
    o_p = jax.nn.sigmoid(pre_p[:, 3 * NHPL:4 * NHPL])
    c_p_new = f_p * c_p + i_p * g_p
    h_p_new = o_p * jnp.tanh(c_p_new)

    # ---------------- fused critic / actor heads ------------------------------
    va = (jnp.dot(h_p_new, pw_ref[WVA_R:WVA_R + NHPL, 0:1 + NUM_OUTPUTS],
                  preferred_element_type=f32)
          + pw_ref[BVA_R:BVA_R + 1, 0:1 + NUM_OUTPUTS])
    v = va[:, 0:1]
    logit = va[:, 1:1 + NUM_OUTPUTS]

    # stable log-softmax / softmax
    m = jnp.max(logit, axis=1, keepdims=True)
    el = logit - m
    log_prob = el - jnp.log(jnp.sum(jnp.exp(el), axis=1, keepdims=True))
    prob = jnp.exp(log_prob)

    # multinomial(1) sample using an externally supplied uniform u in [0,1)
    # (valid only because NUM_OUTPUTS == 2; asserted in the wrapper)
    idx = (u >= prob[:, 0:1]).astype(jnp.int32)                            # (1,1)
    onehot = (lax.broadcasted_iota(jnp.int32, (1, NUM_OUTPUTS), 1)
              == idx).astype(f32)

    entropy = -jnp.sum(log_prob * prob, axis=1, keepdims=True)
    lpa = jnp.sum(log_prob * onehot, axis=1, keepdims=True)                # gather(1, sample)

    # ---------------- model LSTM: stage concat(z, onehot, h_m), one matmul ----
    stage_ref[1:2, 0:Z_SIZE] = z
    stage_ref[1:2, Z_SIZE:Z_SIZE + NUM_OUTPUTS] = onehot
    stage_ref[1:2, Z_SIZE + NUM_OUTPUTS:Z_SIZE + NUM_OUTPUTS + NHML] = h_m
    pre_m = (jnp.dot(stage_ref[1:2, 0:Z_SIZE + NUM_OUTPUTS + NHML],
                     pw_ref[WM_R:WM_R + Z_SIZE + NUM_OUTPUTS + NHML, 0:4 * NHML],
                     preferred_element_type=f32)
             + pw_ref[BM_R:BM_R + 1, 0:4 * NHML])                          # (1,128)
    i_m = jax.nn.sigmoid(pre_m[:, 0:NHML])
    f_m = jax.nn.sigmoid(pre_m[:, NHML:2 * NHML])
    g_m = jnp.tanh(pre_m[:, 2 * NHML:3 * NHML])
    o_m = jax.nn.sigmoid(pre_m[:, 3 * NHML:4 * NHML])
    c_m_new = f_m * c_m + i_m * g_m
    h_m_new = o_m * jnp.tanh(c_m_new)

    # ---------------- MDN head (get_mdn_coef), single fused matmul ------------
    # lane j*16 + k of `md` == element [k, j] of torch.reshape(vecs, (-1, 6))
    md = (jnp.dot(h_m_new, pw_ref[WMDN_R:WMDN_R + NHML, 0:6 * Z_SIZE],
                  preferred_element_type=f32)
          + pw_ref[BMDN_R:BMDN_R + 1, 0:6 * Z_SIZE])
    lw0 = md[:, 0:Z_SIZE]
    lw1 = md[:, Z_SIZE:2 * Z_SIZE]
    mx = jnp.maximum(lw0, lw1)
    lse = mx + jnp.log(jnp.exp(lw0 - mx) + jnp.exp(lw1 - mx))
    # TODO(synk): mdn_loss_f uses the *previous* step's coefficients (None right
    #             after reset_hidden_layer), so mdn_loss is not computed here.

    # ---------------- pack all outputs into one lane-dense (8,128) slab -------
    out_ref[...] = jnp.zeros((8, 128), f32)
    out_ref[0:1, 0:1] = v
    out_ref[0:1, 1:2] = entropy
    out_ref[0:1, 2:3] = lpa
    out_ref[0:1, 3:4] = (idx + 2).astype(f32)       # action_map = {0: 2, 1: 3}
    out_ref[0:1, 4:6] = prob
    out_ref[0:1, 6:8] = onehot
    out_ref[1:2, 0:Z_SIZE] = z
    out_ref[2:3, 0:NHPL] = h_p_new
    out_ref[3:4, 0:NHPL] = c_p_new
    out_ref[4:5, 0:NHML] = h_m_new
    out_ref[5:6, 0:NHML] = c_m_new
    out_ref[6:7, 0:Z_SIZE] = lw0 - lse
    out_ref[6:7, Z_SIZE:2 * Z_SIZE] = lw1 - lse
    out_ref[6:7, 2 * Z_SIZE:6 * Z_SIZE] = md[:, 2 * Z_SIZE:6 * Z_SIZE]


# ---- deterministic parameter init in the *PyTorch* layouts -------------------
def init_params(key):
    ks = list(jax.random.split(key, 24))
    it = iter(ks)

    def unif(k, shape, fan_in):
        bound = 1.0 / np.sqrt(fan_in)
        return jax.random.uniform(k, shape, jnp.float32, -bound, bound)

    p = {}
    conv_defs = [(32, NUM_INPUTS, 4), (32, 32, 4), (32, 32, 3), (32, 32, 2)]
    p['conv_w'], p['conv_b'] = [], []
    for (co, ci, k) in conv_defs:
        fan = ci * k * k
        p['conv_w'].append(unif(next(it), (co, ci, k, k), fan))   # (Cout, Cin, KH, KW)
        p['conv_b'].append(unif(next(it), (co,), fan))
    p['zfc_w'] = unif(next(it), (Z_SIZE, 32 * 2 * 2), 128)        # (out, in) torch Linear
    p['zfc_b'] = unif(next(it), (Z_SIZE,), 128)

    def lstm(inp, hid):
        return (unif(next(it), (4 * hid, inp), hid),
                unif(next(it), (4 * hid, hid), hid),
                unif(next(it), (4 * hid,), hid),
                unif(next(it), (4 * hid,), hid))

    p['plstm'] = lstm(Z_SIZE + NHML, NHPL)
    p['mlstm'] = lstm(Z_SIZE + NUM_OUTPUTS, NHML)
    p['critic_w'] = unif(next(it), (1, NHPL), NHPL)
    p['critic_b'] = unif(next(it), (1,), NHPL)
    p['actor_w'] = unif(next(it), (NUM_OUTPUTS, NHPL), NHPL)
    p['actor_b'] = unif(next(it), (NUM_OUTPUTS,), NHPL)
    nout = NUM_MIX * 3 * Z_SIZE
    p['mdn_w'] = unif(next(it), (nout, NHML), NHML)
    p['mdn_b'] = unif(next(it), (nout,), NHML)
    return p


# ---- glue: rearrange torch-layout parameters into the two packed slabs -------
def to_kernel_params(p):
    f32 = jnp.float32

    def stack_w(w):   # (Cout, Cin, KH, KW) -> rows (kh*K + kw)*Cin + c, 32 lanes
        co, ci, kh, kw = w.shape
        return jnp.transpose(w, (2, 3, 1, 0)).reshape(kh * kw * ci, co)

    cw = jnp.zeros((CW_SLAB_ROWS, 128), f32)
    cw = cw.at[0:CONV_KKC[1], CW_LANES[1]:CW_LANES[1] + 32].set(stack_w(p['conv_w'][1]))
    cw = cw.at[0:CONV_KKC[2], CW_LANES[2]:CW_LANES[2] + 32].set(stack_w(p['conv_w'][2]))
    cw = cw.at[0:CONV_KKC[3], CW_LANES[3]:CW_LANES[3] + 32].set(stack_w(p['conv_w'][3]))
    cw = cw.at[0:CONV_KKC[0], CW_LANES[0]:CW_LANES[0] + 32].set(stack_w(p['conv_w'][0]))

    pw = jnp.zeros((PW_ROWS, 128), f32)

    # z_fc: torch flattens NCHW as index c*4 + h*2 + w; kernel lane group q = 2h + w
    wz = jnp.transpose(p['zfc_w'].reshape(Z_SIZE, 32, 2, 2), (2, 3, 1, 0)).reshape(128, Z_SIZE)
    pw = pw.at[WZ_R:WZ_R + 128, 0:Z_SIZE].set(wz)
    pw = pw.at[BZ_R, 0:Z_SIZE].set(p['zfc_b'])

    # LSTMCell: fused-gate layout [w_ih^T ; w_hh^T] -> (In + H, 4H), b = b_ih + b_hh
    def lstm_pack(w_ih, w_hh, b_ih, b_hh):
        return jnp.concatenate([w_ih.T, w_hh.T], axis=0), (b_ih + b_hh)

    wp, bp = lstm_pack(*p['plstm'])                   # (64, 64), (64,)
    wm, bm = lstm_pack(*p['mlstm'])                   # (50, 128), (128,)
    pw = pw.at[WP_R:WP_R + 64, 0:64].set(wp)
    pw = pw.at[BP_R, 0:64].set(bp)
    pw = pw.at[WM_R:WM_R + 50, 0:128].set(wm)
    pw = pw.at[BM_R, 0:128].set(bm)

    # fused critic + actor: columns [v, logit0, logit1]
    wva = jnp.concatenate([p['critic_w'], p['actor_w']], axis=0).T      # (16, 3)
    pw = pw.at[WVA_R:WVA_R + NHPL, 0:1 + NUM_OUTPUTS].set(wva)
    pw = pw.at[BVA_R, 0:1 + NUM_OUTPUTS].set(
        jnp.concatenate([p['critic_b'], p['actor_b']]))

    # mdn_linear: lane j*16 + k of the fused output = torch output unit 6k + j
    wmdn = jnp.transpose(p['mdn_w'].reshape(Z_SIZE, NUM_MIX * 3, NHML),
                         (1, 0, 2)).reshape(NUM_MIX * 3 * Z_SIZE, NHML).T   # (32, 96)
    pw = pw.at[WMDN_R:WMDN_R + NHML, 0:6 * Z_SIZE].set(wmdn)
    pw = pw.at[BMDN_R, 0:6 * Z_SIZE].set(
        p['mdn_b'].reshape(Z_SIZE, NUM_MIX * 3).T.reshape(6 * Z_SIZE))

    for l in range(4):
        pw = pw.at[CB_R + l, 0:32].set(p['conv_b'][l])

    return {'cw': cw, 'pw': pw}


# ---- wrapper -----------------------------------------------------------------
def _conv1_im2col(x_nchw):
    """Build conv1's im2col LHS: row PITCH*i + j holds the 48 = 4*4*3 input
    values for conv1 output pixel (i, j); junk rows are zero."""
    x = jnp.transpose(x_nchw[0], (1, 2, 0)).astype(jnp.float32)            # (42, 42, 3)
    taps = [x[kh:kh + 2 * CONV_N[0]:2, kw:kw + 2 * CONV_N[0]:2, :]
            for kh in range(CONV_K[0]) for kw in range(CONV_K[0])]
    patches = jnp.concatenate(taps, axis=-1)                               # (20, 20, 48)
    padded = jnp.pad(patches, ((0, 0), (0, PITCH - CONV_N[0]), (0, 0)))    # (20, 21, 48)
    flat = padded.reshape(CONV_N[0] * PITCH, CONV_KKC[0])                  # (420, 48)
    return jnp.pad(flat, ((0, R_OUT[0] - CONV_N[0] * PITCH), (0, 0)))      # (456, 48)


def model_forward(params_k, x_nchw, h_p, c_p, h_m, c_m, u):
    x_cols = _conv1_im2col(x_nchw)

    # pack uniform sample + hidden state into one (8,128) input slab
    st = jnp.zeros((8, 128), jnp.float32)
    st = st.at[0, 0].set(u.reshape(()))
    st = st.at[2, :NHPL].set(h_p.reshape(NHPL))
    st = st.at[3, :NHPL].set(c_p.reshape(NHPL))
    st = st.at[4, :NHML].set(h_m.reshape(NHML))
    st = st.at[5, :NHML].set(c_m.reshape(NHML))

    vmem = pl.BlockSpec(memory_space=pltpu.MemorySpace.VMEM)
    slab = pl.pallas_call(
        model_fwd_kernel,
        out_shape=jax.ShapeDtypeStruct((8, 128), jnp.float32),
        in_specs=[vmem, vmem, vmem, vmem],
        out_specs=vmem,
        scratch_shapes=[
            pltpu.VMEM((R_OUT[0], 32), jnp.float32),   # conv1 activation
            pltpu.VMEM((R_OUT[1], 32), jnp.float32),   # conv2 activation
            pltpu.VMEM((R_OUT[2], 32), jnp.float32),   # conv3 activation
            pltpu.VMEM((R_OUT[3], 32), jnp.float32),   # conv4 activation
            pltpu.VMEM((R_OUT[1], CONV_KKC[1]), jnp.float32),   # shared im2col LHS
            pltpu.VMEM((8, 128), jnp.float32),         # small-matmul staging rows
        ],
    )(x_cols, params_k['cw'], params_k['pw'], st)

    logw = jnp.stack([slab[6, 0:Z_SIZE], slab[6, Z_SIZE:2 * Z_SIZE]], axis=1)
    mean = jnp.stack([slab[6, 2 * Z_SIZE:3 * Z_SIZE], slab[6, 3 * Z_SIZE:4 * Z_SIZE]], axis=1)
    logstd = jnp.stack([slab[6, 4 * Z_SIZE:5 * Z_SIZE], slab[6, 5 * Z_SIZE:6 * Z_SIZE]], axis=1)

    return {
        'action': jnp.round(slab[0, 3]).astype(jnp.int32).reshape(1, 1),
        'v': slab[0:1, 0:1],
        'entropy': slab[0:1, 1:2],
        'log_prob_action': slab[0:1, 2:3],
        'prob': slab[0:1, 4:6],
        'action_onehot': slab[0:1, 6:8],
        'z': slab[1:2, 0:Z_SIZE],
        'h_policy': slab[2:3, 0:NHPL],
        'c_policy': slab[3:4, 0:NHPL],
        'h_model': slab[4:5, 0:NHML],
        'c_model': slab[5:6, 0:NHML],
        # PyTorch get_mdn_coef shapes: (z_size, num_mix)
        'logweight_mdn': logw, 'mean_mdn': mean, 'logstd_mdn': logstd,
    }


if __name__ == "__main__":
    # the in-kernel multinomial sample (u >= prob[:, 0:1]) is only valid for 2 actions
    assert NUM_OUTPUTS == 2

    key = jax.random.PRNGKey(0)
    k_param, k_x, k_u = jax.random.split(key, 3)

    params_t = init_params(k_param)          # torch-layout, deterministic
    params_k = to_kernel_params(params_t)    # packed kernel slabs (glue)

    # normalized 42x42 RGB frame, NCHW, batch 1 (hidden state assumes batch 1)
    x = jax.random.uniform(k_x, (1, NUM_INPUTS, IMG, IMG), jnp.float32)
    h_p = jnp.zeros((1, NHPL), jnp.float32)
    c_p = jnp.zeros((1, NHPL), jnp.float32)
    h_m = jnp.zeros((1, NHML), jnp.float32)
    c_m = jnp.zeros((1, NHML), jnp.float32)
    u = jax.random.uniform(k_u, (1, 1), jnp.float32)   # uniform for multinomial sample

    fwd = jax.jit(model_forward)
    out = fwd(params_k, x, h_p, c_p, h_m, c_m, u)
    out = jax.block_until_ready(out)

    print("KERNEL_OK")
</pallas_src>

<mosaic_0001>
module attributes {stable_mosaic.version = 11 : i64} {
  func.func @model_fwd_kernel(%arg0: memref<456x48xf32, #tpu.memory_space<vmem>>, %arg1: memref<512x128xf32, #tpu.memory_space<vmem>>, %arg2: memref<312x128xf32, #tpu.memory_space<vmem>>, %arg3: memref<8x128xf32, #tpu.memory_space<vmem>>, %arg4: memref<8x128xf32, #tpu.memory_space<vmem>>, %arg5: memref<456x32xf32, #tpu.memory_space<vmem>>, %arg6: memref<192x32xf32, #tpu.memory_space<vmem>>, %arg7: memref<72x32xf32, #tpu.memory_space<vmem>>, %arg8: memref<24x32xf32, #tpu.memory_space<vmem>>, %arg9: memref<192x512xf32, #tpu.memory_space<vmem>>, %arg10: memref<8x128xf32, #tpu.memory_space<vmem>>) attributes {dimension_semantics = [], scalar_prefetch = 0 : i64, scratch_operands = 6 : i64, tpu.core_type = #tpu.core_type<tc>} {
    %c0 = arith.constant 0 : index
    %c0_0 = arith.constant 0 : index
    %0 = vector.load %arg0[%c0, %c0_0] : memref<456x48xf32, #tpu.memory_space<vmem>>, vector<152x48xf32>
    %c0_1 = arith.constant 0 : index
    %c96 = arith.constant 96 : index
    %1 = vector.load %arg1[%c0_1, %c96] : memref<512x128xf32, #tpu.memory_space<vmem>>, vector<48x32xf32>
    %cst = arith.constant dense<0.000000e+00> : vector<152x32xf32>
    %2 = tpu.matmul %0, %1, %cst {dimension_numbers = #tpu.dot_dimension_numbers<[1], [0], [0], [1], [0, 0, 1, 1], [], []>} : vector<152x48xf32>, vector<48x32xf32>, vector<152x32xf32> -> vector<152x32xf32>
    %c301 = arith.constant 301 : index
    %c0_2 = arith.constant 0 : index
    %3 = vector.load %arg2[%c301, %c0_2] : memref<312x128xf32, #tpu.memory_space<vmem>>, vector<1x32xf32>
    %4 = vector.broadcast %3 : vector<1x32xf32> to vector<152x32xf32>
    %5 = arith.addf %2, %4 : vector<152x32xf32>
    %cst_3 = arith.constant 0.000000e+00 : f32
    %6 = vector.broadcast %cst_3 : f32 to vector<152x32xf32>
    %7 = arith.maximumf %5, %6 : vector<152x32xf32>
    %c0_4 = arith.constant 0 : index
    %c0_5 = arith.constant 0 : index
    %8 = vector.load %arg5[%c0_4, %c0_5] : memref<456x32xf32, #tpu.memory_space<vmem>>, vector<152x32xf32>
    tpu.vector_store %arg5[%c0_4, %c0_5], %7 {strides = array<i32>} : memref<456x32xf32, #tpu.memory_space<vmem>>, vector<152x32xf32>,
    %c152 = arith.constant 152 : index
    %c0_6 = arith.constant 0 : index
    %9 = vector.load %arg0[%c152, %c0_6] : memref<456x48xf32, #tpu.memory_space<vmem>>, vector<152x48xf32>
    %c0_7 = arith.constant 0 : index
    %c96_8 = arith.constant 96 : index
    %10 = vector.load %arg1[%c0_7, %c96_8] : memref<512x128xf32, #tpu.memory_space<vmem>>, vector<48x32xf32>
    %cst_9 = arith.constant dense<0.000000e+00> : vector<152x32xf32>
    %11 = tpu.matmul %9, %10, %cst_9 {dimension_numbers = #tpu.dot_dimension_numbers<[1], [0], [0], [1], [0, 0, 1, 1], [], []>} : vector<152x48xf32>, vector<48x32xf32>, vector<152x32xf32> -> vector<152x32xf32>
    %c301_10 = arith.constant 301 : index
    %c0_11 = arith.constant 0 : index
    %12 = vector.load %arg2[%c301_10, %c0_11] : memref<312x128xf32, #tpu.memory_space<vmem>>, vector<1x32xf32>
    %13 = vector.broadcast %12 : vector<1x32xf32> to vector<152x32xf32>
    %14 = arith.addf %11, %13 : vector<152x32xf32>
    %cst_12 = arith.constant 0.000000e+00 : f32
    %15 = vector.broadcast %cst_12 : f32 to vector<152x32xf32>
    %16 = arith.maximumf %14, %15 : vector<152x32xf32>
    %c152_13 = arith.constant 152 : index
    %c0_14 = arith.constant 0 : index
    %17 = vector.load %arg5[%c152_13, %c0_14] : memref<456x32xf32, #tpu.memory_space<vmem>>, vector<152x32xf32>
    tpu.vector_store %arg5[%c152_13, %c0_14], %16 {strides = array<i32>} : memref<456x32xf32, #tpu.memory_space<vmem>>, vector<152x32xf32>,
    %c304 = arith.constant 304 : index
    %c0_15 = arith.constant 0 : index
    %18 = vector.load %arg0[%c304, %c0_15] : memref<456x48xf32, #tpu.memory_space<vmem>>, vector<152x48xf32>
    %c0_16 = arith.constant 0 : index
    %c96_17 = arith.constant 96 : index
    %19 = vector.load %arg1[%c0_16, %c96_17] : memref<512x128xf32, #tpu.memory_space<vmem>>, vector<48x32xf32>
    %cst_18 = arith.constant dense<0.000000e+00> : vector<152x32xf32>
    %20 = tpu.matmul %18, %19, %cst_18 {dimension_numbers = #tpu.dot_dimension_numbers<[1], [0], [0], [1], [0, 0, 1, 1], [], []>} : vector<152x48xf32>, vector<48x32xf32>, vector<152x32xf32> -> vector<152x32xf32>
    %c301_19 = arith.constant 301 : index
    %c0_20 = arith.constant 0 : index
    %21 = vector.load %arg2[%c301_19, %c0_20] : memref<312x128xf32, #tpu.memory_space<vmem>>, vector<1x32xf32>
    %22 = vector.broadcast %21 : vector<1x32xf32> to vector<152x32xf32>
    %23 = arith.addf %20, %22 : vector<152x32xf32>
    %cst_21 = arith.constant 0.000000e+00 : f32
    %24 = vector.broadcast %cst_21 : f32 to vector<152x32xf32>
    %25 = arith.maximumf %23, %24 : vector<152x32xf32>
    %c304_22 = arith.constant 304 : index
    %c0_23 = arith.constant 0 : index
    %26 = vector.load %arg5[%c304_22, %c0_23] : memref<456x32xf32, #tpu.memory_space<vmem>>, vector<152x32xf32>
    tpu.vector_store %arg5[%c304_22, %c0_23], %25 {strides = array<i32>} : memref<456x32xf32, #tpu.memory_space<vmem>>, vector<152x32xf32>,
    %c0_24 = arith.constant 0 : index
    %c0_25 = arith.constant 0 : index
    %27 = tpu.strided_load %arg5[%c0_24, %c0_25] {strides = array<i32: 2, 1>} : memref<456x32xf32, #tpu.memory_space<vmem>>, vector<192x32xf32>
    %c0_26 = arith.constant 0 : index
    %c0_27 = arith.constant 0 : index
    %28 = vector.load %arg9[%c0_26, %c0_27] : memref<192x512xf32, #tpu.memory_space<vmem>>, vector<192x32xf32>
    tpu.vector_store %arg9[%c0_26, %c0_27], %27 {strides = array<i32>} : memref<192x512xf32, #tpu.memory_space<vmem>>, vector<192x32xf32>,
    %c1 = arith.constant 1 : index
    %c0_28 = arith.constant 0 : index
    %29 = tpu.strided_load %arg5[%c1, %c0_28] {strides = array<i32: 2, 1>} : memref<456x32xf32, #tpu.memory_space<vmem>>, vector<192x32xf32>
    %c0_29 = arith.constant 0 : index
    %c32 = arith.constant 32 : index
    %30 = vector.load %arg9[%c0_29, %c32] : memref<192x512xf32, #tpu.memory_space<vmem>>, vector<192x32xf32>
    tpu.vector_store %arg9[%c0_29, %c32], %29 {strides = array<i32>} : memref<192x512xf32, #tpu.memory_space<vmem>>, vector<192x32xf32>,
    %c2 = arith.constant 2 : index
    %c0_30 = arith.constant 0 : index
    %31 = tpu.strided_load %arg5[%c2, %c0_30] {strides = array<i32: 2, 1>} : memref<456x32xf32, #tpu.memory_space<vmem>>, vector<192x32xf32>
    %c0_31 = arith.constant 0 : index
    %c64 = arith.constant 64 : index
    %32 = vector.load %arg9[%c0_31, %c64] : memref<192x512xf32, #tpu.memory_space<vmem>>, vector<192x32xf32>
    tpu.vector_store %arg9[%c0_31, %c64], %31 {strides = array<i32>} : memref<192x512xf32, #tpu.memory_space<vmem>>, vector<192x32xf32>,
    %c3 = arith.constant 3 : index
    %c0_32 = arith.constant 0 : index
    %33 = tpu.strided_load %arg5[%c3, %c0_32] {strides = array<i32: 2, 1>} : memref<456x32xf32, #tpu.memory_space<vmem>>, vector<192x32xf32>
    %c0_33 = arith.constant 0 : index
    %c96_34 = arith.constant 96 : index
    %34 = vector.load %arg9[%c0_33, %c96_34] : memref<192x512xf32, #tpu.memory_space<vmem>>, vector<192x32xf32>
    tpu.vector_store %arg9[%c0_33, %c96_34], %33 {strides = array<i32>} : memref<192x512xf32, #tpu.memory_space<vmem>>, vector<192x32xf32>,
    %c21 = arith.constant 21 : index
    %c0_35 = arith.constant 0 : index
    %35 = tpu.strided_load %arg5[%c21, %c0_35] {strides = array<i32: 2, 1>} : memref<456x32xf32, #tpu.memory_space<vmem>>, vector<192x32xf32>
    %c0_36 = arith.constant 0 : index
    %c128 = arith.constant 128 : index
    %36 = vector.load %arg9[%c0_36, %c128] : memref<192x512xf32, #tpu.memory_space<vmem>>, vector<192x32xf32>
    tpu.vector_store %arg9[%c0_36, %c128], %35 {strides = array<i32>} : memref<192x512xf32, #tpu.memory_space<vmem>>, vector<192x32xf32>,
    %c22 = arith.constant 22 : index
    %c0_37 = arith.constant 0 : index
    %37 = tpu.strided_load %arg5[%c22, %c0_37] {strides = array<i32: 2, 1>} : memref<456x32xf32, #tpu.memory_space<vmem>>, vector<192x32xf32>
    %c0_38 = arith.constant 0 : index
    %c160 = arith.constant 160 : index
    %38 = vector.load %arg9[%c0_38, %c160] : memref<192x512xf32, #tpu.memory_space<vmem>>, vector<192x32xf32>
    tpu.vector_store %arg9[%c0_38, %c160], %37 {strides = array<i32>} : memref<192x512xf32, #tpu.memory_space<vmem>>, vector<192x32xf32>,
    %c23 = arith.constant 23 : index
    %c0_39 = arith.constant 0 : index
    %39 = tpu.strided_load %arg5[%c23, %c0_39] {strides = array<i32: 2, 1>} : memref<456x32xf32, #tpu.memory_space<vmem>>, vector<192x32xf32>
    %c0_40 = arith.constant 0 : index
    %c192 = arith.constant 192 : index
    %40 = vector.load %arg9[%c0_40, %c192] : memref<192x512xf32, #tpu.memory_space<vmem>>, vector<192x32xf32>
    tpu.vector_store %arg9[%c0_40, %c192], %39 {strides = array<i32>} : memref<192x512xf32, #tpu.memory_space<vmem>>, vector<192x32xf32>,
    %c24 = arith.constant 24 : index
    %c0_41 = arith.constant 0 : index
    %41 = tpu.strided_load %arg5[%c24, %c0_41] {strides = array<i32: 2, 1>} : memref<456x32xf32, #tpu.memory_space<vmem>>, vector<192x32xf32>
    %c0_42 = arith.constant 0 : index
    %c224 = arith.constant 224 : index
    %42 = vector.load %arg9[%c0_42, %c224] : memref<192x512xf32, #tpu.memory_space<vmem>>, vector<192x32xf32>
    tpu.vector_store %arg9[%c0_42, %c224], %41 {strides = array<i32>} : memref<192x512xf32, #tpu.memory_space<vmem>>, vector<192x32xf32>,
    %c42 = arith.constant 42 : index
    %c0_43 = arith.constant 0 : index
    %43 = tpu.strided_load %arg5[%c42, %c0_43] {strides = array<i32: 2, 1>} : memref<456x32xf32, #tpu.memory_space<vmem>>, vector<192x32xf32>
    %c0_44 = arith.constant 0 : index
    %c256 = arith.constant 256 : index
    %44 = vector.load %arg9[%c0_44, %c256] : memref<192x512xf32, #tpu.memory_space<vmem>>, vector<192x32xf32>
    tpu.vector_store %arg9[%c0_44, %c256], %43 {strides = array<i32>} : memref<192x512xf32, #tpu.memory_space<vmem>>, vector<192x32xf32>,
    %c43 = arith.constant 43 : index
    %c0_45 = arith.constant 0 : index
    %45 = tpu.strided_load %arg5[%c43, %c0_45] {strides = array<i32: 2, 1>} : memref<456x32xf32, #tpu.memory_space<vmem>>, vector<192x32xf32>
    %c0_46 = arith.constant 0 : index
    %c288 = arith.constant 288 : index
    %46 = vector.load %arg9[%c0_46, %c288] : memref<192x512xf32, #tpu.memory_space<vmem>>, vector<192x32xf32>
    tpu.vector_store %arg9[%c0_46, %c288], %45 {strides = array<i32>} : memref<192x512xf32, #tpu.memory_space<vmem>>, vector<192x32xf32>,
    %c44 = arith.constant 44 : index
    %c0_47 = arith.constant 0 : index
    %47 = tpu.strided_load %arg5[%c44, %c0_47] {strides = array<i32: 2, 1>} : memref<456x32xf32, #tpu.memory_space<vmem>>, vector<192x32xf32>
    %c0_48 = arith.constant 0 : index
    %c320 = arith.constant 320 : index
    %48 = vector.load %arg9[%c0_48, %c320] : memref<192x512xf32, #tpu.memory_space<vmem>>, vector<192x32xf32>
    tpu.vector_store %arg9[%c0_48, %c320], %47 {strides = array<i32>} : memref<192x512xf32, #tpu.memory_space<vmem>>, vector<192x32xf32>,
    %c45 = arith.constant 45 : index
    %c0_49 = arith.constant 0 : index
    %49 = tpu.strided_load %arg5[%c45, %c0_49] {strides = array<i32: 2, 1>} : memref<456x32xf32, #tpu.memory_space<vmem>>, vector<192x32xf32>
    %c0_50 = arith.constant 0 : index
    %c352 = arith.constant 352 : index
    %50 = vector.load %arg9[%c0_50, %c352] : memref<192x512xf32, #tpu.memory_space<vmem>>, vector<192x32xf32>
    tpu.vector_store %arg9[%c0_50, %c352], %49 {strides = array<i32>} : memref<192x512xf32, #tpu.memory_space<vmem>>, vector<192x32xf32>,
    %c63 = arith.constant 63 : index
    %c0_51 = arith.constant 0 : index
    %51 = tpu.strided_load %arg5[%c63, %c0_51] {strides = array<i32: 2, 1>} : memref<456x32xf32, #tpu.memory_space<vmem>>, vector<192x32xf32>
    %c0_52 = arith.constant 0 : index
    %c384 = arith.constant 384 : index
    %52 = vector.load %arg9[%c0_52, %c384] : memref<192x512xf32, #tpu.memory_space<vmem>>, vector<192x32xf32>
    tpu.vector_store %arg9[%c0_52, %c384], %51 {strides = array<i32>} : memref<192x512xf32, #tpu.memory_space<vmem>>, vector<192x32xf32>,
    %c64_53 = arith.constant 64 : index
    %c0_54 = arith.constant 0 : index
    %53 = tpu.strided_load %arg5[%c64_53, %c0_54] {strides = array<i32: 2, 1>} : memref<456x32xf32, #tpu.memory_space<vmem>>, vector<192x32xf32>
    %c0_55 = arith.constant 0 : index
    %c416 = arith.constant 416 : index
    %54 = vector.load %arg9[%c0_55, %c416] : memref<192x512xf32, #tpu.memory_space<vmem>>, vector<192x32xf32>
    tpu.vector_store %arg9[%c0_55, %c416], %53 {strides = array<i32>} : memref<192x512xf32, #tpu.memory_space<vmem>>, vector<192x32xf32>,
    %c65 = arith.constant 65 : index
    %c0_56 = arith.constant 0 : index
    %55 = tpu.strided_load %arg5[%c65, %c0_56] {strides = array<i32: 2, 1>} : memref<456x32xf32, #tpu.memory_space<vmem>>, vector<192x32xf32>
    %c0_57 = arith.constant 0 : index
    %c448 = arith.constant 448 : index
    %56 = vector.load %arg9[%c0_57, %c448] : memref<192x512xf32, #tpu.memory_space<vmem>>, vector<192x32xf32>
    tpu.vector_store %arg9[%c0_57, %c448], %55 {strides = array<i32>} : memref<192x512xf32, #tpu.memory_space<vmem>>, vector<192x32xf32>,
    %c66 = arith.constant 66 : index
    %c0_58 = arith.constant 0 : index
    %57 = tpu.strided_load %arg5[%c66, %c0_58] {strides = array<i32: 2, 1>} : memref<456x32xf32, #tpu.memory_space<vmem>>, vector<192x32xf32>
    %c0_59 = arith.constant 0 : index
    %c480 = arith.constant 480 : index
    %58 = vector.load %arg9[%c0_59, %c480] : memref<192x512xf32, #tpu.memory_space<vmem>>, vector<192x32xf32>
    tpu.vector_store %arg9[%c0_59, %c480], %57 {strides = array<i32>} : memref<192x512xf32, #tpu.memory_space<vmem>>, vector<192x32xf32>,
    %c0_60 = arith.constant 0 : index
    %c0_61 = arith.constant 0 : index
    %59 = vector.load %arg9[%c0_60, %c0_61] : memref<192x512xf32, #tpu.memory_space<vmem>>, vector<96x512xf32>
    %c0_62 = arith.constant 0 : index
    %c0_63 = arith.constant 0 : index
    %60 = vector.load %arg1[%c0_62, %c0_63] : memref<512x128xf32, #tpu.memory_space<vmem>>, vector<512x32xf32>
    %cst_64 = arith.constant dense<0.000000e+00> : vector<96x32xf32>
    %61 = tpu.matmul %59, %60, %cst_64 {dimension_numbers = #tpu.dot_dimension_numbers<[1], [0], [0], [1], [0, 0, 1, 1], [], []>} : vector<96x512xf32>, vector<512x32xf32>, vector<96x32xf32> -> vector<96x32xf32>
    %c302 = arith.constant 302 : index
    %c0_65 = arith.constant 0 : index
    %62 = vector.load %arg2[%c302, %c0_65] : memref<312x128xf32, #tpu.memory_space<vmem>>, vector<1x32xf32>
    %63 = vector.broadcast %62 : vector<1x32xf32> to vector<96x32xf32>
    %64 = arith.addf %61, %63 : vector<96x32xf32>
    %cst_66 = arith.constant 0.000000e+00 : f32
    %65 = vector.broadcast %cst_66 : f32 to vector<96x32xf32>
    %66 = arith.maximumf %64, %65 : vector<96x32xf32>
    %c0_67 = arith.constant 0 : index
    %c0_68 = arith.constant 0 : index
    %67 = vector.load %arg6[%c0_67, %c0_68] : memref<192x32xf32, #tpu.memory_space<vmem>>, vector<96x32xf32>
    tpu.vector_store %arg6[%c0_67, %c0_68], %66 {strides = array<i32>} : memref<192x32xf32, #tpu.memory_space<vmem>>, vector<96x32xf32>,
    %c96_69 = arith.constant 96 : index
    %c0_70 = arith.constant 0 : index
    %68 = vector.load %arg9[%c96_69, %c0_70] : memref<192x512xf32, #tpu.memory_space<vmem>>, vector<96x512xf32>
    %c0_71 = arith.constant 0 : index
    %c0_72 = arith.constant 0 : index
    %69 = vector.load %arg1[%c0_71, %c0_72] : memref<512x128xf32, #tpu.memory_space<vmem>>, vector<512x32xf32>
    %cst_73 = arith.constant dense<0.000000e+00> : vector<96x32xf32>
    %70 = tpu.matmul %68, %69, %cst_73 {dimension_numbers = #tpu.dot_dimension_numbers<[1], [0], [0], [1], [0, 0, 1, 1], [], []>} : vector<96x512xf32>, vector<512x32xf32>, vector<96x32xf32> -> vector<96x32xf32>
    %c302_74 = arith.constant 302 : index
    %c0_75 = arith.constant 0 : index
    %71 = vector.load %arg2[%c302_74, %c0_75] : memref<312x128xf32, #tpu.memory_space<vmem>>, vector<1x32xf32>
    %72 = vector.broadcast %71 : vector<1x32xf32> to vector<96x32xf32>
    %73 = arith.addf %70, %72 : vector<96x32xf32>
    %cst_76 = arith.constant 0.000000e+00 : f32
    %74 = vector.broadcast %cst_76 : f32 to vector<96x32xf32>
    %75 = arith.maximumf %73, %74 : vector<96x32xf32>
    %c96_77 = arith.constant 96 : index
    %c0_78 = arith.constant 0 : index
    %76 = vector.load %arg6[%c96_77, %c0_78] : memref<192x32xf32, #tpu.memory_space<vmem>>, vector<96x32xf32>
    tpu.vector_store %arg6[%c96_77, %c0_78], %75 {strides = array<i32>} : memref<192x32xf32, #tpu.memory_space<vmem>>, vector<96x32xf32>,
    %c0_79 = arith.constant 0 : index
    %c0_80 = arith.constant 0 : index
    %77 = tpu.strided_load %arg6[%c0_79, %c0_80] {strides = array<i32: 2, 1>} : memref<192x32xf32, #tpu.memory_space<vmem>>, vector<72x32xf32>
    %c0_81 = arith.constant 0 : index
    %c0_82 = arith.constant 0 : index
    %78 = vector.load %arg9[%c0_81, %c0_82] : memref<192x512xf32, #tpu.memory_space<vmem>>, vector<72x32xf32>
    tpu.vector_store %arg9[%c0_81, %c0_82], %77 {strides = array<i32>} : memref<192x512xf32, #tpu.memory_space<vmem>>, vector<72x32xf32>,
    %c1_83 = arith.constant 1 : index
    %c0_84 = arith.constant 0 : index
    %79 = tpu.strided_load %arg6[%c1_83, %c0_84] {strides = array<i32: 2, 1>} : memref<192x32xf32, #tpu.memory_space<vmem>>, vector<72x32xf32>
    %c0_85 = arith.constant 0 : index
    %c32_86 = arith.constant 32 : index
    %80 = vector.load %arg9[%c0_85, %c32_86] : memref<192x512xf32, #tpu.memory_space<vmem>>, vector<72x32xf32>
    tpu.vector_store %arg9[%c0_85, %c32_86], %79 {strides = array<i32>} : memref<192x512xf32, #tpu.memory_space<vmem>>, vector<72x32xf32>,
    %c2_87 = arith.constant 2 : index
    %c0_88 = arith.constant 0 : index
    %81 = tpu.strided_load %arg6[%c2_87, %c0_88] {strides = array<i32: 2, 1>} : memref<192x32xf32, #tpu.memory_space<vmem>>, vector<72x32xf32>
    %c0_89 = arith.constant 0 : index
    %c64_90 = arith.constant 64 : index
    %82 = vector.load %arg9[%c0_89, %c64_90] : memref<192x512xf32, #tpu.memory_space<vmem>>, vector<72x32xf32>
    tpu.vector_store %arg9[%c0_89, %c64_90], %81 {strides = array<i32>} : memref<192x512xf32, #tpu.memory_space<vmem>>, vector<72x32xf32>,
    %c21_91 = arith.constant 21 : index
    %c0_92 = arith.constant 0 : index
    %83 = tpu.strided_load %arg6[%c21_91, %c0_92] {strides = array<i32: 2, 1>} : memref<192x32xf32, #tpu.memory_space<vmem>>, vector<72x32xf32>
    %c0_93 = arith.constant 0 : index
    %c96_94 = arith.constant 96 : index
    %84 = vector.load %arg9[%c0_93, %c96_94] : memref<192x512xf32, #tpu.memory_space<vmem>>, vector<72x32xf32>
    tpu.vector_store %arg9[%c0_93, %c96_94], %83 {strides = array<i32>} : memref<192x512xf32, #tpu.memory_space<vmem>>, vector<72x32xf32>,
    %c22_95 = arith.constant 22 : index
    %c0_96 = arith.constant 0 : index
    %85 = tpu.strided_load %arg6[%c22_95, %c0_96] {strides = array<i32: 2, 1>} : memref<192x32xf32, #tpu.memory_space<vmem>>, vector<72x32xf32>
    %c0_97 = arith.constant 0 : index
    %c128_98 = arith.constant 128 : index
    %86 = vector.load %arg9[%c0_97, %c128_98] : memref<192x512xf32, #tpu.memory_space<vmem>>, vector<72x32xf32>
    tpu.vector_store %arg9[%c0_97, %c128_98], %85 {strides = array<i32>} : memref<192x512xf32, #tpu.memory_space<vmem>>, vector<72x32xf32>,
    %c23_99 = arith.constant 23 : index
    %c0_100 = arith.constant 0 : index
    %87 = tpu.strided_load %arg6[%c23_99, %c0_100] {strides = array<i32: 2, 1>} : memref<192x32xf32, #tpu.memory_space<vmem>>, vector<72x32xf32>
    %c0_101 = arith.constant 0 : index
    %c160_102 = arith.constant 160 : index
    %88 = vector.load %arg9[%c0_101, %c160_102] : memref<192x512xf32, #tpu.memory_space<vmem>>, vector<72x32xf32>
    tpu.vector_store %arg9[%c0_101, %c160_102], %87 {strides = array<i32>} : memref<192x512xf32, #tpu.memory_space<vmem>>, vector<72x32xf32>,
    %c42_103 = arith.constant 42 : index
    %c0_104 = arith.constant 0 : index
    %89 = tpu.strided_load %arg6[%c42_103, %c0_104] {strides = array<i32: 2, 1>} : memref<192x32xf32, #tpu.memory_space<vmem>>, vector<72x32xf32>
    %c0_105 = arith.constant 0 : index
    %c192_106 = arith.constant 192 : index
    %90 = vector.load %arg9[%c0_105, %c192_106] : memref<192x512xf32, #tpu.memory_space<vmem>>, vector<72x32xf32>
    tpu.vector_store %arg9[%c0_105, %c192_106], %89 {strides = array<i32>} : memref<192x512xf32, #tpu.memory_space<vmem>>, vector<72x32xf32>,
    %c43_107 = arith.constant 43 : index
    %c0_108 = arith.constant 0 : index
    %91 = tpu.strided_load %arg6[%c43_107, %c0_108] {strides = array<i32: 2, 1>} : memref<192x32xf32, #tpu.memory_space<vmem>>, vector<72x32xf32>
    %c0_109 = arith.constant 0 : index
    %c224_110 = arith.constant 224 : index
    %92 = vector.load %arg9[%c0_109, %c224_110] : memref<192x512xf32, #tpu.memory_space<vmem>>, vector<72x32xf32>
    tpu.vector_store %arg9[%c0_109, %c224_110], %91 {strides = array<i32>} : memref<192x512xf32, #tpu.memory_space<vmem>>, vector<72x32xf32>,
    %c44_111 = arith.constant 44 : index
    %c0_112 = arith.constant 0 : index
    %93 = tpu.strided_load %arg6[%c44_111, %c0_112] {strides = array<i32: 2, 1>} : memref<192x32xf32, #tpu.memory_space<vmem>>, vector<72x32xf32>
    %c0_113 = arith.constant 0 : index
    %c256_114 = arith.constant 256 : index
    %94 = vector.load %arg9[%c0_113, %c256_114] : memref<192x512xf32, #tpu.memory_space<vmem>>, vector<72x32xf32>
    tpu.vector_store %arg9[%c0_113, %c256_114], %93 {strides = array<i32>} : memref<192x512xf32, #tpu.memory_space<vmem>>, vector<72x32xf32>,
    %c0_115 = arith.constant 0 : index
    %c0_116 = arith.constant 0 : index
    %95 = vector.load %arg9[%c0_115, %c0_116] : memref<192x512xf32, #tpu.memory_space<vmem>>, vector<72x288xf32>
    %c0_117 = arith.constant 0 : index
    %c32_118 = arith.constant 32 : index
    %96 = vector.load %arg1[%c0_117, %c32_118] : memref<512x128xf32, #tpu.memory_space<vmem>>, vector<288x32xf32>
    %cst_119 = arith.constant dense<0.000000e+00> : vector<72x32xf32>
    %97 = tpu.matmul %95, %96, %cst_119 {dimension_numbers = #tpu.dot_dimension_numbers<[1], [0], [0], [1], [0, 0, 1, 1], [], []>} : vector<72x288xf32>, vector<288x32xf32>, vector<72x32xf32> -> vector<72x32xf32>
    %c303 = arith.constant 303 : index
    %c0_120 = arith.constant 0 : index
    %98 = vector.load %arg2[%c303, %c0_120] : memref<312x128xf32, #tpu.memory_space<vmem>>, vector<1x32xf32>
    %99 = vector.broadcast %98 : vector<1x32xf32> to vector<72x32xf32>
    %100 = arith.addf %97, %99 : vector<72x32xf32>
    %cst_121 = arith.constant 0.000000e+00 : f32
    %101 = vector.broadcast %cst_121 : f32 to vector<72x32xf32>
    %102 = arith.maximumf %100, %101 : vector<72x32xf32>
    %c0_122 = arith.constant 0 : index
    %c0_123 = arith.constant 0 : index
    %103 = vector.load %arg7[%c0_122, %c0_123] : memref<72x32xf32, #tpu.memory_space<vmem>>, vector<72x32xf32>
    tpu.vector_store %arg7[%c0_122, %c0_123], %102 {strides = array<i32>} : memref<72x32xf32, #tpu.memory_space<vmem>>, vector<72x32xf32>,
    %c0_124 = arith.constant 0 : index
    %c0_125 = arith.constant 0 : index
    %104 = tpu.strided_load %arg7[%c0_124, %c0_125] {strides = array<i32: 2, 1>} : memref<72x32xf32, #tpu.memory_space<vmem>>, vector<24x32xf32>
    %c0_126 = arith.constant 0 : index
    %c0_127 = arith.constant 0 : index
    %105 = vector.load %arg9[%c0_126, %c0_127] : memref<192x512xf32, #tpu.memory_space<vmem>>, vector<24x32xf32>
    tpu.vector_store %arg9[%c0_126, %c0_127], %104 {strides = array<i32>} : memref<192x512xf32, #tpu.memory_space<vmem>>, vector<24x32xf32>,
    %c1_128 = arith.constant 1 : index
    %c0_129 = arith.constant 0 : index
    %106 = tpu.strided_load %arg7[%c1_128, %c0_129] {strides = array<i32: 2, 1>} : memref<72x32xf32, #tpu.memory_space<vmem>>, vector<24x32xf32>
    %c0_130 = arith.constant 0 : index
    %c32_131 = arith.constant 32 : index
    %107 = vector.load %arg9[%c0_130, %c32_131] : memref<192x512xf32, #tpu.memory_space<vmem>>, vector<24x32xf32>
    tpu.vector_store %arg9[%c0_130, %c32_131], %106 {strides = array<i32>} : memref<192x512xf32, #tpu.memory_space<vmem>>, vector<24x32xf32>,
    %c21_132 = arith.constant 21 : index
    %c0_133 = arith.constant 0 : index
    %108 = tpu.strided_load %arg7[%c21_132, %c0_133] {strides = array<i32: 2, 1>} : memref<72x32xf32, #tpu.memory_space<vmem>>, vector<24x32xf32>
    %c0_134 = arith.constant 0 : index
    %c64_135 = arith.constant 64 : index
    %109 = vector.load %arg9[%c0_134, %c64_135] : memref<192x512xf32, #tpu.memory_space<vmem>>, vector<24x32xf32>
    tpu.vector_store %arg9[%c0_134, %c64_135], %108 {strides = array<i32>} : memref<192x512xf32, #tpu.memory_space<vmem>>, vector<24x32xf32>,
    %c22_136 = arith.constant 22 : index
    %c0_137 = arith.constant 0 : index
    %110 = tpu.strided_load %arg7[%c22_136, %c0_137] {strides = array<i32: 2, 1>} : memref<72x32xf32, #tpu.memory_space<vmem>>, vector<24x32xf32>
    %c0_138 = arith.constant 0 : index
    %c96_139 = arith.constant 96 : index
    %111 = vector.load %arg9[%c0_138, %c96_139] : memref<192x512xf32, #tpu.memory_space<vmem>>, vector<24x32xf32>
    tpu.vector_store %arg9[%c0_138, %c96_139], %110 {strides = array<i32>} : memref<192x512xf32, #tpu.memory_space<vmem>>, vector<24x32xf32>,
    %c0_140 = arith.constant 0 : index
    %c0_141 = arith.constant 0 : index
    %112 = vector.load %arg9[%c0_140, %c0_141] : memref<192x512xf32, #tpu.memory_space<vmem>>, vector<24x128xf32>
    %c0_142 = arith.constant 0 : index
    %c64_143 = arith.constant 64 : index
    %113 = vector.load %arg1[%c0_142, %c64_143] : memref<512x128xf32, #tpu.memory_space<vmem>>, vector<128x32xf32>
    %cst_144 = arith.constant dense<0.000000e+00> : vector<24x32xf32>
    %114 = tpu.matmul %112, %113, %cst_144 {dimension_numbers = #tpu.dot_dimension_numbers<[1], [0], [0], [1], [0, 0, 1, 1], [], []>} : vector<24x128xf32>, vector<128x32xf32>, vector<24x32xf32> -> vector<24x32xf32>
    %c304_145 = arith.constant 304 : index
    %c0_146 = arith.constant 0 : index
    %115 = vector.load %arg2[%c304_145, %c0_146] : memref<312x128xf32, #tpu.memory_space<vmem>>, vector<1x32xf32>
    %116 = vector.broadcast %115 : vector<1x32xf32> to vector<24x32xf32>
    %117 = arith.addf %114, %116 : vector<24x32xf32>
    %cst_147 = arith.constant 0.000000e+00 : f32
    %118 = vector.broadcast %cst_147 : f32 to vector<24x32xf32>
    %119 = arith.maximumf %117, %118 : vector<24x32xf32>
    %c0_148 = arith.constant 0 : index
    %c0_149 = arith.constant 0 : index
    %120 = vector.load %arg8[%c0_148, %c0_149] : memref<24x32xf32, #tpu.memory_space<vmem>>, vector<24x32xf32>
    tpu.vector_store %arg8[%c0_148, %c0_149], %119 {strides = array<i32>} : memref<24x32xf32, #tpu.memory_space<vmem>>, vector<24x32xf32>,
    %c0_150 = arith.constant 0 : index
    %c0_151 = arith.constant 0 : index
    %121 = vector.load %arg8[%c0_150, %c0_151] : memref<24x32xf32, #tpu.memory_space<vmem>>, vector<1x32xf32>
    %c2_152 = arith.constant 2 : index
    %c0_153 = arith.constant 0 : index
    %122 = vector.load %arg10[%c2_152, %c0_153] : memref<8x128xf32, #tpu.memory_space<vmem>>, vector<1x32xf32>
    tpu.vector_store %arg10[%c2_152, %c0_153], %121 {strides = array<i32>} : memref<8x128xf32, #tpu.memory_space<vmem>>, vector<1x32xf32>,
    %c1_154 = arith.constant 1 : index
    %c0_155 = arith.constant 0 : index
    %123 = vector.load %arg8[%c1_154, %c0_155] : memref<24x32xf32, #tpu.memory_space<vmem>>, vector<1x32xf32>
    %c2_156 = arith.constant 2 : index
    %c32_157 = arith.constant 32 : index
    %124 = vector.load %arg10[%c2_156, %c32_157] : memref<8x128xf32, #tpu.memory_space<vmem>>, vector<1x32xf32>
    tpu.vector_store %arg10[%c2_156, %c32_157], %123 {strides = array<i32>} : memref<8x128xf32, #tpu.memory_space<vmem>>, vector<1x32xf32>,
    %c21_158 = arith.constant 21 : index
    %c0_159 = arith.constant 0 : index
    %125 = vector.load %arg8[%c21_158, %c0_159] : memref<24x32xf32, #tpu.memory_space<vmem>>, vector<1x32xf32>
    %c2_160 = arith.constant 2 : index
    %c64_161 = arith.constant 64 : index
    %126 = vector.load %arg10[%c2_160, %c64_161] : memref<8x128xf32, #tpu.memory_space<vmem>>, vector<1x32xf32>
    tpu.vector_store %arg10[%c2_160, %c64_161], %125 {strides = array<i32>} : memref<8x128xf32, #tpu.memory_space<vmem>>, vector<1x32xf32>,
    %c22_162 = arith.constant 22 : index
    %c0_163 = arith.constant 0 : index
    %127 = vector.load %arg8[%c22_162, %c0_163] : memref<24x32xf32, #tpu.memory_space<vmem>>, vector<1x32xf32>
    %c2_164 = arith.constant 2 : index
    %c96_165 = arith.constant 96 : index
    %128 = vector.load %arg10[%c2_164, %c96_165] : memref<8x128xf32, #tpu.memory_space<vmem>>, vector<1x32xf32>
    tpu.vector_store %arg10[%c2_164, %c96_165], %127 {strides = array<i32>} : memref<8x128xf32, #tpu.memory_space<vmem>>, vector<1x32xf32>,
    %c2_166 = arith.constant 2 : index
    %c0_167 = arith.constant 0 : index
    %129 = vector.load %arg10[%c2_166, %c0_167] : memref<8x128xf32, #tpu.memory_space<vmem>>, vector<1x128xf32>
    %c0_168 = arith.constant 0 : index
    %c0_169 = arith.constant 0 : index
    %130 = vector.load %arg2[%c0_168, %c0_169] : memref<312x128xf32, #tpu.memory_space<vmem>>, vector<128x16xf32>
    %cst_170 = arith.constant dense<0.000000e+00> : vector<1x16xf32>
    %131 = tpu.matmul %129, %130, %cst_170 {dimension_numbers = #tpu.dot_dimension_numbers<[1], [0], [0], [1], [0, 0, 1, 1], [], []>} : vector<1x128xf32>, vector<128x16xf32>, vector<1x16xf32> -> vector<1x16xf32>
    %c296 = arith.constant 296 : index
    %c0_171 = arith.constant 0 : index
    %132 = vector.load %arg2[%c296, %c0_171] : memref<312x128xf32, #tpu.memory_space<vmem>>, vector<1x16xf32>
    %133 = arith.addf %131, %132 : vector<1x16xf32>
    %c0_172 = arith.constant 0 : index
    %c0_173 = arith.constant 0 : index
    %134 = vector.load %arg3[%c0_172, %c0_173] : memref<8x128xf32, #tpu.memory_space<vmem>>, vector<1x1xf32>
    %c2_174 = arith.constant 2 : index
    %c0_175 = arith.constant 0 : index
    %135 = vector.load %arg3[%c2_174, %c0_175] : memref<8x128xf32, #tpu.memory_space<vmem>>, vector<1x16xf32>
    %c3_176 = arith.constant 3 : index
    %c0_177 = arith.constant 0 : index
    %136 = vector.load %arg3[%c3_176, %c0_177] : memref<8x128xf32, #tpu.memory_space<vmem>>, vector<1x16xf32>
    %c4 = arith.constant 4 : index
    %c0_178 = arith.constant 0 : index
    %137 = vector.load %arg3[%c4, %c0_178] : memref<8x128xf32, #tpu.memory_space<vmem>>, vector<1x32xf32>
    %c5 = arith.constant 5 : index
    %c0_179 = arith.constant 0 : index
    %138 = vector.load %arg3[%c5, %c0_179] : memref<8x128xf32, #tpu.memory_space<vmem>>, vector<1x32xf32>
    %c0_180 = arith.constant 0 : index
    %c0_181 = arith.constant 0 : index
    %139 = vector.load %arg10[%c0_180, %c0_181] : memref<8x128xf32, #tpu.memory_space<vmem>>, vector<1x16xf32>
    tpu.vector_store %arg10[%c0_180, %c0_181], %133 {strides = array<i32>} : memref<8x128xf32, #tpu.memory_space<vmem>>, vector<1x16xf32>,
    %c0_182 = arith.constant 0 : index
    %c16 = arith.constant 16 : index
    %140 = vector.load %arg10[%c0_182, %c16] : memref<8x128xf32, #tpu.memory_space<vmem>>, vector<1x32xf32>
    tpu.vector_store %arg10[%c0_182, %c16], %137 {strides = array<i32>} : memref<8x128xf32, #tpu.memory_space<vmem>>, vector<1x32xf32>,
    %c0_183 = arith.constant 0 : index
    %c48 = arith.constant 48 : index
    %141 = vector.load %arg10[%c0_183, %c48] : memref<8x128xf32, #tpu.memory_space<vmem>>, vector<1x16xf32>
    tpu.vector_store %arg10[%c0_183, %c48], %135 {strides = array<i32>} : memref<8x128xf32, #tpu.memory_space<vmem>>, vector<1x16xf32>,
    %c0_184 = arith.constant 0 : index
    %c0_185 = arith.constant 0 : index
    %142 = vector.load %arg10[%c0_184, %c0_185] : memref<8x128xf32, #tpu.memory_space<vmem>>, vector<1x64xf32>
    %c128_186 = arith.constant 128 : index
    %c0_187 = arith.constant 0 : index
    %143 = vector.load %arg2[%c128_186, %c0_187] : memref<312x128xf32, #tpu.memory_space<vmem>>, vector<64x64xf32>
    %cst_188 = arith.constant dense<0.000000e+00> : vector<1x64xf32>
    %144 = tpu.matmul %142, %143, %cst_188 {dimension_numbers = #tpu.dot_dimension_numbers<[1], [0], [0], [1], [0, 0, 1, 1], [], []>} : vector<1x64xf32>, vector<64x64xf32>, vector<1x64xf32> -> vector<1x64xf32>
    %c297 = arith.constant 297 : index
    %c0_189 = arith.constant 0 : index
    %145 = vector.load %arg2[%c297, %c0_189] : memref<312x128xf32, #tpu.memory_space<vmem>>, vector<1x64xf32>
    %146 = arith.addf %144, %145 : vector<1x64xf32>
    %147 = vector.extract_strided_slice %146 {offsets = [0, 0], sizes = [1, 16], strides = [1, 1]} : vector<1x64xf32> to vector<1x16xf32>
    %148 = arith.negf %147 : vector<1x16xf32>
    %149 = math.exp %148 : vector<1x16xf32>
    %cst_190 = arith.constant 1.000000e+00 : f32
    %150 = vector.broadcast %cst_190 : f32 to vector<1x16xf32>
    %151 = arith.addf %150, %149 : vector<1x16xf32>
    %152 = arith.divf %150, %151 : vector<1x16xf32>
    %153 = vector.extract_strided_slice %146 {offsets = [0, 16], sizes = [1, 16], strides = [1, 1]} : vector<1x64xf32> to vector<1x16xf32>
    %154 = arith.negf %153 : vector<1x16xf32>
    %155 = math.exp %154 : vector<1x16xf32>
    %cst_191 = arith.constant 1.000000e+00 : f32
    %156 = vector.broadcast %cst_191 : f32 to vector<1x16xf32>
    %157 = arith.addf %156, %155 : vector<1x16xf32>
    %158 = arith.divf %156, %157 : vector<1x16xf32>
    %159 = vector.extract_strided_slice %146 {offsets = [0, 32], sizes = [1, 16], strides = [1, 1]} : vector<1x64xf32> to vector<1x16xf32>
    %160 = math.tanh %159 : vector<1x16xf32>
    %161 = vector.extract_strided_slice %146 {offsets = [0, 48], sizes = [1, 16], strides = [1, 1]} : vector<1x64xf32> to vector<1x16xf32>
    %162 = arith.negf %161 : vector<1x16xf32>
    %163 = math.exp %162 : vector<1x16xf32>
    %cst_192 = arith.constant 1.000000e+00 : f32
    %164 = vector.broadcast %cst_192 : f32 to vector<1x16xf32>
    %165 = arith.addf %164, %163 : vector<1x16xf32>
    %166 = arith.divf %164, %165 : vector<1x16xf32>
    %167 = arith.mulf %158, %136 : vector<1x16xf32>
    %168 = arith.mulf %152, %160 : vector<1x16xf32>
    %169 = arith.addf %167, %168 : vector<1x16xf32>
    %170 = math.tanh %169 : vector<1x16xf32>
    %171 = arith.mulf %166, %170 : vector<1x16xf32>
    %c248 = arith.constant 248 : index
    %c0_193 = arith.constant 0 : index
    %172 = vector.load %arg2[%c248, %c0_193] : memref<312x128xf32, #tpu.memory_space<vmem>>, vector<16x3xf32>
    %cst_194 = arith.constant dense<0.000000e+00> : vector<1x3xf32>
    %173 = tpu.matmul %171, %172, %cst_194 {dimension_numbers = #tpu.dot_dimension_numbers<[1], [0], [0], [1], [0, 0, 1, 1], [], []>} : vector<1x16xf32>, vector<16x3xf32>, vector<1x3xf32> -> vector<1x3xf32>
    %c299 = arith.constant 299 : index
    %c0_195 = arith.constant 0 : index
    %174 = vector.load %arg2[%c299, %c0_195] : memref<312x128xf32, #tpu.memory_space<vmem>>, vector<1x3xf32>
    %175 = arith.addf %173, %174 : vector<1x3xf32>
    %176 = vector.extract_strided_slice %175 {offsets = [0, 0], sizes = [1, 1], strides = [1, 1]} : vector<1x3xf32> to vector<1x1xf32>
    %177 = vector.extract_strided_slice %175 {offsets = [0, 1], sizes = [1, 2], strides = [1, 1]} : vector<1x3xf32> to vector<1x2xf32>
    %cst_196 = arith.constant dense<0xFF800000> : vector<1xf32>
    %178 = vector.multi_reduction <maximumf>, %177, %cst_196 [1] : vector<1x2xf32> to vector<1xf32>
    %179 = vector.shape_cast %178 : vector<1xf32> to vector<1x1xf32>
    %180 = vector.broadcast %179 : vector<1x1xf32> to vector<1x2xf32>
    %181 = arith.subf %177, %180 : vector<1x2xf32>
    %182 = math.exp %181 : vector<1x2xf32>
    %cst_197 = arith.constant dense<0.000000e+00> : vector<1xf32>
    %183 = vector.multi_reduction <add>, %182, %cst_197 [1] : vector<1x2xf32> to vector<1xf32>
    %184 = vector.shape_cast %183 : vector<1xf32> to vector<1x1xf32>
    %185 = math.log %184 : vector<1x1xf32>
    %186 = vector.broadcast %185 : vector<1x1xf32> to vector<1x2xf32>
    %187 = arith.subf %181, %186 : vector<1x2xf32>
    %188 = math.exp %187 : vector<1x2xf32>
    %189 = vector.extract_strided_slice %188 {offsets = [0, 0], sizes = [1, 1], strides = [1, 1]} : vector<1x2xf32> to vector<1x1xf32>
    %190 = arith.cmpf oge, %134, %189 : vector<1x1xf32>
    %191 = arith.extui %190 : vector<1x1xi1> to vector<1x1xi32>
    %192 = tpu.iota {dimensions = array<i32: 1>} : vector<1x2xi32>
    %193 = vector.broadcast %191 : vector<1x1xi32> to vector<1x2xi32>
    %194 = arith.cmpi eq, %192, %193 : vector<1x2xi32>
    %195 = arith.extui %194 : vector<1x2xi1> to vector<1x2xi32>
    %196 = arith.sitofp %195 : vector<1x2xi32> to vector<1x2xf32>
    %197 = arith.mulf %187, %188 : vector<1x2xf32>
    %cst_198 = arith.constant dense<0.000000e+00> : vector<1xf32>
    %198 = vector.multi_reduction <add>, %197, %cst_198 [1] : vector<1x2xf32> to vector<1xf32>
    %199 = vector.shape_cast %198 : vector<1xf32> to vector<1x1xf32>
    %cst_199 = arith.constant 0.000000e+00 : f32
    %200 = vector.broadcast %cst_199 : f32 to vector<1x1xf32>
    %201 = arith.subf %200, %199 : vector<1x1xf32>
    %202 = arith.mulf %187, %196 : vector<1x2xf32>
    %cst_200 = arith.constant dense<0.000000e+00> : vector<1xf32>
    %203 = vector.multi_reduction <add>, %202, %cst_200 [1] : vector<1x2xf32> to vector<1xf32>
    %204 = vector.shape_cast %203 : vector<1xf32> to vector<1x1xf32>
    %c1_201 = arith.constant 1 : index
    %c0_202 = arith.constant 0 : index
    %205 = vector.load %arg10[%c1_201, %c0_202] : memref<8x128xf32, #tpu.memory_space<vmem>>, vector<1x16xf32>
    tpu.vector_store %arg10[%c1_201, %c0_202], %133 {strides = array<i32>} : memref<8x128xf32, #tpu.memory_space<vmem>>, vector<1x16xf32>,
    %c1_203 = arith.constant 1 : index
    %c16_204 = arith.constant 16 : index
    %206 = vector.load %arg10[%c1_203, %c16_204] : memref<8x128xf32, #tpu.memory_space<vmem>>, vector<1x2xf32>
    tpu.vector_store %arg10[%c1_203, %c16_204], %196 {strides = array<i32>} : memref<8x128xf32, #tpu.memory_space<vmem>>, vector<1x2xf32>,
    %c1_205 = arith.constant 1 : index
    %c18 = arith.constant 18 : index
    %207 = vector.load %arg10[%c1_205, %c18] : memref<8x128xf32, #tpu.memory_space<vmem>>, vector<1x32xf32>
    tpu.vector_store %arg10[%c1_205, %c18], %137 {strides = array<i32>} : memref<8x128xf32, #tpu.memory_space<vmem>>, vector<1x32xf32>,
    %c1_206 = arith.constant 1 : index
    %c0_207 = arith.constant 0 : index
    %208 = vector.load %arg10[%c1_206, %c0_207] : memref<8x128xf32, #tpu.memory_space<vmem>>, vector<1x50xf32>
    %c192_208 = arith.constant 192 : index
    %c0_209 = arith.constant 0 : index
    %209 = vector.load %arg2[%c192_208, %c0_209] : memref<312x128xf32, #tpu.memory_space<vmem>>, vector<50x128xf32>
    %cst_210 = arith.constant dense<0.000000e+00> : vector<1x128xf32>
    %210 = tpu.matmul %208, %209, %cst_210 {dimension_numbers = #tpu.dot_dimension_numbers<[1], [0], [0], [1], [0, 0, 1, 1], [], []>} : vector<1x50xf32>, vector<50x128xf32>, vector<1x128xf32> -> vector<1x128xf32>
    %c298 = arith.constant 298 : index
    %c0_211 = arith.constant 0 : index
    %211 = vector.load %arg2[%c298, %c0_211] : memref<312x128xf32, #tpu.memory_space<vmem>>, vector<1x128xf32>
    %212 = arith.addf %210, %211 : vector<1x128xf32>
    %213 = vector.extract_strided_slice %212 {offsets = [0, 0], sizes = [1, 32], strides = [1, 1]} : vector<1x128xf32> to vector<1x32xf32>
    %214 = arith.negf %213 : vector<1x32xf32>
    %215 = math.exp %214 : vector<1x32xf32>
    %cst_212 = arith.constant 1.000000e+00 : f32
    %216 = vector.broadcast %cst_212 : f32 to vector<1x32xf32>
    %217 = arith.addf %216, %215 : vector<1x32xf32>
    %218 = arith.divf %216, %217 : vector<1x32xf32>
    %219 = vector.extract_strided_slice %212 {offsets = [0, 32], sizes = [1, 32], strides = [1, 1]} : vector<1x128xf32> to vector<1x32xf32>
    %220 = arith.negf %219 : vector<1x32xf32>
    %221 = math.exp %220 : vector<1x32xf32>
    %cst_213 = arith.constant 1.000000e+00 : f32
    %222 = vector.broadcast %cst_213 : f32 to vector<1x32xf32>
    %223 = arith.addf %222, %221 : vector<1x32xf32>
    %224 = arith.divf %222, %223 : vector<1x32xf32>
    %225 = vector.extract_strided_slice %212 {offsets = [0, 64], sizes = [1, 32], strides = [1, 1]} : vector<1x128xf32> to vector<1x32xf32>
    %226 = math.tanh %225 : vector<1x32xf32>
    %227 = vector.extract_strided_slice %212 {offsets = [0, 96], sizes = [1, 32], strides = [1, 1]} : vector<1x128xf32> to vector<1x32xf32>
    %228 = arith.negf %227 : vector<1x32xf32>
    %229 = math.exp %228 : vector<1x32xf32>
    %cst_214 = arith.constant 1.000000e+00 : f32
    %230 = vector.broadcast %cst_214 : f32 to vector<1x32xf32>
    %231 = arith.addf %230, %229 : vector<1x32xf32>
    %232 = arith.divf %230, %231 : vector<1x32xf32>
    %233 = arith.mulf %224, %138 : vector<1x32xf32>
    %234 = arith.mulf %218, %226 : vector<1x32xf32>
    %235 = arith.addf %233, %234 : vector<1x32xf32>
    %236 = math.tanh %235 : vector<1x32xf32>
    %237 = arith.mulf %232, %236 : vector<1x32xf32>
    %c264 = arith.constant 264 : index
    %c0_215 = arith.constant 0 : index
    %238 = vector.load %arg2[%c264, %c0_215] : memref<312x128xf32, #tpu.memory_space<vmem>>, vector<32x96xf32>
    %cst_216 = arith.constant dense<0.000000e+00> : vector<1x96xf32>
    %239 = tpu.matmul %237, %238, %cst_216 {dimension_numbers = #tpu.dot_dimension_numbers<[1], [0], [0], [1], [0, 0, 1, 1], [], []>} : vector<1x32xf32>, vector<32x96xf32>, vector<1x96xf32> -> vector<1x96xf32>
    %c300 = arith.constant 300 : index
    %c0_217 = arith.constant 0 : index
    %240 = vector.load %arg2[%c300, %c0_217] : memref<312x128xf32, #tpu.memory_space<vmem>>, vector<1x96xf32>
    %241 = arith.addf %239, %240 : vector<1x96xf32>
    %242 = vector.extract_strided_slice %241 {offsets = [0, 0], sizes = [1, 16], strides = [1, 1]} : vector<1x96xf32> to vector<1x16xf32>
    %243 = vector.extract_strided_slice %241 {offsets = [0, 16], sizes = [1, 16], strides = [1, 1]} : vector<1x96xf32> to vector<1x16xf32>
    %244 = arith.maximumf %242, %243 : vector<1x16xf32>
    %245 = arith.subf %242, %244 : vector<1x16xf32>
    %246 = math.exp %245 : vector<1x16xf32>
    %247 = arith.subf %243, %244 : vector<1x16xf32>
    %248 = math.exp %247 : vector<1x16xf32>
    %249 = arith.addf %246, %248 : vector<1x16xf32>
    %250 = math.log %249 : vector<1x16xf32>
    %251 = arith.addf %244, %250 : vector<1x16xf32>
    %cst_218 = arith.constant 0.000000e+00 : f32
    %252 = vector.broadcast %cst_218 : f32 to vector<8x128xf32>
    %c0_219 = arith.constant 0 : index
    %c0_220 = arith.constant 0 : index
    %253 = vector.load %arg4[%c0_219, %c0_220] : memref<8x128xf32, #tpu.memory_space<vmem>>, vector<8x128xf32>
    tpu.vector_store %arg4[%c0_219, %c0_220], %252 {strides = array<i32>} : memref<8x128xf32, #tpu.memory_space<vmem>>, vector<8x128xf32>,
    %c0_221 = arith.constant 0 : index
    %c0_222 = arith.constant 0 : index
    %254 = vector.load %arg4[%c0_221, %c0_222] : memref<8x128xf32, #tpu.memory_space<vmem>>, vector<1x1xf32>
    tpu.vector_store %arg4[%c0_221, %c0_222], %176 {strides = array<i32>} : memref<8x128xf32, #tpu.memory_space<vmem>>, vector<1x1xf32>,
    %c0_223 = arith.constant 0 : index
    %c1_224 = arith.constant 1 : index
    %255 = vector.load %arg4[%c0_223, %c1_224] : memref<8x128xf32, #tpu.memory_space<vmem>>, vector<1x1xf32>
    tpu.vector_store %arg4[%c0_223, %c1_224], %201 {strides = array<i32>} : memref<8x128xf32, #tpu.memory_space<vmem>>, vector<1x1xf32>,
    %c0_225 = arith.constant 0 : index
    %c2_226 = arith.constant 2 : index
    %256 = vector.load %arg4[%c0_225, %c2_226] : memref<8x128xf32, #tpu.memory_space<vmem>>, vector<1x1xf32>
    tpu.vector_store %arg4[%c0_225, %c2_226], %204 {strides = array<i32>} : memref<8x128xf32, #tpu.memory_space<vmem>>, vector<1x1xf32>,
    %c2_i32 = arith.constant 2 : i32
    %257 = vector.broadcast %c2_i32 : i32 to vector<1x1xi32>
    %258 = arith.addi %191, %257 : vector<1x1xi32>
    %259 = arith.sitofp %258 : vector<1x1xi32> to vector<1x1xf32>
    %c0_227 = arith.constant 0 : index
    %c3_228 = arith.constant 3 : index
    %260 = vector.load %arg4[%c0_227, %c3_228] : memref<8x128xf32, #tpu.memory_space<vmem>>, vector<1x1xf32>
    tpu.vector_store %arg4[%c0_227, %c3_228], %259 {strides = array<i32>} : memref<8x128xf32, #tpu.memory_space<vmem>>, vector<1x1xf32>,
    %c0_229 = arith.constant 0 : index
    %c4_230 = arith.constant 4 : index
    %261 = vector.load %arg4[%c0_229, %c4_230] : memref<8x128xf32, #tpu.memory_space<vmem>>, vector<1x2xf32>
    tpu.vector_store %arg4[%c0_229, %c4_230], %188 {strides = array<i32>} : memref<8x128xf32, #tpu.memory_space<vmem>>, vector<1x2xf32>,
    %c0_231 = arith.constant 0 : index
    %c6 = arith.constant 6 : index
    %262 = vector.load %arg4[%c0_231, %c6] : memref<8x128xf32, #tpu.memory_space<vmem>>, vector<1x2xf32>
    tpu.vector_store %arg4[%c0_231, %c6], %196 {strides = array<i32>} : memref<8x128xf32, #tpu.memory_space<vmem>>, vector<1x2xf32>,
    %c1_232 = arith.constant 1 : index
    %c0_233 = arith.constant 0 : index
    %263 = vector.load %arg4[%c1_232, %c0_233] : memref<8x128xf32, #tpu.memory_space<vmem>>, vector<1x16xf32>
    tpu.vector_store %arg4[%c1_232, %c0_233], %133 {strides = array<i32>} : memref<8x128xf32, #tpu.memory_space<vmem>>, vector<1x16xf32>,
    %c2_234 = arith.constant 2 : index
    %c0_235 = arith.constant 0 : index
    %264 = vector.load %arg4[%c2_234, %c0_235] : memref<8x128xf32, #tpu.memory_space<vmem>>, vector<1x16xf32>
    tpu.vector_store %arg4[%c2_234, %c0_235], %171 {strides = array<i32>} : memref<8x128xf32, #tpu.memory_space<vmem>>, vector<1x16xf32>,
    %c3_236 = arith.constant 3 : index
    %c0_237 = arith.constant 0 : index
    %265 = vector.load %arg4[%c3_236, %c0_237] : memref<8x128xf32, #tpu.memory_space<vmem>>, vector<1x16xf32>
    tpu.vector_store %arg4[%c3_236, %c0_237], %169 {strides = array<i32>} : memref<8x128xf32, #tpu.memory_space<vmem>>, vector<1x16xf32>,
    %c4_238 = arith.constant 4 : index
    %c0_239 = arith.constant 0 : index
    %266 = vector.load %arg4[%c4_238, %c0_239] : memref<8x128xf32, #tpu.memory_space<vmem>>, vector<1x32xf32>
    tpu.vector_store %arg4[%c4_238, %c0_239], %237 {strides = array<i32>} : memref<8x128xf32, #tpu.memory_space<vmem>>, vector<1x32xf32>,
    %c5_240 = arith.constant 5 : index
    %c0_241 = arith.constant 0 : index
    %267 = vector.load %arg4[%c5_240, %c0_241] : memref<8x128xf32, #tpu.memory_space<vmem>>, vector<1x32xf32>
    tpu.vector_store %arg4[%c5_240, %c0_241], %235 {strides = array<i32>} : memref<8x128xf32, #tpu.memory_space<vmem>>, vector<1x32xf32>,
    %268 = arith.subf %242, %251 : vector<1x16xf32>
    %c6_242 = arith.constant 6 : index
    %c0_243 = arith.constant 0 : index
    %269 = vector.load %arg4[%c6_242, %c0_243] : memref<8x128xf32, #tpu.memory_space<vmem>>, vector<1x16xf32>
    tpu.vector_store %arg4[%c6_242, %c0_243], %268 {strides = array<i32>} : memref<8x128xf32, #tpu.memory_space<vmem>>, vector<1x16xf32>,
    %270 = arith.subf %243, %251 : vector<1x16xf32>
    %c6_244 = arith.constant 6 : index
    %c16_245 = arith.constant 16 : index
    %271 = vector.load %arg4[%c6_244, %c16_245] : memref<8x128xf32, #tpu.memory_space<vmem>>, vector<1x16xf32>
    tpu.vector_store %arg4[%c6_244, %c16_245], %270 {strides = array<i32>} : memref<8x128xf32, #tpu.memory_space<vmem>>, vector<1x16xf32>,
    %272 = vector.extract_strided_slice %241 {offsets = [0, 32], sizes = [1, 64], strides = [1, 1]} : vector<1x96xf32> to vector<1x64xf32>
    %c6_246 = arith.constant 6 : index
    %c32_247 = arith.constant 32 : index
    %273 = vector.load %arg4[%c6_246, %c32_247] : memref<8x128xf32, #tpu.memory_space<vmem>>, vector<1x64xf32>
    tpu.vector_store %arg4[%c6_246, %c32_247], %272 {strides = array<i32>} : memref<8x128xf32, #tpu.memory_space<vmem>>, vector<1x64xf32>,
    return
  }
}

</mosaic_0001>

<llo_original>
// kernel: model_forward.1
$region0: #{model_forward.1}
  #allocation0 [shape = 'u32[]', space=smem, size = 0x4, offset = 0x4, fixed_abs, tag = 'smem constant byte address 0x4 - core index']
  #allocation1 [shape = 'u32[144,128]{1,0:T(1,128)}', space=vmem, size = 0x12000, scoped, tag = 'internal scratch']
  #allocation2 [shape = 'f32[456,32]{1,0:T(8,128)}', space=vmem, size = 0x39000, scoped, tag = 'scratch operand']
  #allocation3 [shape = 'f32[192,32]{1,0:T(8,128)}', space=vmem, size = 0x18000, scoped, tag = 'scratch operand']
  #allocation4 [shape = 'f32[72,32]{1,0:T(8,128)}', space=vmem, size = 0x9000, scoped, tag = 'scratch operand']
  #allocation5 [shape = 'f32[24,32]{1,0:T(8,128)}', space=vmem, size = 0x3000, scoped, tag = 'scratch operand']
  #allocation6 [shape = 'f32[192,512]{1,0:T(8,128)}', space=vmem, size = 0x60000, scoped, tag = 'scratch operand']
  #allocation7 [shape = 'f32[8,128]{1,0:T(8,128)}', space=vmem, size = 0x1000, scoped, tag = 'scratch operand']
  %s0 = inlined_call_operand.vmem [shape: f32[456,48], index: 0, kind: input, shape index: {}]
  %s1 = inlined_call_operand.vmem [shape: f32[512,128], index: 1, kind: input, shape index: {}]
  %s2 = inlined_call_operand.vmem [shape: f32[312,128], index: 2, kind: input, shape index: {}]
  %s3 = inlined_call_operand.vmem [shape: f32[8,128], index: 3, kind: input, shape index: {}]
  %s4 = inlined_call_operand.vmem [shape: f32[8,128], index: 4, kind: output, shape index: {}]
  %s5 = sld [smem:[#allocation0]]
  $region26: #{model_forward.1} parent=0
    _
  %s7 = ssub.s32 1, %s5
  %s8 = scalar_select 0, %s7, %s5
  // Predicated region
  $region2: #{model_forward.1} parent=0 // pred_check
    _
  $region3: #{model_forward.1} parent=0 // pred_check_branch
    %10 = sbr.rel (0) target = $region5
  $region4: #{model_forward.1} parent=0 // pred_region
    _
  $region5: #{model_forward.1} parent=0 // pred_fallthru
    _
  // Predicated region
  $region6: #{model_forward.1} parent=0 // pred_check
    _
  $region7: #{model_forward.1} parent=0 // pred_check_branch
    %12 = sbr.rel (0) target = $region9
  $region8: #{model_forward.1} parent=0 // pred_region
    _
  $region9: #{model_forward.1} parent=0 // pred_fallthru
    _
  // Predicated region
  $region10: #{model_forward.1} parent=0 // pred_check
    _
  $region11: #{model_forward.1} parent=0 // pred_check_branch
    %14 = sbr.rel (0) target = $region13
  $region12: #{model_forward.1} parent=0 // pred_region
    _
  $region13: #{model_forward.1} parent=0 // pred_fallthru
    _
  // Predicated region
  $region14: #{model_forward.1} parent=0 // pred_check
    _
  $region15: #{model_forward.1} parent=0 // pred_check_branch
    %16 = sbr.rel (0) target = $region17
  $region16: #{model_forward.1} parent=0 // pred_region
    _
  $region17: #{model_forward.1} parent=0 // pred_fallthru
    _
  %v17 = vld [vmem:[%s0] sm:$0xff]
  %v18 = vld [vmem:[%s0 + $0x8] sm:$0xff]
  %v19 = vld [vmem:[%s0 + $0x10] sm:$0xff]
  %v20 = vld [vmem:[%s0 + $0x18] sm:$0xff]
  %v21 = vld [vmem:[%s0 + $0x20] sm:$0xff]
  %v22 = vld [vmem:[%s0 + $0x28] sm:$0xff]
  %v23 = vld [vmem:[%s0 + $0x30] sm:$0xff]
  %v24 = vld [vmem:[%s0 + $0x38] sm:$0xff]
  %v25 = vld [vmem:[%s0 + $0x40] sm:$0xff]
  %v26 = vld [vmem:[%s0 + $0x48] sm:$0xff]
  %v27 = vld [vmem:[%s0 + $0x50] sm:$0xff]
  %v28 = vld [vmem:[%s0 + $0x58] sm:$0xff]
  %v29 = vld [vmem:[%s0 + $0x60] sm:$0xff]
  %v30 = vld [vmem:[%s0 + $0x68] sm:$0xff]
  %v31 = vld [vmem:[%s0 + $0x70] sm:$0xff]
  %v32 = vld [vmem:[%s0 + $0x78] sm:$0xff]
  %v33 = vld [vmem:[%s0 + $0x80] sm:$0xff]
  %v34 = vld [vmem:[%s0 + $0x88] sm:$0xff]
  %v35 = vld [vmem:[%s0 + $0x90] sm:$0xff]
  %v36 = vld [vmem:[%s1] sm:$0xff]
  %v37 = vld [vmem:[%s1 + $0x8] sm:$0xff]
  %v38 = vld [vmem:[%s1 + $0x10] sm:$0xff]
  %v39 = vld [vmem:[%s1 + $0x18] sm:$0xff]
  %v40 = vld [vmem:[%s1 + $0x20] sm:$0xff]
  %v41 = vld [vmem:[%s1 + $0x28] sm:$0xff]
  %v42 = vld [vmem:[%s2 + $0x12d] sm:$0x1]
  %v43 = vlaneseq
  %v44 = vshrl.u32 %v43, 7
  %v45 = vsub.s32 0, %v44
  %v46 = vrot.slane %v42, %v45
  %53 = vrot.lane.b32.xlu0 %v36, 32
  %v54 = vpop.permute.xlu0 %53
  %55 = vrot.lane.b32.xlu0 %v37, 32
  %v56 = vpop.permute.xlu0 %55
  %57 = vrot.lane.b32.xlu0 %v38, 32
  %v58 = vpop.permute.xlu0 %57
  %59 = vrot.lane.b32.xlu0 %v39, 32
  %v60 = vpop.permute.xlu0 %59
  %61 = vrot.lane.b32.xlu0 %v40, 32
  %v62 = vpop.permute.xlu0 %61
  %63 = vrot.lane.b32.xlu0 %v41, 32
  %v64 = vpop.permute.xlu0 %63
  %vm71 = vcmask 392192
  %v73 = vsel %vm71, %v17, 0
  %v76 = vsel %vm71, %v18, 0
  %v79 = vsel %vm71, %v19, 0
  %v82 = vsel %vm71, %v20, 0
  %v85 = vsel %vm71, %v21, 0
  %v88 = vsel %vm71, %v22, 0
  %v91 = vsel %vm71, %v23, 0
  %v94 = vsel %vm71, %v24, 0
  %v97 = vsel %vm71, %v25, 0
  %v100 = vsel %vm71, %v26, 0
  %v103 = vsel %vm71, %v27, 0
  %v106 = vsel %vm71, %v28, 0
  %v109 = vsel %vm71, %v29, 0
  %v112 = vsel %vm71, %v30, 0
  %v115 = vsel %vm71, %v31, 0
  %v118 = vsel %vm71, %v32, 0
  %v121 = vsel %vm71, %v33, 0
  %v124 = vsel %vm71, %v34, 0
  %v127 = vsel %vm71, %v35, 0
  %129 = vmatprep.subr.mxu0 0.0
  %130 = vmatpush1.msra.mxu0 %v54
  %131 = vmatprep.subr.mxu0 0.0
  %132 = vmatpush1.msra.mxu0 %v56
  %133 = vmatprep.subr.mxu0 0.0
  %134 = vmatpush1.msra.mxu0 %v58
  %135 = vmatprep.subr.mxu0 0.0
  %136 = vmatpush1.msra.mxu0 %v60
  %137 = vmatprep.subr.mxu0 0.0
  %138 = vmatpush1.msra.mxu0 %v62
  %139 = vmatprep.subr.mxu0 0.0
  %140 = vmatpush1.msra.mxu0 %v64
  %141 = vmatprep.subr.mxu0 0.0
  %142 = vmatpush1.msra.mxu0 0.0
  %143 = vmatprep.subr.mxu0 0.0
  %144 = vmatpush1.msra.mxu0 0.0
  %145 = vmatprep.subr.mxu0 0.0
  %146 = vmatpush1.msra.mxu0 0.0
  %147 = vmatprep.subr.mxu0 0.0
  %148 = vmatpush1.msra.mxu0 0.0
  %149 = vmatprep.subr.mxu0 0.0
  %150 = vmatpush1.msra.mxu0 0.0
  %151 = vmatprep.subr.mxu0 0.0
  %152 = vmatpush1.msra.mxu0 0.0
  %153 = vmatprep.subr.mxu0 0.0
  %154 = vmatpush1.msra.mxu0 0.0
  %155 = vmatprep.subr.mxu0 0.0
  %156 = vmatpush1.msra.mxu0 0.0
  %157 = vmatprep.subr.mxu0 0.0
  %158 = vmatpush1.msra.mxu0 0.0
  %159 = vmatprep.subr.mxu0 0.0
  %160 = vmatpush1.msra.mxu0 0.0
  %161 = vmatprep.subr.mxu0 0.0
  %162 = vmatpush1.msra.mxu0 0.0
  %163 = vmatprep.subr.mxu0 0.0
  %164 = vmatpush1.msra.mxu0 0.0
  %165 = vmatprep.subr.mxu0 0.0
  %166 = vmatpush1.msra.mxu0 0.0
  %167 = vmatprep.subr.mxu0 0.0
  %168 = vmatpush1.msra.mxu0 0.0
  %169 = vmatprep.subr.mxu0 0.0
  %170 = vmatpush1.msra.mxu0 0.0
  %171 = vmatprep.subr.mxu0 0.0
  %172 = vmatpush1.msra.mxu0 0.0
  %173 = vmatprep.subr.mxu0 0.0
  %174 = vmatpush1.msra.mxu0 0.0
  %175 = vmatprep.subr.mxu0 0.0
  %176 = vmatpush1.msra.mxu0 0.0
  %177 = vmatprep.subr.mxu0 0.0
  %178 = vmatpush1.msra.mxu0 0.0
  %179 = vmatprep.subr.mxu0 0.0
  %180 = vmatpush1.msra.mxu0 0.0
  %181 = vmatprep.subr.mxu0 0.0
  %182 = vmatpush1.msra.mxu0 0.0
  %183 = vmatprep.subr.mxu0 0.0
  %184 = vmatpush1.msra.mxu0 0.0
  %185 = vmatprep.subr.mxu0 0.0
  %186 = vmatpush1.msra.mxu0 0.0
  %187 = vmatprep.subr.mxu0 0.0
  %188 = vmatpush1.msra.mxu0 0.0
  %189 = vmatprep.subr.mxu0 0.0
  %190 = vmatpush1.msra.mxu0 0.0
  %191 = vmatprep.subr.mxu0 0.0
  %192 = vmatpush1.msra.mxu0 0.0
  %193 = vmatprep.mubr.f32.mxu0 0.0
  %194 = vmatmul.mubr.f32.gmra.mrb[0].mxu0 %v73
  %v195 = vpop.f32.mrb[0].mxu0
  %v196 = vadd.f32 %v46, %v195
  %v197 = vpop.f32.mrb[0].mxu0
  %198 = vmatprep.mubr.f32.mxu0 0.0
  %199 = vmatmul.mubr.f32.gmra.mrb[0].mxu0 %v76
  %v200 = vpop.f32.mrb[0].mxu0
  %v201 = vadd.f32 %v46, %v200
  %v202 = vpop.f32.mrb[0].mxu0
  %203 = vmatprep.mubr.f32.mxu0 0.0
  %204 = vmatmul.mubr.f32.gmra.mrb[0].mxu0 %v79
  %v205 = vpop.f32.mrb[0].mxu0
  %v206 = vadd.f32 %v46, %v205
  %v207 = vpop.f32.mrb[0].mxu0
  %208 = vmatprep.mubr.f32.mxu0 0.0
  %209 = vmatmul.mubr.f32.gmra.mrb[0].mxu0 %v82
  %v210 = vpop.f32.mrb[0].mxu0
  %v211 = vadd.f32 %v46, %v210
  %v212 = vpop.f32.mrb[0].mxu0
  %213 = vmatprep.mubr.f32.mxu0 0.0
  %214 = vmatmul.mubr.f32.gmra.mrb[0].mxu0 %v85
  %v215 = vpop.f32.mrb[0].mxu0
  %v216 = vadd.f32 %v46, %v215
  %v217 = vpop.f32.mrb[0].mxu0
  %218 = vmatprep.mubr.f32.mxu0 0.0
  %219 = vmatmul.mubr.f32.gmra.mrb[0].mxu0 %v88
  %v220 = vpop.f32.mrb[0].mxu0
  %v221 = vadd.f32 %v46, %v220
  %v222 = vpop.f32.mrb[0].mxu0
  %223 = vmatprep.mubr.f32.mxu0 0.0
  %224 = vmatmul.mubr.f32.gmra.mrb[0].mxu0 %v91
  %v225 = vpop.f32.mrb[0].mxu0
  %v226 = vadd.f32 %v46, %v225
  %v227 = vpop.f32.mrb[0].mxu0
  %228 = vmatprep.mubr.f32.mxu0 0.0
  %229 = vmatmul.mubr.f32.gmra.mrb[0].mxu0 %v94
  %v230 = vpop.f32.mrb[0].mxu0
  %v231 = vadd.f32 %v46, %v230
  %v232 = vpop.f32.mrb[0].mxu0
  %233 = vmatprep.mubr.f32.mxu0 0.0
  %234 = vmatmul.mubr.f32.gmra.mrb[0].mxu0 %v97
  %v235 = vpop.f32.mrb[0].mxu0
  %v236 = vadd.f32 %v46, %v235
  %v237 = vpop.f32.mrb[0].mxu0
  %238 = vmatprep.mubr.f32.mxu0 0.0
  %239 = vmatmul.mubr.f32.gmra.mrb[0].mxu0 %v100
  %v240 = vpop.f32.mrb[0].mxu0
  %v241 = vadd.f32 %v46, %v240
  %v242 = vpop.f32.mrb[0].mxu0
  %243 = vmatprep.mubr.f32.mxu0 0.0
  %244 = vmatmul.mubr.f32.gmra.mrb[0].mxu0 %v103
  %v245 = vpop.f32.mrb[0].mxu0
  %v246 = vadd.f32 %v46, %v245
  %v247 = vpop.f32.mrb[0].mxu0
  %248 = vmatprep.mubr.f32.mxu0 0.0
  %249 = vmatmul.mubr.f32.gmra.mrb[0].mxu0 %v106
  %v250 = vpop.f32.mrb[0].mxu0
  %v251 = vadd.f32 %v46, %v250
  %v252 = vpop.f32.mrb[0].mxu0
  %253 = vmatprep.mubr.f32.mxu0 0.0
  %254 = vmatmul.mubr.f32.gmra.mrb[0].mxu0 %v109
  %v255 = vpop.f32.mrb[0].mxu0
  %v256 = vadd.f32 %v46, %v255
  %v257 = vpop.f32.mrb[0].mxu0
  %258 = vmatprep.mubr.f32.mxu0 0.0
  %259 = vmatmul.mubr.f32.gmra.mrb[0].mxu0 %v112
  %v260 = vpop.f32.mrb[0].mxu0
  %v261 = vadd.f32 %v46, %v260
  %v262 = vpop.f32.mrb[0].mxu0
  %263 = vmatprep.mubr.f32.mxu0 0.0
  %264 = vmatmul.mubr.f32.gmra.mrb[0].mxu0 %v115
  %v265 = vpop.f32.mrb[0].mxu0
  %v266 = vadd.f32 %v46, %v265
  %v267 = vpop.f32.mrb[0].mxu0
  %268 = vmatprep.mubr.f32.mxu0 0.0
  %269 = vmatmul.mubr.f32.gmra.mrb[0].mxu0 %v118
  %v270 = vpop.f32.mrb[0].mxu0
  %v271 = vadd.f32 %v46, %v270
  %v272 = vpop.f32.mrb[0].mxu0
  %273 = vmatprep.mubr.f32.mxu0 0.0
  %274 = vmatmul.mubr.f32.gmra.mrb[0].mxu0 %v121
  %v275 = vpop.f32.mrb[0].mxu0
  %v276 = vadd.f32 %v46, %v275
  %v277 = vpop.f32.mrb[0].mxu0
  %278 = vmatprep.mubr.f32.mxu0 0.0
  %279 = vmatmul.mubr.f32.gmra.mrb[0].mxu0 %v124
  %v280 = vpop.f32.mrb[0].mxu0
  %v281 = vadd.f32 %v46, %v280
  %v282 = vpop.f32.mrb[0].mxu0
  %283 = vmatprep.mubr.f32.mxu0 0.0
  %284 = vmatmul.mubr.f32.gmra.mrb[0].mxu0 %v127
  %v285 = vpop.f32.mrb[0].mxu0
  %v286 = vadd.f32 %v46, %v285
  %v287 = vpop.f32.mrb[0].mxu0
  %288 = vdwg.mxu0
  %v289 = vmax.f32 %v196, 0.0
  %v290 = vmax.f32 %v201, 0.0
  %v291 = vmax.f32 %v206, 0.0
  %v292 = vmax.f32 %v211, 0.0
  %v293 = vmax.f32 %v216, 0.0
  %v294 = vmax.f32 %v221, 0.0
  %v295 = vmax.f32 %v226, 0.0
  %v296 = vmax.f32 %v231, 0.0
  %v297 = vmax.f32 %v236, 0.0
  %v298 = vmax.f32 %v241, 0.0
  %v299 = vmax.f32 %v246, 0.0
  %v300 = vmax.f32 %v251, 0.0
  %v301 = vmax.f32 %v256, 0.0
  %v302 = vmax.f32 %v261, 0.0
  %v303 = vmax.f32 %v266, 0.0
  %v304 = vmax.f32 %v271, 0.0
  %v305 = vmax.f32 %v276, 0.0
  %v306 = vmax.f32 %v281, 0.0
  %v307 = vmax.f32 %v286, 0.0
  %vm308 = vcmask 261120
  %309 = vst.msk [vmem:[#allocation2] sm:$0xff] %vm308, %v289
  %310 = vst.msk [vmem:[#allocation2 + $0x8] sm:$0xff] %vm308, %v290
  %311 = vst.msk [vmem:[#allocation2 + $0x10] sm:$0xff] %vm308, %v291
  %312 = vst.msk [vmem:[#allocation2 + $0x18] sm:$0xff] %vm308, %v292
  %313 = vst.msk [vmem:[#allocation2 + $0x20] sm:$0xff] %vm308, %v293
  %314 = vst.msk [vmem:[#allocation2 + $0x28] sm:$0xff] %vm308, %v294
  %315 = vst.msk [vmem:[#allocation2 + $0x30] sm:$0xff] %vm308, %v295
  %316 = vst.msk [vmem:[#allocation2 + $0x38] sm:$0xff] %vm308, %v296
  %317 = vst.msk [vmem:[#allocation2 + $0x40] sm:$0xff] %vm308, %v297
  %318 = vst.msk [vmem:[#allocation2 + $0x48] sm:$0xff] %vm308, %v298
  %319 = vst.msk [vmem:[#allocation2 + $0x50] sm:$0xff] %vm308, %v299
  %320 = vst.msk [vmem:[#allocation2 + $0x58] sm:$0xff] %vm308, %v300
  %321 = vst.msk [vmem:[#allocation2 + $0x60] sm:$0xff] %vm308, %v301
  %322 = vst.msk [vmem:[#allocation2 + $0x68] sm:$0xff] %vm308, %v302
  %323 = vst.msk [vmem:[#allocation2 + $0x70] sm:$0xff] %vm308, %v303
  %324 = vst.msk [vmem:[#allocation2 + $0x78] sm:$0xff] %vm308, %v304
  %325 = vst.msk [vmem:[#allocation2 + $0x80] sm:$0xff] %vm308, %v305
  %326 = vst.msk [vmem:[#allocation2 + $0x88] sm:$0xff] %vm308, %v306
  %327 = vst.msk [vmem:[#allocation2 + $0x90] sm:$0xff] %vm308, %v307
  %v328 = vld [vmem:[%s0 + $0x98] sm:$0xff]
  %v329 = vld [vmem:[%s0 + $0xa0] sm:$0xff]
  %v330 = vld [vmem:[%s0 + $0xa8] sm:$0xff]
  %v331 = vld [vmem:[%s0 + $0xb0] sm:$0xff]
  %v332 = vld [vmem:[%s0 + $0xb8] sm:$0xff]
  %v333 = vld [vmem:[%s0 + $0xc0] sm:$0xff]
  %v334 = vld [vmem:[%s0 + $0xc8] sm:$0xff]
  %v335 = vld [vmem:[%s0 + $0xd0] sm:$0xff]
  %v336 = vld [vmem:[%s0 + $0xd8] sm:$0xff]
  %v337 = vld [vmem:[%s0 + $0xe0] sm:$0xff]
  %v338 = vld [vmem:[%s0 + $0xe8] sm:$0xff]
  %v339 = vld [vmem:[%s0 + $0xf0] sm:$0xff]
  %v340 = vld [vmem:[%s0 + $0xf8] sm:$0xff]
  %v341 = vld [vmem:[%s0 + $0x100] sm:$0xff]
  %v342 = vld [vmem:[%s0 + $0x108] sm:$0xff]
  %v343 = vld [vmem:[%s0 + $0x110] sm:$0xff]
  %v344 = vld [vmem:[%s0 + $0x118] sm:$0xff]
  %v345 = vld [vmem:[%s0 + $0x120] sm:$0xff]
  %v346 = vld [vmem:[%s0 + $0x128] sm:$0xff]
  %v347 = vld [vmem:[%s1] sm:$0xff]
  %v348 = vld [vmem:[%s1 + $0x8] sm:$0xff]
  %v349 = vld [vmem:[%s1 + $0x10] sm:$0xff]
  %v350 = vld [vmem:[%s1 + $0x18] sm:$0xff]
  %v351 = vld [vmem:[%s1 + $0x20] sm:$0xff]
  %v352 = vld [vmem:[%s1 + $0x28] sm:$0xff]
  %v353 = vld [vmem:[%s2 + $0x12d] sm:$0x1]
  %v354 = vlaneseq
  %v355 = vshrl.u32 %v354, 7
  %v356 = vsub.s32 0, %v355
  %v357 = vrot.slane %v353, %v356
  %364 = vrot.lane.b32.xlu0 %v347, 32
  %v365 = vpop.permute.xlu0 %364
  %366 = vrot.lane.b32.xlu0 %v348, 32
  %v367 = vpop.permute.xlu0 %366
  %368 = vrot.lane.b32.xlu0 %v349, 32
  %v369 = vpop.permute.xlu0 %368
  %370 = vrot.lane.b32.xlu0 %v350, 32
  %v371 = vpop.permute.xlu0 %370
  %372 = vrot.lane.b32.xlu0 %v351, 32
  %v373 = vpop.permute.xlu0 %372
  %374 = vrot.lane.b32.xlu0 %v352, 32
  %v375 = vpop.permute.xlu0 %374
  %v383 = vsel %vm71, %v328, 0
  %v386 = vsel %vm71, %v329, 0
  %v389 = vsel %vm71, %v330, 0
  %v392 = vsel %vm71, %v331, 0
  %v395 = vsel %vm71, %v332, 0
  %v398 = vsel %vm71, %v333, 0
  %v401 = vsel %vm71, %v334, 0
  %v404 = vsel %vm71, %v335, 0
  %v407 = vsel %vm71, %v336, 0
  %v410 = vsel %vm71, %v337, 0
  %v413 = vsel %vm71, %v338, 0
  %v416 = vsel %vm71, %v339, 0
  %v419 = vsel %vm71, %v340, 0
  %v422 = vsel %vm71, %v341, 0
  %v425 = vsel %vm71, %v342, 0
  %v428 = vsel %vm71, %v343, 0
  %v431 = vsel %vm71, %v344, 0
  %v434 = vsel %vm71, %v345, 0
  %v437 = vsel %vm71, %v346, 0
  %439 = vmatprep.subr.mxu0 0.0
  %440 = vmatpush1.msra.mxu0 %v365
  %441 = vmatprep.subr.mxu0 0.0
  %442 = vmatpush1.msra.mxu0 %v367
  %443 = vmatprep.subr.mxu0 0.0
  %444 = vmatpush1.msra.mxu0 %v369
  %445 = vmatprep.subr.mxu0 0.0
  %446 = vmatpush1.msra.mxu0 %v371
  %447 = vmatprep.subr.mxu0 0.0
  %448 = vmatpush1.msra.mxu0 %v373
  %449 = vmatprep.subr.mxu0 0.0
  %450 = vmatpush1.msra.mxu0 %v375
  %451 = vmatprep.subr.mxu0 0.0
  %452 = vmatpush1.msra.mxu0 0.0
  %453 = vmatprep.subr.mxu0 0.0
  %454 = vmatpush1.msra.mxu0 0.0
  %455 = vmatprep.subr.mxu0 0.0
  %456 = vmatpush1.msra.mxu0 0.0
  %457 = vmatprep.subr.mxu0 0.0
  %458 = vmatpush1.msra.mxu0 0.0
  %459 = vmatprep.subr.mxu0 0.0
  %460 = vmatpush1.msra.mxu0 0.0
  %461 = vmatprep.subr.mxu0 0.0
  %462 = vmatpush1.msra.mxu0 0.0
  %463 = vmatprep.subr.mxu0 0.0
  %464 = vmatpush1.msra.mxu0 0.0
  %465 = vmatprep.subr.mxu0 0.0
  %466 = vmatpush1.msra.mxu0 0.0
  %467 = vmatprep.subr.mxu0 0.0
  %468 = vmatpush1.msra.mxu0 0.0
  %469 = vmatprep.subr.mxu0 0.0
  %470 = vmatpush1.msra.mxu0 0.0
  %471 = vmatprep.subr.mxu0 0.0
  %472 = vmatpush1.msra.mxu0 0.0
  %473 = vmatprep.subr.mxu0 0.0
  %474 = vmatpush1.msra.mxu0 0.0
  %475 = vmatprep.subr.mxu0 0.0
  %476 = vmatpush1.msra.mxu0 0.0
  %477 = vmatprep.subr.mxu0 0.0
  %478 = vmatpush1.msra.mxu0 0.0
  %479 = vmatprep.subr.mxu0 0.0
  %480 = vmatpush1.msra.mxu0 0.0
  %481 = vmatprep.subr.mxu0 0.0
  %482 = vmatpush1.msra.mxu0 0.0
  %483 = vmatprep.subr.mxu0 0.0
  %484 = vmatpush1.msra.mxu0 0.0
  %485 = vmatprep.subr.mxu0 0.0
  %486 = vmatpush1.msra.mxu0 0.0
  %487 = vmatprep.subr.mxu0 0.0
  %488 = vmatpush1.msra.mxu0 0.0
  %489 = vmatprep.subr.mxu0 0.0
  %490 = vmatpush1.msra.mxu0 0.0
  %491 = vmatprep.subr.mxu0 0.0
  %492 = vmatpush1.msra.mxu0 0.0
  %493 = vmatprep.subr.mxu0 0.0
  %494 = vmatpush1.msra.mxu0 0.0
  %495 = vmatprep.subr.mxu0 0.0
  %496 = vmatpush1.msra.mxu0 0.0
  %497 = vmatprep.subr.mxu0 0.0
  %498 = vmatpush1.msra.mxu0 0.0
  %499 = vmatprep.subr.mxu0 0.0
  %500 = vmatpush1.msra.mxu0 0.0
  %501 = vmatprep.subr.mxu0 0.0
  %502 = vmatpush1.msra.mxu0 0.0
  %503 = vmatprep.mubr.f32.mxu0 0.0
  %504 = vmatmul.mubr.f32.gmra.mrb[0].mxu0 %v383
  %v505 = vpop.f32.mrb[0].mxu0
  %v506 = vadd.f32 %v357, %v505
  %v507 = vpop.f32.mrb[0].mxu0
  %508 = vmatprep.mubr.f32.mxu0 0.0
  %509 = vmatmul.mubr.f32.gmra.mrb[0].mxu0 %v386
  %v510 = vpop.f32.mrb[0].mxu0
  %v511 = vadd.f32 %v357, %v510
  %v512 = vpop.f32.mrb[0].mxu0
  %513 = vmatprep.mubr.f32.mxu0 0.0
  %514 = vmatmul.mubr.f32.gmra.mrb[0].mxu0 %v389
  %v515 = vpop.f32.mrb[0].mxu0
  %v516 = vadd.f32 %v357, %v515
  %v517 = vpop.f32.mrb[0].mxu0
  %518 = vmatprep.mubr.f32.mxu0 0.0
  %519 = vmatmul.mubr.f32.gmra.mrb[0].mxu0 %v392
  %v520 = vpop.f32.mrb[0].mxu0
  %v521 = vadd.f32 %v357, %v520
  %v522 = vpop.f32.mrb[0].mxu0
  %523 = vmatprep.mubr.f32.mxu0 0.0
  %524 = vmatmul.mubr.f32.gmra.mrb[0].mxu0 %v395
  %v525 = vpop.f32.mrb[0].mxu0
  %v526 = vadd.f32 %v357, %v525
  %v527 = vpop.f32.mrb[0].mxu0
  %528 = vmatprep.mubr.f32.mxu0 0.0
  %529 = vmatmul.mubr.f32.gmra.mrb[0].mxu0 %v398
  %v530 = vpop.f32.mrb[0].mxu0
  %v531 = vadd.f32 %v357, %v530
  %v532 = vpop.f32.mrb[0].mxu0
  %533 = vmatprep.mubr.f32.mxu0 0.0
  %534 = vmatmul.mubr.f32.gmra.mrb[0].mxu0 %v401
  %v535 = vpop.f32.mrb[0].mxu0
  %v536 = vadd.f32 %v357, %v535
  %v537 = vpop.f32.mrb[0].mxu0
  %538 = vmatprep.mubr.f32.mxu0 0.0
  %539 = vmatmul.mubr.f32.gmra.mrb[0].mxu0 %v404
  %v540 = vpop.f32.mrb[0].mxu0
  %v541 = vadd.f32 %v357, %v540
  %v542 = vpop.f32.mrb[0].mxu0
  %543 = vmatprep.mubr.f32.mxu0 0.0
  %544 = vmatmul.mubr.f32.gmra.mrb[0].mxu0 %v407
  %v545 = vpop.f32.mrb[0].mxu0
  %v546 = vadd.f32 %v357, %v545
  %v547 = vpop.f32.mrb[0].mxu0
  %548 = vmatprep.mubr.f32.mxu0 0.0
  %549 = vmatmul.mubr.f32.gmra.mrb[0].mxu0 %v410
  %v550 = vpop.f32.mrb[0].mxu0
  %v551 = vadd.f32 %v357, %v550
  %v552 = vpop.f32.mrb[0].mxu0
  %553 = vmatprep.mubr.f32.mxu0 0.0
  %554 = vmatmul.mubr.f32.gmra.mrb[0].mxu0 %v413
  %v555 = vpop.f32.mrb[0].mxu0
  %v556 = vadd.f32 %v357, %v555
  %v557 = vpop.f32.mrb[0].mxu0
  %558 = vmatprep.mubr.f32.mxu0 0.0
  %559 = vmatmul.mubr.f32.gmra.mrb[0].mxu0 %v416
  %v560 = vpop.f32.mrb[0].mxu0
  %v561 = vadd.f32 %v357, %v560
  %v562 = vpop.f32.mrb[0].mxu0
  %563 = vmatprep.mubr.f32.mxu0 0.0
  %564 = vmatmul.mubr.f32.gmra.mrb[0].mxu0 %v419
  %v565 = vpop.f32.mrb[0].mxu0
  %v566 = vadd.f32 %v357, %v565
  %v567 = vpop.f32.mrb[0].mxu0
  %568 = vmatprep.mubr.f32.mxu0 0.0
  %569 = vmatmul.mubr.f32.gmra.mrb[0].mxu0 %v422
  %v570 = vpop.f32.mrb[0].mxu0
  %v571 = vadd.f32 %v357, %v570
  %v572 = vpop.f32.mrb[0].mxu0
  %573 = vmatprep.mubr.f32.mxu0 0.0
  %574 = vmatmul.mubr.f32.gmra.mrb[0].mxu0 %v425
  %v575 = vpop.f32.mrb[0].mxu0
  %v576 = vadd.f32 %v357, %v575
  %v577 = vpop.f32.mrb[0].mxu0
  %578 = vmatprep.mubr.f32.mxu0 0.0
  %579 = vmatmul.mubr.f32.gmra.mrb[0].mxu0 %v428
  %v580 = vpop.f32.mrb[0].mxu0
  %v581 = vadd.f32 %v357, %v580
  %v582 = vpop.f32.mrb[0].mxu0
  %583 = vmatprep.mubr.f32.mxu0 0.0
  %584 = vmatmul.mubr.f32.gmra.mrb[0].mxu0 %v431
  %v585 = vpop.f32.mrb[0].mxu0
  %v586 = vadd.f32 %v357, %v585
  %v587 = vpop.f32.mrb[0].mxu0
  %588 = vmatprep.mubr.f32.mxu0 0.0
  %589 = vmatmul.mubr.f32.gmra.mrb[0].mxu0 %v434
  %v590 = vpop.f32.mrb[0].mxu0
  %v591 = vadd.f32 %v357, %v590
  %v592 = vpop.f32.mrb[0].mxu0
  %593 = vmatprep.mubr.f32.mxu0 0.0
  %594 = vmatmul.mubr.f32.gmra.mrb[0].mxu0 %v437
  %v595 = vpop.f32.mrb[0].mxu0
  %v596 = vadd.f32 %v357, %v595
  %v597 = vpop.f32.mrb[0].mxu0
  %598 = vdwg.mxu0
  %v599 = vmax.f32 %v506, 0.0
  %v600 = vmax.f32 %v511, 0.0
  %v601 = vmax.f32 %v516, 0.0
  %v602 = vmax.f32 %v521, 0.0
  %v603 = vmax.f32 %v526, 0.0
  %v604 = vmax.f32 %v531, 0.0
  %v605 = vmax.f32 %v536, 0.0
  %v606 = vmax.f32 %v541, 0.0
  %v607 = vmax.f32 %v546, 0.0
  %v608 = vmax.f32 %v551, 0.0
  %v609 = vmax.f32 %v556, 0.0
  %v610 = vmax.f32 %v561, 0.0
  %v611 = vmax.f32 %v566, 0.0
  %v612 = vmax.f32 %v571, 0.0
  %v613 = vmax.f32 %v576, 0.0
  %v614 = vmax.f32 %v581, 0.0
  %v615 = vmax.f32 %v586, 0.0
  %v616 = vmax.f32 %v591, 0.0
  %v617 = vmax.f32 %v596, 0.0
  %618 = vst.msk [vmem:[#allocation2 + $0x98] sm:$0xff] %vm308, %v599
  %619 = vst.msk [vmem:[#allocation2 + $0xa0] sm:$0xff] %vm308, %v600
  %620 = vst.msk [vmem:[#allocation2 + $0xa8] sm:$0xff] %vm308, %v601
  %621 = vst.msk [vmem:[#allocation2 + $0xb0] sm:$0xff] %vm308, %v602
  %622 = vst.msk [vmem:[#allocation2 + $0xb8] sm:$0xff] %vm308, %v603
  %623 = vst.msk [vmem:[#allocation2 + $0xc0] sm:$0xff] %vm308, %v604
  %624 = vst.msk [vmem:[#allocation2 + $0xc8] sm:$0xff] %vm308, %v605
  %625 = vst.msk [vmem:[#allocation2 + $0xd0] sm:$0xff] %vm308, %v606
  %626 = vst.msk [vmem:[#allocation2 + $0xd8] sm:$0xff] %vm308, %v607
  %627 = vst.msk [vmem:[#allocation2 + $0xe0] sm:$0xff] %vm308, %v608
  %628 = vst.msk [vmem:[#allocation2 + $0xe8] sm:$0xff] %vm308, %v609
  %629 = vst.msk [vmem:[#allocation2 + $0xf0] sm:$0xff] %vm308, %v610
  %630 = vst.msk [vmem:[#allocation2 + $0xf8] sm:$0xff] %vm308, %v611
  %631 = vst.msk [vmem:[#allocation2 + $0x100] sm:$0xff] %vm308, %v612
  %632 = vst.msk [vmem:[#allocation2 + $0x108] sm:$0xff] %vm308, %v613
  %633 = vst.msk [vmem:[#allocation2 + $0x110] sm:$0xff] %vm308, %v614
  %634 = vst.msk [vmem:[#allocation2 + $0x118] sm:$0xff] %vm308, %v615
  %635 = vst.msk [vmem:[#allocation2 + $0x120] sm:$0xff] %vm308, %v616
  %636 = vst.msk [vmem:[#allocation2 + $0x128] sm:$0xff] %vm308, %v617
  %v637 = vld [vmem:[%s0 + $0x130] sm:$0xff]
  %v638 = vld [vmem:[%s0 + $0x138] sm:$0xff]
  %v639 = vld [vmem:[%s0 + $0x140] sm:$0xff]
  %v640 = vld [vmem:[%s0 + $0x148] sm:$0xff]
  %v641 = vld [vmem:[%s0 + $0x150] sm:$0xff]
  %v642 = vld [vmem:[%s0 + $0x158] sm:$0xff]
  %v643 = vld [vmem:[%s0 + $0x160] sm:$0xff]
  %v644 = vld [vmem:[%s0 + $0x168] sm:$0xff]
  %v645 = vld [vmem:[%s0 + $0x170] sm:$0xff]
  %v646 = vld [vmem:[%s0 + $0x178] sm:$0xff]
  %v647 = vld [vmem:[%s0 + $0x180] sm:$0xff]
  %v648 = vld [vmem:[%s0 + $0x188] sm:$0xff]
  %v649 = vld [vmem:[%s0 + $0x190] sm:$0xff]
  %v650 = vld [vmem:[%s0 + $0x198] sm:$0xff]
  %v651 = vld [vmem:[%s0 + $0x1a0] sm:$0xff]
  %v652 = vld [vmem:[%s0 + $0x1a8] sm:$0xff]
  %v653 = vld [vmem:[%s0 + $0x1b0] sm:$0xff]
  %v654 = vld [vmem:[%s0 + $0x1b8] sm:$0xff]
  %v655 = vld [vmem:[%s0 + $0x1c0] sm:$0xff]
  %v656 = vld [vmem:[%s1] sm:$0xff]
  %v657 = vld [vmem:[%s1 + $0x8] sm:$0xff]
  %v658 = vld [vmem:[%s1 + $0x10] sm:$0xff]
  %v659 = vld [vmem:[%s1 + $0x18] sm:$0xff]
  %v660 = vld [vmem:[%s1 + $0x20] sm:$0xff]
  %v661 = vld [vmem:[%s1 + $0x28] sm:$0xff]
  %v662 = vld [vmem:[%s2 + $0x12d] sm:$0x1]
  %v663 = vlaneseq
  %v664 = vshrl.u32 %v663, 7
  %v665 = vsub.s32 0, %v664
  %v666 = vrot.slane %v662, %v665
  %673 = vrot.lane.b32.xlu0 %v656, 32
  %v674 = vpop.permute.xlu0 %673
  %675 = vrot.lane.b32.xlu0 %v657, 32
  %v676 = vpop.permute.xlu0 %675
  %677 = vrot.lane.b32.xlu0 %v658, 32
  %v678 = vpop.permute.xlu0 %677
  %679 = vrot.lane.b32.xlu0 %v659, 32
  %v680 = vpop.permute.xlu0 %679
  %681 = vrot.lane.b32.xlu0 %v660, 32
  %v682 = vpop.permute.xlu0 %681
  %683 = vrot.lane.b32.xlu0 %v661, 32
  %v684 = vpop.permute.xlu0 %683
  %v692 = vsel %vm71, %v637, 0
  %v695 = vsel %vm71, %v638, 0
  %v698 = vsel %vm71, %v639, 0
  %v701 = vsel %vm71, %v640, 0
  %v704 = vsel %vm71, %v641, 0
  %v707 = vsel %vm71, %v642, 0
  %v710 = vsel %vm71, %v643, 0
  %v713 = vsel %vm71, %v644, 0
  %v716 = vsel %vm71, %v645, 0
  %v719 = vsel %vm71, %v646, 0
  %v722 = vsel %vm71, %v647, 0
  %v725 = vsel %vm71, %v648, 0
  %v728 = vsel %vm71, %v649, 0
  %v731 = vsel %vm71, %v650, 0
  %v734 = vsel %vm71, %v651, 0
  %v737 = vsel %vm71, %v652, 0
  %v740 = vsel %vm71, %v653, 0
  %v743 = vsel %vm71, %v654, 0
  %v746 = vsel %vm71, %v655, 0
  %748 = vmatprep.subr.mxu0 0.0
  %749 = vmatpush1.msra.mxu0 %v674
  %750 = vmatprep.subr.mxu0 0.0
  %751 = vmatpush1.msra.mxu0 %v676
  %752 = vmatprep.subr.mxu0 0.0
  %753 = vmatpush1.msra.mxu0 %v678
  %754 = vmatprep.subr.mxu0 0.0
  %755 = vmatpush1.msra.mxu0 %v680
  %756 = vmatprep.subr.mxu0 0.0
  %757 = vmatpush1.msra.mxu0 %v682
  %758 = vmatprep.subr.mxu0 0.0
  %759 = vmatpush1.msra.mxu0 %v684
  %760 = vmatprep.subr.mxu0 0.0
  %761 = vmatpush1.msra.mxu0 0.0
  %762 = vmatprep.subr.mxu0 0.0
  %763 = vmatpush1.msra.mxu0 0.0
  %764 = vmatprep.subr.mxu0 0.0
  %765 = vmatpush1.msra.mxu0 0.0
  %766 = vmatprep.subr.mxu0 0.0
  %767 = vmatpush1.msra.mxu0 0.0
  %768 = vmatprep.subr.mxu0 0.0
  %769 = vmatpush1.msra.mxu0 0.0
  %770 = vmatprep.subr.mxu0 0.0
  %771 = vmatpush1.msra.mxu0 0.0
  %772 = vmatprep.subr.mxu0 0.0
  %773 = vmatpush1.msra.mxu0 0.0
  %774 = vmatprep.subr.mxu0 0.0
  %775 = vmatpush1.msra.mxu0 0.0
  %776 = vmatprep.subr.mxu0 0.0
  %777 = vmatpush1.msra.mxu0 0.0
  %778 = vmatprep.subr.mxu0 0.0
  %779 = vmatpush1.msra.mxu0 0.0
  %780 = vmatprep.subr.mxu0 0.0
  %781 = vmatpush1.msra.mxu0 0.0
  %782 = vmatprep.subr.mxu0 0.0
  %783 = vmatpush1.msra.mxu0 0.0
  %784 = vmatprep.subr.mxu0 0.0
  %785 = vmatpush1.msra.mxu0 0.0
  %786 = vmatprep.subr.mxu0 0.0
  %787 = vmatpush1.msra.mxu0 0.0
  %788 = vmatprep.subr.mxu0 0.0
  %789 = vmatpush1.msra.mxu0 0.0
  %790 = vmatprep.subr.mxu0 0.0
  %791 = vmatpush1.msra.mxu0 0.0
  %792 = vmatprep.subr.mxu0 0.0
  %793 = vmatpush1.msra.mxu0 0.0
  %794 = vmatprep.subr.mxu0 0.0
  %795 = vmatpush1.msra.mxu0 0.0
  %796 = vmatprep.subr.mxu0 0.0
  %797 = vmatpush1.msra.mxu0 0.0
  %798 = vmatprep.subr.mxu0 0.0
  %799 = vmatpush1.msra.mxu0 0.0
  %800 = vmatprep.subr.mxu0 0.0
  %801 = vmatpush1.msra.mxu0 0.0
  %802 = vmatprep.subr.mxu0 0.0
  %803 = vmatpush1.msra.mxu0 0.0
  %804 = vmatprep.subr.mxu0 0.0
  %805 = vmatpush1.msra.mxu0 0.0
  %806 = vmatprep.subr.mxu0 0.0
  %807 = vmatpush1.msra.mxu0 0.0
  %808 = vmatprep.subr.mxu0 0.0
  %809 = vmatpush1.msra.mxu0 0.0
  %810 = vmatprep.subr.mxu0 0.0
  %811 = vmatpush1.msra.mxu0 0.0
  %812 = vmatprep.mubr.f32.mxu0 0.0
  %813 = vmatmul.mubr.f32.gmra.mrb[0].mxu0 %v692
  %v814 = vpop.f32.mrb[0].mxu0
  %v815 = vadd.f32 %v666, %v814
  %v816 = vpop.f32.mrb[0].mxu0
  %817 = vmatprep.mubr.f32.mxu0 0.0
  %818 = vmatmul.mubr.f32.gmra.mrb[0].mxu0 %v695
  %v819 = vpop.f32.mrb[0].mxu0
  %v820 = vadd.f32 %v666, %v819
  %v821 = vpop.f32.mrb[0].mxu0
  %822 = vmatprep.mubr.f32.mxu0 0.0
  %823 = vmatmul.mubr.f32.gmra.mrb[0].mxu0 %v698
  %v824 = vpop.f32.mrb[0].mxu0
  %v825 = vadd.f32 %v666, %v824
  %v826 = vpop.f32.mrb[0].mxu0
  %827 = vmatprep.mubr.f32.mxu0 0.0
  %828 = vmatmul.mubr.f32.gmra.mrb[0].mxu0 %v701
  %v829 = vpop.f32.mrb[0].mxu0
  %v830 = vadd.f32 %v666, %v829
  %v831 = vpop.f32.mrb[0].mxu0
  %832 = vmatprep.mubr.f32.mxu0 0.0
  %833 = vmatmul.mubr.f32.gmra.mrb[0].mxu0 %v704
  %v834 = vpop.f32.mrb[0].mxu0
  %v835 = vadd.f32 %v666, %v834
  %v836 = vpop.f32.mrb[0].mxu0
  %837 = vmatprep.mubr.f32.mxu0 0.0
  %838 = vmatmul.mubr.f32.gmra.mrb[0].mxu0 %v707
  %v839 = vpop.f32.mrb[0].mxu0
  %v840 = vadd.f32 %v666, %v839
  %v841 = vpop.f32.mrb[0].mxu0
  %842 = vmatprep.mubr.f32.mxu0 0.0
  %843 = vmatmul.mubr.f32.gmra.mrb[0].mxu0 %v710
  %v844 = vpop.f32.mrb[0].mxu0
  %v845 = vadd.f32 %v666, %v844
  %v846 = vpop.f32.mrb[0].mxu0
  %847 = vmatprep.mubr.f32.mxu0 0.0
  %848 = vmatmul.mubr.f32.gmra.mrb[0].mxu0 %v713
  %v849 = vpop.f32.mrb[0].mxu0
  %v850 = vadd.f32 %v666, %v849
  %v851 = vpop.f32.mrb[0].mxu0
  %852 = vmatprep.mubr.f32.mxu0 0.0
  %853 = vmatmul.mubr.f32.gmra.mrb[0].mxu0 %v716
  %v854 = vpop.f32.mrb[0].mxu0
  %v855 = vadd.f32 %v666, %v854
  %v856 = vpop.f32.mrb[0].mxu0
  %857 = vmatprep.mubr.f32.mxu0 0.0
  %858 = vmatmul.mubr.f32.gmra.mrb[0].mxu0 %v719
  %v859 = vpop.f32.mrb[0].mxu0
  %v860 = vadd.f32 %v666, %v859
  %v861 = vpop.f32.mrb[0].mxu0
  %862 = vmatprep.mubr.f32.mxu0 0.0
  %863 = vmatmul.mubr.f32.gmra.mrb[0].mxu0 %v722
  %v864 = vpop.f32.mrb[0].mxu0
  %v865 = vadd.f32 %v666, %v864
  %v866 = vpop.f32.mrb[0].mxu0
  %867 = vmatprep.mubr.f32.mxu0 0.0
  %868 = vmatmul.mubr.f32.gmra.mrb[0].mxu0 %v725
  %v869 = vpop.f32.mrb[0].mxu0
  %v870 = vadd.f32 %v666, %v869
  %v871 = vpop.f32.mrb[0].mxu0
  %872 = vmatprep.mubr.f32.mxu0 0.0
  %873 = vmatmul.mubr.f32.gmra.mrb[0].mxu0 %v728
  %v874 = vpop.f32.mrb[0].mxu0
  %v875 = vadd.f32 %v666, %v874
  %v876 = vpop.f32.mrb[0].mxu0
  %877 = vmatprep.mubr.f32.mxu0 0.0
  %878 = vmatmul.mubr.f32.gmra.mrb[0].mxu0 %v731
  %v879 = vpop.f32.mrb[0].mxu0
  %v880 = vadd.f32 %v666, %v879
  %v881 = vpop.f32.mrb[0].mxu0
  %882 = vmatprep.mubr.f32.mxu0 0.0
  %883 = vmatmul.mubr.f32.gmra.mrb[0].mxu0 %v734
  %v884 = vpop.f32.mrb[0].mxu0
  %v885 = vadd.f32 %v666, %v884
  %v886 = vpop.f32.mrb[0].mxu0
  %887 = vmatprep.mubr.f32.mxu0 0.0
  %888 = vmatmul.mubr.f32.gmra.mrb[0].mxu0 %v737
  %v889 = vpop.f32.mrb[0].mxu0
  %v890 = vadd.f32 %v666, %v889
  %v891 = vpop.f32.mrb[0].mxu0
  %892 = vmatprep.mubr.f32.mxu0 0.0
  %893 = vmatmul.mubr.f32.gmra.mrb[0].mxu0 %v740
  %v894 = vpop.f32.mrb[0].mxu0
  %v895 = vadd.f32 %v666, %v894
  %v896 = vpop.f32.mrb[0].mxu0
  %897 = vmatprep.mubr.f32.mxu0 0.0
  %898 = vmatmul.mubr.f32.gmra.mrb[0].mxu0 %v743
  %v899 = vpop.f32.mrb[0].mxu0
  %v900 = vadd.f32 %v666, %v899
  %v901 = vpop.f32.mrb[0].mxu0
  %902 = vmatprep.mubr.f32.mxu0 0.0
  %903 = vmatmul.mubr.f32.gmra.mrb[0].mxu0 %v746
  %v904 = vpop.f32.mrb[0].mxu0
  %v905 = vadd.f32 %v666, %v904
  %v906 = vpop.f32.mrb[0].mxu0
  %907 = vdwg.mxu0
  %v908 = vmax.f32 %v815, 0.0
  %v909 = vmax.f32 %v820, 0.0
  %v910 = vmax.f32 %v825, 0.0
  %v911 = vmax.f32 %v830, 0.0
  %v912 = vmax.f32 %v835, 0.0
  %v913 = vmax.f32 %v840, 0.0
  %v914 = vmax.f32 %v845, 0.0
  %v915 = vmax.f32 %v850, 0.0
  %v916 = vmax.f32 %v855, 0.0
  %v917 = vmax.f32 %v860, 0.0
  %v918 = vmax.f32 %v865, 0.0
  %v919 = vmax.f32 %v870, 0.0
  %v920 = vmax.f32 %v875, 0.0
  %v921 = vmax.f32 %v880, 0.0
  %v922 = vmax.f32 %v885, 0.0
  %v923 = vmax.f32 %v890, 0.0
  %v924 = vmax.f32 %v895, 0.0
  %v925 = vmax.f32 %v900, 0.0
  %v926 = vmax.f32 %v905, 0.0
  %927 = vst.msk [vmem:[#allocation2 + $0x130] sm:$0xff] %vm308, %v908
  %928 = vst.msk [vmem:[#allocation2 + $0x138] sm:$0xff] %vm308, %v909
  %929 = vst.msk [vmem:[#allocation2 + $0x140] sm:$0xff] %vm308, %v910
  %930 = vst.msk [vmem:[#allocation2 + $0x148] sm:$0xff] %vm308, %v911
  %931 = vst.msk [vmem:[#allocation2 + $0x150] sm:$0xff] %vm308, %v912
  %932 = vst.msk [vmem:[#allocation2 + $0x158] sm:$0xff] %vm308, %v913
  %933 = vst.msk [vmem:[#allocation2 + $0x160] sm:$0xff] %vm308, %v914
  %934 = vst.msk [vmem:[#allocation2 + $0x168] sm:$0xff] %vm308, %v915
  %935 = vst.msk [vmem:[#allocation2 + $0x170] sm:$0xff] %vm308, %v916
  %936 = vst.msk [vmem:[#allocation2 + $0x178] sm:$0xff] %vm308, %v917
  %937 = vst.msk [vmem:[#allocation2 + $0x180] sm:$0xff] %vm308, %v918
  %938 = vst.msk [vmem:[#allocation2 + $0x188] sm:$0xff] %vm308, %v919
  %939 = vst.msk [vmem:[#allocation2 + $0x190] sm:$0xff] %vm308, %v920
  %940 = vst.msk [vmem:[#allocation2 + $0x198] sm:$0xff] %vm308, %v921
  %941 = vst.msk [vmem:[#allocation2 + $0x1a0] sm:$0xff] %vm308, %v922
  %942 = vst.msk [vmem:[#allocation2 + $0x1a8] sm:$0xff] %vm308, %v923
  %943 = vst.msk [vmem:[#allocation2 + $0x1b0] sm:$0xff] %vm308, %v924
  %944 = vst.msk [vmem:[#allocation2 + $0x1b8] sm:$0xff] %vm308, %v925
  %945 = vst.msk [vmem:[#allocation2 + $0x1c0] sm:$0xff] %vm308, %v926
  %v946 = vld [vmem:[#allocation2] ss:$2 sm:$0xff]
  %s947 = scalar_lea.vmem [#allocation2], 16
  %v948 = vld [vmem:[%s947] ss:$2 sm:$0xff]
  %s949 = scalar_lea.vmem [#allocation2], 32
  %v950 = vld [vmem:[%s949] ss:$2 sm:$0xff]
  %s951 = scalar_lea.vmem [#allocation2], 48
  %v952 = vld [vmem:[%s951] ss:$2 sm:$0xff]
  %s953 = scalar_lea.vmem [#allocation2], 64
  %v954 = vld [vmem:[%s953] ss:$2 sm:$0xff]
  %s955 = scalar_lea.vmem [#allocation2], 80
  %v956 = vld [vmem:[%s955] ss:$2 sm:$0xff]
  %s957 = scalar_lea.vmem [#allocation2], 96
  %v958 = vld [vmem:[%s957] ss:$2 sm:$0xff]
  %s959 = scalar_lea.vmem [#allocation2], 112
  %v960 = vld [vmem:[%s959] ss:$2 sm:$0xff]
  %s961 = scalar_lea.vmem [#allocation2], 128
  %v962 = vld [vmem:[%s961] ss:$2 sm:$0xff]
  %s963 = scalar_lea.vmem [#allocation2], 144
  %v964 = vld [vmem:[%s963] ss:$2 sm:$0xff]
  %s965 = scalar_lea.vmem [#allocation2], 160
  %v966 = vld [vmem:[%s965] ss:$2 sm:$0xff]
  %s967 = scalar_lea.vmem [#allocation2], 176
  %v968 = vld [vmem:[%s967] ss:$2 sm:$0xff]
  %s969 = scalar_lea.vmem [#allocation2], 192
  %v970 = vld [vmem:[%s969] ss:$2 sm:$0xff]
  %s971 = scalar_lea.vmem [#allocation2], 208
  %v972 = vld [vmem:[%s971] ss:$2 sm:$0xff]
  %s973 = scalar_lea.vmem [#allocation2], 224
  %v974 = vld [vmem:[%s973] ss:$2 sm:$0xff]
  %s975 = scalar_lea.vmem [#allocation2], 240
  %v976 = vld [vmem:[%s975] ss:$2 sm:$0xff]
  %s977 = scalar_lea.vmem [#allocation2], 256
  %v978 = vld [vmem:[%s977] ss:$2 sm:$0xff]
  %s979 = scalar_lea.vmem [#allocation2], 272
  %v980 = vld [vmem:[%s979] ss:$2 sm:$0xff]
  %s981 = scalar_lea.vmem [#allocation2], 288
  %v982 = vld [vmem:[%s981] ss:$2 sm:$0xff]
  %s983 = scalar_lea.vmem [#allocation2], 304
  %v984 = vld [vmem:[%s983] ss:$2 sm:$0xff]
  %s985 = scalar_lea.vmem [#allocation2], 320
  %v986 = vld [vmem:[%s985] ss:$2 sm:$0xff]
  %s987 = scalar_lea.vmem [#allocation2], 336
  %v988 = vld [vmem:[%s987] ss:$2 sm:$0xff]
  %s989 = scalar_lea.vmem [#allocation2], 352
  %v990 = vld [vmem:[%s989] ss:$2 sm:$0xff]
  %s991 = scalar_lea.vmem [#allocation2], 368
  %v992 = vld [vmem:[%s991] ss:$2 sm:$0xff]
  %993 = vst.msk [vmem:[#allocation6] sm:$0xff] %vm308, %v946
  %994 = vst.msk [vmem:[#allocation6 + $0x20] sm:$0xff] %vm308, %v948
  %995 = vst.msk [vmem:[#allocation6 + $0x40] sm:$0xff] %vm308, %v950
  %996 = vst.msk [vmem:[#allocation6 + $0x60] sm:$0xff] %vm308, %v952
  %997 = vst.msk [vmem:[#allocation6 + $0x80] sm:$0xff] %vm308, %v954
  %998 = vst.msk [vmem:[#allocation6 + $0xa0] sm:$0xff] %vm308, %v956
  %999 = vst.msk [vmem:[#allocation6 + $0xc0] sm:$0xff] %vm308, %v958
  %1000 = vst.msk [vmem:[#allocation6 + $0xe0] sm:$0xff] %vm308, %v960
  %1001 = vst.msk [vmem:[#allocation6 + $0x100] sm:$0xff] %vm308, %v962
  %1002 = vst.msk [vmem:[#allocation6 + $0x120] sm:$0xff] %vm308, %v964
  %1003 = vst.msk [vmem:[#allocation6 + $0x140] sm:$0xff] %vm308, %v966
  %1004 = vst.msk [vmem:[#allocation6 + $0x160] sm:$0xff] %vm308, %v968
  %1005 = vst.msk [vmem:[#allocation6 + $0x180] sm:$0xff] %vm308, %v970
  %1006 = vst.msk [vmem:[#allocation6 + $0x1a0] sm:$0xff] %vm308, %v972
  %1007 = vst.msk [vmem:[#allocation6 + $0x1c0] sm:$0xff] %vm308, %v974
  %1008 = vst.msk [vmem:[#allocation6 + $0x1e0] sm:$0xff] %vm308, %v976
  %1009 = vst.msk [vmem:[#allocation6 + $0x200] sm:$0xff] %vm308, %v978
  %1010 = vst.msk [vmem:[#allocation6 + $0x220] sm:$0xff] %vm308, %v980
  %1011 = vst.msk [vmem:[#allocation6 + $0x240] sm:$0xff] %vm308, %v982
  %1012 = vst.msk [vmem:[#allocation6 + $0x260] sm:$0xff] %vm308, %v984
  %1013 = vst.msk [vmem:[#allocation6 + $0x280] sm:$0xff] %vm308, %v986
  %1014 = vst.msk [vmem:[#allocation6 + $0x2a0] sm:$0xff] %vm308, %v988
  %1015 = vst.msk [vmem:[#allocation6 + $0x2c0] sm:$0xff] %vm308, %v990
  %1016 = vst.msk [vmem:[#allocation6 + $0x2e0] sm:$0xff] %vm308, %v992
  %s1017 = scalar_lea.vmem [#allocation2], 1
  %v1018 = vld [vmem:[%s1017] ss:$2 sm:$0xff]
  %s1019 = scalar_lea.vmem [#allocation2], 17
  %v1020 = vld [vmem:[%s1019] ss:$2 sm:$0xff]
  %s1021 = scalar_lea.vmem [#allocation2], 33
  %v1022 = vld [vmem:[%s1021] ss:$2 sm:$0xff]
  %s1023 = scalar_lea.vmem [#allocation2], 49
  %v1024 = vld [vmem:[%s1023] ss:$2 sm:$0xff]
  %s1025 = scalar_lea.vmem [#allocation2], 65
  %v1026 = vld [vmem:[%s1025] ss:$2 sm:$0xff]
  %s1027 = scalar_lea.vmem [#allocation2], 81
  %v1028 = vld [vmem:[%s1027] ss:$2 sm:$0xff]
  %s1029 = scalar_lea.vmem [#allocation2], 97
  %v1030 = vld [vmem:[%s1029] ss:$2 sm:$0xff]
  %s1031 = scalar_lea.vmem [#allocation2], 113
  %v1032 = vld [vmem:[%s1031] ss:$2 sm:$0xff]
  %s1033 = scalar_lea.vmem [#allocation2], 129
  %v1034 = vld [vmem:[%s1033] ss:$2 sm:$0xff]
  %s1035 = scalar_lea.vmem [#allocation2], 145
  %v1036 = vld [vmem:[%s1035] ss:$2 sm:$0xff]
  %s1037 = scalar_lea.vmem [#allocation2], 161
  %v1038 = vld [vmem:[%s1037] ss:$2 sm:$0xff]
  %s1039 = scalar_lea.vmem [#allocation2], 177
  %v1040 = vld [vmem:[%s1039] ss:$2 sm:$0xff]
  %s1041 = scalar_lea.vmem [#allocation2], 193
  %v1042 = vld [vmem:[%s1041] ss:$2 sm:$0xff]
  %s1043 = scalar_lea.vmem [#allocation2], 209
  %v1044 = vld [vmem:[%s1043] ss:$2 sm:$0xff]
  %s1045 = scalar_lea.vmem [#allocation2], 225
  %v1046 = vld [vmem:[%s1045] ss:$2 sm:$0xff]
  %s1047 = scalar_lea.vmem [#allocation2], 241
  %v1048 = vld [vmem:[%s1047] ss:$2 sm:$0xff]
  %s1049 = scalar_lea.vmem [#allocation2], 257
  %v1050 = vld [vmem:[%s1049] ss:$2 sm:$0xff]
  %s1051 = scalar_lea.vmem [#allocation2], 273
  %v1052 = vld [vmem:[%s1051] ss:$2 sm:$0xff]
  %s1053 = scalar_lea.vmem [#allocation2], 289
  %v1054 = vld [vmem:[%s1053] ss:$2 sm:$0xff]
  %s1055 = scalar_lea.vmem [#allocation2], 305
  %v1056 = vld [vmem:[%s1055] ss:$2 sm:$0xff]
  %s1057 = scalar_lea.vmem [#allocation2], 321
  %v1058 = vld [vmem:[%s1057] ss:$2 sm:$0xff]
  %s1059 = scalar_lea.vmem [#allocation2], 337
  %v1060 = vld [vmem:[%s1059] ss:$2 sm:$0xff]
  %s1061 = scalar_lea.vmem [#allocation2], 353
  %v1062 = vld [vmem:[%s1061] ss:$2 sm:$0xff]
  %s1063 = scalar_lea.vmem [#allocation2], 369
  %v1064 = vld [vmem:[%s1063] ss:$2 sm:$0xff]
  %1089 = vrot.lane.b32.xlu0 %v1018, 32
  %v1090 = vpop.permute.xlu0 %1089
  %1091 = vrot.lane.b32.xlu0 %v1020, 32
  %v1092 = vpop.permute.xlu0 %1091
  %1093 = vrot.lane.b32.xlu0 %v1022, 32
  %v1094 = vpop.permute.xlu0 %1093
  %1095 = vrot.lane.b32.xlu0 %v1024, 32
  %v1096 = vpop.permute.xlu0 %1095
  %1097 = vrot.lane.b32.xlu0 %v1026, 32
  %v1098 = vpop.permute.xlu0 %1097
  %1099 = vrot.lane.b32.xlu0 %v1028, 32
  %v1100 = vpop.permute.xlu0 %1099
  %1101 = vrot.lane.b32.xlu0 %v1030, 32
  %v1102 = vpop.permute.xlu0 %1101
  %1103 = vrot.lane.b32.xlu0 %v1032, 32
  %v1104 = vpop.permute.xlu0 %1103
  %1105 = vrot.lane.b32.xlu0 %v1034, 32
  %v1106 = vpop.permute.xlu0 %1105
  %1107 = vrot.lane.b32.xlu0 %v1036, 32
  %v1108 = vpop.permute.xlu0 %1107
  %1109 = vrot.lane.b32.xlu0 %v1038, 32
  %v1110 = vpop.permute.xlu0 %1109
  %1111 = vrot.lane.b32.xlu0 %v1040, 32
  %v1112 = vpop.permute.xlu0 %1111
  %1113 = vrot.lane.b32.xlu0 %v1042, 32
  %v1114 = vpop.permute.xlu0 %1113
  %1115 = vrot.lane.b32.xlu0 %v1044, 32
  %v1116 = vpop.permute.xlu0 %1115
  %1117 = vrot.lane.b32.xlu0 %v1046, 32
  %v1118 = vpop.permute.xlu0 %1117
  %1119 = vrot.lane.b32.xlu0 %v1048, 32
  %v1120 = vpop.permute.xlu0 %1119
  %1121 = vrot.lane.b32.xlu0 %v1050, 32
  %v1122 = vpop.permute.xlu0 %1121
  %1123 = vrot.lane.b32.xlu0 %v1052, 32
  %v1124 = vpop.permute.xlu0 %1123
  %1125 = vrot.lane.b32.xlu0 %v1054, 32
  %v1126 = vpop.permute.xlu0 %1125
  %1127 = vrot.lane.b32.xlu0 %v1056, 32
  %v1128 = vpop.permute.xlu0 %1127
  %1129 = vrot.lane.b32.xlu0 %v1058, 32
  %v1130 = vpop.permute.xlu0 %1129
  %1131 = vrot.lane.b32.xlu0 %v1060, 32
  %v1132 = vpop.permute.xlu0 %1131
  %1133 = vrot.lane.b32.xlu0 %v1062, 32
  %v1134 = vpop.permute.xlu0 %1133
  %1135 = vrot.lane.b32.xlu0 %v1064, 32
  %v1136 = vpop.permute.xlu0 %1135
  %vm1161 = vcmask 523520
  %1162 = vst.msk [vmem:[#allocation6] sm:$0xff] %vm1161, %v1090
  %1163 = vst.msk [vmem:[#allocation6 + $0x20] sm:$0xff] %vm1161, %v1092
  %1164 = vst.msk [vmem:[#allocation6 + $0x40] sm:$0xff] %vm1161, %v1094
  %1165 = vst.msk [vmem:[#allocation6 + $0x60] sm:$0xff] %vm1161, %v1096
  %1166 = vst.msk [vmem:[#allocation6 + $0x80] sm:$0xff] %vm1161, %v1098
  %1167 = vst.msk [vmem:[#allocation6 + $0xa0] sm:$0xff] %vm1161, %v1100
  %1168 = vst.msk [vmem:[#allocation6 + $0xc0] sm:$0xff] %vm1161, %v1102
  %1169 = vst.msk [vmem:[#allocation6 + $0xe0] sm:$0xff] %vm1161, %v1104
  %1170 = vst.msk [vmem:[#allocation6 + $0x100] sm:$0xff] %vm1161, %v1106
  %1171 = vst.msk [vmem:[#allocation6 + $0x120] sm:$0xff] %vm1161, %v1108
  %1172 = vst.msk [vmem:[#allocation6 + $0x140] sm:$0xff] %vm1161, %v1110
  %1173 = vst.msk [vmem:[#allocation6 + $0x160] sm:$0xff] %vm1161, %v1112
  %1174 = vst.msk [vmem:[#allocation6 + $0x180] sm:$0xff] %vm1161, %v1114
  %1175 = vst.msk [vmem:[#allocation6 + $0x1a0] sm:$0xff] %vm1161, %v1116
  %1176 = vst.msk [vmem:[#allocation6 + $0x1c0] sm:$0xff] %vm1161, %v1118
  %1177 = vst.msk [vmem:[#allocation6 + $0x1e0] sm:$0xff] %vm1161, %v1120
  %1178 = vst.msk [vmem:[#allocation6 + $0x200] sm:$0xff] %vm1161, %v1122
  %1179 = vst.msk [vmem:[#allocation6 + $0x220] sm:$0xff] %vm1161, %v1124
  %1180 = vst.msk [vmem:[#allocation6 + $0x240] sm:$0xff] %vm1161, %v1126
  %1181 = vst.msk [vmem:[#allocation6 + $0x260] sm:$0xff] %vm1161, %v1128
  %1182 = vst.msk [vmem:[#allocation6 + $0x280] sm:$0xff] %vm1161, %v1130
  %1183 = vst.msk [vmem:[#allocation6 + $0x2a0] sm:$0xff] %vm1161, %v1132
  %1184 = vst.msk [vmem:[#allocation6 + $0x2c0] sm:$0xff] %vm1161, %v1134
  %1185 = vst.msk [vmem:[#allocation6 + $0x2e0] sm:$0xff] %vm1161, %v1136
  %s1186 = scalar_lea.vmem [#allocation2], 2
  %v1187 = vld [vmem:[%s1186] ss:$2 sm:$0xff]
  %s1188 = scalar_lea.vmem [#allocation2], 18
  %v1189 = vld [vmem:[%s1188] ss:$2 sm:$0xff]
  %s1190 = scalar_lea.vmem [#allocation2], 34
  %v1191 = vld [vmem:[%s1190] ss:$2 sm:$0xff]
  %s1192 = scalar_lea.vmem [#allocation2], 50
  %v1193 = vld [vmem:[%s1192] ss:$2 sm:$0xff]
  %s1194 = scalar_lea.vmem [#allocation2], 66
  %v1195 = vld [vmem:[%s1194] ss:$2 sm:$0xff]
  %s1196 = scalar_lea.vmem [#allocation2], 82
  %v1197 = vld [vmem:[%s1196] ss:$2 sm:$0xff]
  %s1198 = scalar_lea.vmem [#allocation2], 98
  %v1199 = vld [vmem:[%s1198] ss:$2 sm:$0xff]
  %s1200 = scalar_lea.vmem [#allocation2], 114
  %v1201 = vld [vmem:[%s1200] ss:$2 sm:$0xff]
  %s1202 = scalar_lea.vmem [#allocation2], 130
  %v1203 = vld [vmem:[%s1202] ss:$2 sm:$0xff]
  %s1204 = scalar_lea.vmem [#allocation2], 146
  %v1205 = vld [vmem:[%s1204] ss:$2 sm:$0xff]
  %s1206 = scalar_lea.vmem [#allocation2], 162
  %v1207 = vld [vmem:[%s1206] ss:$2 sm:$0xff]
  %s1208 = scalar_lea.vmem [#allocation2], 178
  %v1209 = vld [vmem:[%s1208] ss:$2 sm:$0xff]
  %s1210 = scalar_lea.vmem [#allocation2], 194
  %v1211 = vld [vmem:[%s1210] ss:$2 sm:$0xff]
  %s1212 = scalar_lea.vmem [#allocation2], 210
  %v1213 = vld [vmem:[%s1212] ss:$2 sm:$0xff]
  %s1214 = scalar_lea.vmem [#allocation2], 226
  %v1215 = vld [vmem:[%s1214] ss:$2 sm:$0xff]
  %s1216 = scalar_lea.vmem [#allocation2], 242
  %v1217 = vld [vmem:[%s1216] ss:$2 sm:$0xff]
  %s1218 = scalar_lea.vmem [#allocation2], 258
  %v1219 = vld [vmem:[%s1218] ss:$2 sm:$0xff]
  %s1220 = scalar_lea.vmem [#allocation2], 274
  %v1221 = vld [vmem:[%s1220] ss:$2 sm:$0xff]
  %s1222 = scalar_lea.vmem [#allocation2], 290
  %v1223 = vld [vmem:[%s1222] ss:$2 sm:$0xff]
  %s1224 = scalar_lea.vmem [#allocation2], 306
  %v1225 = vld [vmem:[%s1224] ss:$2 sm:$0xff]
  %s1226 = scalar_lea.vmem [#allocation2], 322
  %v1227 = vld [vmem:[%s1226] ss:$2 sm:$0xff]
  %s1228 = scalar_lea.vmem [#allocation2], 338
  %v1229 = vld [vmem:[%s1228] ss:$2 sm:$0xff]
  %s1230 = scalar_lea.vmem [#allocation2], 354
  %v1231 = vld [vmem:[%s1230] ss:$2 sm:$0xff]
  %s1232 = scalar_lea.vmem [#allocation2], 370
  %v1233 = vld [vmem:[%s1232] ss:$2 sm:$0xff]
  %1258 = vrot.lane.b32.xlu0 %v1187, 64
  %v1259 = vpop.permute.xlu0 %1258
  %1260 = vrot.lane.b32.xlu0 %v1189, 64
  %v1261 = vpop.permute.xlu0 %1260
  %1262 = vrot.lane.b32.xlu0 %v1191, 64
  %v1263 = vpop.permute.xlu0 %1262
  %1264 = vrot.lane.b32.xlu0 %v1193, 64
  %v1265 = vpop.permute.xlu0 %1264
  %1266 = vrot.lane.b32.xlu0 %v1195, 64
  %v1267 = vpop.permute.xlu0 %1266
  %1268 = vrot.lane.b32.xlu0 %v1197, 64
  %v1269 = vpop.permute.xlu0 %1268
  %1270 = vrot.lane.b32.xlu0 %v1199, 64
  %v1271 = vpop.permute.xlu0 %1270
  %1272 = vrot.lane.b32.xlu0 %v1201, 64
  %v1273 = vpop.permute.xlu0 %1272
  %1274 = vrot.lane.b32.xlu0 %v1203, 64
  %v1275 = vpop.permute.xlu0 %1274
  %1276 = vrot.lane.b32.xlu0 %v1205, 64
  %v1277 = vpop.permute.xlu0 %1276
  %1278 = vrot.lane.b32.xlu0 %v1207, 64
  %v1279 = vpop.permute.xlu0 %1278
  %1280 = vrot.lane.b32.xlu0 %v1209, 64
  %v1281 = vpop.permute.xlu0 %1280
  %1282 = vrot.lane.b32.xlu0 %v1211, 64
  %v1283 = vpop.permute.xlu0 %1282
  %1284 = vrot.lane.b32.xlu0 %v1213, 64
  %v1285 = vpop.permute.xlu0 %1284
  %1286 = vrot.lane.b32.xlu0 %v1215, 64
  %v1287 = vpop.permute.xlu0 %1286
  %1288 = vrot.lane.b32.xlu0 %v1217, 64
  %v1289 = vpop.permute.xlu0 %1288
  %1290 = vrot.lane.b32.xlu0 %v1219, 64
  %v1291 = vpop.permute.xlu0 %1290
  %1292 = vrot.lane.b32.xlu0 %v1221, 64
  %v1293 = vpop.permute.xlu0 %1292
  %1294 = vrot.lane.b32.xlu0 %v1223, 64
  %v1295 = vpop.permute.xlu0 %1294
  %1296 = vrot.lane.b32.xlu0 %v1225, 64
  %v1297 = vpop.permute.xlu0 %1296
  %1298 = vrot.lane.b32.xlu0 %v1227, 64
  %v1299 = vpop.permute.xlu0 %1298
  %1300 = vrot.lane.b32.xlu0 %v1229, 64
  %v1301 = vpop.permute.xlu0 %1300
  %1302 = vrot.lane.b32.xlu0 %v1231, 64
  %v1303 = vpop.permute.xlu0 %1302
  %1304 = vrot.lane.b32.xlu0 %v1233, 64
  %v1305 = vpop.permute.xlu0 %1304
  %vm1330 = vcmask 785920
  %1331 = vst.msk [vmem:[#allocation6] sm:$0xff] %vm1330, %v1259
  %1332 = vst.msk [vmem:[#allocation6 + $0x20] sm:$0xff] %vm1330, %v1261
  %1333 = vst.msk [vmem:[#allocation6 + $0x40] sm:$0xff] %vm1330, %v1263
  %1334 = vst.msk [vmem:[#allocation6 + $0x60] sm:$0xff] %vm1330, %v1265
  %1335 = vst.msk [vmem:[#allocation6 + $0x80] sm:$0xff] %vm1330, %v1267
  %1336 = vst.msk [vmem:[#allocation6 + $0xa0] sm:$0xff] %vm1330, %v1269
  %1337 = vst.msk [vmem:[#allocation6 + $0xc0] sm:$0xff] %vm1330, %v1271
  %1338 = vst.msk [vmem:[#allocation6 + $0xe0] sm:$0xff] %vm1330, %v1273
  %1339 = vst.msk [vmem:[#allocation6 + $0x100] sm:$0xff] %vm1330, %v1275
  %1340 = vst.msk [vmem:[#allocation6 + $0x120] sm:$0xff] %vm1330, %v1277
  %1341 = vst.msk [vmem:[#allocation6 + $0x140] sm:$0xff] %vm1330, %v1279
  %1342 = vst.msk [vmem:[#allocation6 + $0x160] sm:$0xff] %vm1330, %v1281
  %1343 = vst.msk [vmem:[#allocation6 + $0x180] sm:$0xff] %vm1330, %v1283
  %1344 = vst.msk [vmem:[#allocation6 + $0x1a0] sm:$0xff] %vm1330, %v1285
  %1345 = vst.msk [vmem:[#allocation6 + $0x1c0] sm:$0xff] %vm1330, %v1287
  %1346 = vst.msk [vmem:[#allocation6 + $0x1e0] sm:$0xff] %vm1330, %v1289
  %1347 = vst.msk [vmem:[#allocation6 + $0x200] sm:$0xff] %vm1330, %v1291
  %1348 = vst.msk [vmem:[#allocation6 + $0x220] sm:$0xff] %vm1330, %v1293
  %1349 = vst.msk [vmem:[#allocation6 + $0x240] sm:$0xff] %vm1330, %v1295
  %1350 = vst.msk [vmem:[#allocation6 + $0x260] sm:$0xff] %vm1330, %v1297
  %1351 = vst.msk [vmem:[#allocation6 + $0x280] sm:$0xff] %vm1330, %v1299
  %1352 = vst.msk [vmem:[#allocation6 + $0x2a0] sm:$0xff] %vm1330, %v1301
  %1353 = vst.msk [vmem:[#allocation6 + $0x2c0] sm:$0xff] %vm1330, %v1303
  %1354 = vst.msk [vmem:[#allocation6 + $0x2e0] sm:$0xff] %vm1330, %v1305
  %s1355 = scalar_lea.vmem [#allocation2], 3
  %v1356 = vld [vmem:[%s1355] ss:$2 sm:$0xff]
  %s1357 = scalar_lea.vmem [#allocation2], 19
  %v1358 = vld [vmem:[%s1357] ss:$2 sm:$0xff]
  %s1359 = scalar_lea.vmem [#allocation2], 35
  %v1360 = vld [vmem:[%s1359] ss:$2 sm:$0xff]
  %s1361 = scalar_lea.vmem [#allocation2], 51
  %v1362 = vld [vmem:[%s1361] ss:$2 sm:$0xff]
  %s1363 = scalar_lea.vmem [#allocation2], 67
  %v1364 = vld [vmem:[%s1363] ss:$2 sm:$0xff]
  %s1365 = scalar_lea.vmem [#allocation2], 83
  %v1366 = vld [vmem:[%s1365] ss:$2 sm:$0xff]
  %s1367 = scalar_lea.vmem [#allocation2], 99
  %v1368 = vld [vmem:[%s1367] ss:$2 sm:$0xff]
  %s1369 = scalar_lea.vmem [#allocation2], 115
  %v1370 = vld [vmem:[%s1369] ss:$2 sm:$0xff]
  %s1371 = scalar_lea.vmem [#allocation2], 131
  %v1372 = vld [vmem:[%s1371] ss:$2 sm:$0xff]
  %s1373 = scalar_lea.vmem [#allocation2], 147
  %v1374 = vld [vmem:[%s1373] ss:$2 sm:$0xff]
  %s1375 = scalar_lea.vmem [#allocation2], 163
  %v1376 = vld [vmem:[%s1375] ss:$2 sm:$0xff]
  %s1377 = scalar_lea.vmem [#allocation2], 179
  %v1378 = vld [vmem:[%s1377] ss:$2 sm:$0xff]
  %s1379 = scalar_lea.vmem [#allocation2], 195
  %v1380 = vld [vmem:[%s1379] ss:$2 sm:$0xff]
  %s1381 = scalar_lea.vmem [#allocation2], 211
  %v1382 = vld [vmem:[%s1381] ss:$2 sm:$0xff]
  %s1383 = scalar_lea.vmem [#allocation2], 227
  %v1384 = vld [vmem:[%s1383] ss:$2 sm:$0xff]
  %s1385 = scalar_lea.vmem [#allocation2], 243
  %v1386 = vld [vmem:[%s1385] ss:$2 sm:$0xff]
  %s1387 = scalar_lea.vmem [#allocation2], 259
  %v1388 = vld [vmem:[%s1387] ss:$2 sm:$0xff]
  %s1389 = scalar_lea.vmem [#allocation2], 275
  %v1390 = vld [vmem:[%s1389] ss:$2 sm:$0xff]
  %s1391 = scalar_lea.vmem [#allocation2], 291
  %v1392 = vld [vmem:[%s1391] ss:$2 sm:$0xff]
  %s1393 = scalar_lea.vmem [#allocation2], 307
  %v1394 = vld [vmem:[%s1393] ss:$2 sm:$0xff]
  %s1395 = scalar_lea.vmem [#allocation2], 323
  %v1396 = vld [vmem:[%s1395] ss:$2 sm:$0xff]
  %s1397 = scalar_lea.vmem [#allocation2], 339
  %v1398 = vld [vmem:[%s1397] ss:$2 sm:$0xff]
  %s1399 = scalar_lea.vmem [#allocation2], 355
  %v1400 = vld [vmem:[%s1399] ss:$2 sm:$0xff]
  %s1401 = scalar_lea.vmem [#allocation2], 371
  %v1402 = vld [vmem:[%s1401] ss:$2 sm:$0xff]
  %1427 = vrot.lane.b32.xlu0 %v1356, 96
  %v1428 = vpop.permute.xlu0 %1427
  %1429 = vrot.lane.b32.xlu0 %v1358, 96
  %v1430 = vpop.permute.xlu0 %1429
  %1431 = vrot.lane.b32.xlu0 %v1360, 96
  %v1432 = vpop.permute.xlu0 %1431
  %1433 = vrot.lane.b32.xlu0 %v1362, 96
  %v1434 = vpop.permute.xlu0 %1433
  %1435 = vrot.lane.b32.xlu0 %v1364, 96
  %v1436 = vpop.permute.xlu0 %1435
  %1437 = vrot.lane.b32.xlu0 %v1366, 96
  %v1438 = vpop.permute.xlu0 %1437
  %1439 = vrot.lane.b32.xlu0 %v1368, 96
  %v1440 = vpop.permute.xlu0 %1439
  %1441 = vrot.lane.b32.xlu0 %v1370, 96
  %v1442 = vpop.permute.xlu0 %1441
  %1443 = vrot.lane.b32.xlu0 %v1372, 96
  %v1444 = vpop.permute.xlu0 %1443
  %1445 = vrot.lane.b32.xlu0 %v1374, 96
  %v1446 = vpop.permute.xlu0 %1445
  %1447 = vrot.lane.b32.xlu0 %v1376, 96
  %v1448 = vpop.permute.xlu0 %1447
  %1449 = vrot.lane.b32.xlu0 %v1378, 96
  %v1450 = vpop.permute.xlu0 %1449
  %1451 = vrot.lane.b32.xlu0 %v1380, 96
  %v1452 = vpop.permute.xlu0 %1451
  %1453 = vrot.lane.b32.xlu0 %v1382, 96
  %v1454 = vpop.permute.xlu0 %1453
  %1455 = vrot.lane.b32.xlu0 %v1384, 96
  %v1456 = vpop.permute.xlu0 %1455
  %1457 = vrot.lane.b32.xlu0 %v1386, 96
  %v1458 = vpop.permute.xlu0 %1457
  %1459 = vrot.lane.b32.xlu0 %v1388, 96
  %v1460 = vpop.permute.xlu0 %1459
  %1461 = vrot.lane.b32.xlu0 %v1390, 96
  %v1462 = vpop.permute.xlu0 %1461
  %1463 = vrot.lane.b32.xlu0 %v1392, 96
  %v1464 = vpop.permute.xlu0 %1463
  %1465 = vrot.lane.b32.xlu0 %v1394, 96
  %v1466 = vpop.permute.xlu0 %1465
  %1467 = vrot.lane.b32.xlu0 %v1396, 96
  %v1468 = vpop.permute.xlu0 %1467
  %1469 = vrot.lane.b32.xlu0 %v1398, 96
  %v1470 = vpop.permute.xlu0 %1469
  %1471 = vrot.lane.b32.xlu0 %v1400, 96
  %v1472 = vpop.permute.xlu0 %1471
  %1473 = vrot.lane.b32.xlu0 %v1402, 96
  %v1474 = vpop.permute.xlu0 %1473
  %vm1499 = vcmask 1048320
  %1500 = vst.msk [vmem:[#allocation6] sm:$0xff] %vm1499, %v1428
  %1501 = vst.msk [vmem:[#allocation6 + $0x20] sm:$0xff] %vm1499, %v1430
  %1502 = vst.msk [vmem:[#allocation6 + $0x40] sm:$0xff] %vm1499, %v1432
  %1503 = vst.msk [vmem:[#allocation6 + $0x60] sm:$0xff] %vm1499, %v1434
  %1504 = vst.msk [vmem:[#allocation6 + $0x80] sm:$0xff] %vm1499, %v1436
  %1505 = vst.msk [vmem:[#allocation6 + $0xa0] sm:$0xff] %vm1499, %v1438
  %1506 = vst.msk [vmem:[#allocation6 + $0xc0] sm:$0xff] %vm1499, %v1440
  %1507 = vst.msk [vmem:[#allocation6 + $0xe0] sm:$0xff] %vm1499, %v1442
  %1508 = vst.msk [vmem:[#allocation6 + $0x100] sm:$0xff] %vm1499, %v1444
  %1509 = vst.msk [vmem:[#allocation6 + $0x120] sm:$0xff] %vm1499, %v1446
  %1510 = vst.msk [vmem:[#allocation6 + $0x140] sm:$0xff] %vm1499, %v1448
  %1511 = vst.msk [vmem:[#allocation6 + $0x160] sm:$0xff] %vm1499, %v1450
  %1512 = vst.msk [vmem:[#allocation6 + $0x180] sm:$0xff] %vm1499, %v1452
  %1513 = vst.msk [vmem:[#allocation6 + $0x1a0] sm:$0xff] %vm1499, %v1454
  %1514 = vst.msk [vmem:[#allocation6 + $0x1c0] sm:$0xff] %vm1499, %v1456
  %1515 = vst.msk [vmem:[#allocation6 + $0x1e0] sm:$0xff] %vm1499, %v1458
  %1516 = vst.msk [vmem:[#allocation6 + $0x200] sm:$0xff] %vm1499, %v1460
  %1517 = vst.msk [vmem:[#allocation6 + $0x220] sm:$0xff] %vm1499, %v1462
  %1518 = vst.msk [vmem:[#allocation6 + $0x240] sm:$0xff] %vm1499, %v1464
  %1519 = vst.msk [vmem:[#allocation6 + $0x260] sm:$0xff] %vm1499, %v1466
  %1520 = vst.msk [vmem:[#allocation6 + $0x280] sm:$0xff] %vm1499, %v1468
  %1521 = vst.msk [vmem:[#allocation6 + $0x2a0] sm:$0xff] %vm1499, %v1470
  %1522 = vst.msk [vmem:[#allocation6 + $0x2c0] sm:$0xff] %vm1499, %v1472
  %1523 = vst.msk [vmem:[#allocation6 + $0x2e0] sm:$0xff] %vm1499, %v1474
  %s1524 = scalar_lea.vmem [#allocation2], 21
  %v1525 = vld [vmem:[%s1524] ss:$2 sm:$0xff]
  %s1526 = scalar_lea.vmem [#allocation2], 37
  %v1527 = vld [vmem:[%s1526] ss:$2 sm:$0xff]
  %s1528 = scalar_lea.vmem [#allocation2], 53
  %v1529 = vld [vmem:[%s1528] ss:$2 sm:$0xff]
  %s1530 = scalar_lea.vmem [#allocation2], 69
  %v1531 = vld [vmem:[%s1530] ss:$2 sm:$0xff]
  %s1532 = scalar_lea.vmem [#allocation2], 85
  %v1533 = vld [vmem:[%s1532] ss:$2 sm:$0xff]
  %s1534 = scalar_lea.vmem [#allocation2], 101
  %v1535 = vld [vmem:[%s1534] ss:$2 sm:$0xff]
  %s1536 = scalar_lea.vmem [#allocation2], 117
  %v1537 = vld [vmem:[%s1536] ss:$2 sm:$0xff]
  %s1538 = scalar_lea.vmem [#allocation2], 133
  %v1539 = vld [vmem:[%s1538] ss:$2 sm:$0xff]
  %s1540 = scalar_lea.vmem [#allocation2], 149
  %v1541 = vld [vmem:[%s1540] ss:$2 sm:$0xff]
  %s1542 = scalar_lea.vmem [#allocation2], 165
  %v1543 = vld [vmem:[%s1542] ss:$2 sm:$0xff]
  %s1544 = scalar_lea.vmem [#allocation2], 181
  %v1545 = vld [vmem:[%s1544] ss:$2 sm:$0xff]
  %s1546 = scalar_lea.vmem [#allocation2], 197
  %v1547 = vld [vmem:[%s1546] ss:$2 sm:$0xff]
  %s1548 = scalar_lea.vmem [#allocation2], 213
  %v1549 = vld [vmem:[%s1548] ss:$2 sm:$0xff]
  %s1550 = scalar_lea.vmem [#allocation2], 229
  %v1551 = vld [vmem:[%s1550] ss:$2 sm:$0xff]
  %s1552 = scalar_lea.vmem [#allocation2], 245
  %v1553 = vld [vmem:[%s1552] ss:$2 sm:$0xff]
  %s1554 = scalar_lea.vmem [#allocation2], 261
  %v1555 = vld [vmem:[%s1554] ss:$2 sm:$0xff]
  %s1556 = scalar_lea.vmem [#allocation2], 277
  %v1557 = vld [vmem:[%s1556] ss:$2 sm:$0xff]
  %s1558 = scalar_lea.vmem [#allocation2], 293
  %v1559 = vld [vmem:[%s1558] ss:$2 sm:$0xff]
  %s1560 = scalar_lea.vmem [#allocation2], 309
  %v1561 = vld [vmem:[%s1560] ss:$2 sm:$0xff]
  %s1562 = scalar_lea.vmem [#allocation2], 325
  %v1563 = vld [vmem:[%s1562] ss:$2 sm:$0xff]
  %s1564 = scalar_lea.vmem [#allocation2], 341
  %v1565 = vld [vmem:[%s1564] ss:$2 sm:$0xff]
  %s1566 = scalar_lea.vmem [#allocation2], 357
  %v1567 = vld [vmem:[%s1566] ss:$2 sm:$0xff]
  %s1568 = scalar_lea.vmem [#allocation2], 373
  %v1569 = vld [vmem:[%s1568] ss:$2 sm:$0xff]
  %s1570 = scalar_lea.vmem [#allocation2], 389
  %v1571 = vld [vmem:[%s1570] ss:$2 sm:$0xff]
  %1572 = vst.msk [vmem:[#allocation6 + $0x8] sm:$0xff] %vm308, %v1525
  %1573 = vst.msk [vmem:[#allocation6 + $0x28] sm:$0xff] %vm308, %v1527
  %1574 = vst.msk [vmem:[#allocation6 + $0x48] sm:$0xff] %vm308, %v1529
  %1575 = vst.msk [vmem:[#allocation6 + $0x68] sm:$0xff] %vm308, %v1531
  %1576 = vst.msk [vmem:[#allocation6 + $0x88] sm:$0xff] %vm308, %v1533
  %1577 = vst.msk [vmem:[#allocation6 + $0xa8] sm:$0xff] %vm308, %v1535
  %1578 = vst.msk [vmem:[#allocation6 + $0xc8] sm:$0xff] %vm308, %v1537
  %1579 = vst.msk [vmem:[#allocation6 + $0xe8] sm:$0xff] %vm308, %v1539
  %1580 = vst.msk [vmem:[#allocation6 + $0x108] sm:$0xff] %vm308, %v1541
  %1581 = vst.msk [vmem:[#allocation6 + $0x128] sm:$0xff] %vm308, %v1543
  %1582 = vst.msk [vmem:[#allocation6 + $0x148] sm:$0xff] %vm308, %v1545
  %1583 = vst.msk [vmem:[#allocation6 + $0x168] sm:$0xff] %vm308, %v1547
  %1584 = vst.msk [vmem:[#allocation6 + $0x188] sm:$0xff] %vm308, %v1549
  %1585 = vst.msk [vmem:[#allocation6 + $0x1a8] sm:$0xff] %vm308, %v1551
  %1586 = vst.msk [vmem:[#allocation6 + $0x1c8] sm:$0xff] %vm308, %v1553
  %1587 = vst.msk [vmem:[#allocation6 + $0x1e8] sm:$0xff] %vm308, %v1555
  %1588 = vst.msk [vmem:[#allocation6 + $0x208] sm:$0xff] %vm308, %v1557
  %1589 = vst.msk [vmem:[#allocation6 + $0x228] sm:$0xff] %vm308, %v1559
  %1590 = vst.msk [vmem:[#allocation6 + $0x248] sm:$0xff] %vm308, %v1561
  %1591 = vst.msk [vmem:[#allocation6 + $0x268] sm:$0xff] %vm308, %v1563
  %1592 = vst.msk [vmem:[#allocation6 + $0x288] sm:$0xff] %vm308, %v1565
  %1593 = vst.msk [vmem:[#allocation6 + $0x2a8] sm:$0xff] %vm308, %v1567
  %1594 = vst.msk [vmem:[#allocation6 + $0x2c8] sm:$0xff] %vm308, %v1569
  %1595 = vst.msk [vmem:[#allocation6 + $0x2e8] sm:$0xff] %vm308, %v1571
  %s1596 = scalar_lea.vmem [#allocation2], 22
  %v1597 = vld [vmem:[%s1596] ss:$2 sm:$0xff]
  %s1598 = scalar_lea.vmem [#allocation2], 38
  %v1599 = vld [vmem:[%s1598] ss:$2 sm:$0xff]
  %s1600 = scalar_lea.vmem [#allocation2], 54
  %v1601 = vld [vmem:[%s1600] ss:$2 sm:$0xff]
  %s1602 = scalar_lea.vmem [#allocation2], 70
  %v1603 = vld [vmem:[%s1602] ss:$2 sm:$0xff]
  %s1604 = scalar_lea.vmem [#allocation2], 86
  %v1605 = vld [vmem:[%s1604] ss:$2 sm:$0xff]
  %s1606 = scalar_lea.vmem [#allocation2], 102
  %v1607 = vld [vmem:[%s1606] ss:$2 sm:$0xff]
  %s1608 = scalar_lea.vmem [#allocation2], 118
  %v1609 = vld [vmem:[%s1608] ss:$2 sm:$0xff]
  %s1610 = scalar_lea.vmem [#allocation2], 134
  %v1611 = vld [vmem:[%s1610] ss:$2 sm:$0xff]
  %s1612 = scalar_lea.vmem [#allocation2], 150
  %v1613 = vld [vmem:[%s1612] ss:$2 sm:$0xff]
  %s1614 = scalar_lea.vmem [#allocation2], 166
  %v1615 = vld [vmem:[%s1614] ss:$2 sm:$0xff]
  %s1616 = scalar_lea.vmem [#allocation2], 182
  %v1617 = vld [vmem:[%s1616] ss:$2 sm:$0xff]
  %s1618 = scalar_lea.vmem [#allocation2], 198
  %v1619 = vld [vmem:[%s1618] ss:$2 sm:$0xff]
  %s1620 = scalar_lea.vmem [#allocation2], 214
  %v1621 = vld [vmem:[%s1620] ss:$2 sm:$0xff]
  %s1622 = scalar_lea.vmem [#allocation2], 230
  %v1623 = vld [vmem:[%s1622] ss:$2 sm:$0xff]
  %s1624 = scalar_lea.vmem [#allocation2], 246
  %v1625 = vld [vmem:[%s1624] ss:$2 sm:$0xff]
  %s1626 = scalar_lea.vmem [#allocation2], 262
  %v1627 = vld [vmem:[%s1626] ss:$2 sm:$0xff]
  %s1628 = scalar_lea.vmem [#allocation2], 278
  %v1629 = vld [vmem:[%s1628] ss:$2 sm:$0xff]
  %s1630 = scalar_lea.vmem [#allocation2], 294
  %v1631 = vld [vmem:[%s1630] ss:$2 sm:$0xff]
  %s1632 = scalar_lea.vmem [#allocation2], 310
  %v1633 = vld [vmem:[%s1632] ss:$2 sm:$0xff]
  %s1634 = scalar_lea.vmem [#allocation2], 326
  %v1635 = vld [vmem:[%s1634] ss:$2 sm:$0xff]
  %s1636 = scalar_lea.vmem [#allocation2], 342
  %v1637 = vld [vmem:[%s1636] ss:$2 sm:$0xff]
  %s1638 = scalar_lea.vmem [#allocation2], 358
  %v1639 = vld [vmem:[%s1638] ss:$2 sm:$0xff]
  %s1640 = scalar_lea.vmem [#allocation2], 374
  %v1641 = vld [vmem:[%s1640] ss:$2 sm:$0xff]
  %s1642 = scalar_lea.vmem [#allocation2], 390
  %v1643 = vld [vmem:[%s1642] ss:$2 sm:$0xff]
  %1668 = vrot.lane.b32.xlu0 %v1597, 32
  %v1669 = vpop.permute.xlu0 %1668
  %1670 = vrot.lane.b32.xlu0 %v1599, 32
  %v1671 = vpop.permute.xlu0 %1670
  %1672 = vrot.lane.b32.xlu0 %v1601, 32
  %v1673 = vpop.permute.xlu0 %1672
  %1674 = vrot.lane.b32.xlu0 %v1603, 32
  %v1675 = vpop.permute.xlu0 %1674
  %1676 = vrot.lane.b32.xlu0 %v1605, 32
  %v1677 = vpop.permute.xlu0 %1676
  %1678 = vrot.lane.b32.xlu0 %v1607, 32
  %v1679 = vpop.permute.xlu0 %1678
  %1680 = vrot.lane.b32.xlu0 %v1609, 32
  %v1681 = vpop.permute.xlu0 %1680
  %1682 = vrot.lane.b32.xlu0 %v1611, 32
  %v1683 = vpop.permute.xlu0 %1682
  %1684 = vrot.lane.b32.xlu0 %v1613, 32
  %v1685 = vpop.permute.xlu0 %1684
  %1686 = vrot.lane.b32.xlu0 %v1615, 32
  %v1687 = vpop.permute.xlu0 %1686
  %1688 = vrot.lane.b32.xlu0 %v1617, 32
  %v1689 = vpop.permute.xlu0 %1688
  %1690 = vrot.lane.b32.xlu0 %v1619, 32
  %v1691 = vpop.permute.xlu0 %1690
  %1692 = vrot.lane.b32.xlu0 %v1621, 32
  %v1693 = vpop.permute.xlu0 %1692
  %1694 = vrot.lane.b32.xlu0 %v1623, 32
  %v1695 = vpop.permute.xlu0 %1694
  %1696 = vrot.lane.b32.xlu0 %v1625, 32
  %v1697 = vpop.permute.xlu0 %1696
  %1698 = vrot.lane.b32.xlu0 %v1627, 32
  %v1699 = vpop.permute.xlu0 %1698
  %1700 = vrot.lane.b32.xlu0 %v1629, 32
  %v1701 = vpop.permute.xlu0 %1700
  %1702 = vrot.lane.b32.xlu0 %v1631, 32
  %v1703 = vpop.permute.xlu0 %1702
  %1704 = vrot.lane.b32.xlu0 %v1633, 32
  %v1705 = vpop.permute.xlu0 %1704
  %1706 = vrot.lane.b32.xlu0 %v1635, 32
  %v1707 = vpop.permute.xlu0 %1706
  %1708 = vrot.lane.b32.xlu0 %v1637, 32
  %v1709 = vpop.permute.xlu0 %1708
  %1710 = vrot.lane.b32.xlu0 %v1639, 32
  %v1711 = vpop.permute.xlu0 %1710
  %1712 = vrot.lane.b32.xlu0 %v1641, 32
  %v1713 = vpop.permute.xlu0 %1712
  %1714 = vrot.lane.b32.xlu0 %v1643, 32
  %v1715 = vpop.permute.xlu0 %1714
  %1740 = vst.msk [vmem:[#allocation6 + $0x8] sm:$0xff] %vm1161, %v1669
  %1741 = vst.msk [vmem:[#allocation6 + $0x28] sm:$0xff] %vm1161, %v1671
  %1742 = vst.msk [vmem:[#allocation6 + $0x48] sm:$0xff] %vm1161, %v1673
  %1743 = vst.msk [vmem:[#allocation6 + $0x68] sm:$0xff] %vm1161, %v1675
  %1744 = vst.msk [vmem:[#allocation6 + $0x88] sm:$0xff] %vm1161, %v1677
  %1745 = vst.msk [vmem:[#allocation6 + $0xa8] sm:$0xff] %vm1161, %v1679
  %1746 = vst.msk [vmem:[#allocation6 + $0xc8] sm:$0xff] %vm1161, %v1681
  %1747 = vst.msk [vmem:[#allocation6 + $0xe8] sm:$0xff] %vm1161, %v1683
  %1748 = vst.msk [vmem:[#allocation6 + $0x108] sm:$0xff] %vm1161, %v1685
  %1749 = vst.msk [vmem:[#allocation6 + $0x128] sm:$0xff] %vm1161, %v1687
  %1750 = vst.msk [vmem:[#allocation6 + $0x148] sm:$0xff] %vm1161, %v1689
  %1751 = vst.msk [vmem:[#allocation6 + $0x168] sm:$0xff] %vm1161, %v1691
  %1752 = vst.msk [vmem:[#allocation6 + $0x188] sm:$0xff] %vm1161, %v1693
  %1753 = vst.msk [vmem:[#allocation6 + $0x1a8] sm:$0xff] %vm1161, %v1695
  %1754 = vst.msk [vmem:[#allocation6 + $0x1c8] sm:$0xff] %vm1161, %v1697
  %1755 = vst.msk [vmem:[#allocation6 + $0x1e8] sm:$0xff] %vm1161, %v1699
  %1756 = vst.msk [vmem:[#allocation6 + $0x208] sm:$0xff] %vm1161, %v1701
  %1757 = vst.msk [vmem:[#allocation6 + $0x228] sm:$0xff] %vm1161, %v1703
  %1758 = vst.msk [vmem:[#allocation6 + $0x248] sm:$0xff] %vm1161, %v1705
  %1759 = vst.msk [vmem:[#allocation6 + $0x268] sm:$0xff] %vm1161, %v1707
  %1760 = vst.msk [vmem:[#allocation6 + $0x288] sm:$0xff] %vm1161, %v1709
  %1761 = vst.msk [vmem:[#allocation6 + $0x2a8] sm:$0xff] %vm1161, %v1711
  %1762 = vst.msk [vmem:[#allocation6 + $0x2c8] sm:$0xff] %vm1161, %v1713
  %1763 = vst.msk [vmem:[#allocation6 + $0x2e8] sm:$0xff] %vm1161, %v1715
  %s1764 = scalar_lea.vmem [#allocation2], 23
  %v1765 = vld [vmem:[%s1764] ss:$2 sm:$0xff]
  %s1766 = scalar_lea.vmem [#allocation2], 39
  %v1767 = vld [vmem:[%s1766] ss:$2 sm:$0xff]
  %s1768 = scalar_lea.vmem [#allocation2], 55
  %v1769 = vld [vmem:[%s1768] ss:$2 sm:$0xff]
  %s1770 = scalar_lea.vmem [#allocation2], 71
  %v1771 = vld [vmem:[%s1770] ss:$2 sm:$0xff]
  %s1772 = scalar_lea.vmem [#allocation2], 87
  %v1773 = vld [vmem:[%s1772] ss:$2 sm:$0xff]
  %s1774 = scalar_lea.vmem [#allocation2], 103
  %v1775 = vld [vmem:[%s1774] ss:$2 sm:$0xff]
  %s1776 = scalar_lea.vmem [#allocation2], 119
  %v1777 = vld [vmem:[%s1776] ss:$2 sm:$0xff]
  %s1778 = scalar_lea.vmem [#allocation2], 135
  %v1779 = vld [vmem:[%s1778] ss:$2 sm:$0xff]
  %s1780 = scalar_lea.vmem [#allocation2], 151
  %v1781 = vld [vmem:[%s1780] ss:$2 sm:$0xff]
  %s1782 = scalar_lea.vmem [#allocation2], 167
  %v1783 = vld [vmem:[%s1782] ss:$2 sm:$0xff]
  %s1784 = scalar_lea.vmem [#allocation2], 183
  %v1785 = vld [vmem:[%s1784] ss:$2 sm:$0xff]
  %s1786 = scalar_lea.vmem [#allocation2], 199
  %v1787 = vld [vmem:[%s1786] ss:$2 sm:$0xff]
  %s1788 = scalar_lea.vmem [#allocation2], 215
  %v1789 = vld [vmem:[%s1788] ss:$2 sm:$0xff]
  %s1790 = scalar_lea.vmem [#allocation2], 231
  %v1791 = vld [vmem:[%s1790] ss:$2 sm:$0xff]
  %s1792 = scalar_lea.vmem [#allocation2], 247
  %v1793 = vld [vmem:[%s1792] ss:$2 sm:$0xff]
  %s1794 = scalar_lea.vmem [#allocation2], 263
  %v1795 = vld [vmem:[%s1794] ss:$2 sm:$0xff]
  %s1796 = scalar_lea.vmem [#allocation2], 279
  %v1797 = vld [vmem:[%s1796] ss:$2 sm:$0xff]
  %s1798 = scalar_lea.vmem [#allocation2], 295
  %v1799 = vld [vmem:[%s1798] ss:$2 sm:$0xff]
  %s1800 = scalar_lea.vmem [#allocation2], 311
  %v1801 = vld [vmem:[%s1800] ss:$2 sm:$0xff]
  %s1802 = scalar_lea.vmem [#allocation2], 327
  %v1803 = vld [vmem:[%s1802] ss:$2 sm:$0xff]
  %s1804 = scalar_lea.vmem [#allocation2], 343
  %v1805 = vld [vmem:[%s1804] ss:$2 sm:$0xff]
  %s1806 = scalar_lea.vmem [#allocation2], 359
  %v1807 = vld [vmem:[%s1806] ss:$2 sm:$0xff]
  %s1808 = scalar_lea.vmem [#allocation2], 375
  %v1809 = vld [vmem:[%s1808] ss:$2 sm:$0xff]
  %s1810 = scalar_lea.vmem [#allocation2], 391
  %v1811 = vld [vmem:[%s1810] ss:$2 sm:$0xff]
  %1836 = vrot.lane.b32.xlu0 %v1765, 64
  %v1837 = vpop.permute.xlu0 %1836
  %1838 = vrot.lane.b32.xlu0 %v1767, 64
  %v1839 = vpop.permute.xlu0 %1838
  %1840 = vrot.lane.b32.xlu0 %v1769, 64
  %v1841 = vpop.permute.xlu0 %1840
  %1842 = vrot.lane.b32.xlu0 %v1771, 64
  %v1843 = vpop.permute.xlu0 %1842
  %1844 = vrot.lane.b32.xlu0 %v1773, 64
  %v1845 = vpop.permute.xlu0 %1844
  %1846 = vrot.lane.b32.xlu0 %v1775, 64
  %v1847 = vpop.permute.xlu0 %1846
  %1848 = vrot.lane.b32.xlu0 %v1777, 64
  %v1849 = vpop.permute.xlu0 %1848
  %1850 = vrot.lane.b32.xlu0 %v1779, 64
  %v1851 = vpop.permute.xlu0 %1850
  %1852 = vrot.lane.b32.xlu0 %v1781, 64
  %v1853 = vpop.permute.xlu0 %1852
  %1854 = vrot.lane.b32.xlu0 %v1783, 64
  %v1855 = vpop.permute.xlu0 %1854
  %1856 = vrot.lane.b32.xlu0 %v1785, 64
  %v1857 = vpop.permute.xlu0 %1856
  %1858 = vrot.lane.b32.xlu0 %v1787, 64
  %v1859 = vpop.permute.xlu0 %1858
  %1860 = vrot.lane.b32.xlu0 %v1789, 64
  %v1861 = vpop.permute.xlu0 %1860
  %1862 = vrot.lane.b32.xlu0 %v1791, 64
  %v1863 = vpop.permute.xlu0 %1862
  %1864 = vrot.lane.b32.xlu0 %v1793, 64
  %v1865 = vpop.permute.xlu0 %1864
  %1866 = vrot.lane.b32.xlu0 %v1795, 64
  %v1867 = vpop.permute.xlu0 %1866
  %1868 = vrot.lane.b32.xlu0 %v1797, 64
  %v1869 = vpop.permute.xlu0 %1868
  %1870 = vrot.lane.b32.xlu0 %v1799, 64
  %v1871 = vpop.permute.xlu0 %1870
  %1872 = vrot.lane.b32.xlu0 %v1801, 64
  %v1873 = vpop.permute.xlu0 %1872
  %1874 = vrot.lane.b32.xlu0 %v1803, 64
  %v1875 = vpop.permute.xlu0 %1874
  %1876 = vrot.lane.b32.xlu0 %v1805, 64
  %v1877 = vpop.permute.xlu0 %1876
  %1878 = vrot.lane.b32.xlu0 %v1807, 64
  %v1879 = vpop.permute.xlu0 %1878
  %1880 = vrot.lane.b32.xlu0 %v1809, 64
  %v1881 = vpop.permute.xlu0 %1880
  %1882 = vrot.lane.b32.xlu0 %v1811, 64
  %v1883 = vpop.permute.xlu0 %1882
  %1908 = vst.msk [vmem:[#allocation6 + $0x8] sm:$0xff] %vm1330, %v1837
  %1909 = vst.msk [vmem:[#allocation6 + $0x28] sm:$0xff] %vm1330, %v1839
  %1910 = vst.msk [vmem:[#allocation6 + $0x48] sm:$0xff] %vm1330, %v1841
  %1911 = vst.msk [vmem:[#allocation6 + $0x68] sm:$0xff] %vm1330, %v1843
  %1912 = vst.msk [vmem:[#allocation6 + $0x88] sm:$0xff] %vm1330, %v1845
  %1913 = vst.msk [vmem:[#allocation6 + $0xa8] sm:$0xff] %vm1330, %v1847
  %1914 = vst.msk [vmem:[#allocation6 + $0xc8] sm:$0xff] %vm1330, %v1849
  %1915 = vst.msk [vmem:[#allocation6 + $0xe8] sm:$0xff] %vm1330, %v1851
  %1916 = vst.msk [vmem:[#allocation6 + $0x108] sm:$0xff] %vm1330, %v1853
  %1917 = vst.msk [vmem:[#allocation6 + $0x128] sm:$0xff] %vm1330, %v1855
  %1918 = vst.msk [vmem:[#allocation6 + $0x148] sm:$0xff] %vm1330, %v1857
  %1919 = vst.msk [vmem:[#allocation6 + $0x168] sm:$0xff] %vm1330, %v1859
  %1920 = vst.msk [vmem:[#allocation6 + $0x188] sm:$0xff] %vm1330, %v1861
  %1921 = vst.msk [vmem:[#allocation6 + $0x1a8] sm:$0xff] %vm1330, %v1863
  %1922 = vst.msk [vmem:[#allocation6 + $0x1c8] sm:$0xff] %vm1330, %v1865
  %1923 = vst.msk [vmem:[#allocation6 + $0x1e8] sm:$0xff] %vm1330, %v1867
  %1924 = vst.msk [vmem:[#allocation6 + $0x208] sm:$0xff] %vm1330, %v1869
  %1925 = vst.msk [vmem:[#allocation6 + $0x228] sm:$0xff] %vm1330, %v1871
  %1926 = vst.msk [vmem:[#allocation6 + $0x248] sm:$0xff] %vm1330, %v1873
  %1927 = vst.msk [vmem:[#allocation6 + $0x268] sm:$0xff] %vm1330, %v1875
  %1928 = vst.msk [vmem:[#allocation6 + $0x288] sm:$0xff] %vm1330, %v1877
  %1929 = vst.msk [vmem:[#allocation6 + $0x2a8] sm:$0xff] %vm1330, %v1879
  %1930 = vst.msk [vmem:[#allocation6 + $0x2c8] sm:$0xff] %vm1330, %v1881
  %1931 = vst.msk [vmem:[#allocation6 + $0x2e8] sm:$0xff] %vm1330, %v1883
  %s1932 = scalar_lea.vmem [#allocation2], 24
  %v1933 = vld [vmem:[%s1932] ss:$2 sm:$0xff]
  %s1934 = scalar_lea.vmem [#allocation2], 40
  %v1935 = vld [vmem:[%s1934] ss:$2 sm:$0xff]
  %s1936 = scalar_lea.vmem [#allocation2], 56
  %v1937 = vld [vmem:[%s1936] ss:$2 sm:$0xff]
  %s1938 = scalar_lea.vmem [#allocation2], 72
  %v1939 = vld [vmem:[%s1938] ss:$2 sm:$0xff]
  %s1940 = scalar_lea.vmem [#allocation2], 88
  %v1941 = vld [vmem:[%s1940] ss:$2 sm:$0xff]
  %s1942 = scalar_lea.vmem [#allocation2], 104
  %v1943 = vld [vmem:[%s1942] ss:$2 sm:$0xff]
  %s1944 = scalar_lea.vmem [#allocation2], 120
  %v1945 = vld [vmem:[%s1944] ss:$2 sm:$0xff]
  %s1946 = scalar_lea.vmem [#allocation2], 136
  %v1947 = vld [vmem:[%s1946] ss:$2 sm:$0xff]
  %s1948 = scalar_lea.vmem [#allocation2], 152
  %v1949 = vld [vmem:[%s1948] ss:$2 sm:$0xff]
  %s1950 = scalar_lea.vmem [#allocation2], 168
  %v1951 = vld [vmem:[%s1950] ss:$2 sm:$0xff]
  %s1952 = scalar_lea.vmem [#allocation2], 184
  %v1953 = vld [vmem:[%s1952] ss:$2 sm:$0xff]
  %s1954 = scalar_lea.vmem [#allocation2], 200
  %v1955 = vld [vmem:[%s1954] ss:$2 sm:$0xff]
  %s1956 = scalar_lea.vmem [#allocation2], 216
  %v1957 = vld [vmem:[%s1956] ss:$2 sm:$0xff]
  %s1958 = scalar_lea.vmem [#allocation2], 232
  %v1959 = vld [vmem:[%s1958] ss:$2 sm:$0xff]
  %s1960 = scalar_lea.vmem [#allocation2], 248
  %v1961 = vld [vmem:[%s1960] ss:$2 sm:$0xff]
  %s1962 = scalar_lea.vmem [#allocation2], 264
  %v1963 = vld [vmem:[%s1962] ss:$2 sm:$0xff]
  %s1964 = scalar_lea.vmem [#allocation2], 280
  %v1965 = vld [vmem:[%s1964] ss:$2 sm:$0xff]
  %s1966 = scalar_lea.vmem [#allocation2], 296
  %v1967 = vld [vmem:[%s1966] ss:$2 sm:$0xff]
  %s1968 = scalar_lea.vmem [#allocation2], 312
  %v1969 = vld [vmem:[%s1968] ss:$2 sm:$0xff]
  %s1970 = scalar_lea.vmem [#allocation2], 328
  %v1971 = vld [vmem:[%s1970] ss:$2 sm:$0xff]
  %s1972 = scalar_lea.vmem [#allocation2], 344
  %v1973 = vld [vmem:[%s1972] ss:$2 sm:$0xff]
  %s1974 = scalar_lea.vmem [#allocation2], 360
  %v1975 = vld [vmem:[%s1974] ss:$2 sm:$0xff]
  %s1976 = scalar_lea.vmem [#allocation2], 376
  %v1977 = vld [vmem:[%s1976] ss:$2 sm:$0xff]
  %s1978 = scalar_lea.vmem [#allocation2], 392
  %v1979 = vld [vmem:[%s1978] ss:$2 sm:$0xff]
  %2004 = vrot.lane.b32.xlu0 %v1933, 96
  %v2005 = vpop.permute.xlu0 %2004
  %2006 = vrot.lane.b32.xlu0 %v1935, 96
  %v2007 = vpop.permute.xlu0 %2006
  %2008 = vrot.lane.b32.xlu0 %v1937, 96
  %v2009 = vpop.permute.xlu0 %2008
  %2010 = vrot.lane.b32.xlu0 %v1939, 96
  %v2011 = vpop.permute.xlu0 %2010
  %2012 = vrot.lane.b32.xlu0 %v1941, 96
  %v2013 = vpop.permute.xlu0 %2012
  %2014 = vrot.lane.b32.xlu0 %v1943, 96
  %v2015 = vpop.permute.xlu0 %2014
  %2016 = vrot.lane.b32.xlu0 %v1945, 96
  %v2017 = vpop.permute.xlu0 %2016
  %2018 = vrot.lane.b32.xlu0 %v1947, 96
  %v2019 = vpop.permute.xlu0 %2018
  %2020 = vrot.lane.b32.xlu0 %v1949, 96
  %v2021 = vpop.permute.xlu0 %2020
  %2022 = vrot.lane.b32.xlu0 %v1951, 96
  %v2023 = vpop.permute.xlu0 %2022
  %2024 = vrot.lane.b32.xlu0 %v1953, 96
  %v2025 = vpop.permute.xlu0 %2024
  %2026 = vrot.lane.b32.xlu0 %v1955, 96
  %v2027 = vpop.permute.xlu0 %2026
  %2028 = vrot.lane.b32.xlu0 %v1957, 96
  %v2029 = vpop.permute.xlu0 %2028
  %2030 = vrot.lane.b32.xlu0 %v1959, 96
  %v2031 = vpop.permute.xlu0 %2030
  %2032 = vrot.lane.b32.xlu0 %v1961, 96
  %v2033 = vpop.permute.xlu0 %2032
  %2034 = vrot.lane.b32.xlu0 %v1963, 96
  %v2035 = vpop.permute.xlu0 %2034
  %2036 = vrot.lane.b32.xlu0 %v1965, 96
  %v2037 = vpop.permute.xlu0 %2036
  %2038 = vrot.lane.b32.xlu0 %v1967, 96
  %v2039 = vpop.permute.xlu0 %2038
  %2040 = vrot.lane.b32.xlu0 %v1969, 96
  %v2041 = vpop.permute.xlu0 %2040
  %2042 = vrot.lane.b32.xlu0 %v1971, 96
  %v2043 = vpop.permute.xlu0 %2042
  %2044 = vrot.lane.b32.xlu0 %v1973, 96
  %v2045 = vpop.permute.xlu0 %2044
  %2046 = vrot.lane.b32.xlu0 %v1975, 96
  %v2047 = vpop.permute.xlu0 %2046
  %2048 = vrot.lane.b32.xlu0 %v1977, 96
  %v2049 = vpop.permute.xlu0 %2048
  %2050 = vrot.lane.b32.xlu0 %v1979, 96
  %v2051 = vpop.permute.xlu0 %2050
  %2076 = vst.msk [vmem:[#allocation6 + $0x8] sm:$0xff] %vm1499, %v2005
  %2077 = vst.msk [vmem:[#allocation6 + $0x28] sm:$0xff] %vm1499, %v2007
  %2078 = vst.msk [vmem:[#allocation6 + $0x48] sm:$0xff] %vm1499, %v2009
  %2079 = vst.msk [vmem:[#allocation6 + $0x68] sm:$0xff] %vm1499, %v2011
  %2080 = vst.msk [vmem:[#allocation6 + $0x88] sm:$0xff] %vm1499, %v2013
  %2081 = vst.msk [vmem:[#allocation6 + $0xa8] sm:$0xff] %vm1499, %v2015
  %2082 = vst.msk [vmem:[#allocation6 + $0xc8] sm:$0xff] %vm1499, %v2017
  %2083 = vst.msk [vmem:[#allocation6 + $0xe8] sm:$0xff] %vm1499, %v2019
  %2084 = vst.msk [vmem:[#allocation6 + $0x108] sm:$0xff] %vm1499, %v2021
  %2085 = vst.msk [vmem:[#allocation6 + $0x128] sm:$0xff] %vm1499, %v2023
  %2086 = vst.msk [vmem:[#allocation6 + $0x148] sm:$0xff] %vm1499, %v2025
  %2087 = vst.msk [vmem:[#allocation6 + $0x168] sm:$0xff] %vm1499, %v2027
  %2088 = vst.msk [vmem:[#allocation6 + $0x188] sm:$0xff] %vm1499, %v2029
  %2089 = vst.msk [vmem:[#allocation6 + $0x1a8] sm:$0xff] %vm1499, %v2031
  %2090 = vst.msk [vmem:[#allocation6 + $0x1c8] sm:$0xff] %vm1499, %v2033
  %2091 = vst.msk [vmem:[#allocation6 + $0x1e8] sm:$0xff] %vm1499, %v2035
  %2092 = vst.msk [vmem:[#allocation6 + $0x208] sm:$0xff] %vm1499, %v2037
  %2093 = vst.msk [vmem:[#allocation6 + $0x228] sm:$0xff] %vm1499, %v2039
  %2094 = vst.msk [vmem:[#allocation6 + $0x248] sm:$0xff] %vm1499, %v2041
  %2095 = vst.msk [vmem:[#allocation6 + $0x268] sm:$0xff] %vm1499, %v2043
  %2096 = vst.msk [vmem:[#allocation6 + $0x288] sm:$0xff] %vm1499, %v2045
  %2097 = vst.msk [vmem:[#allocation6 + $0x2a8] sm:$0xff] %vm1499, %v2047
  %2098 = vst.msk [vmem:[#allocation6 + $0x2c8] sm:$0xff] %vm1499, %v2049
  %2099 = vst.msk [vmem:[#allocation6 + $0x2e8] sm:$0xff] %vm1499, %v2051
  %s2100 = scalar_lea.vmem [#allocation2], 42
  %v2101 = vld [vmem:[%s2100] ss:$2 sm:$0xff]
  %s2102 = scalar_lea.vmem [#allocation2], 58
  %v2103 = vld [vmem:[%s2102] ss:$2 sm:$0xff]
  %s2104 = scalar_lea.vmem [#allocation2], 74
  %v2105 = vld [vmem:[%s2104] ss:$2 sm:$0xff]
  %s2106 = scalar_lea.vmem [#allocation2], 90
  %v2107 = vld [vmem:[%s2106] ss:$2 sm:$0xff]
  %s2108 = scalar_lea.vmem [#allocation2], 106
  %v2109 = vld [vmem:[%s2108] ss:$2 sm:$0xff]
  %s2110 = scalar_lea.vmem [#allocation2], 122
  %v2111 = vld [vmem:[%s2110] ss:$2 sm:$0xff]
  %s2112 = scalar_lea.vmem [#allocation2], 138
  %v2113 = vld [vmem:[%s2112] ss:$2 sm:$0xff]
  %s2114 = scalar_lea.vmem [#allocation2], 154
  %v2115 = vld [vmem:[%s2114] ss:$2 sm:$0xff]
  %s2116 = scalar_lea.vmem [#allocation2], 170
  %v2117 = vld [vmem:[%s2116] ss:$2 sm:$0xff]
  %s2118 = scalar_lea.vmem [#allocation2], 186
  %v2119 = vld [vmem:[%s2118] ss:$2 sm:$0xff]
  %s2120 = scalar_lea.vmem [#allocation2], 202
  %v2121 = vld [vmem:[%s2120] ss:$2 sm:$0xff]
  %s2122 = scalar_lea.vmem [#allocation2], 218
  %v2123 = vld [vmem:[%s2122] ss:$2 sm:$0xff]
  %s2124 = scalar_lea.vmem [#allocation2], 234
  %v2125 = vld [vmem:[%s2124] ss:$2 sm:$0xff]
  %s2126 = scalar_lea.vmem [#allocation2], 250
  %v2127 = vld [vmem:[%s2126] ss:$2 sm:$0xff]
  %s2128 = scalar_lea.vmem [#allocation2], 266
  %v2129 = vld [vmem:[%s2128] ss:$2 sm:$0xff]
  %s2130 = scalar_lea.vmem [#allocation2], 282
  %v2131 = vld [vmem:[%s2130] ss:$2 sm:$0xff]
  %s2132 = scalar_lea.vmem [#allocation2], 298
  %v2133 = vld [vmem:[%s2132] ss:$2 sm:$0xff]
  %s2134 = scalar_lea.vmem [#allocation2], 314
  %v2135 = vld [vmem:[%s2134] ss:$2 sm:$0xff]
  %s2136 = scalar_lea.vmem [#allocation2], 330
  %v2137 = vld [vmem:[%s2136] ss:$2 sm:$0xff]
  %s2138 = scalar_lea.vmem [#allocation2], 346
  %v2139 = vld [vmem:[%s2138] ss:$2 sm:$0xff]
  %s2140 = scalar_lea.vmem [#allocation2], 362
  %v2141 = vld [vmem:[%s2140] ss:$2 sm:$0xff]
  %s2142 = scalar_lea.vmem [#allocation2], 378
  %v2143 = vld [vmem:[%s2142] ss:$2 sm:$0xff]
  %s2144 = scalar_lea.vmem [#allocation2], 394
  %v2145 = vld [vmem:[%s2144] ss:$2 sm:$0xff]
  %s2146 = scalar_lea.vmem [#allocation2], 410
  %v2147 = vld [vmem:[%s2146] ss:$2 sm:$0xff]
  %2148 = vst.msk [vmem:[#allocation6 + $0x10] sm:$0xff] %vm308, %v2101
  %2149 = vst.msk [vmem:[#allocation6 + $0x30] sm:$0xff] %vm308, %v2103
  %2150 = vst.msk [vmem:[#allocation6 + $0x50] sm:$0xff] %vm308, %v2105
  %2151 = vst.msk [vmem:[#allocation6 + $0x70] sm:$0xff] %vm308, %v2107
  %2152 = vst.msk [vmem:[#allocation6 + $0x90] sm:$0xff] %vm308, %v2109
  %2153 = vst.msk [vmem:[#allocation6 + $0xb0] sm:$0xff] %vm308, %v2111
  %2154 = vst.msk [vmem:[#allocation6 + $0xd0] sm:$0xff] %vm308, %v2113
  %2155 = vst.msk [vmem:[#allocation6 + $0xf0] sm:$0xff] %vm308, %v2115
  %2156 = vst.msk [vmem:[#allocation6 + $0x110] sm:$0xff] %vm308, %v2117
  %2157 = vst.msk [vmem:[#allocation6 + $0x130] sm:$0xff] %vm308, %v2119
  %2158 = vst.msk [vmem:[#allocation6 + $0x150] sm:$0xff] %vm308, %v2121
  %2159 = vst.msk [vmem:[#allocation6 + $0x170] sm:$0xff] %vm308, %v2123
  %2160 = vst.msk [vmem:[#allocation6 + $0x190] sm:$0xff] %vm308, %v2125
  %2161 = vst.msk [vmem:[#allocation6 + $0x1b0] sm:$0xff] %vm308, %v2127
  %2162 = vst.msk [vmem:[#allocation6 + $0x1d0] sm:$0xff] %vm308, %v2129
  %2163 = vst.msk [vmem:[#allocation6 + $0x1f0] sm:$0xff] %vm308, %v2131
  %2164 = vst.msk [vmem:[#allocation6 + $0x210] sm:$0xff] %vm308, %v2133
  %2165 = vst.msk [vmem:[#allocation6 + $0x230] sm:$0xff] %vm308, %v2135
  %2166 = vst.msk [vmem:[#allocation6 + $0x250] sm:$0xff] %vm308, %v2137
  %2167 = vst.msk [vmem:[#allocation6 + $0x270] sm:$0xff] %vm308, %v2139
  %2168 = vst.msk [vmem:[#allocation6 + $0x290] sm:$0xff] %vm308, %v2141
  %2169 = vst.msk [vmem:[#allocation6 + $0x2b0] sm:$0xff] %vm308, %v2143
  %2170 = vst.msk [vmem:[#allocation6 + $0x2d0] sm:$0xff] %vm308, %v2145
  %2171 = vst.msk [vmem:[#allocation6 + $0x2f0] sm:$0xff] %vm308, %v2147
  %s2172 = scalar_lea.vmem [#allocation2], 43
  %v2173 = vld [vmem:[%s2172] ss:$2 sm:$0xff]
  %s2174 = scalar_lea.vmem [#allocation2], 59
  %v2175 = vld [vmem:[%s2174] ss:$2 sm:$0xff]
  %s2176 = scalar_lea.vmem [#allocation2], 75
  %v2177 = vld [vmem:[%s2176] ss:$2 sm:$0xff]
  %s2178 = scalar_lea.vmem [#allocation2], 91
  %v2179 = vld [vmem:[%s2178] ss:$2 sm:$0xff]
  %s2180 = scalar_lea.vmem [#allocation2], 107
  %v2181 = vld [vmem:[%s2180] ss:$2 sm:$0xff]
  %s2182 = scalar_lea.vmem [#allocation2], 123
  %v2183 = vld [vmem:[%s2182] ss:$2 sm:$0xff]
  %s2184 = scalar_lea.vmem [#allocation2], 139
  %v2185 = vld [vmem:[%s2184] ss:$2 sm:$0xff]
  %s2186 = scalar_lea.vmem [#allocation2], 155
  %v2187 = vld [vmem:[%s2186] ss:$2 sm:$0xff]
  %s2188 = scalar_lea.vmem [#allocation2], 171
  %v2189 = vld [vmem:[%s2188] ss:$2 sm:$0xff]
  %s2190 = scalar_lea.vmem [#allocation2], 187
  %v2191 = vld [vmem:[%s2190] ss:$2 sm:$0xff]
  %s2192 = scalar_lea.vmem [#allocation2], 203
  %v2193 = vld [vmem:[%s2192] ss:$2 sm:$0xff]
  %s2194 = scalar_lea.vmem [#allocation2], 219
  %v2195 = vld [vmem:[%s2194] ss:$2 sm:$0xff]
  %s2196 = scalar_lea.vmem [#allocation2], 235
  %v2197 = vld [vmem:[%s2196] ss:$2 sm:$0xff]
  %s2198 = scalar_lea.vmem [#allocation2], 251
  %v2199 = vld [vmem:[%s2198] ss:$2 sm:$0xff]
  %s2200 = scalar_lea.vmem [#allocation2], 267
  %v2201 = vld [vmem:[%s2200] ss:$2 sm:$0xff]
  %s2202 = scalar_lea.vmem [#allocation2], 283
  %v2203 = vld [vmem:[%s2202] ss:$2 sm:$0xff]
  %s2204 = scalar_lea.vmem [#allocation2], 299
  %v2205 = vld [vmem:[%s2204] ss:$2 sm:$0xff]
  %s2206 = scalar_lea.vmem [#allocation2], 315
  %v2207 = vld [vmem:[%s2206] ss:$2 sm:$0xff]
  %s2208 = scalar_lea.vmem [#allocation2], 331
  %v2209 = vld [vmem:[%s2208] ss:$2 sm:$0xff]
  %s2210 = scalar_lea.vmem [#allocation2], 347
  %v2211 = vld [vmem:[%s2210] ss:$2 sm:$0xff]
  %s2212 = scalar_lea.vmem [#allocation2], 363
  %v2213 = vld [vmem:[%s2212] ss:$2 sm:$0xff]
  %s2214 = scalar_lea.vmem [#allocation2], 379
  %v2215 = vld [vmem:[%s2214] ss:$2 sm:$0xff]
  %s2216 = scalar_lea.vmem [#allocation2], 395
  %v2217 = vld [vmem:[%s2216] ss:$2 sm:$0xff]
  %s2218 = scalar_lea.vmem [#allocation2], 411
  %v2219 = vld [vmem:[%s2218] ss:$2 sm:$0xff]
  %2244 = vrot.lane.b32.xlu0 %v2173, 32
  %v2245 = vpop.permute.xlu0 %2244
  %2246 = vrot.lane.b32.xlu0 %v2175, 32
  %v2247 = vpop.permute.xlu0 %2246
  %2248 = vrot.lane.b32.xlu0 %v2177, 32
  %v2249 = vpop.permute.xlu0 %2248
  %2250 = vrot.lane.b32.xlu0 %v2179, 32
  %v2251 = vpop.permute.xlu0 %2250
  %2252 = vrot.lane.b32.xlu0 %v2181, 32
  %v2253 = vpop.permute.xlu0 %2252
  %2254 = vrot.lane.b32.xlu0 %v2183, 32
  %v2255 = vpop.permute.xlu0 %2254
  %2256 = vrot.lane.b32.xlu0 %v2185, 32
  %v2257 = vpop.permute.xlu0 %2256
  %2258 = vrot.lane.b32.xlu0 %v2187, 32
  %v2259 = vpop.permute.xlu0 %2258
  %2260 = vrot.lane.b32.xlu0 %v2189, 32
  %v2261 = vpop.permute.xlu0 %2260
  %2262 = vrot.lane.b32.xlu0 %v2191, 32
  %v2263 = vpop.permute.xlu0 %2262
  %2264 = vrot.lane.b32.xlu0 %v2193, 32
  %v2265 = vpop.permute.xlu0 %2264
  %2266 = vrot.lane.b32.xlu0 %v2195, 32
  %v2267 = vpop.permute.xlu0 %2266
  %2268 = vrot.lane.b32.xlu0 %v2197, 32
  %v2269 = vpop.permute.xlu0 %2268
  %2270 = vrot.lane.b32.xlu0 %v2199, 32
  %v2271 = vpop.permute.xlu0 %2270
  %2272 = vrot.lane.b32.xlu0 %v2201, 32
  %v2273 = vpop.permute.xlu0 %2272
  %2274 = vrot.lane.b32.xlu0 %v2203, 32
  %v2275 = vpop.permute.xlu0 %2274
  %2276 = vrot.lane.b32.xlu0 %v2205, 32
  %v2277 = vpop.permute.xlu0 %2276
  %2278 = vrot.lane.b32.xlu0 %v2207, 32
  %v2279 = vpop.permute.xlu0 %2278
  %2280 = vrot.lane.b32.xlu0 %v2209, 32
  %v2281 = vpop.permute.xlu0 %2280
  %2282 = vrot.lane.b32.xlu0 %v2211, 32
  %v2283 = vpop.permute.xlu0 %2282
  %2284 = vrot.lane.b32.xlu0 %v2213, 32
  %v2285 = vpop.permute.xlu0 %2284
  %2286 = vrot.lane.b32.xlu0 %v2215, 32
  %v2287 = vpop.permute.xlu0 %2286
  %2288 = vrot.lane.b32.xlu0 %v2217, 32
  %v2289 = vpop.permute.xlu0 %2288
  %2290 = vrot.lane.b32.xlu0 %v2219, 32
  %v2291 = vpop.permute.xlu0 %2290
  %2316 = vst.msk [vmem:[#allocation6 + $0x10] sm:$0xff] %vm1161, %v2245
  %2317 = vst.msk [vmem:[#allocation6 + $0x30] sm:$0xff] %vm1161, %v2247
  %2318 = vst.msk [vmem:[#allocation6 + $0x50] sm:$0xff] %vm1161, %v2249
  %2319 = vst.msk [vmem:[#allocation6 + $0x70] sm:$0xff] %vm1161, %v2251
  %2320 = vst.msk [vmem:[#allocation6 + $0x90] sm:$0xff] %vm1161, %v2253
  %2321 = vst.msk [vmem:[#allocation6 + $0xb0] sm:$0xff] %vm1161, %v2255
  %2322 = vst.msk [vmem:[#allocation6 + $0xd0] sm:$0xff] %vm1161, %v2257
  %2323 = vst.msk [vmem:[#allocation6 + $0xf0] sm:$0xff] %vm1161, %v2259
  %2324 = vst.msk [vmem:[#allocation6 + $0x110] sm:$0xff] %vm1161, %v2261
  %2325 = vst.msk [vmem:[#allocation6 + $0x130] sm:$0xff] %vm1161, %v2263
  %2326 = vst.msk [vmem:[#allocation6 + $0x150] sm:$0xff] %vm1161, %v2265
  %2327 = vst.msk [vmem:[#allocation6 + $0x170] sm:$0xff] %vm1161, %v2267
  %2328 = vst.msk [vmem:[#allocation6 + $0x190] sm:$0xff] %vm1161, %v2269
  %2329 = vst.msk [vmem:[#allocation6 + $0x1b0] sm:$0xff] %vm1161, %v2271
  %2330 = vst.msk [vmem:[#allocation6 + $0x1d0] sm:$0xff] %vm1161, %v2273
  %2331 = vst.msk [vmem:[#allocation6 + $0x1f0] sm:$0xff] %vm1161, %v2275
  %2332 = vst.msk [vmem:[#allocation6 + $0x210] sm:$0xff] %vm1161, %v2277
  %2333 = vst.msk [vmem:[#allocation6 + $0x230] sm:$0xff] %vm1161, %v2279
  %2334 = vst.msk [vmem:[#allocation6 + $0x250] sm:$0xff] %vm1161, %v2281
  %2335 = vst.msk [vmem:[#allocation6 + $0x270] sm:$0xff] %vm1161, %v2283
  %2336 = vst.msk [vmem:[#allocation6 + $0x290] sm:$0xff] %vm1161, %v2285
  %2337 = vst.msk [vmem:[#allocation6 + $0x2b0] sm:$0xff] %vm1161, %v2287
  %2338 = vst.msk [vmem:[#allocation6 + $0x2d0] sm:$0xff] %vm1161, %v2289
  %2339 = vst.msk [vmem:[#allocation6 + $0x2f0] sm:$0xff] %vm1161, %v2291
  %s2340 = scalar_lea.vmem [#allocation2], 44
  %v2341 = vld [vmem:[%s2340] ss:$2 sm:$0xff]
  %s2342 = scalar_lea.vmem [#allocation2], 60
  %v2343 = vld [vmem:[%s2342] ss:$2 sm:$0xff]
  %s2344 = scalar_lea.vmem [#allocation2], 76
  %v2345 = vld [vmem:[%s2344] ss:$2 sm:$0xff]
  %s2346 = scalar_lea.vmem [#allocation2], 92
  %v2347 = vld [vmem:[%s2346] ss:$2 sm:$0xff]
  %s2348 = scalar_lea.vmem [#allocation2], 108
  %v2349 = vld [vmem:[%s2348] ss:$2 sm:$0xff]
  %s2350 = scalar_lea.vmem [#allocation2], 124
  %v2351 = vld [vmem:[%s2350] ss:$2 sm:$0xff]
  %s2352 = scalar_lea.vmem [#allocation2], 140
  %v2353 = vld [vmem:[%s2352] ss:$2 sm:$0xff]
  %s2354 = scalar_lea.vmem [#allocation2], 156
  %v2355 = vld [vmem:[%s2354] ss:$2 sm:$0xff]
  %s2356 = scalar_lea.vmem [#allocation2], 172
  %v2357 = vld [vmem:[%s2356] ss:$2 sm:$0xff]
  %s2358 = scalar_lea.vmem [#allocation2], 188
  %v2359 = vld [vmem:[%s2358] ss:$2 sm:$0xff]
  %s2360 = scalar_lea.vmem [#allocation2], 204
  %v2361 = vld [vmem:[%s2360] ss:$2 sm:$0xff]
  %s2362 = scalar_lea.vmem [#allocation2], 220
  %v2363 = vld [vmem:[%s2362] ss:$2 sm:$0xff]
  %s2364 = scalar_lea.vmem [#allocation2], 236
  %v2365 = vld [vmem:[%s2364] ss:$2 sm:$0xff]
  %s2366 = scalar_lea.vmem [#allocation2], 252
  %v2367 = vld [vmem:[%s2366] ss:$2 sm:$0xff]
  %s2368 = scalar_lea.vmem [#allocation2], 268
  %v2369 = vld [vmem:[%s2368] ss:$2 sm:$0xff]
  %s2370 = scalar_lea.vmem [#allocation2], 284
  %v2371 = vld [vmem:[%s2370] ss:$2 sm:$0xff]
  %s2372 = scalar_lea.vmem [#allocation2], 300
  %v2373 = vld [vmem:[%s2372] ss:$2 sm:$0xff]
  %s2374 = scalar_lea.vmem [#allocation2], 316
  %v2375 = vld [vmem:[%s2374] ss:$2 sm:$0xff]
  %s2376 = scalar_lea.vmem [#allocation2], 332
  %v2377 = vld [vmem:[%s2376] ss:$2 sm:$0xff]
  %s2378 = scalar_lea.vmem [#allocation2], 348
  %v2379 = vld [vmem:[%s2378] ss:$2 sm:$0xff]
  %s2380 = scalar_lea.vmem [#allocation2], 364
  %v2381 = vld [vmem:[%s2380] ss:$2 sm:$0xff]
  %s2382 = scalar_lea.vmem [#allocation2], 380
  %v2383 = vld [vmem:[%s2382] ss:$2 sm:$0xff]
  %s2384 = scalar_lea.vmem [#allocation2], 396
  %v2385 = vld [vmem:[%s2384] ss:$2 sm:$0xff]
  %s2386 = scalar_lea.vmem [#allocation2], 412
  %v2387 = vld [vmem:[%s2386] ss:$2 sm:$0xff]
  %2412 = vrot.lane.b32.xlu0 %v2341, 64
  %v2413 = vpop.permute.xlu0 %2412
  %2414 = vrot.lane.b32.xlu0 %v2343, 64
  %v2415 = vpop.permute.xlu0 %2414
  %2416 = vrot.lane.b32.xlu0 %v2345, 64
  %v2417 = vpop.permute.xlu0 %2416
  %2418 = vrot.lane.b32.xlu0 %v2347, 64
  %v2419 = vpop.permute.xlu0 %2418
  %2420 = vrot.lane.b32.xlu0 %v2349, 64
  %v2421 = vpop.permute.xlu0 %2420
  %2422 = vrot.lane.b32.xlu0 %v2351, 64
  %v2423 = vpop.permute.xlu0 %2422
  %2424 = vrot.lane.b32.xlu0 %v2353, 64
  %v2425 = vpop.permute.xlu0 %2424
  %2426 = vrot.lane.b32.xlu0 %v2355, 64
  %v2427 = vpop.permute.xlu0 %2426
  %2428 = vrot.lane.b32.xlu0 %v2357, 64
  %v2429 = vpop.permute.xlu0 %2428
  %2430 = vrot.lane.b32.xlu0 %v2359, 64
  %v2431 = vpop.permute.xlu0 %2430
  %2432 = vrot.lane.b32.xlu0 %v2361, 64
  %v2433 = vpop.permute.xlu0 %2432
  %2434 = vrot.lane.b32.xlu0 %v2363, 64
  %v2435 = vpop.permute.xlu0 %2434
  %2436 = vrot.lane.b32.xlu0 %v2365, 64
  %v2437 = vpop.permute.xlu0 %2436
  %2438 = vrot.lane.b32.xlu0 %v2367, 64
  %v2439 = vpop.permute.xlu0 %2438
  %2440 = vrot.lane.b32.xlu0 %v2369, 64
  %v2441 = vpop.permute.xlu0 %2440
  %2442 = vrot.lane.b32.xlu0 %v2371, 64
  %v2443 = vpop.permute.xlu0 %2442
  %2444 = vrot.lane.b32.xlu0 %v2373, 64
  %v2445 = vpop.permute.xlu0 %2444
  %2446 = vrot.lane.b32.xlu0 %v2375, 64
  %v2447 = vpop.permute.xlu0 %2446
  %2448 = vrot.lane.b32.xlu0 %v2377, 64
  %v2449 = vpop.permute.xlu0 %2448
  %2450 = vrot.lane.b32.xlu0 %v2379, 64
  %v2451 = vpop.permute.xlu0 %2450
  %2452 = vrot.lane.b32.xlu0 %v2381, 64
  %v2453 = vpop.permute.xlu0 %2452
  %2454 = vrot.lane.b32.xlu0 %v2383, 64
  %v2455 = vpop.permute.xlu0 %2454
  %2456 = vrot.lane.b32.xlu0 %v2385, 64
  %v2457 = vpop.permute.xlu0 %2456
  %2458 = vrot.lane.b32.xlu0 %v2387, 64
  %v2459 = vpop.permute.xlu0 %2458
  %2484 = vst.msk [vmem:[#allocation6 + $0x10] sm:$0xff] %vm1330, %v2413
  %2485 = vst.msk [vmem:[#allocation6 + $0x30] sm:$0xff] %vm1330, %v2415
  %2486 = vst.msk [vmem:[#allocation6 + $0x50] sm:$0xff] %vm1330, %v2417
  %2487 = vst.msk [vmem:[#allocation6 + $0x70] sm:$0xff] %vm1330, %v2419
  %2488 = vst.msk [vmem:[#allocation6 + $0x90] sm:$0xff] %vm1330, %v2421
  %2489 = vst.msk [vmem:[#allocation6 + $0xb0] sm:$0xff] %vm1330, %v2423
  %2490 = vst.msk [vmem:[#allocation6 + $0xd0] sm:$0xff] %vm1330, %v2425
  %2491 = vst.msk [vmem:[#allocation6 + $0xf0] sm:$0xff] %vm1330, %v2427
  %2492 = vst.msk [vmem:[#allocation6 + $0x110] sm:$0xff] %vm1330, %v2429
  %2493 = vst.msk [vmem:[#allocation6 + $0x130] sm:$0xff] %vm1330, %v2431
  %2494 = vst.msk [vmem:[#allocation6 + $0x150] sm:$0xff] %vm1330, %v2433
  %2495 = vst.msk [vmem:[#allocation6 + $0x170] sm:$0xff] %vm1330, %v2435
  %2496 = vst.msk [vmem:[#allocation6 + $0x190] sm:$0xff] %vm1330, %v2437
  %2497 = vst.msk [vmem:[#allocation6 + $0x1b0] sm:$0xff] %vm1330, %v2439
  %2498 = vst.msk [vmem:[#allocation6 + $0x1d0] sm:$0xff] %vm1330, %v2441
  %2499 = vst.msk [vmem:[#allocation6 + $0x1f0] sm:$0xff] %vm1330, %v2443
  %2500 = vst.msk [vmem:[#allocation6 + $0x210] sm:$0xff] %vm1330, %v2445
  %2501 = vst.msk [vmem:[#allocation6 + $0x230] sm:$0xff] %vm1330, %v2447
  %2502 = vst.msk [vmem:[#allocation6 + $0x250] sm:$0xff] %vm1330, %v2449
  %2503 = vst.msk [vmem:[#allocation6 + $0x270] sm:$0xff] %vm1330, %v2451
  %2504 = vst.msk [vmem:[#allocation6 + $0x290] sm:$0xff] %vm1330, %v2453
  %2505 = vst.msk [vmem:[#allocation6 + $0x2b0] sm:$0xff] %vm1330, %v2455
  %2506 = vst.msk [vmem:[#allocation6 + $0x2d0] sm:$0xff] %vm1330, %v2457
  %2507 = vst.msk [vmem:[#allocation6 + $0x2f0] sm:$0xff] %vm1330, %v2459
  %s2508 = scalar_lea.vmem [#allocation2], 45
  %v2509 = vld [vmem:[%s2508] ss:$2 sm:$0xff]
  %s2510 = scalar_lea.vmem [#allocation2], 61
  %v2511 = vld [vmem:[%s2510] ss:$2 sm:$0xff]
  %s2512 = scalar_lea.vmem [#allocation2], 77
  %v2513 = vld [vmem:[%s2512] ss:$2 sm:$0xff]
  %s2514 = scalar_lea.vmem [#allocation2], 93
  %v2515 = vld [vmem:[%s2514] ss:$2 sm:$0xff]
  %s2516 = scalar_lea.vmem [#allocation2], 109
  %v2517 = vld [vmem:[%s2516] ss:$2 sm:$0xff]
  %s2518 = scalar_lea.vmem [#allocation2], 125
  %v2519 = vld [vmem:[%s2518] ss:$2 sm:$0xff]
  %s2520 = scalar_lea.vmem [#allocation2], 141
  %v2521 = vld [vmem:[%s2520] ss:$2 sm:$0xff]
  %s2522 = scalar_lea.vmem [#allocation2], 157
  %v2523 = vld [vmem:[%s2522] ss:$2 sm:$0xff]
  %s2524 = scalar_lea.vmem [#allocation2], 173
  %v2525 = vld [vmem:[%s2524] ss:$2 sm:$0xff]
  %s2526 = scalar_lea.vmem [#allocation2], 189
  %v2527 = vld [vmem:[%s2526] ss:$2 sm:$0xff]
  %s2528 = scalar_lea.vmem [#allocation2], 205
  %v2529 = vld [vmem:[%s2528] ss:$2 sm:$0xff]
  %s2530 = scalar_lea.vmem [#allocation2], 221
  %v2531 = vld [vmem:[%s2530] ss:$2 sm:$0xff]
  %s2532 = scalar_lea.vmem [#allocation2], 237
  %v2533 = vld [vmem:[%s2532] ss:$2 sm:$0xff]
  %s2534 = scalar_lea.vmem [#allocation2], 253
  %v2535 = vld [vmem:[%s2534] ss:$2 sm:$0xff]
  %s2536 = scalar_lea.vmem [#allocation2], 269
  %v2537 = vld [vmem:[%s2536] ss:$2 sm:$0xff]
  %s2538 = scalar_lea.vmem [#allocation2], 285
  %v2539 = vld [vmem:[%s2538] ss:$2 sm:$0xff]
  %s2540 = scalar_lea.vmem [#allocation2], 301
  %v2541 = vld [vmem:[%s2540] ss:$2 sm:$0xff]
  %s2542 = scalar_lea.vmem [#allocation2], 317
  %v2543 = vld [vmem:[%s2542] ss:$2 sm:$0xff]
  %s2544 = scalar_lea.vmem [#allocation2], 333
  %v2545 = vld [vmem:[%s2544] ss:$2 sm:$0xff]
  %s2546 = scalar_lea.vmem [#allocation2], 349
  %v2547 = vld [vmem:[%s2546] ss:$2 sm:$0xff]
  %s2548 = scalar_lea.vmem [#allocation2], 365
  %v2549 = vld [vmem:[%s2548] ss:$2 sm:$0xff]
  %s2550 = scalar_lea.vmem [#allocation2], 381
  %v2551 = vld [vmem:[%s2550] ss:$2 sm:$0xff]
  %s2552 = scalar_lea.vmem [#allocation2], 397
  %v2553 = vld [vmem:[%s2552] ss:$2 sm:$0xff]
  %s2554 = scalar_lea.vmem [#allocation2], 413
  %v2555 = vld [vmem:[%s2554] ss:$2 sm:$0xff]
  %2580 = vrot.lane.b32.xlu0 %v2509, 96
  %v2581 = vpop.permute.xlu0 %2580
  %2582 = vrot.lane.b32.xlu0 %v2511, 96
  %v2583 = vpop.permute.xlu0 %2582
  %2584 = vrot.lane.b32.xlu0 %v2513, 96
  %v2585 = vpop.permute.xlu0 %2584
  %2586 = vrot.lane.b32.xlu0 %v2515, 96
  %v2587 = vpop.permute.xlu0 %2586
  %2588 = vrot.lane.b32.xlu0 %v2517, 96
  %v2589 = vpop.permute.xlu0 %2588
  %2590 = vrot.lane.b32.xlu0 %v2519, 96
  %v2591 = vpop.permute.xlu0 %2590
  %2592 = vrot.lane.b32.xlu0 %v2521, 96
  %v2593 = vpop.permute.xlu0 %2592
  %2594 = vrot.lane.b32.xlu0 %v2523, 96
  %v2595 = vpop.permute.xlu0 %2594
  %2596 = vrot.lane.b32.xlu0 %v2525, 96
  %v2597 = vpop.permute.xlu0 %2596
  %2598 = vrot.lane.b32.xlu0 %v2527, 96
  %v2599 = vpop.permute.xlu0 %2598
  %2600 = vrot.lane.b32.xlu0 %v2529, 96
  %v2601 = vpop.permute.xlu0 %2600
  %2602 = vrot.lane.b32.xlu0 %v2531, 96
  %v2603 = vpop.permute.xlu0 %2602
  %2604 = vrot.lane.b32.xlu0 %v2533, 96
  %v2605 = vpop.permute.xlu0 %2604
  %2606 = vrot.lane.b32.xlu0 %v2535, 96
  %v2607 = vpop.permute.xlu0 %2606
  %2608 = vrot.lane.b32.xlu0 %v2537, 96
  %v2609 = vpop.permute.xlu0 %2608
  %2610 = vrot.lane.b32.xlu0 %v2539, 96
  %v2611 = vpop.permute.xlu0 %2610
  %2612 = vrot.lane.b32.xlu0 %v2541, 96
  %v2613 = vpop.permute.xlu0 %2612
  %2614 = vrot.lane.b32.xlu0 %v2543, 96
  %v2615 = vpop.permute.xlu0 %2614
  %2616 = vrot.lane.b32.xlu0 %v2545, 96
  %v2617 = vpop.permute.xlu0 %2616
  %2618 = vrot.lane.b32.xlu0 %v2547, 96
  %v2619 = vpop.permute.xlu0 %2618
  %2620 = vrot.lane.b32.xlu0 %v2549, 96
  %v2621 = vpop.permute.xlu0 %2620
  %2622 = vrot.lane.b32.xlu0 %v2551, 96
  %v2623 = vpop.permute.xlu0 %2622
  %2624 = vrot.lane.b32.xlu0 %v2553, 96
  %v2625 = vpop.permute.xlu0 %2624
  %2626 = vrot.lane.b32.xlu0 %v2555, 96
  %v2627 = vpop.permute.xlu0 %2626
  %2652 = vst.msk [vmem:[#allocation6 + $0x10] sm:$0xff] %vm1499, %v2581
  %2653 = vst.msk [vmem:[#allocation6 + $0x30] sm:$0xff] %vm1499, %v2583
  %2654 = vst.msk [vmem:[#allocation6 + $0x50] sm:$0xff] %vm1499, %v2585
  %2655 = vst.msk [vmem:[#allocation6 + $0x70] sm:$0xff] %vm1499, %v2587
  %2656 = vst.msk [vmem:[#allocation6 + $0x90] sm:$0xff] %vm1499, %v2589
  %2657 = vst.msk [vmem:[#allocation6 + $0xb0] sm:$0xff] %vm1499, %v2591
  %2658 = vst.msk [vmem:[#allocation6 + $0xd0] sm:$0xff] %vm1499, %v2593
  %2659 = vst.msk [vmem:[#allocation6 + $0xf0] sm:$0xff] %vm1499, %v2595
  %2660 = vst.msk [vmem:[#allocation6 + $0x110] sm:$0xff] %vm1499, %v2597
  %2661 = vst.msk [vmem:[#allocation6 + $0x130] sm:$0xff] %vm1499, %v2599
  %2662 = vst.msk [vmem:[#allocation6 + $0x150] sm:$0xff] %vm1499, %v2601
  %2663 = vst.msk [vmem:[#allocation6 + $0x170] sm:$0xff] %vm1499, %v2603
  %2664 = vst.msk [vmem:[#allocation6 + $0x190] sm:$0xff] %vm1499, %v2605
  %2665 = vst.msk [vmem:[#allocation6 + $0x1b0] sm:$0xff] %vm1499, %v2607
  %2666 = vst.msk [vmem:[#allocation6 + $0x1d0] sm:$0xff] %vm1499, %v2609
  %2667 = vst.msk [vmem:[#allocation6 + $0x1f0] sm:$0xff] %vm1499, %v2611
  %2668 = vst.msk [vmem:[#allocation6 + $0x210] sm:$0xff] %vm1499, %v2613
  %2669 = vst.msk [vmem:[#allocation6 + $0x230] sm:$0xff] %vm1499, %v2615
  %2670 = vst.msk [vmem:[#allocation6 + $0x250] sm:$0xff] %vm1499, %v2617
  %2671 = vst.msk [vmem:[#allocation6 + $0x270] sm:$0xff] %vm1499, %v2619
  %2672 = vst.msk [vmem:[#allocation6 + $0x290] sm:$0xff] %vm1499, %v2621
  %2673 = vst.msk [vmem:[#allocation6 + $0x2b0] sm:$0xff] %vm1499, %v2623
  %2674 = vst.msk [vmem:[#allocation6 + $0x2d0] sm:$0xff] %vm1499, %v2625
  %2675 = vst.msk [vmem:[#allocation6 + $0x2f0] sm:$0xff] %vm1499, %v2627
  %s2676 = scalar_lea.vmem [#allocation2], 63
  %v2677 = vld [vmem:[%s2676] ss:$2 sm:$0xff]
  %s2678 = scalar_lea.vmem [#allocation2], 79
  %v2679 = vld [vmem:[%s2678] ss:$2 sm:$0xff]
  %s2680 = scalar_lea.vmem [#allocation2], 95
  %v2681 = vld [vmem:[%s2680] ss:$2 sm:$0xff]
  %s2682 = scalar_lea.vmem [#allocation2], 111
  %v2683 = vld [vmem:[%s2682] ss:$2 sm:$0xff]
  %s2684 = scalar_lea.vmem [#allocation2], 127
  %v2685 = vld [vmem:[%s2684] ss:$2 sm:$0xff]
  %s2686 = scalar_lea.vmem [#allocation2], 143
  %v2687 = vld [vmem:[%s2686] ss:$2 sm:$0xff]
  %s2688 = scalar_lea.vmem [#allocation2], 159
  %v2689 = vld [vmem:[%s2688] ss:$2 sm:$0xff]
  %s2690 = scalar_lea.vmem [#allocation2], 175
  %v2691 = vld [vmem:[%s2690] ss:$2 sm:$0xff]
  %s2692 = scalar_lea.vmem [#allocation2], 191
  %v2693 = vld [vmem:[%s2692] ss:$2 sm:$0xff]
  %s2694 = scalar_lea.vmem [#allocation2], 207
  %v2695 = vld [vmem:[%s2694] ss:$2 sm:$0xff]
  %s2696 = scalar_lea.vmem [#allocation2], 223
  %v2697 = vld [vmem:[%s2696] ss:$2 sm:$0xff]
  %s2698 = scalar_lea.vmem [#allocation2], 239
  %v2699 = vld [vmem:[%s2698] ss:$2 sm:$0xff]
  %s2700 = scalar_lea.vmem [#allocation2], 255
  %v2701 = vld [vmem:[%s2700] ss:$2 sm:$0xff]
  %s2702 = scalar_lea.vmem [#allocation2], 271
  %v2703 = vld [vmem:[%s2702] ss:$2 sm:$0xff]
  %s2704 = scalar_lea.vmem [#allocation2], 287
  %v2705 = vld [vmem:[%s2704] ss:$2 sm:$0xff]
  %s2706 = scalar_lea.vmem [#allocation2], 303
  %v2707 = vld [vmem:[%s2706] ss:$2 sm:$0xff]
  %s2708 = scalar_lea.vmem [#allocation2], 319
  %v2709 = vld [vmem:[%s2708] ss:$2 sm:$0xff]
  %s2710 = scalar_lea.vmem [#allocation2], 335
  %v2711 = vld [vmem:[%s2710] ss:$2 sm:$0xff]
  %s2712 = scalar_lea.vmem [#allocation2], 351
  %v2713 = vld [vmem:[%s2712] ss:$2 sm:$0xff]
  %s2714 = scalar_lea.vmem [#allocation2], 367
  %v2715 = vld [vmem:[%s2714] ss:$2 sm:$0xff]
  %s2716 = scalar_lea.vmem [#allocation2], 383
  %v2717 = vld [vmem:[%s2716] ss:$2 sm:$0xff]
  %s2718 = scalar_lea.vmem [#allocation2], 399
  %v2719 = vld [vmem:[%s2718] ss:$2 sm:$0xff]
  %s2720 = scalar_lea.vmem [#allocation2], 415
  %v2721 = vld [vmem:[%s2720] ss:$2 sm:$0xff]
  %s2722 = scalar_lea.vmem [#allocation2], 431
  %v2723 = vld [vmem:[%s2722] ss:$2 sm:$0xff]
  %2724 = vst.msk [vmem:[#allocation6 + $0x18] sm:$0xff] %vm308, %v2677
  %2725 = vst.msk [vmem:[#allocation6 + $0x38] sm:$0xff] %vm308, %v2679
  %2726 = vst.msk [vmem:[#allocation6 + $0x58] sm:$0xff] %vm308, %v2681
  %2727 = vst.msk [vmem:[#allocation6 + $0x78] sm:$0xff] %vm308, %v2683
  %2728 = vst.msk [vmem:[#allocation6 + $0x98] sm:$0xff] %vm308, %v2685
  %2729 = vst.msk [vmem:[#allocation6 + $0xb8] sm:$0xff] %vm308, %v2687
  %2730 = vst.msk [vmem:[#allocation6 + $0xd8] sm:$0xff] %vm308, %v2689
  %2731 = vst.msk [vmem:[#allocation6 + $0xf8] sm:$0xff] %vm308, %v2691
  %2732 = vst.msk [vmem:[#allocation6 + $0x118] sm:$0xff] %vm308, %v2693
  %2733 = vst.msk [vmem:[#allocation6 + $0x138] sm:$0xff] %vm308, %v2695
  %2734 = vst.msk [vmem:[#allocation6 + $0x158] sm:$0xff] %vm308, %v2697
  %2735 = vst.msk [vmem:[#allocation6 + $0x178] sm:$0xff] %vm308, %v2699
  %2736 = vst.msk [vmem:[#allocation6 + $0x198] sm:$0xff] %vm308, %v2701
  %2737 = vst.msk [vmem:[#allocation6 + $0x1b8] sm:$0xff] %vm308, %v2703
  %2738 = vst.msk [vmem:[#allocation6 + $0x1d8] sm:$0xff] %vm308, %v2705
  %2739 = vst.msk [vmem:[#allocation6 + $0x1f8] sm:$0xff] %vm308, %v2707
  %2740 = vst.msk [vmem:[#allocation6 + $0x218] sm:$0xff] %vm308, %v2709
  %2741 = vst.msk [vmem:[#allocation6 + $0x238] sm:$0xff] %vm308, %v2711
  %2742 = vst.msk [vmem:[#allocation6 + $0x258] sm:$0xff] %vm308, %v2713
  %2743 = vst.msk [vmem:[#allocation6 + $0x278] sm:$0xff] %vm308, %v2715
  %2744 = vst.msk [vmem:[#allocation6 + $0x298] sm:$0xff] %vm308, %v2717
  %2745 = vst.msk [vmem:[#allocation6 + $0x2b8] sm:$0xff] %vm308, %v2719
  %2746 = vst.msk [vmem:[#allocation6 + $0x2d8] sm:$0xff] %vm308, %v2721
  %2747 = vst.msk [vmem:[#allocation6 + $0x2f8] sm:$0xff] %vm308, %v2723
  %v2748 = vld [vmem:[%s953] ss:$2 sm:$0xff]
  %v2749 = vld [vmem:[%s955] ss:$2 sm:$0xff]
  %v2750 = vld [vmem:[%s957] ss:$2 sm:$0xff]
  %v2751 = vld [vmem:[%s959] ss:$2 sm:$0xff]
  %v2752 = vld [vmem:[%s961] ss:$2 sm:$0xff]
  %v2753 = vld [vmem:[%s963] ss:$2 sm:$0xff]
  %v2754 = vld [vmem:[%s965] ss:$2 sm:$0xff]
  %v2755 = vld [vmem:[%s967] ss:$2 sm:$0xff]
  %v2756 = vld [vmem:[%s969] ss:$2 sm:$0xff]
  %v2757 = vld [vmem:[%s971] ss:$2 sm:$0xff]
  %v2758 = vld [vmem:[%s973] ss:$2 sm:$0xff]
  %v2759 = vld [vmem:[%s975] ss:$2 sm:$0xff]
  %v2760 = vld [vmem:[%s977] ss:$2 sm:$0xff]
  %v2761 = vld [vmem:[%s979] ss:$2 sm:$0xff]
  %v2762 = vld [vmem:[%s981] ss:$2 sm:$0xff]
  %v2763 = vld [vmem:[%s983] ss:$2 sm:$0xff]
  %v2764 = vld [vmem:[%s985] ss:$2 sm:$0xff]
  %v2765 = vld [vmem:[%s987] ss:$2 sm:$0xff]
  %v2766 = vld [vmem:[%s989] ss:$2 sm:$0xff]
  %v2767 = vld [vmem:[%s991] ss:$2 sm:$0xff]
  %s2768 = scalar_lea.vmem [#allocation2], 384
  %v2769 = vld [vmem:[%s2768] ss:$2 sm:$0xff]
  %s2770 = scalar_lea.vmem [#allocation2], 400
  %v2771 = vld [vmem:[%s2770] ss:$2 sm:$0xff]
  %s2772 = scalar_lea.vmem [#allocation2], 416
  %v2773 = vld [vmem:[%s2772] ss:$2 sm:$0xff]
  %s2774 = scalar_lea.vmem [#allocation2], 432
  %v2775 = vld [vmem:[%s2774] ss:$2 sm:$0xff]
  %2800 = vrot.lane.b32.xlu0 %v2748, 32
  %v2801 = vpop.permute.xlu0 %2800
  %2802 = vrot.lane.b32.xlu0 %v2749, 32
  %v2803 = vpop.permute.xlu0 %2802
  %2804 = vrot.lane.b32.xlu0 %v2750, 32
  %v2805 = vpop.permute.xlu0 %2804
  %2806 = vrot.lane.b32.xlu0 %v2751, 32
  %v2807 = vpop.permute.xlu0 %2806
  %2808 = vrot.lane.b32.xlu0 %v2752, 32
  %v2809 = vpop.permute.xlu0 %2808
  %2810 = vrot.lane.b32.xlu0 %v2753, 32
  %v2811 = vpop.permute.xlu0 %2810
  %2812 = vrot.lane.b32.xlu0 %v2754, 32
  %v2813 = vpop.permute.xlu0 %2812
  %2814 = vrot.lane.b32.xlu0 %v2755, 32
  %v2815 = vpop.permute.xlu0 %2814
  %2816 = vrot.lane.b32.xlu0 %v2756, 32
  %v2817 = vpop.permute.xlu0 %2816
  %2818 = vrot.lane.b32.xlu0 %v2757, 32
  %v2819 = vpop.permute.xlu0 %2818
  %2820 = vrot.lane.b32.xlu0 %v2758, 32
  %v2821 = vpop.permute.xlu0 %2820
  %2822 = vrot.lane.b32.xlu0 %v2759, 32
  %v2823 = vpop.permute.xlu0 %2822
  %2824 = vrot.lane.b32.xlu0 %v2760, 32
  %v2825 = vpop.permute.xlu0 %2824
  %2826 = vrot.lane.b32.xlu0 %v2761, 32
  %v2827 = vpop.permute.xlu0 %2826
  %2828 = vrot.lane.b32.xlu0 %v2762, 32
  %v2829 = vpop.permute.xlu0 %2828
  %2830 = vrot.lane.b32.xlu0 %v2763, 32
  %v2831 = vpop.permute.xlu0 %2830
  %2832 = vrot.lane.b32.xlu0 %v2764, 32
  %v2833 = vpop.permute.xlu0 %2832
  %2834 = vrot.lane.b32.xlu0 %v2765, 32
  %v2835 = vpop.permute.xlu0 %2834
  %2836 = vrot.lane.b32.xlu0 %v2766, 32
  %v2837 = vpop.permute.xlu0 %2836
  %2838 = vrot.lane.b32.xlu0 %v2767, 32
  %v2839 = vpop.permute.xlu0 %2838
  %2840 = vrot.lane.b32.xlu0 %v2769, 32
  %v2841 = vpop.permute.xlu0 %2840
  %2842 = vrot.lane.b32.xlu0 %v2771, 32
  %v2843 = vpop.permute.xlu0 %2842
  %2844 = vrot.lane.b32.xlu0 %v2773, 32
  %v2845 = vpop.permute.xlu0 %2844
  %2846 = vrot.lane.b32.xlu0 %v2775, 32
  %v2847 = vpop.permute.xlu0 %2846
  %2872 = vst.msk [vmem:[#allocation6 + $0x18] sm:$0xff] %vm1161, %v2801
  %2873 = vst.msk [vmem:[#allocation6 + $0x38] sm:$0xff] %vm1161, %v2803
  %2874 = vst.msk [vmem:[#allocation6 + $0x58] sm:$0xff] %vm1161, %v2805
  %2875 = vst.msk [vmem:[#allocation6 + $0x78] sm:$0xff] %vm1161, %v2807
  %2876 = vst.msk [vmem:[#allocation6 + $0x98] sm:$0xff] %vm1161, %v2809
  %2877 = vst.msk [vmem:[#allocation6 + $0xb8] sm:$0xff] %vm1161, %v2811
  %2878 = vst.msk [vmem:[#allocation6 + $0xd8] sm:$0xff] %vm1161, %v2813
  %2879 = vst.msk [vmem:[#allocation6 + $0xf8] sm:$0xff] %vm1161, %v2815
  %2880 = vst.msk [vmem:[#allocation6 + $0x118] sm:$0xff] %vm1161, %v2817
  %2881 = vst.msk [vmem:[#allocation6 + $0x138] sm:$0xff] %vm1161, %v2819
  %2882 = vst.msk [vmem:[#allocation6 + $0x158] sm:$0xff] %vm1161, %v2821
  %2883 = vst.msk [vmem:[#allocation6 + $0x178] sm:$0xff] %vm1161, %v2823
  %2884 = vst.msk [vmem:[#allocation6 + $0x198] sm:$0xff] %vm1161, %v2825
  %2885 = vst.msk [vmem:[#allocation6 + $0x1b8] sm:$0xff] %vm1161, %v2827
  %2886 = vst.msk [vmem:[#allocation6 + $0x1d8] sm:$0xff] %vm1161, %v2829
  %2887 = vst.msk [vmem:[#allocation6 + $0x1f8] sm:$0xff] %vm1161, %v2831
  %2888 = vst.msk [vmem:[#allocation6 + $0x218] sm:$0xff] %vm1161, %v2833
  %2889 = vst.msk [vmem:[#allocation6 + $0x238] sm:$0xff] %vm1161, %v2835
  %2890 = vst.msk [vmem:[#allocation6 + $0x258] sm:$0xff] %vm1161, %v2837
  %2891 = vst.msk [vmem:[#allocation6 + $0x278] sm:$0xff] %vm1161, %v2839
  %2892 = vst.msk [vmem:[#allocation6 + $0x298] sm:$0xff] %vm1161, %v2841
  %2893 = vst.msk [vmem:[#allocation6 + $0x2b8] sm:$0xff] %vm1161, %v2843
  %2894 = vst.msk [vmem:[#allocation6 + $0x2d8] sm:$0xff] %vm1161, %v2845
  %2895 = vst.msk [vmem:[#allocation6 + $0x2f8] sm:$0xff] %vm1161, %v2847
  %v2896 = vld [vmem:[%s1025] ss:$2 sm:$0xff]
  %v2897 = vld [vmem:[%s1027] ss:$2 sm:$0xff]
  %v2898 = vld [vmem:[%s1029] ss:$2 sm:$0xff]
  %v2899 = vld [vmem:[%s1031] ss:$2 sm:$0xff]
  %v2900 = vld [vmem:[%s1033] ss:$2 sm:$0xff]
  %v2901 = vld [vmem:[%s1035] ss:$2 sm:$0xff]
  %v2902 = vld [vmem:[%s1037] ss:$2 sm:$0xff]
  %v2903 = vld [vmem:[%s1039] ss:$2 sm:$0xff]
  %v2904 = vld [vmem:[%s1041] ss:$2 sm:$0xff]
  %v2905 = vld [vmem:[%s1043] ss:$2 sm:$0xff]
  %v2906 = vld [vmem:[%s1045] ss:$2 sm:$0xff]
  %v2907 = vld [vmem:[%s1047] ss:$2 sm:$0xff]
  %v2908 = vld [vmem:[%s1049] ss:$2 sm:$0xff]
  %v2909 = vld [vmem:[%s1051] ss:$2 sm:$0xff]
  %v2910 = vld [vmem:[%s1053] ss:$2 sm:$0xff]
  %v2911 = vld [vmem:[%s1055] ss:$2 sm:$0xff]
  %v2912 = vld [vmem:[%s1057] ss:$2 sm:$0xff]
  %v2913 = vld [vmem:[%s1059] ss:$2 sm:$0xff]
  %v2914 = vld [vmem:[%s1061] ss:$2 sm:$0xff]
  %v2915 = vld [vmem:[%s1063] ss:$2 sm:$0xff]
  %s2916 = scalar_lea.vmem [#allocation2], 385
  %v2917 = vld [vmem:[%s2916] ss:$2 sm:$0xff]
  %s2918 = scalar_lea.vmem [#allocation2], 401
  %v2919 = vld [vmem:[%s2918] ss:$2 sm:$0xff]
  %s2920 = scalar_lea.vmem [#allocation2], 417
  %v2921 = vld [vmem:[%s2920] ss:$2 sm:$0xff]
  %s2922 = scalar_lea.vmem [#allocation2], 433
  %v2923 = vld [vmem:[%s2922] ss:$2 sm:$0xff]
  %2948 = vrot.lane.b32.xlu0 %v2896, 64
  %v2949 = vpop.permute.xlu0 %2948
  %2950 = vrot.lane.b32.xlu0 %v2897, 64
  %v2951 = vpop.permute.xlu0 %2950
  %2952 = vrot.lane.b32.xlu0 %v2898, 64
  %v2953 = vpop.permute.xlu0 %2952
  %2954 = vrot.lane.b32.xlu0 %v2899, 64
  %v2955 = vpop.permute.xlu0 %2954
  %2956 = vrot.lane.b32.xlu0 %v2900, 64
  %v2957 = vpop.permute.xlu0 %2956
  %2958 = vrot.lane.b32.xlu0 %v2901, 64
  %v2959 = vpop.permute.xlu0 %2958
  %2960 = vrot.lane.b32.xlu0 %v2902, 64
  %v2961 = vpop.permute.xlu0 %2960
  %2962 = vrot.lane.b32.xlu0 %v2903, 64
  %v2963 = vpop.permute.xlu0 %2962
  %2964 = vrot.lane.b32.xlu0 %v2904, 64
  %v2965 = vpop.permute.xlu0 %2964
  %2966 = vrot.lane.b32.xlu0 %v2905, 64
  %v2967 = vpop.permute.xlu0 %2966
  %2968 = vrot.lane.b32.xlu0 %v2906, 64
  %v2969 = vpop.permute.xlu0 %2968
  %2970 = vrot.lane.b32.xlu0 %v2907, 64
  %v2971 = vpop.permute.xlu0 %2970
  %2972 = vrot.lane.b32.xlu0 %v2908, 64
  %v2973 = vpop.permute.xlu0 %2972
  %2974 = vrot.lane.b32.xlu0 %v2909, 64
  %v2975 = vpop.permute.xlu0 %2974
  %2976 = vrot.lane.b32.xlu0 %v2910, 64
  %v2977 = vpop.permute.xlu0 %2976
  %2978 = vrot.lane.b32.xlu0 %v2911, 64
  %v2979 = vpop.permute.xlu0 %2978
  %2980 = vrot.lane.b32.xlu0 %v2912, 64
  %v2981 = vpop.permute.xlu0 %2980
  %2982 = vrot.lane.b32.xlu0 %v2913, 64
  %v2983 = vpop.permute.xlu0 %2982
  %2984 = vrot.lane.b32.xlu0 %v2914, 64
  %v2985 = vpop.permute.xlu0 %2984
  %2986 = vrot.lane.b32.xlu0 %v2915, 64
  %v2987 = vpop.permute.xlu0 %2986
  %2988 = vrot.lane.b32.xlu0 %v2917, 64
  %v2989 = vpop.permute.xlu0 %2988
  %2990 = vrot.lane.b32.xlu0 %v2919, 64
  %v2991 = vpop.permute.xlu0 %2990
  %2992 = vrot.lane.b32.xlu0 %v2921, 64
  %v2993 = vpop.permute.xlu0 %2992
  %2994 = vrot.lane.b32.xlu0 %v2923, 64
  %v2995 = vpop.permute.xlu0 %2994
  %3020 = vst.msk [vmem:[#allocation6 + $0x18] sm:$0xff] %vm1330, %v2949
  %3021 = vst.msk [vmem:[#allocation6 + $0x38] sm:$0xff] %vm1330, %v2951
  %3022 = vst.msk [vmem:[#allocation6 + $0x58] sm:$0xff] %vm1330, %v2953
  %3023 = vst.msk [vmem:[#allocation6 + $0x78] sm:$0xff] %vm1330, %v2955
  %3024 = vst.msk [vmem:[#allocation6 + $0x98] sm:$0xff] %vm1330, %v2957
  %3025 = vst.msk [vmem:[#allocation6 + $0xb8] sm:$0xff] %vm1330, %v2959
  %3026 = vst.msk [vmem:[#allocation6 + $0xd8] sm:$0xff] %vm1330, %v2961
  %3027 = vst.msk [vmem:[#allocation6 + $0xf8] sm:$0xff] %vm1330, %v2963
  %3028 = vst.msk [vmem:[#allocation6 + $0x118] sm:$0xff] %vm1330, %v2965
  %3029 = vst.msk [vmem:[#allocation6 + $0x138] sm:$0xff] %vm1330, %v2967
  %3030 = vst.msk [vmem:[#allocation6 + $0x158] sm:$0xff] %vm1330, %v2969
  %3031 = vst.msk [vmem:[#allocation6 + $0x178] sm:$0xff] %vm1330, %v2971
  %3032 = vst.msk [vmem:[#allocation6 + $0x198] sm:$0xff] %vm1330, %v2973
  %3033 = vst.msk [vmem:[#allocation6 + $0x1b8] sm:$0xff] %vm1330, %v2975
  %3034 = vst.msk [vmem:[#allocation6 + $0x1d8] sm:$0xff] %vm1330, %v2977
  %3035 = vst.msk [vmem:[#allocation6 + $0x1f8] sm:$0xff] %vm1330, %v2979
  %3036 = vst.msk [vmem:[#allocation6 + $0x218] sm:$0xff] %vm1330, %v2981
  %3037 = vst.msk [vmem:[#allocation6 + $0x238] sm:$0xff] %vm1330, %v2983
  %3038 = vst.msk [vmem:[#allocation6 + $0x258] sm:$0xff] %vm1330, %v2985
  %3039 = vst.msk [vmem:[#allocation6 + $0x278] sm:$0xff] %vm1330, %v2987
  %3040 = vst.msk [vmem:[#allocation6 + $0x298] sm:$0xff] %vm1330, %v2989
  %3041 = vst.msk [vmem:[#allocation6 + $0x2b8] sm:$0xff] %vm1330, %v2991
  %3042 = vst.msk [vmem:[#allocation6 + $0x2d8] sm:$0xff] %vm1330, %v2993
  %3043 = vst.msk [vmem:[#allocation6 + $0x2f8] sm:$0xff] %vm1330, %v2995
  %v3044 = vld [vmem:[%s1194] ss:$2 sm:$0xff]
  %v3045 = vld [vmem:[%s1196] ss:$2 sm:$0xff]
  %v3046 = vld [vmem:[%s1198] ss:$2 sm:$0xff]
  %v3047 = vld [vmem:[%s1200] ss:$2 sm:$0xff]
  %v3048 = vld [vmem:[%s1202] ss:$2 sm:$0xff]
  %v3049 = vld [vmem:[%s1204] ss:$2 sm:$0xff]
  %v3050 = vld [vmem:[%s1206] ss:$2 sm:$0xff]
  %v3051 = vld [vmem:[%s1208] ss:$2 sm:$0xff]
  %v3052 = vld [vmem:[%s1210] ss:$2 sm:$0xff]
  %v3053 = vld [vmem:[%s1212] ss:$2 sm:$0xff]
  %v3054 = vld [vmem:[%s1214] ss:$2 sm:$0xff]
  %v3055 = vld [vmem:[%s1216] ss:$2 sm:$0xff]
  %v3056 = vld [vmem:[%s1218] ss:$2 sm:$0xff]
  %v3057 = vld [vmem:[%s1220] ss:$2 sm:$0xff]
  %v3058 = vld [vmem:[%s1222] ss:$2 sm:$0xff]
  %v3059 = vld [vmem:[%s1224] ss:$2 sm:$0xff]
  %v3060 = vld [vmem:[%s1226] ss:$2 sm:$0xff]
  %v3061 = vld [vmem:[%s1228] ss:$2 sm:$0xff]
  %v3062 = vld [vmem:[%s1230] ss:$2 sm:$0xff]
  %v3063 = vld [vmem:[%s1232] ss:$2 sm:$0xff]
  %s3064 = scalar_lea.vmem [#allocation2], 386
  %v3065 = vld [vmem:[%s3064] ss:$2 sm:$0xff]
  %s3066 = scalar_lea.vmem [#allocation2], 402
  %v3067 = vld [vmem:[%s3066] ss:$2 sm:$0xff]
  %s3068 = scalar_lea.vmem [#allocation2], 418
  %v3069 = vld [vmem:[%s3068] ss:$2 sm:$0xff]
  %s3070 = scalar_lea.vmem [#allocation2], 434
  %v3071 = vld [vmem:[%s3070] ss:$2 sm:$0xff]
  %3096 = vrot.lane.b32.xlu0 %v3044, 96
  %v3097 = vpop.permute.xlu0 %3096
  %3098 = vrot.lane.b32.xlu0 %v3045, 96
  %v3099 = vpop.permute.xlu0 %3098
  %3100 = vrot.lane.b32.xlu0 %v3046, 96
  %v3101 = vpop.permute.xlu0 %3100
  %3102 = vrot.lane.b32.xlu0 %v3047, 96
  %v3103 = vpop.permute.xlu0 %3102
  %3104 = vrot.lane.b32.xlu0 %v3048, 96
  %v3105 = vpop.permute.xlu0 %3104
  %3106 = vrot.lane.b32.xlu0 %v3049, 96
  %v3107 = vpop.permute.xlu0 %3106
  %3108 = vrot.lane.b32.xlu0 %v3050, 96
  %v3109 = vpop.permute.xlu0 %3108
  %3110 = vrot.lane.b32.xlu0 %v3051, 96
  %v3111 = vpop.permute.xlu0 %3110
  %3112 = vrot.lane.b32.xlu0 %v3052, 96
  %v3113 = vpop.permute.xlu0 %3112
  %3114 = vrot.lane.b32.xlu0 %v3053, 96
  %v3115 = vpop.permute.xlu0 %3114
  %3116 = vrot.lane.b32.xlu0 %v3054, 96
  %v3117 = vpop.permute.xlu0 %3116
  %3118 = vrot.lane.b32.xlu0 %v3055, 96
  %v3119 = vpop.permute.xlu0 %3118
  %3120 = vrot.lane.b32.xlu0 %v3056, 96
  %v3121 = vpop.permute.xlu0 %3120
  %3122 = vrot.lane.b32.xlu0 %v3057, 96
  %v3123 = vpop.permute.xlu0 %3122
  %3124 = vrot.lane.b32.xlu0 %v3058, 96
  %v3125 = vpop.permute.xlu0 %3124
  %3126 = vrot.lane.b32.xlu0 %v3059, 96
  %v3127 = vpop.permute.xlu0 %3126
  %3128 = vrot.lane.b32.xlu0 %v3060, 96
  %v3129 = vpop.permute.xlu0 %3128
  %3130 = vrot.lane.b32.xlu0 %v3061, 96
  %v3131 = vpop.permute.xlu0 %3130
  %3132 = vrot.lane.b32.xlu0 %v3062, 96
  %v3133 = vpop.permute.xlu0 %3132
  %3134 = vrot.lane.b32.xlu0 %v3063, 96
  %v3135 = vpop.permute.xlu0 %3134
  %3136 = vrot.lane.b32.xlu0 %v3065, 96
  %v3137 = vpop.permute.xlu0 %3136
  %3138 = vrot.lane.b32.xlu0 %v3067, 96
  %v3139 = vpop.permute.xlu0 %3138
  %3140 = vrot.lane.b32.xlu0 %v3069, 96
  %v3141 = vpop.permute.xlu0 %3140
  %3142 = vrot.lane.b32.xlu0 %v3071, 96
  %v3143 = vpop.permute.xlu0 %3142
  %3168 = vst.msk [vmem:[#allocation6 + $0x18] sm:$0xff] %vm1499, %v3097
  %3169 = vst.msk [vmem:[#allocation6 + $0x38] sm:$0xff] %vm1499, %v3099
  %3170 = vst.msk [vmem:[#allocation6 + $0x58] sm:$0xff] %vm1499, %v3101
  %3171 = vst.msk [vmem:[#allocation6 + $0x78] sm:$0xff] %vm1499, %v3103
  %3172 = vst.msk [vmem:[#allocation6 + $0x98] sm:$0xff] %vm1499, %v3105
  %3173 = vst.msk [vmem:[#allocation6 + $0xb8] sm:$0xff] %vm1499, %v3107
  %3174 = vst.msk [vmem:[#allocation6 + $0xd8] sm:$0xff] %vm1499, %v3109
  %3175 = vst.msk [vmem:[#allocation6 + $0xf8] sm:$0xff] %vm1499, %v3111
  %3176 = vst.msk [vmem:[#allocation6 + $0x118] sm:$0xff] %vm1499, %v3113
  %3177 = vst.msk [vmem:[#allocation6 + $0x138] sm:$0xff] %vm1499, %v3115
  %3178 = vst.msk [vmem:[#allocation6 + $0x158] sm:$0xff] %vm1499, %v3117
  %3179 = vst.msk [vmem:[#allocation6 + $0x178] sm:$0xff] %vm1499, %v3119
  %3180 = vst.msk [vmem:[#allocation6 + $0x198] sm:$0xff] %vm1499, %v3121
  %3181 = vst.msk [vmem:[#allocation6 + $0x1b8] sm:$0xff] %vm1499, %v3123
  %3182 = vst.msk [vmem:[#allocation6 + $0x1d8] sm:$0xff] %vm1499, %v3125
  %3183 = vst.msk [vmem:[#allocation6 + $0x1f8] sm:$0xff] %vm1499, %v3127
  %3184 = vst.msk [vmem:[#allocation6 + $0x218] sm:$0xff] %vm1499, %v3129
  %3185 = vst.msk [vmem:[#allocation6 + $0x238] sm:$0xff] %vm1499, %v3131
  %3186 = vst.msk [vmem:[#allocation6 + $0x258] sm:$0xff] %vm1499, %v3133
  %3187 = vst.msk [vmem:[#allocation6 + $0x278] sm:$0xff] %vm1499, %v3135
  %3188 = vst.msk [vmem:[#allocation6 + $0x298] sm:$0xff] %vm1499, %v3137
  %3189 = vst.msk [vmem:[#allocation6 + $0x2b8] sm:$0xff] %vm1499, %v3139
  %3190 = vst.msk [vmem:[#allocation6 + $0x2d8] sm:$0xff] %vm1499, %v3141
  %3191 = vst.msk [vmem:[#allocation6 + $0x2f8] sm:$0xff] %vm1499, %v3143
  %v3192 = vld [vmem:[#allocation6] sm:$0xff]
  %v3193 = vld [vmem:[#allocation6 + $0x8] sm:$0xff]
  %v3194 = vld [vmem:[#allocation6 + $0x10] sm:$0xff]
  %v3195 = vld [vmem:[#allocation6 + $0x18] sm:$0xff]
  %v3196 = vld [vmem:[#allocation6 + $0x20] sm:$0xff]
  %v3197 = vld [vmem:[#allocation6 + $0x28] sm:$0xff]
  %v3198 = vld [vmem:[#allocation6 + $0x30] sm:$0xff]
  %v3199 = vld [vmem:[#allocation6 + $0x38] sm:$0xff]
  %v3200 = vld [vmem:[#allocation6 + $0x40] sm:$0xff]
  %v3201 = vld [vmem:[#allocation6 + $0x48] sm:$0xff]
  %v3202 = vld [vmem:[#allocation6 + $0x50] sm:$0xff]
  %v3203 = vld [vmem:[#allocation6 + $0x58] sm:$0xff]
  %v3204 = vld [vmem:[#allocation6 + $0x60] sm:$0xff]
  %v3205 = vld [vmem:[#allocation6 + $0x68] sm:$0xff]
  %v3206 = vld [vmem:[#allocation6 + $0x70] sm:$0xff]
  %v3207 = vld [vmem:[#allocation6 + $0x78] sm:$0xff]
  %v3208 = vld [vmem:[#allocation6 + $0x80] sm:$0xff]
  %v3209 = vld [vmem:[#allocation6 + $0x88] sm:$0xff]
  %v3210 = vld [vmem:[#allocation6 + $0x90] sm:$0xff]
  %v3211 = vld [vmem:[#allocation6 + $0x98] sm:$0xff]
  %v3212 = vld [vmem:[#allocation6 + $0xa0] sm:$0xff]
  %v3213 = vld [vmem:[#allocation6 + $0xa8] sm:$0xff]
  %v3214 = vld [vmem:[#allocation6 + $0xb0] sm:$0xff]
  %v3215 = vld [vmem:[#allocation6 + $0xb8] sm:$0xff]
  %v3216 = vld [vmem:[#allocation6 + $0xc0] sm:$0xff]
  %v3217 = vld [vmem:[#allocation6 + $0xc8] sm:$0xff]
  %v3218 = vld [vmem:[#allocation6 + $0xd0] sm:$0xff]
  %v3219 = vld [vmem:[#allocation6 + $0xd8] sm:$0xff]
  %v3220 = vld [vmem:[#allocation6 + $0xe0] sm:$0xff]
  %v3221 = vld [vmem:[#allocation6 + $0xe8] sm:$0xff]
  %v3222 = vld [vmem:[#allocation6 + $0xf0] sm:$0xff]
  %v3223 = vld [vmem:[#allocation6 + $0xf8] sm:$0xff]
  %v3224 = vld [vmem:[#allocation6 + $0x100] sm:$0xff]
  %v3225 = vld [vmem:[#allocation6 + $0x108] sm:$0xff]
  %v3226 = vld [vmem:[#allocation6 + $0x110] sm:$0xff]
  %v3227 = vld [vmem:[#allocation6 + $0x118] sm:$0xff]
  %v3228 = vld [vmem:[#allocation6 + $0x120] sm:$0xff]
  %v3229 = vld [vmem:[#allocation6 + $0x128] sm:$0xff]
  %v3230 = vld [vmem:[#allocation6 + $0x130] sm:$0xff]
  %v3231 = vld [vmem:[#allocation6 + $0x138] sm:$0xff]
  %v3232 = vld [vmem:[#allocation6 + $0x140] sm:$0xff]
  %v3233 = vld [vmem:[#allocation6 + $0x148] sm:$0xff]
  %v3234 = vld [vmem:[#allocation6 + $0x150] sm:$0xff]
  %v3235 = vld [vmem:[#allocation6 + $0x158] sm:$0xff]
  %v3236 = vld [vmem:[#allocation6 + $0x160] sm:$0xff]
  %v3237 = vld [vmem:[#allocation6 + $0x168] sm:$0xff]
  %v3238 = vld [vmem:[#allocation6 + $0x170] sm:$0xff]
  %v3239 = vld [vmem:[#allocation6 + $0x178] sm:$0xff]
  %v3240 = vld [vmem:[%s1] sm:$0xff]
  %v3241 = vld [vmem:[%s1 + $0x8] sm:$0xff]
  %v3242 = vld [vmem:[%s1 + $0x10] sm:$0xff]
  %v3243 = vld [vmem:[%s1 + $0x18] sm:$0xff]
  %v3244 = vld [vmem:[%s1 + $0x20] sm:$0xff]
  %v3245 = vld [vmem:[%s1 + $0x28] sm:$0xff]
  %v3246 = vld [vmem:[%s1 + $0x30] sm:$0xff]
  %v3247 = vld [vmem:[%s1 + $0x38] sm:$0xff]
  %v3248 = vld [vmem:[%s1 + $0x40] sm:$0xff]
  %v3249 = vld [vmem:[%s1 + $0x48] sm:$0xff]
  %v3250 = vld [vmem:[%s1 + $0x50] sm:$0xff]
  %v3251 = vld [vmem:[%s1 + $0x58] sm:$0xff]
  %v3252 = vld [vmem:[%s1 + $0x60] sm:$0xff]
  %v3253 = vld [vmem:[%s1 + $0x68] sm:$0xff]
  %v3254 = vld [vmem:[%s1 + $0x70] sm:$0xff]
  %v3255 = vld [vmem:[%s1 + $0x78] sm:$0xff]
  %v3256 = vld [vmem:[%s1 + $0x80] sm:$0xff]
  %v3257 = vld [vmem:[%s1 + $0x88] sm:$0xff]
  %v3258 = vld [vmem:[%s1 + $0x90] sm:$0xff]
  %v3259 = vld [vmem:[%s1 + $0x98] sm:$0xff]
  %v3260 = vld [vmem:[%s1 + $0xa0] sm:$0xff]
  %v3261 = vld [vmem:[%s1 + $0xa8] sm:$0xff]
  %v3262 = vld [vmem:[%s1 + $0xb0] sm:$0xff]
  %v3263 = vld [vmem:[%s1 + $0xb8] sm:$0xff]
  %v3264 = vld [vmem:[%s1 + $0xc0] sm:$0xff]
  %v3265 = vld [vmem:[%s1 + $0xc8] sm:$0xff]
  %v3266 = vld [vmem:[%s1 + $0xd0] sm:$0xff]
  %v3267 = vld [vmem:[%s1 + $0xd8] sm:$0xff]
  %v3268 = vld [vmem:[%s1 + $0xe0] sm:$0xff]
  %v3269 = vld [vmem:[%s1 + $0xe8] sm:$0xff]
  %v3270 = vld [vmem:[%s1 + $0xf0] sm:$0xff]
  %v3271 = vld [vmem:[%s1 + $0xf8] sm:$0xff]
  %v3272 = vld [vmem:[%s1 + $0x100] sm:$0xff]
  %v3273 = vld [vmem:[%s1 + $0x108] sm:$0xff]
  %v3274 = vld [vmem:[%s1 + $0x110] sm:$0xff]
  %v3275 = vld [vmem:[%s1 + $0x118] sm:$0xff]
  %v3276 = vld [vmem:[%s1 + $0x120] sm:$0xff]
  %v3277 = vld [vmem:[%s1 + $0x128] sm:$0xff]
  %v3278 = vld [vmem:[%s1 + $0x130] sm:$0xff]
  %v3279 = vld [vmem:[%s1 + $0x138] sm:$0xff]
  %v3280 = vld [vmem:[%s1 + $0x140] sm:$0xff]
  %v3281 = vld [vmem:[%s1 + $0x148] sm:$0xff]
  %v3282 = vld [vmem:[%s1 + $0x150] sm:$0xff]
  %v3283 = vld [vmem:[%s1 + $0x158] sm:$0xff]
  %v3284 = vld [vmem:[%s1 + $0x160] sm:$0xff]
  %v3285 = vld [vmem:[%s1 + $0x168] sm:$0xff]
  %v3286 = vld [vmem:[%s1 + $0x170] sm:$0xff]
  %v3287 = vld [vmem:[%s1 + $0x178] sm:$0xff]
  %v3288 = vld [vmem:[%s1 + $0x180] sm:$0xff]
  %v3289 = vld [vmem:[%s1 + $0x188] sm:$0xff]
  %v3290 = vld [vmem:[%s1 + $0x190] sm:$0xff]
  %v3291 = vld [vmem:[%s1 + $0x198] sm:$0xff]
  %v3292 = vld [vmem:[%s1 + $0x1a0] sm:$0xff]
  %v3293 = vld [vmem:[%s1 + $0x1a8] sm:$0xff]
  %v3294 = vld [vmem:[%s1 + $0x1b0] sm:$0xff]
  %v3295 = vld [vmem:[%s1 + $0x1b8] sm:$0xff]
  %v3296 = vld [vmem:[%s1 + $0x1c0] sm:$0xff]
  %v3297 = vld [vmem:[%s1 + $0x1c8] sm:$0xff]
  %v3298 = vld [vmem:[%s1 + $0x1d0] sm:$0xff]
  %v3299 = vld [vmem:[%s1 + $0x1d8] sm:$0xff]
  %v3300 = vld [vmem:[%s1 + $0x1e0] sm:$0xff]
  %v3301 = vld [vmem:[%s1 + $0x1e8] sm:$0xff]
  %v3302 = vld [vmem:[%s1 + $0x1f0] sm:$0xff]
  %v3303 = vld [vmem:[%s1 + $0x1f8] sm:$0xff]
  %v3304 = vld [vmem:[%s2 + $0x12e] sm:$0x1]
  %v3305 = vlaneseq
  %v3306 = vshrl.u32 %v3305, 7
  %v3307 = vsub.s32 0, %v3306
  %v3308 = vrot.slane %v3304, %v3307
  %3309 = vmatprep.subr.mxu0 0.0
  %3310 = vmatpush1.msra.mxu0 %v3240
  %3311 = vmatprep.subr.mxu0 0.0
  %3312 = vmatpush1.msra.mxu0 %v3241
  %3313 = vmatprep.subr.mxu0 0.0
  %3314 = vmatpush1.msra.mxu0 %v3242
  %3315 = vmatprep.subr.mxu0 0.0
  %3316 = vmatpush1.msra.mxu0 %v3243
  %3317 = vmatprep.subr.mxu0 0.0
  %3318 = vmatpush1.msra.mxu0 %v3244
  %3319 = vmatprep.subr.mxu0 0.0
  %3320 = vmatpush1.msra.mxu0 %v3245
  %3321 = vmatprep.subr.mxu0 0.0
  %3322 = vmatpush1.msra.mxu0 %v3246
  %3323 = vmatprep.subr.mxu0 0.0
  %3324 = vmatpush1.msra.mxu0 %v3247
  %3325 = vmatprep.subr.mxu0 0.0
  %3326 = vmatpush1.msra.mxu0 %v3248
  %3327 = vmatprep.subr.mxu0 0.0
  %3328 = vmatpush1.msra.mxu0 %v3249
  %3329 = vmatprep.subr.mxu0 0.0
  %3330 = vmatpush1.msra.mxu0 %v3250
  %3331 = vmatprep.subr.mxu0 0.0
  %3332 = vmatpush1.msra.mxu0 %v3251
  %3333 = vmatprep.subr.mxu0 0.0
  %3334 = vmatpush1.msra.mxu0 %v3252
  %3335 = vmatprep.subr.mxu0 0.0
  %3336 = vmatpush1.msra.mxu0 %v3253
  %3337 = vmatprep.subr.mxu0 0.0
  %3338 = vmatpush1.msra.mxu0 %v3254
  %3339 = vmatprep.subr.mxu0 0.0
  %3340 = vmatpush1.msra.mxu0 %v3255
  %3341 = vmatprep.subr.mxu0 0.0
  %3342 = vmatpush1.msra.mxu0 %v3256
  %3343 = vmatprep.subr.mxu0 0.0
  %3344 = vmatpush1.msra.mxu0 %v3257
  %3345 = vmatprep.subr.mxu0 0.0
  %3346 = vmatpush1.msra.mxu0 %v3258
  %3347 = vmatprep.subr.mxu0 0.0
  %3348 = vmatpush1.msra.mxu0 %v3259
  %3349 = vmatprep.subr.mxu0 0.0
  %3350 = vmatpush1.msra.mxu0 %v3260
  %3351 = vmatprep.subr.mxu0 0.0
  %3352 = vmatpush1.msra.mxu0 %v3261
  %3353 = vmatprep.subr.mxu0 0.0
  %3354 = vmatpush1.msra.mxu0 %v3262
  %3355 = vmatprep.subr.mxu0 0.0
  %3356 = vmatpush1.msra.mxu0 %v3263
  %3357 = vmatprep.subr.mxu0 0.0
  %3358 = vmatpush1.msra.mxu0 %v3264
  %3359 = vmatprep.subr.mxu0 0.0
  %3360 = vmatpush1.msra.mxu0 %v3265
  %3361 = vmatprep.subr.mxu0 0.0
  %3362 = vmatpush1.msra.mxu0 %v3266
  %3363 = vmatprep.subr.mxu0 0.0
  %3364 = vmatpush1.msra.mxu0 %v3267
  %3365 = vmatprep.subr.mxu0 0.0
  %3366 = vmatpush1.msra.mxu0 %v3268
  %3367 = vmatprep.subr.mxu0 0.0
  %3368 = vmatpush1.msra.mxu0 %v3269
  %3369 = vmatprep.subr.mxu0 0.0
  %3370 = vmatpush1.msra.mxu0 %v3270
  %3371 = vmatprep.subr.mxu0 0.0
  %3372 = vmatpush1.msra.mxu0 %v3271
  %3373 = vmatprep.mubr.f32.mxu0 %v3193
  %3374 = vmatmul.mubr.f32.gmra.mrb[0].mxu0 %v3192
  %v3375 = vpop.f32.mrb[0].mxu0
  %v3376 = vadd.f32 %v3308, %v3375
  %v3377 = vpop.f32.mrb[0].mxu0
  %3378 = vmatprep.mubr.f32.mxu0 %v3197
  %3379 = vmatmul.mubr.f32.gmra.mrb[0].mxu0 %v3196
  %v3380 = vpop.f32.mrb[0].mxu0
  %v3381 = vadd.f32 %v3308, %v3380
  %v3382 = vpop.f32.mrb[0].mxu0
  %3383 = vmatprep.mubr.f32.mxu0 %v3201
  %3384 = vmatmul.mubr.f32.gmra.mrb[0].mxu0 %v3200
  %v3385 = vpop.f32.mrb[0].mxu0
  %v3386 = vadd.f32 %v3308, %v3385
  %v3387 = vpop.f32.mrb[0].mxu0
  %3388 = vmatprep.mubr.f32.mxu0 %v3205
  %3389 = vmatmul.mubr.f32.gmra.mrb[0].mxu0 %v3204
  %v3390 = vpop.f32.mrb[0].mxu0
  %v3391 = vadd.f32 %v3308, %v3390
  %v3392 = vpop.f32.mrb[0].mxu0
  %3393 = vmatprep.mubr.f32.mxu0 %v3209
  %3394 = vmatmul.mubr.f32.gmra.mrb[0].mxu0 %v3208
  %v3395 = vpop.f32.mrb[0].mxu0
  %v3396 = vadd.f32 %v3308, %v3395
  %v3397 = vpop.f32.mrb[0].mxu0
  %3398 = vmatprep.mubr.f32.mxu0 %v3213
  %3399 = vmatmul.mubr.f32.gmra.mrb[0].mxu0 %v3212
  %v3400 = vpop.f32.mrb[0].mxu0
  %v3401 = vadd.f32 %v3308, %v3400
  %v3402 = vpop.f32.mrb[0].mxu0
  %3403 = vmatprep.mubr.f32.mxu0 %v3217
  %3404 = vmatmul.mubr.f32.gmra.mrb[0].mxu0 %v3216
  %v3405 = vpop.f32.mrb[0].mxu0
  %v3406 = vadd.f32 %v3308, %v3405
  %v3407 = vpop.f32.mrb[0].mxu0
  %3408 = vmatprep.mubr.f32.mxu0 %v3221
  %3409 = vmatmul.mubr.f32.gmra.mrb[0].mxu0 %v3220
  %v3410 = vpop.f32.mrb[0].mxu0
  %v3411 = vadd.f32 %v3308, %v3410
  %v3412 = vpop.f32.mrb[0].mxu0
  %3413 = vmatprep.mubr.f32.mxu0 %v3225
  %3414 = vmatmul.mubr.f32.gmra.mrb[0].mxu0 %v3224
  %v3415 = vpop.f32.mrb[0].mxu0
  %v3416 = vadd.f32 %v3308, %v3415
  %v3417 = vpop.f32.mrb[0].mxu0
  %3418 = vmatprep.mubr.f32.mxu0 %v3229
  %3419 = vmatmul.mubr.f32.gmra.mrb[0].mxu0 %v3228
  %v3420 = vpop.f32.mrb[0].mxu0
  %v3421 = vadd.f32 %v3308, %v3420
  %v3422 = vpop.f32.mrb[0].mxu0
  %3423 = vmatprep.mubr.f32.mxu0 %v3233
  %3424 = vmatmul.mubr.f32.gmra.mrb[0].mxu0 %v3232
  %v3425 = vpop.f32.mrb[0].mxu0
  %v3426 = vadd.f32 %v3308, %v3425
  %v3427 = vpop.f32.mrb[0].mxu0
  %3428 = vmatprep.mubr.f32.mxu0 %v3237
  %3429 = vmatmul.mubr.f32.gmra.mrb[0].mxu0 %v3236
  %v3430 = vpop.f32.mrb[0].mxu0
  %v3431 = vadd.f32 %v3308, %v3430
  %v3432 = vpop.f32.mrb[0].mxu0
  %3433 = vdwg.mxu0
  %3434 = vmatprep.subr.mxu0 0.0
  %3435 = vmatpush1.msra.mxu0 %v3272
  %3436 = vmatprep.subr.mxu0 0.0
  %3437 = vmatpush1.msra.mxu0 %v3273
  %3438 = vmatprep.subr.mxu0 0.0
  %3439 = vmatpush1.msra.mxu0 %v3274
  %3440 = vmatprep.subr.mxu0 0.0
  %3441 = vmatpush1.msra.mxu0 %v3275
  %3442 = vmatprep.subr.mxu0 0.0
  %3443 = vmatpush1.msra.mxu0 %v3276
  %3444 = vmatprep.subr.mxu0 0.0
  %3445 = vmatpush1.msra.mxu0 %v3277
  %3446 = vmatprep.subr.mxu0 0.0
  %3447 = vmatpush1.msra.mxu0 %v3278
  %3448 = vmatprep.subr.mxu0 0.0
  %3449 = vmatpush1.msra.mxu0 %v3279
  %3450 = vmatprep.subr.mxu0 0.0
  %3451 = vmatpush1.msra.mxu0 %v3280
  %3452 = vmatprep.subr.mxu0 0.0
  %3453 = vmatpush1.msra.mxu0 %v3281
  %3454 = vmatprep.subr.mxu0 0.0
  %3455 = vmatpush1.msra.mxu0 %v3282
  %3456 = vmatprep.subr.mxu0 0.0
  %3457 = vmatpush1.msra.mxu0 %v3283
  %3458 = vmatprep.subr.mxu0 0.0
  %3459 = vmatpush1.msra.mxu0 %v3284
  %3460 = vmatprep.subr.mxu0 0.0
  %3461 = vmatpush1.msra.mxu0 %v3285
  %3462 = vmatprep.subr.mxu0 0.0
  %3463 = vmatpush1.msra.mxu0 %v3286
  %3464 = vmatprep.subr.mxu0 0.0
  %3465 = vmatpush1.msra.mxu0 %v3287
  %3466 = vmatprep.subr.mxu0 0.0
  %3467 = vmatpush1.msra.mxu0 %v3288
  %3468 = vmatprep.subr.mxu0 0.0
  %3469 = vmatpush1.msra.mxu0 %v3289
  %3470 = vmatprep.subr.mxu0 0.0
  %3471 = vmatpush1.msra.mxu0 %v3290
  %3472 = vmatprep.subr.mxu0 0.0
  %3473 = vmatpush1.msra.mxu0 %v3291
  %3474 = vmatprep.subr.mxu0 0.0
  %3475 = vmatpush1.msra.mxu0 %v3292
  %3476 = vmatprep.subr.mxu0 0.0
  %3477 = vmatpush1.msra.mxu0 %v3293
  %3478 = vmatprep.subr.mxu0 0.0
  %3479 = vmatpush1.msra.mxu0 %v3294
  %3480 = vmatprep.subr.mxu0 0.0
  %3481 = vmatpush1.msra.mxu0 %v3295
  %3482 = vmatprep.subr.mxu0 0.0
  %3483 = vmatpush1.msra.mxu0 %v3296
  %3484 = vmatprep.subr.mxu0 0.0
  %3485 = vmatpush1.msra.mxu0 %v3297
  %3486 = vmatprep.subr.mxu0 0.0
  %3487 = vmatpush1.msra.mxu0 %v3298
  %3488 = vmatprep.subr.mxu0 0.0
  %3489 = vmatpush1.msra.mxu0 %v3299
  %3490 = vmatprep.subr.mxu0 0.0
  %3491 = vmatpush1.msra.mxu0 %v3300
  %3492 = vmatprep.subr.mxu0 0.0
  %3493 = vmatpush1.msra.mxu0 %v3301
  %3494 = vmatprep.subr.mxu0 0.0
  %3495 = vmatpush1.msra.mxu0 %v3302
  %3496 = vmatprep.subr.mxu0 0.0
  %3497 = vmatpush1.msra.mxu0 %v3303
  %3498 = vmatprep.mubr.f32.mxu0 %v3195
  %3499 = vmatmul.mubr.f32.gmra.mrb[0].mxu0 %v3194
  %v3500 = vpop.f32.mrb[0].mxu0
  %v3501 = vadd.f32 %v3376, %v3500
  %v3502 = vpop.f32.mrb[0].mxu0
  %3503 = vmatprep.mubr.f32.mxu0 %v3199
  %3504 = vmatmul.mubr.f32.gmra.mrb[0].mxu0 %v3198
  %v3505 = vpop.f32.mrb[0].mxu0
  %v3506 = vadd.f32 %v3381, %v3505
  %v3507 = vpop.f32.mrb[0].mxu0
  %3508 = vmatprep.mubr.f32.mxu0 %v3203
  %3509 = vmatmul.mubr.f32.gmra.mrb[0].mxu0 %v3202
  %v3510 = vpop.f32.mrb[0].mxu0
  %v3511 = vadd.f32 %v3386, %v3510
  %v3512 = vpop.f32.mrb[0].mxu0
  %3513 = vmatprep.mubr.f32.mxu0 %v3207
  %3514 = vmatmul.mubr.f32.gmra.mrb[0].mxu0 %v3206
  %v3515 = vpop.f32.mrb[0].mxu0
  %v3516 = vadd.f32 %v3391, %v3515
  %v3517 = vpop.f32.mrb[0].mxu0
  %3518 = vmatprep.mubr.f32.mxu0 %v3211
  %3519 = vmatmul.mubr.f32.gmra.mrb[0].mxu0 %v3210
  %v3520 = vpop.f32.mrb[0].mxu0
  %v3521 = vadd.f32 %v3396, %v3520
  %v3522 = vpop.f32.mrb[0].mxu0
  %3523 = vmatprep.mubr.f32.mxu0 %v3215
  %3524 = vmatmul.mubr.f32.gmra.mrb[0].mxu0 %v3214
  %v3525 = vpop.f32.mrb[0].mxu0
  %v3526 = vadd.f32 %v3401, %v3525
  %v3527 = vpop.f32.mrb[0].mxu0
  %3528 = vmatprep.mubr.f32.mxu0 %v3219
  %3529 = vmatmul.mubr.f32.gmra.mrb[0].mxu0 %v3218
  %v3530 = vpop.f32.mrb[0].mxu0
  %v3531 = vadd.f32 %v3406, %v3530
  %v3532 = vpop.f32.mrb[0].mxu0
  %3533 = vmatprep.mubr.f32.mxu0 %v3223
  %3534 = vmatmul.mubr.f32.gmra.mrb[0].mxu0 %v3222
  %v3535 = vpop.f32.mrb[0].mxu0
  %v3536 = vadd.f32 %v3411, %v3535
  %v3537 = vpop.f32.mrb[0].mxu0
  %3538 = vmatprep.mubr.f32.mxu0 %v3227
  %3539 = vmatmul.mubr.f32.gmra.mrb[0].mxu0 %v3226
  %v3540 = vpop.f32.mrb[0].mxu0
  %v3541 = vadd.f32 %v3416, %v3540
  %v3542 = vpop.f32.mrb[0].mxu0
  %3543 = vmatprep.mubr.f32.mxu0 %v3231
  %3544 = vmatmul.mubr.f32.gmra.mrb[0].mxu0 %v3230
  %v3545 = vpop.f32.mrb[0].mxu0
  %v3546 = vadd.f32 %v3421, %v3545
  %v3547 = vpop.f32.mrb[0].mxu0
  %3548 = vmatprep.mubr.f32.mxu0 %v3235
  %3549 = vmatmul.mubr.f32.gmra.mrb[0].mxu0 %v3234
  %v3550 = vpop.f32.mrb[0].mxu0
  %v3551 = vadd.f32 %v3426, %v3550
  %v3552 = vpop.f32.mrb[0].mxu0
  %3553 = vmatprep.mubr.f32.mxu0 %v3239
  %3554 = vmatmul.mubr.f32.gmra.mrb[0].mxu0 %v3238
  %v3555 = vpop.f32.mrb[0].mxu0
  %v3556 = vadd.f32 %v3431, %v3555
  %v3557 = vpop.f32.mrb[0].mxu0
  %3558 = vdwg.mxu0
  %v3559 = vmax.f32 %v3501, 0.0
  %v3560 = vmax.f32 %v3506, 0.0
  %v3561 = vmax.f32 %v3511, 0.0
  %v3562 = vmax.f32 %v3516, 0.0
  %v3563 = vmax.f32 %v3521, 0.0
  %v3564 = vmax.f32 %v3526, 0.0
  %v3565 = vmax.f32 %v3531, 0.0
  %v3566 = vmax.f32 %v3536, 0.0
  %v3567 = vmax.f32 %v3541, 0.0
  %v3568 = vmax.f32 %v3546, 0.0
  %v3569 = vmax.f32 %v3551, 0.0
  %v3570 = vmax.f32 %v3556, 0.0
  %3571 = vst.msk [vmem:[#allocation3] sm:$0xff] %vm308, %v3559
  %3572 = vst.msk [vmem:[#allocation3 + $0x8] sm:$0xff] %vm308, %v3560
  %3573 = vst.msk [vmem:[#allocation3 + $0x10] sm:$0xff] %vm308, %v3561
  %3574 = vst.msk [vmem:[#allocation3 + $0x18] sm:$0xff] %vm308, %v3562
  %3575 = vst.msk [vmem:[#allocation3 + $0x20] sm:$0xff] %vm308, %v3563
  %3576 = vst.msk [vmem:[#allocation3 + $0x28] sm:$0xff] %vm308, %v3564
  %3577 = vst.msk [vmem:[#allocation3 + $0x30] sm:$0xff] %vm308, %v3565
  %3578 = vst.msk [vmem:[#allocation3 + $0x38] sm:$0xff] %vm308, %v3566
  %3579 = vst.msk [vmem:[#allocation3 + $0x40] sm:$0xff] %vm308, %v3567
  %3580 = vst.msk [vmem:[#allocation3 + $0x48] sm:$0xff] %vm308, %v3568
  %3581 = vst.msk [vmem:[#allocation3 + $0x50] sm:$0xff] %vm308, %v3569
  %3582 = vst.msk [vmem:[#allocation3 + $0x58] sm:$0xff] %vm308, %v3570
  %v3583 = vld [vmem:[#allocation6 + $0x180] sm:$0xff]
  %v3584 = vld [vmem:[#allocation6 + $0x188] sm:$0xff]
  %v3585 = vld [vmem:[#allocation6 + $0x190] sm:$0xff]
  %v3586 = vld [vmem:[#allocation6 + $0x198] sm:$0xff]
  %v3587 = vld [vmem:[#allocation6 + $0x1a0] sm:$0xff]
  %v3588 = vld [vmem:[#allocation6 + $0x1a8] sm:$0xff]
  %v3589 = vld [vmem:[#allocation6 + $0x1b0] sm:$0xff]
  %v3590 = vld [vmem:[#allocation6 + $0x1b8] sm:$0xff]
  %v3591 = vld [vmem:[#allocation6 + $0x1c0] sm:$0xff]
  %v3592 = vld [vmem:[#allocation6 + $0x1c8] sm:$0xff]
  %v3593 = vld [vmem:[#allocation6 + $0x1d0] sm:$0xff]
  %v3594 = vld [vmem:[#allocation6 + $0x1d8] sm:$0xff]
  %v3595 = vld [vmem:[#allocation6 + $0x1e0] sm:$0xff]
  %v3596 = vld [vmem:[#allocation6 + $0x1e8] sm:$0xff]
  %v3597 = vld [vmem:[#allocation6 + $0x1f0] sm:$0xff]
  %v3598 = vld [vmem:[#allocation6 + $0x1f8] sm:$0xff]
  %v3599 = vld [vmem:[#allocation6 + $0x200] sm:$0xff]
  %v3600 = vld [vmem:[#allocation6 + $0x208] sm:$0xff]
  %v3601 = vld [vmem:[#allocation6 + $0x210] sm:$0xff]
  %v3602 = vld [vmem:[#allocation6 + $0x218] sm:$0xff]
  %v3603 = vld [vmem:[#allocation6 + $0x220] sm:$0xff]
  %v3604 = vld [vmem:[#allocation6 + $0x228] sm:$0xff]
  %v3605 = vld [vmem:[#allocation6 + $0x230] sm:$0xff]
  %v3606 = vld [vmem:[#allocation6 + $0x238] sm:$0xff]
  %v3607 = vld [vmem:[#allocation6 + $0x240] sm:$0xff]
  %v3608 = vld [vmem:[#allocation6 + $0x248] sm:$0xff]
  %v3609 = vld [vmem:[#allocation6 + $0x250] sm:$0xff]
  %v3610 = vld [vmem:[#allocation6 + $0x258] sm:$0xff]
  %v3611 = vld [vmem:[#allocation6 + $0x260] sm:$0xff]
  %v3612 = vld [vmem:[#allocation6 + $0x268] sm:$0xff]
  %v3613 = vld [vmem:[#allocation6 + $0x270] sm:$0xff]
  %v3614 = vld [vmem:[#allocation6 + $0x278] sm:$0xff]
  %v3615 = vld [vmem:[#allocation6 + $0x280] sm:$0xff]
  %v3616 = vld [vmem:[#allocation6 + $0x288] sm:$0xff]
  %v3617 = vld [vmem:[#allocation6 + $0x290] sm:$0xff]
  %v3618 = vld [vmem:[#allocation6 + $0x298] sm:$0xff]
  %v3619 = vld [vmem:[#allocation6 + $0x2a0] sm:$0xff]
  %v3620 = vld [vmem:[#allocation6 + $0x2a8] sm:$0xff]
  %v3621 = vld [vmem:[#allocation6 + $0x2b0] sm:$0xff]
  %v3622 = vld [vmem:[#allocation6 + $0x2b8] sm:$0xff]
  %v3623 = vld [vmem:[#allocation6 + $0x2c0] sm:$0xff]
  %v3624 = vld [vmem:[#allocation6 + $0x2c8] sm:$0xff]
  %v3625 = vld [vmem:[#allocation6 + $0x2d0] sm:$0xff]
  %v3626 = vld [vmem:[#allocation6 + $0x2d8] sm:$0xff]
  %v3627 = vld [vmem:[#allocation6 + $0x2e0] sm:$0xff]
  %v3628 = vld [vmem:[#allocation6 + $0x2e8] sm:$0xff]
  %v3629 = vld [vmem:[#allocation6 + $0x2f0] sm:$0xff]
  %v3630 = vld [vmem:[#allocation6 + $0x2f8] sm:$0xff]
  %v3631 = vld [vmem:[%s1] sm:$0xff]
  %v3632 = vld [vmem:[%s1 + $0x8] sm:$0xff]
  %v3633 = vld [vmem:[%s1 + $0x10] sm:$0xff]
  %v3634 = vld [vmem:[%s1 + $0x18] sm:$0xff]
  %v3635 = vld [vmem:[%s1 + $0x20] sm:$0xff]
  %v3636 = vld [vmem:[%s1 + $0x28] sm:$0xff]
  %v3637 = vld [vmem:[%s1 + $0x30] sm:$0xff]
  %v3638 = vld [vmem:[%s1 + $0x38] sm:$0xff]
  %v3639 = vld [vmem:[%s1 + $0x40] sm:$0xff]
  %v3640 = vld [vmem:[%s1 + $0x48] sm:$0xff]
  %v3641 = vld [vmem:[%s1 + $0x50] sm:$0xff]
  %v3642 = vld [vmem:[%s1 + $0x58] sm:$0xff]
  %v3643 = vld [vmem:[%s1 + $0x60] sm:$0xff]
  %v3644 = vld [vmem:[%s1 + $0x68] sm:$0xff]
  %v3645 = vld [vmem:[%s1 + $0x70] sm:$0xff]
  %v3646 = vld [vmem:[%s1 + $0x78] sm:$0xff]
  %v3647 = vld [vmem:[%s1 + $0x80] sm:$0xff]
  %v3648 = vld [vmem:[%s1 + $0x88] sm:$0xff]
  %v3649 = vld [vmem:[%s1 + $0x90] sm:$0xff]
  %v3650 = vld [vmem:[%s1 + $0x98] sm:$0xff]
  %v3651 = vld [vmem:[%s1 + $0xa0] sm:$0xff]
  %v3652 = vld [vmem:[%s1 + $0xa8] sm:$0xff]
  %v3653 = vld [vmem:[%s1 + $0xb0] sm:$0xff]
  %v3654 = vld [vmem:[%s1 + $0xb8] sm:$0xff]
  %v3655 = vld [vmem:[%s1 + $0xc0] sm:$0xff]
  %v3656 = vld [vmem:[%s1 + $0xc8] sm:$0xff]
  %v3657 = vld [vmem:[%s1 + $0xd0] sm:$0xff]
  %v3658 = vld [vmem:[%s1 + $0xd8] sm:$0xff]
  %v3659 = vld [vmem:[%s1 + $0xe0] sm:$0xff]
  %v3660 = vld [vmem:[%s1 + $0xe8] sm:$0xff]
  %v3661 = vld [vmem:[%s1 + $0xf0] sm:$0xff]
  %v3662 = vld [vmem:[%s1 + $0xf8] sm:$0xff]
  %v3663 = vld [vmem:[%s1 + $0x100] sm:$0xff]
  %v3664 = vld [vmem:[%s1 + $0x108] sm:$0xff]
  %v3665 = vld [vmem:[%s1 + $0x110] sm:$0xff]
  %v3666 = vld [vmem:[%s1 + $0x118] sm:$0xff]
  %v3667 = vld [vmem:[%s1 + $0x120] sm:$0xff]
  %v3668 = vld [vmem:[%s1 + $0x128] sm:$0xff]
  %v3669 = vld [vmem:[%s1 + $0x130] sm:$0xff]
  %v3670 = vld [vmem:[%s1 + $0x138] sm:$0xff]
  %v3671 = vld [vmem:[%s1 + $0x140] sm:$0xff]
  %v3672 = vld [vmem:[%s1 + $0x148] sm:$0xff]
  %v3673 = vld [vmem:[%s1 + $0x150] sm:$0xff]
  %v3674 = vld [vmem:[%s1 + $0x158] sm:$0xff]
  %v3675 = vld [vmem:[%s1 + $0x160] sm:$0xff]
  %v3676 = vld [vmem:[%s1 + $0x168] sm:$0xff]
  %v3677 = vld [vmem:[%s1 + $0x170] sm:$0xff]
  %v3678 = vld [vmem:[%s1 + $0x178] sm:$0xff]
  %v3679 = vld [vmem:[%s1 + $0x180] sm:$0xff]
  %v3680 = vld [vmem:[%s1 + $0x188] sm:$0xff]
  %v3681 = vld [vmem:[%s1 + $0x190] sm:$0xff]
  %v3682 = vld [vmem:[%s1 + $0x198] sm:$0xff]
  %v3683 = vld [vmem:[%s1 + $0x1a0] sm:$0xff]
  %v3684 = vld [vmem:[%s1 + $0x1a8] sm:$0xff]
  %v3685 = vld [vmem:[%s1 + $0x1b0] sm:$0xff]
  %v3686 = vld [vmem:[%s1 + $0x1b8] sm:$0xff]
  %v3687 = vld [vmem:[%s1 + $0x1c0] sm:$0xff]
  %v3688 = vld [vmem:[%s1 + $0x1c8] sm:$0xff]
  %v3689 = vld [vmem:[%s1 + $0x1d0] sm:$0xff]
  %v3690 = vld [vmem:[%s1 + $0x1d8] sm:$0xff]
  %v3691 = vld [vmem:[%s1 + $0x1e0] sm:$0xff]
  %v3692 = vld [vmem:[%s1 + $0x1e8] sm:$0xff]
  %v3693 = vld [vmem:[%s1 + $0x1f0] sm:$0xff]
  %v3694 = vld [vmem:[%s1 + $0x1f8] sm:$0xff]
  %v3695 = vld [vmem:[%s2 + $0x12e] sm:$0x1]
  %v3696 = vlaneseq
  %v3697 = vshrl.u32 %v3696, 7
  %v3698 = vsub.s32 0, %v3697
  %v3699 = vrot.slane %v3695, %v3698
  %3700 = vmatprep.subr.mxu0 0.0
  %3701 = vmatpush1.msra.mxu0 %v3631
  %3702 = vmatprep.subr.mxu0 0.0
  %3703 = vmatpush1.msra.mxu0 %v3632
  %3704 = vmatprep.subr.mxu0 0.0
  %3705 = vmatpush1.msra.mxu0 %v3633
  %3706 = vmatprep.subr.mxu0 0.0
  %3707 = vmatpush1.msra.mxu0 %v3634
  %3708 = vmatprep.subr.mxu0 0.0
  %3709 = vmatpush1.msra.mxu0 %v3635
  %3710 = vmatprep.subr.mxu0 0.0
  %3711 = vmatpush1.msra.mxu0 %v3636
  %3712 = vmatprep.subr.mxu0 0.0
  %3713 = vmatpush1.msra.mxu0 %v3637
  %3714 = vmatprep.subr.mxu0 0.0
  %3715 = vmatpush1.msra.mxu0 %v3638
  %3716 = vmatprep.subr.mxu0 0.0
  %3717 = vmatpush1.msra.mxu0 %v3639
  %3718 = vmatprep.subr.mxu0 0.0
  %3719 = vmatpush1.msra.mxu0 %v3640
  %3720 = vmatprep.subr.mxu0 0.0
  %3721 = vmatpush1.msra.mxu0 %v3641
  %3722 = vmatprep.subr.mxu0 0.0
  %3723 = vmatpush1.msra.mxu0 %v3642
  %3724 = vmatprep.subr.mxu0 0.0
  %3725 = vmatpush1.msra.mxu0 %v3643
  %3726 = vmatprep.subr.mxu0 0.0
  %3727 = vmatpush1.msra.mxu0 %v3644
  %3728 = vmatprep.subr.mxu0 0.0
  %3729 = vmatpush1.msra.mxu0 %v3645
  %3730 = vmatprep.subr.mxu0 0.0
  %3731 = vmatpush1.msra.mxu0 %v3646
  %3732 = vmatprep.subr.mxu0 0.0
  %3733 = vmatpush1.msra.mxu0 %v3647
  %3734 = vmatprep.subr.mxu0 0.0
  %3735 = vmatpush1.msra.mxu0 %v3648
  %3736 = vmatprep.subr.mxu0 0.0
  %3737 = vmatpush1.msra.mxu0 %v3649
  %3738 = vmatprep.subr.mxu0 0.0
  %3739 = vmatpush1.msra.mxu0 %v3650
  %3740 = vmatprep.subr.mxu0 0.0
  %3741 = vmatpush1.msra.mxu0 %v3651
  %3742 = vmatprep.subr.mxu0 0.0
  %3743 = vmatpush1.msra.mxu0 %v3652
  %3744 = vmatprep.subr.mxu0 0.0
  %3745 = vmatpush1.msra.mxu0 %v3653
  %3746 = vmatprep.subr.mxu0 0.0
  %3747 = vmatpush1.msra.mxu0 %v3654
  %3748 = vmatprep.subr.mxu0 0.0
  %3749 = vmatpush1.msra.mxu0 %v3655
  %3750 = vmatprep.subr.mxu0 0.0
  %3751 = vmatpush1.msra.mxu0 %v3656
  %3752 = vmatprep.subr.mxu0 0.0
  %3753 = vmatpush1.msra.mxu0 %v3657
  %3754 = vmatprep.subr.mxu0 0.0
  %3755 = vmatpush1.msra.mxu0 %v3658
  %3756 = vmatprep.subr.mxu0 0.0
  %3757 = vmatpush1.msra.mxu0 %v3659
  %3758 = vmatprep.subr.mxu0 0.0
  %3759 = vmatpush1.msra.mxu0 %v3660
  %3760 = vmatprep.subr.mxu0 0.0
  %3761 = vmatpush1.msra.mxu0 %v3661
  %3762 = vmatprep.subr.mxu0 0.0
  %3763 = vmatpush1.msra.mxu0 %v3662
  %3764 = vmatprep.mubr.f32.mxu0 %v3584
  %3765 = vmatmul.mubr.f32.gmra.mrb[0].mxu0 %v3583
  %v3766 = vpop.f32.mrb[0].mxu0
  %v3767 = vadd.f32 %v3699, %v3766
  %v3768 = vpop.f32.mrb[0].mxu0
  %3769 = vmatprep.mubr.f32.mxu0 %v3588
  %3770 = vmatmul.mubr.f32.gmra.mrb[0].mxu0 %v3587
  %v3771 = vpop.f32.mrb[0].mxu0
  %v3772 = vadd.f32 %v3699, %v3771
  %v3773 = vpop.f32.mrb[0].mxu0
  %3774 = vmatprep.mubr.f32.mxu0 %v3592
  %3775 = vmatmul.mubr.f32.gmra.mrb[0].mxu0 %v3591
  %v3776 = vpop.f32.mrb[0].mxu0
  %v3777 = vadd.f32 %v3699, %v3776
  %v3778 = vpop.f32.mrb[0].mxu0
  %3779 = vmatprep.mubr.f32.mxu0 %v3596
  %3780 = vmatmul.mubr.f32.gmra.mrb[0].mxu0 %v3595
  %v3781 = vpop.f32.mrb[0].mxu0
  %v3782 = vadd.f32 %v3699, %v3781
  %v3783 = vpop.f32.mrb[0].mxu0
  %3784 = vmatprep.mubr.f32.mxu0 %v3600
  %3785 = vmatmul.mubr.f32.gmra.mrb[0].mxu0 %v3599
  %v3786 = vpop.f32.mrb[0].mxu0
  %v3787 = vadd.f32 %v3699, %v3786
  %v3788 = vpop.f32.mrb[0].mxu0
  %3789 = vmatprep.mubr.f32.mxu0 %v3604
  %3790 = vmatmul.mubr.f32.gmra.mrb[0].mxu0 %v3603
  %v3791 = vpop.f32.mrb[0].mxu0
  %v3792 = vadd.f32 %v3699, %v3791
  %v3793 = vpop.f32.mrb[0].mxu0
  %3794 = vmatprep.mubr.f32.mxu0 %v3608
  %3795 = vmatmul.mubr.f32.gmra.mrb[0].mxu0 %v3607
  %v3796 = vpop.f32.mrb[0].mxu0
  %v3797 = vadd.f32 %v3699, %v3796
  %v3798 = vpop.f32.mrb[0].mxu0
  %3799 = vmatprep.mubr.f32.mxu0 %v3612
  %3800 = vmatmul.mubr.f32.gmra.mrb[0].mxu0 %v3611
  %v3801 = vpop.f32.mrb[0].mxu0
  %v3802 = vadd.f32 %v3699, %v3801
  %v3803 = vpop.f32.mrb[0].mxu0
  %3804 = vmatprep.mubr.f32.mxu0 %v3616
  %3805 = vmatmul.mubr.f32.gmra.mrb[0].mxu0 %v3615
  %v3806 = vpop.f32.mrb[0].mxu0
  %v3807 = vadd.f32 %v3699, %v3806
  %v3808 = vpop.f32.mrb[0].mxu0
  %3809 = vmatprep.mubr.f32.mxu0 %v3620
  %3810 = vmatmul.mubr.f32.gmra.mrb[0].mxu0 %v3619
  %v3811 = vpop.f32.mrb[0].mxu0
  %v3812 = vadd.f32 %v3699, %v3811
  %v3813 = vpop.f32.mrb[0].mxu0
  %3814 = vmatprep.mubr.f32.mxu0 %v3624
  %3815 = vmatmul.mubr.f32.gmra.mrb[0].mxu0 %v3623
  %v3816 = vpop.f32.mrb[0].mxu0
  %v3817 = vadd.f32 %v3699, %v3816
  %v3818 = vpop.f32.mrb[0].mxu0
  %3819 = vmatprep.mubr.f32.mxu0 %v3628
  %3820 = vmatmul.mubr.f32.gmra.mrb[0].mxu0 %v3627
  %v3821 = vpop.f32.mrb[0].mxu0
  %v3822 = vadd.f32 %v3699, %v3821
  %v3823 = vpop.f32.mrb[0].mxu0
  %3824 = vdwg.mxu0
  %3825 = vmatprep.subr.mxu0 0.0
  %3826 = vmatpush1.msra.mxu0 %v3663
  %3827 = vmatprep.subr.mxu0 0.0
  %3828 = vmatpush1.msra.mxu0 %v3664
  %3829 = vmatprep.subr.mxu0 0.0
  %3830 = vmatpush1.msra.mxu0 %v3665
  %3831 = vmatprep.subr.mxu0 0.0
  %3832 = vmatpush1.msra.mxu0 %v3666
  %3833 = vmatprep.subr.mxu0 0.0
  %3834 = vmatpush1.msra.mxu0 %v3667
  %3835 = vmatprep.subr.mxu0 0.0
  %3836 = vmatpush1.msra.mxu0 %v3668
  %3837 = vmatprep.subr.mxu0 0.0
  %3838 = vmatpush1.msra.mxu0 %v3669
  %3839 = vmatprep.subr.mxu0 0.0
  %3840 = vmatpush1.msra.mxu0 %v3670
  %3841 = vmatprep.subr.mxu0 0.0
  %3842 = vmatpush1.msra.mxu0 %v3671
  %3843 = vmatprep.subr.mxu0 0.0
  %3844 = vmatpush1.msra.mxu0 %v3672
  %3845 = vmatprep.subr.mxu0 0.0
  %3846 = vmatpush1.msra.mxu0 %v3673
  %3847 = vmatprep.subr.mxu0 0.0
  %3848 = vmatpush1.msra.mxu0 %v3674
  %3849 = vmatprep.subr.mxu0 0.0
  %3850 = vmatpush1.msra.mxu0 %v3675
  %3851 = vmatprep.subr.mxu0 0.0
  %3852 = vmatpush1.msra.mxu0 %v3676
  %3853 = vmatprep.subr.mxu0 0.0
  %3854 = vmatpush1.msra.mxu0 %v3677
  %3855 = vmatprep.subr.mxu0 0.0
  %3856 = vmatpush1.msra.mxu0 %v3678
  %3857 = vmatprep.subr.mxu0 0.0
  %3858 = vmatpush1.msra.mxu0 %v3679
  %3859 = vmatprep.subr.mxu0 0.0
  %3860 = vmatpush1.msra.mxu0 %v3680
  %3861 = vmatprep.subr.mxu0 0.0
  %3862 = vmatpush1.msra.mxu0 %v3681
  %3863 = vmatprep.subr.mxu0 0.0
  %3864 = vmatpush1.msra.mxu0 %v3682
  %3865 = vmatprep.subr.mxu0 0.0
  %3866 = vmatpush1.msra.mxu0 %v3683
  %3867 = vmatprep.subr.mxu0 0.0
  %3868 = vmatpush1.msra.mxu0 %v3684
  %3869 = vmatprep.subr.mxu0 0.0
  %3870 = vmatpush1.msra.mxu0 %v3685
  %3871 = vmatprep.subr.mxu0 0.0
  %3872 = vmatpush1.msra.mxu0 %v3686
  %3873 = vmatprep.subr.mxu0 0.0
  %3874 = vmatpush1.msra.mxu0 %v3687
  %3875 = vmatprep.subr.mxu0 0.0
  %3876 = vmatpush1.msra.mxu0 %v3688
  %3877 = vmatprep.subr.mxu0 0.0
  %3878 = vmatpush1.msra.mxu0 %v3689
  %3879 = vmatprep.subr.mxu0 0.0
  %3880 = vmatpush1.msra.mxu0 %v3690
  %3881 = vmatprep.subr.mxu0 0.0
  %3882 = vmatpush1.msra.mxu0 %v3691
  %3883 = vmatprep.subr.mxu0 0.0
  %3884 = vmatpush1.msra.mxu0 %v3692
  %3885 = vmatprep.subr.mxu0 0.0
  %3886 = vmatpush1.msra.mxu0 %v3693
  %3887 = vmatprep.subr.mxu0 0.0
  %3888 = vmatpush1.msra.mxu0 %v3694
  %3889 = vmatprep.mubr.f32.mxu0 %v3586
  %3890 = vmatmul.mubr.f32.gmra.mrb[0].mxu0 %v3585
  %v3891 = vpop.f32.mrb[0].mxu0
  %v3892 = vadd.f32 %v3767, %v3891
  %v3893 = vpop.f32.mrb[0].mxu0
  %3894 = vmatprep.mubr.f32.mxu0 %v3590
  %3895 = vmatmul.mubr.f32.gmra.mrb[0].mxu0 %v3589
  %v3896 = vpop.f32.mrb[0].mxu0
  %v3897 = vadd.f32 %v3772, %v3896
  %v3898 = vpop.f32.mrb[0].mxu0
  %3899 = vmatprep.mubr.f32.mxu0 %v3594
  %3900 = vmatmul.mubr.f32.gmra.mrb[0].mxu0 %v3593
  %v3901 = vpop.f32.mrb[0].mxu0
  %v3902 = vadd.f32 %v3777, %v3901
  %v3903 = vpop.f32.mrb[0].mxu0
  %3904 = vmatprep.mubr.f32.mxu0 %v3598
  %3905 = vmatmul.mubr.f32.gmra.mrb[0].mxu0 %v3597
  %v3906 = vpop.f32.mrb[0].mxu0
  %v3907 = vadd.f32 %v3782, %v3906
  %v3908 = vpop.f32.mrb[0].mxu0
  %3909 = vmatprep.mubr.f32.mxu0 %v3602
  %3910 = vmatmul.mubr.f32.gmra.mrb[0].mxu0 %v3601
  %v3911 = vpop.f32.mrb[0].mxu0
  %v3912 = vadd.f32 %v3787, %v3911
  %v3913 = vpop.f32.mrb[0].mxu0
  %3914 = vmatprep.mubr.f32.mxu0 %v3606
  %3915 = vmatmul.mubr.f32.gmra.mrb[0].mxu0 %v3605
  %v3916 = vpop.f32.mrb[0].mxu0
  %v3917 = vadd.f32 %v3792, %v3916
  %v3918 = vpop.f32.mrb[0].mxu0
  %3919 = vmatprep.mubr.f32.mxu0 %v3610
  %3920 = vmatmul.mubr.f32.gmra.mrb[0].mxu0 %v3609
  %v3921 = vpop.f32.mrb[0].mxu0
  %v3922 = vadd.f32 %v3797, %v3921
  %v3923 = vpop.f32.mrb[0].mxu0
  %3924 = vmatprep.mubr.f32.mxu0 %v3614
  %3925 = vmatmul.mubr.f32.gmra.mrb[0].mxu0 %v3613
  %v3926 = vpop.f32.mrb[0].mxu0
  %v3927 = vadd.f32 %v3802, %v3926
  %v3928 = vpop.f32.mrb[0].mxu0
  %3929 = vmatprep.mubr.f32.mxu0 %v3618
  %3930 = vmatmul.mubr.f32.gmra.mrb[0].mxu0 %v3617
  %v3931 = vpop.f32.mrb[0].mxu0
  %v3932 = vadd.f32 %v3807, %v3931
  %v3933 = vpop.f32.mrb[0].mxu0
  %3934 = vmatprep.mubr.f32.mxu0 %v3622
  %3935 = vmatmul.mubr.f32.gmra.mrb[0].mxu0 %v3621
  %v3936 = vpop.f32.mrb[0].mxu0
  %v3937 = vadd.f32 %v3812, %v3936
  %v3938 = vpop.f32.mrb[0].mxu0
  %3939 = vmatprep.mubr.f32.mxu0 %v3626
  %3940 = vmatmul.mubr.f32.gmra.mrb[0].mxu0 %v3625
  %v3941 = vpop.f32.mrb[0].mxu0
  %v3942 = vadd.f32 %v3817, %v3941
  %v3943 = vpop.f32.mrb[0].mxu0
  %3944 = vmatprep.mubr.f32.mxu0 %v3630
  %3945 = vmatmul.mubr.f32.gmra.mrb[0].mxu0 %v3629
  %v3946 = vpop.f32.mrb[0].mxu0
  %v3947 = vadd.f32 %v3822, %v3946
  %v3948 = vpop.f32.mrb[0].mxu0
  %3949 = vdwg.mxu0
  %v3950 = vmax.f32 %v3892, 0.0
  %v3951 = vmax.f32 %v3897, 0.0
  %v3952 = vmax.f32 %v3902, 0.0
  %v3953 = vmax.f32 %v3907, 0.0
  %v3954 = vmax.f32 %v3912, 0.0
  %v3955 = vmax.f32 %v3917, 0.0
  %v3956 = vmax.f32 %v3922, 0.0
  %v3957 = vmax.f32 %v3927, 0.0
  %v3958 = vmax.f32 %v3932, 0.0
  %v3959 = vmax.f32 %v3937, 0.0
  %v3960 = vmax.f32 %v3942, 0.0
  %v3961 = vmax.f32 %v3947, 0.0
  %3962 = vst.msk [vmem:[#allocation3 + $0x60] sm:$0xff] %vm308, %v3950
  %3963 = vst.msk [vmem:[#allocation3 + $0x68] sm:$0xff] %vm308, %v3951
  %3964 = vst.msk [vmem:[#allocation3 + $0x70] sm:$0xff] %vm308, %v3952
  %3965 = vst.msk [vmem:[#allocation3 + $0x78] sm:$0xff] %vm308, %v3953
  %3966 = vst.msk [vmem:[#allocation3 + $0x80] sm:$0xff] %vm308, %v3954
  %3967 = vst.msk [vmem:[#allocation3 + $0x88] sm:$0xff] %vm308, %v3955
  %3968 = vst.msk [vmem:[#allocation3 + $0x90] sm:$0xff] %vm308, %v3956
  %3969 = vst.msk [vmem:[#allocation3 + $0x98] sm:$0xff] %vm308, %v3957
  %3970 = vst.msk [vmem:[#allocation3 + $0xa0] sm:$0xff] %vm308, %v3958
  %3971 = vst.msk [vmem:[#allocation3 + $0xa8] sm:$0xff] %vm308, %v3959
  %3972 = vst.msk [vmem:[#allocation3 + $0xb0] sm:$0xff] %vm308, %v3960
  %3973 = vst.msk [vmem:[#allocation3 + $0xb8] sm:$0xff] %vm308, %v3961
  %v3974 = vld [vmem:[#allocation3] ss:$2 sm:$0xff]
  %s3975 = scalar_lea.vmem [#allocation3], 16
  %v3976 = vld [vmem:[%s3975] ss:$2 sm:$0xff]
  %s3977 = scalar_lea.vmem [#allocation3], 32
  %v3978 = vld [vmem:[%s3977] ss:$2 sm:$0xff]
  %s3979 = scalar_lea.vmem [#allocation3], 48
  %v3980 = vld [vmem:[%s3979] ss:$2 sm:$0xff]
  %s3981 = scalar_lea.vmem [#allocation3], 64
  %v3982 = vld [vmem:[%s3981] ss:$2 sm:$0xff]
  %s3983 = scalar_lea.vmem [#allocation3], 80
  %v3984 = vld [vmem:[%s3983] ss:$2 sm:$0xff]
  %s3985 = scalar_lea.vmem [#allocation3], 96
  %v3986 = vld [vmem:[%s3985] ss:$2 sm:$0xff]
  %s3987 = scalar_lea.vmem [#allocation3], 112
  %v3988 = vld [vmem:[%s3987] ss:$2 sm:$0xff]
  %s3989 = scalar_lea.vmem [#allocation3], 128
  %v3990 = vld [vmem:[%s3989] ss:$2 sm:$0xff]
  %3991 = vst.msk [vmem:[#allocation6] sm:$0xff] %vm308, %v3974
  %3992 = vst.msk [vmem:[#allocation6 + $0x20] sm:$0xff] %vm308, %v3976
  %3993 = vst.msk [vmem:[#allocation6 + $0x40] sm:$0xff] %vm308, %v3978
  %3994 = vst.msk [vmem:[#allocation6 + $0x60] sm:$0xff] %vm308, %v3980
  %3995 = vst.msk [vmem:[#allocation6 + $0x80] sm:$0xff] %vm308, %v3982
  %3996 = vst.msk [vmem:[#allocation6 + $0xa0] sm:$0xff] %vm308, %v3984
  %3997 = vst.msk [vmem:[#allocation6 + $0xc0] sm:$0xff] %vm308, %v3986
  %3998 = vst.msk [vmem:[#allocation6 + $0xe0] sm:$0xff] %vm308, %v3988
  %3999 = vst.msk [vmem:[#allocation6 + $0x100] sm:$0xff] %vm308, %v3990
  %s4000 = scalar_lea.vmem [#allocation3], 1
  %v4001 = vld [vmem:[%s4000] ss:$2 sm:$0xff]
  %s4002 = scalar_lea.vmem [#allocation3], 17
  %v4003 = vld [vmem:[%s4002] ss:$2 sm:$0xff]
  %s4004 = scalar_lea.vmem [#allocation3], 33
  %v4005 = vld [vmem:[%s4004] ss:$2 sm:$0xff]
  %s4006 = scalar_lea.vmem [#allocation3], 49
  %v4007 = vld [vmem:[%s4006] ss:$2 sm:$0xff]
  %s4008 = scalar_lea.vmem [#allocation3], 65
  %v4009 = vld [vmem:[%s4008] ss:$2 sm:$0xff]
  %s4010 = scalar_lea.vmem [#allocation3], 81
  %v4011 = vld [vmem:[%s4010] ss:$2 sm:$0xff]
  %s4012 = scalar_lea.vmem [#allocation3], 97
  %v4013 = vld [vmem:[%s4012] ss:$2 sm:$0xff]
  %s4014 = scalar_lea.vmem [#allocation3], 113
  %v4015 = vld [vmem:[%s4014] ss:$2 sm:$0xff]
  %s4016 = scalar_lea.vmem [#allocation3], 129
  %v4017 = vld [vmem:[%s4016] ss:$2 sm:$0xff]
  %4027 = vrot.lane.b32.xlu0 %v4001, 32
  %v4028 = vpop.permute.xlu0 %4027
  %4029 = vrot.lane.b32.xlu0 %v4003, 32
  %v4030 = vpop.permute.xlu0 %4029
  %4031 = vrot.lane.b32.xlu0 %v4005, 32
  %v4032 = vpop.permute.xlu0 %4031
  %4033 = vrot.lane.b32.xlu0 %v4007, 32
  %v4034 = vpop.permute.xlu0 %4033
  %4035 = vrot.lane.b32.xlu0 %v4009, 32
  %v4036 = vpop.permute.xlu0 %4035
  %4037 = vrot.lane.b32.xlu0 %v4011, 32
  %v4038 = vpop.permute.xlu0 %4037
  %4039 = vrot.lane.b32.xlu0 %v4013, 32
  %v4040 = vpop.permute.xlu0 %4039
  %4041 = vrot.lane.b32.xlu0 %v4015, 32
  %v4042 = vpop.permute.xlu0 %4041
  %4043 = vrot.lane.b32.xlu0 %v4017, 32
  %v4044 = vpop.permute.xlu0 %4043
  %4054 = vst.msk [vmem:[#allocation6] sm:$0xff] %vm1161, %v4028
  %4055 = vst.msk [vmem:[#allocation6 + $0x20] sm:$0xff] %vm1161, %v4030
  %4056 = vst.msk [vmem:[#allocation6 + $0x40] sm:$0xff] %vm1161, %v4032
  %4057 = vst.msk [vmem:[#allocation6 + $0x60] sm:$0xff] %vm1161, %v4034
  %4058 = vst.msk [vmem:[#allocation6 + $0x80] sm:$0xff] %vm1161, %v4036
  %4059 = vst.msk [vmem:[#allocation6 + $0xa0] sm:$0xff] %vm1161, %v4038
  %4060 = vst.msk [vmem:[#allocation6 + $0xc0] sm:$0xff] %vm1161, %v4040
  %4061 = vst.msk [vmem:[#allocation6 + $0xe0] sm:$0xff] %vm1161, %v4042
  %4062 = vst.msk [vmem:[#allocation6 + $0x100] sm:$0xff] %vm1161, %v4044
  %s4063 = scalar_lea.vmem [#allocation3], 2
  %v4064 = vld [vmem:[%s4063] ss:$2 sm:$0xff]
  %s4065 = scalar_lea.vmem [#allocation3], 18
  %v4066 = vld [vmem:[%s4065] ss:$2 sm:$0xff]
  %s4067 = scalar_lea.vmem [#allocation3], 34
  %v4068 = vld [vmem:[%s4067] ss:$2 sm:$0xff]
  %s4069 = scalar_lea.vmem [#allocation3], 50
  %v4070 = vld [vmem:[%s4069] ss:$2 sm:$0xff]
  %s4071 = scalar_lea.vmem [#allocation3], 66
  %v4072 = vld [vmem:[%s4071] ss:$2 sm:$0xff]
  %s4073 = scalar_lea.vmem [#allocation3], 82
  %v4074 = vld [vmem:[%s4073] ss:$2 sm:$0xff]
  %s4075 = scalar_lea.vmem [#allocation3], 98
  %v4076 = vld [vmem:[%s4075] ss:$2 sm:$0xff]
  %s4077 = scalar_lea.vmem [#allocation3], 114
  %v4078 = vld [vmem:[%s4077] ss:$2 sm:$0xff]
  %s4079 = scalar_lea.vmem [#allocation3], 130
  %v4080 = vld [vmem:[%s4079] ss:$2 sm:$0xff]
  %4090 = vrot.lane.b32.xlu0 %v4064, 64
  %v4091 = vpop.permute.xlu0 %4090
  %4092 = vrot.lane.b32.xlu0 %v4066, 64
  %v4093 = vpop.permute.xlu0 %4092
  %4094 = vrot.lane.b32.xlu0 %v4068, 64
  %v4095 = vpop.permute.xlu0 %4094
  %4096 = vrot.lane.b32.xlu0 %v4070, 64
  %v4097 = vpop.permute.xlu0 %4096
  %4098 = vrot.lane.b32.xlu0 %v4072, 64
  %v4099 = vpop.permute.xlu0 %4098
  %4100 = vrot.lane.b32.xlu0 %v4074, 64
  %v4101 = vpop.permute.xlu0 %4100
  %4102 = vrot.lane.b32.xlu0 %v4076, 64
  %v4103 = vpop.permute.xlu0 %4102
  %4104 = vrot.lane.b32.xlu0 %v4078, 64
  %v4105 = vpop.permute.xlu0 %4104
  %4106 = vrot.lane.b32.xlu0 %v4080, 64
  %v4107 = vpop.permute.xlu0 %4106
  %4117 = vst.msk [vmem:[#allocation6] sm:$0xff] %vm1330, %v4091
  %4118 = vst.msk [vmem:[#allocation6 + $0x20] sm:$0xff] %vm1330, %v4093
  %4119 = vst.msk [vmem:[#allocation6 + $0x40] sm:$0xff] %vm1330, %v4095
  %4120 = vst.msk [vmem:[#allocation6 + $0x60] sm:$0xff] %vm1330, %v4097
  %4121 = vst.msk [vmem:[#allocation6 + $0x80] sm:$0xff] %vm1330, %v4099
  %4122 = vst.msk [vmem:[#allocation6 + $0xa0] sm:$0xff] %vm1330, %v4101
  %4123 = vst.msk [vmem:[#allocation6 + $0xc0] sm:$0xff] %vm1330, %v4103
  %4124 = vst.msk [vmem:[#allocation6 + $0xe0] sm:$0xff] %vm1330, %v4105
  %4125 = vst.msk [vmem:[#allocation6 + $0x100] sm:$0xff] %vm1330, %v4107
  %s4126 = scalar_lea.vmem [#allocation3], 21
  %v4127 = vld [vmem:[%s4126] ss:$2 sm:$0xff]
  %s4128 = scalar_lea.vmem [#allocation3], 37
  %v4129 = vld [vmem:[%s4128] ss:$2 sm:$0xff]
  %s4130 = scalar_lea.vmem [#allocation3], 53
  %v4131 = vld [vmem:[%s4130] ss:$2 sm:$0xff]
  %s4132 = scalar_lea.vmem [#allocation3], 69
  %v4133 = vld [vmem:[%s4132] ss:$2 sm:$0xff]
  %s4134 = scalar_lea.vmem [#allocation3], 85
  %v4135 = vld [vmem:[%s4134] ss:$2 sm:$0xff]
  %s4136 = scalar_lea.vmem [#allocation3], 101
  %v4137 = vld [vmem:[%s4136] ss:$2 sm:$0xff]
  %s4138 = scalar_lea.vmem [#allocation3], 117
  %v4139 = vld [vmem:[%s4138] ss:$2 sm:$0xff]
  %s4140 = scalar_lea.vmem [#allocation3], 133
  %v4141 = vld [vmem:[%s4140] ss:$2 sm:$0xff]
  %s4142 = scalar_lea.vmem [#allocation3], 149
  %v4143 = vld [vmem:[%s4142] ss:$2 sm:$0xff]
  %4153 = vrot.lane.b32.xlu0 %v4127, 96
  %v4154 = vpop.permute.xlu0 %4153
  %4155 = vrot.lane.b32.xlu0 %v4129, 96
  %v4156 = vpop.permute.xlu0 %4155
  %4157 = vrot.lane.b32.xlu0 %v4131, 96
  %v4158 = vpop.permute.xlu0 %4157
  %4159 = vrot.lane.b32.xlu0 %v4133, 96
  %v4160 = vpop.permute.xlu0 %4159
  %4161 = vrot.lane.b32.xlu0 %v4135, 96
  %v4162 = vpop.permute.xlu0 %4161
  %4163 = vrot.lane.b32.xlu0 %v4137, 96
  %v4164 = vpop.permute.xlu0 %4163
  %4165 = vrot.lane.b32.xlu0 %v4139, 96
  %v4166 = vpop.permute.xlu0 %4165
  %4167 = vrot.lane.b32.xlu0 %v4141, 96
  %v4168 = vpop.permute.xlu0 %4167
  %4169 = vrot.lane.b32.xlu0 %v4143, 96
  %v4170 = vpop.permute.xlu0 %4169
  %4180 = vst.msk [vmem:[#allocation6] sm:$0xff] %vm1499, %v4154
  %4181 = vst.msk [vmem:[#allocation6 + $0x20] sm:$0xff] %vm1499, %v4156
  %4182 = vst.msk [vmem:[#allocation6 + $0x40] sm:$0xff] %vm1499, %v4158
  %4183 = vst.msk [vmem:[#allocation6 + $0x60] sm:$0xff] %vm1499, %v4160
  %4184 = vst.msk [vmem:[#allocation6 + $0x80] sm:$0xff] %vm1499, %v4162
  %4185 = vst.msk [vmem:[#allocation6 + $0xa0] sm:$0xff] %vm1499, %v4164
  %4186 = vst.msk [vmem:[#allocation6 + $0xc0] sm:$0xff] %vm1499, %v4166
  %4187 = vst.msk [vmem:[#allocation6 + $0xe0] sm:$0xff] %vm1499, %v4168
  %4188 = vst.msk [vmem:[#allocation6 + $0x100] sm:$0xff] %vm1499, %v4170
  %s4189 = scalar_lea.vmem [#allocation3], 22
  %v4190 = vld [vmem:[%s4189] ss:$2 sm:$0xff]
  %s4191 = scalar_lea.vmem [#allocation3], 38
  %v4192 = vld [vmem:[%s4191] ss:$2 sm:$0xff]
  %s4193 = scalar_lea.vmem [#allocation3], 54
  %v4194 = vld [vmem:[%s4193] ss:$2 sm:$0xff]
  %s4195 = scalar_lea.vmem [#allocation3], 70
  %v4196 = vld [vmem:[%s4195] ss:$2 sm:$0xff]
  %s4197 = scalar_lea.vmem [#allocation3], 86
  %v4198 = vld [vmem:[%s4197] ss:$2 sm:$0xff]
  %s4199 = scalar_lea.vmem [#allocation3], 102
  %v4200 = vld [vmem:[%s4199] ss:$2 sm:$0xff]
  %s4201 = scalar_lea.vmem [#allocation3], 118
  %v4202 = vld [vmem:[%s4201] ss:$2 sm:$0xff]
  %s4203 = scalar_lea.vmem [#allocation3], 134
  %v4204 = vld [vmem:[%s4203] ss:$2 sm:$0xff]
  %s4205 = scalar_lea.vmem [#allocation3], 150
  %v4206 = vld [vmem:[%s4205] ss:$2 sm:$0xff]
  %4207 = vst.msk [vmem:[#allocation6 + $0x8] sm:$0xff] %vm308, %v4190
  %4208 = vst.msk [vmem:[#allocation6 + $0x28] sm:$0xff] %vm308, %v4192
  %4209 = vst.msk [vmem:[#allocation6 + $0x48] sm:$0xff] %vm308, %v4194
  %4210 = vst.msk [vmem:[#allocation6 + $0x68] sm:$0xff] %vm308, %v4196
  %4211 = vst.msk [vmem:[#allocation6 + $0x88] sm:$0xff] %vm308, %v4198
  %4212 = vst.msk [vmem:[#allocation6 + $0xa8] sm:$0xff] %vm308, %v4200
  %4213 = vst.msk [vmem:[#allocation6 + $0xc8] sm:$0xff] %vm308, %v4202
  %4214 = vst.msk [vmem:[#allocation6 + $0xe8] sm:$0xff] %vm308, %v4204
  %4215 = vst.msk [vmem:[#allocation6 + $0x108] sm:$0xff] %vm308, %v4206
  %s4216 = scalar_lea.vmem [#allocation3], 23
  %v4217 = vld [vmem:[%s4216] ss:$2 sm:$0xff]
  %s4218 = scalar_lea.vmem [#allocation3], 39
  %v4219 = vld [vmem:[%s4218] ss:$2 sm:$0xff]
  %s4220 = scalar_lea.vmem [#allocation3], 55
  %v4221 = vld [vmem:[%s4220] ss:$2 sm:$0xff]
  %s4222 = scalar_lea.vmem [#allocation3], 71
  %v4223 = vld [vmem:[%s4222] ss:$2 sm:$0xff]
  %s4224 = scalar_lea.vmem [#allocation3], 87
  %v4225 = vld [vmem:[%s4224] ss:$2 sm:$0xff]
  %s4226 = scalar_lea.vmem [#allocation3], 103
  %v4227 = vld [vmem:[%s4226] ss:$2 sm:$0xff]
  %s4228 = scalar_lea.vmem [#allocation3], 119
  %v4229 = vld [vmem:[%s4228] ss:$2 sm:$0xff]
  %s4230 = scalar_lea.vmem [#allocation3], 135
  %v4231 = vld [vmem:[%s4230] ss:$2 sm:$0xff]
  %s4232 = scalar_lea.vmem [#allocation3], 151
  %v4233 = vld [vmem:[%s4232] ss:$2 sm:$0xff]
  %4243 = vrot.lane.b32.xlu0 %v4217, 32
  %v4244 = vpop.permute.xlu0 %4243
  %4245 = vrot.lane.b32.xlu0 %v4219, 32
  %v4246 = vpop.permute.xlu0 %4245
  %4247 = vrot.lane.b32.xlu0 %v4221, 32
  %v4248 = vpop.permute.xlu0 %4247
  %4249 = vrot.lane.b32.xlu0 %v4223, 32
  %v4250 = vpop.permute.xlu0 %4249
  %4251 = vrot.lane.b32.xlu0 %v4225, 32
  %v4252 = vpop.permute.xlu0 %4251
  %4253 = vrot.lane.b32.xlu0 %v4227, 32
  %v4254 = vpop.permute.xlu0 %4253
  %4255 = vrot.lane.b32.xlu0 %v4229, 32
  %v4256 = vpop.permute.xlu0 %4255
  %4257 = vrot.lane.b32.xlu0 %v4231, 32
  %v4258 = vpop.permute.xlu0 %4257
  %4259 = vrot.lane.b32.xlu0 %v4233, 32
  %v4260 = vpop.permute.xlu0 %4259
  %4270 = vst.msk [vmem:[#allocation6 + $0x8] sm:$0xff] %vm1161, %v4244
  %4271 = vst.msk [vmem:[#allocation6 + $0x28] sm:$0xff] %vm1161, %v4246
  %4272 = vst.msk [vmem:[#allocation6 + $0x48] sm:$0xff] %vm1161, %v4248
  %4273 = vst.msk [vmem:[#allocation6 + $0x68] sm:$0xff] %vm1161, %v4250
  %4274 = vst.msk [vmem:[#allocation6 + $0x88] sm:$0xff] %vm1161, %v4252
  %4275 = vst.msk [vmem:[#allocation6 + $0xa8] sm:$0xff] %vm1161, %v4254
  %4276 = vst.msk [vmem:[#allocation6 + $0xc8] sm:$0xff] %vm1161, %v4256
  %4277 = vst.msk [vmem:[#allocation6 + $0xe8] sm:$0xff] %vm1161, %v4258
  %4278 = vst.msk [vmem:[#allocation6 + $0x108] sm:$0xff] %vm1161, %v4260
  %s4279 = scalar_lea.vmem [#allocation3], 42
  %v4280 = vld [vmem:[%s4279] ss:$2 sm:$0xff]
  %s4281 = scalar_lea.vmem [#allocation3], 58
  %v4282 = vld [vmem:[%s4281] ss:$2 sm:$0xff]
  %s4283 = scalar_lea.vmem [#allocation3], 74
  %v4284 = vld [vmem:[%s4283] ss:$2 sm:$0xff]
  %s4285 = scalar_lea.vmem [#allocation3], 90
  %v4286 = vld [vmem:[%s4285] ss:$2 sm:$0xff]
  %s4287 = scalar_lea.vmem [#allocation3], 106
  %v4288 = vld [vmem:[%s4287] ss:$2 sm:$0xff]
  %s4289 = scalar_lea.vmem [#allocation3], 122
  %v4290 = vld [vmem:[%s4289] ss:$2 sm:$0xff]
  %s4291 = scalar_lea.vmem [#allocation3], 138
  %v4292 = vld [vmem:[%s4291] ss:$2 sm:$0xff]
  %s4293 = scalar_lea.vmem [#allocation3], 154
  %v4294 = vld [vmem:[%s4293] ss:$2 sm:$0xff]
  %s4295 = scalar_lea.vmem [#allocation3], 170
  %v4296 = vld [vmem:[%s4295] ss:$2 sm:$0xff]
  %4306 = vrot.lane.b32.xlu0 %v4280, 64
  %v4307 = vpop.permute.xlu0 %4306
  %4308 = vrot.lane.b32.xlu0 %v4282, 64
  %v4309 = vpop.permute.xlu0 %4308
  %4310 = vrot.lane.b32.xlu0 %v4284, 64
  %v4311 = vpop.permute.xlu0 %4310
  %4312 = vrot.lane.b32.xlu0 %v4286, 64
  %v4313 = vpop.permute.xlu0 %4312
  %4314 = vrot.lane.b32.xlu0 %v4288, 64
  %v4315 = vpop.permute.xlu0 %4314
  %4316 = vrot.lane.b32.xlu0 %v4290, 64
  %v4317 = vpop.permute.xlu0 %4316
  %4318 = vrot.lane.b32.xlu0 %v4292, 64
  %v4319 = vpop.permute.xlu0 %4318
  %4320 = vrot.lane.b32.xlu0 %v4294, 64
  %v4321 = vpop.permute.xlu0 %4320
  %4322 = vrot.lane.b32.xlu0 %v4296, 64
  %v4323 = vpop.permute.xlu0 %4322
  %4333 = vst.msk [vmem:[#allocation6 + $0x8] sm:$0xff] %vm1330, %v4307
  %4334 = vst.msk [vmem:[#allocation6 + $0x28] sm:$0xff] %vm1330, %v4309
  %4335 = vst.msk [vmem:[#allocation6 + $0x48] sm:$0xff] %vm1330, %v4311
  %4336 = vst.msk [vmem:[#allocation6 + $0x68] sm:$0xff] %vm1330, %v4313
  %4337 = vst.msk [vmem:[#allocation6 + $0x88] sm:$0xff] %vm1330, %v4315
  %4338 = vst.msk [vmem:[#allocation6 + $0xa8] sm:$0xff] %vm1330, %v4317
  %4339 = vst.msk [vmem:[#allocation6 + $0xc8] sm:$0xff] %vm1330, %v4319
  %4340 = vst.msk [vmem:[#allocation6 + $0xe8] sm:$0xff] %vm1330, %v4321
  %4341 = vst.msk [vmem:[#allocation6 + $0x108] sm:$0xff] %vm1330, %v4323
  %s4342 = scalar_lea.vmem [#allocation3], 43
  %v4343 = vld [vmem:[%s4342] ss:$2 sm:$0xff]
  %s4344 = scalar_lea.vmem [#allocation3], 59
  %v4345 = vld [vmem:[%s4344] ss:$2 sm:$0xff]
  %s4346 = scalar_lea.vmem [#allocation3], 75
  %v4347 = vld [vmem:[%s4346] ss:$2 sm:$0xff]
  %s4348 = scalar_lea.vmem [#allocation3], 91
  %v4349 = vld [vmem:[%s4348] ss:$2 sm:$0xff]
  %s4350 = scalar_lea.vmem [#allocation3], 107
  %v4351 = vld [vmem:[%s4350] ss:$2 sm:$0xff]
  %s4352 = scalar_lea.vmem [#allocation3], 123
  %v4353 = vld [vmem:[%s4352] ss:$2 sm:$0xff]
  %s4354 = scalar_lea.vmem [#allocation3], 139
  %v4355 = vld [vmem:[%s4354] ss:$2 sm:$0xff]
  %s4356 = scalar_lea.vmem [#allocation3], 155
  %v4357 = vld [vmem:[%s4356] ss:$2 sm:$0xff]
  %s4358 = scalar_lea.vmem [#allocation3], 171
  %v4359 = vld [vmem:[%s4358] ss:$2 sm:$0xff]
  %4369 = vrot.lane.b32.xlu0 %v4343, 96
  %v4370 = vpop.permute.xlu0 %4369
  %4371 = vrot.lane.b32.xlu0 %v4345, 96
  %v4372 = vpop.permute.xlu0 %4371
  %4373 = vrot.lane.b32.xlu0 %v4347, 96
  %v4374 = vpop.permute.xlu0 %4373
  %4375 = vrot.lane.b32.xlu0 %v4349, 96
  %v4376 = vpop.permute.xlu0 %4375
  %4377 = vrot.lane.b32.xlu0 %v4351, 96
  %v4378 = vpop.permute.xlu0 %4377
  %4379 = vrot.lane.b32.xlu0 %v4353, 96
  %v4380 = vpop.permute.xlu0 %4379
  %4381 = vrot.lane.b32.xlu0 %v4355, 96
  %v4382 = vpop.permute.xlu0 %4381
  %4383 = vrot.lane.b32.xlu0 %v4357, 96
  %v4384 = vpop.permute.xlu0 %4383
  %4385 = vrot.lane.b32.xlu0 %v4359, 96
  %v4386 = vpop.permute.xlu0 %4385
  %4396 = vst.msk [vmem:[#allocation6 + $0x8] sm:$0xff] %vm1499, %v4370
  %4397 = vst.msk [vmem:[#allocation6 + $0x28] sm:$0xff] %vm1499, %v4372
  %4398 = vst.msk [vmem:[#allocation6 + $0x48] sm:$0xff] %vm1499, %v4374
  %4399 = vst.msk [vmem:[#allocation6 + $0x68] sm:$0xff] %vm1499, %v4376
  %4400 = vst.msk [vmem:[#allocation6 + $0x88] sm:$0xff] %vm1499, %v4378
  %4401 = vst.msk [vmem:[#allocation6 + $0xa8] sm:$0xff] %vm1499, %v4380
  %4402 = vst.msk [vmem:[#allocation6 + $0xc8] sm:$0xff] %vm1499, %v4382
  %4403 = vst.msk [vmem:[#allocation6 + $0xe8] sm:$0xff] %vm1499, %v4384
  %4404 = vst.msk [vmem:[#allocation6 + $0x108] sm:$0xff] %vm1499, %v4386
  %s4405 = scalar_lea.vmem [#allocation3], 44
  %v4406 = vld [vmem:[%s4405] ss:$2 sm:$0xff]
  %s4407 = scalar_lea.vmem [#allocation3], 60
  %v4408 = vld [vmem:[%s4407] ss:$2 sm:$0xff]
  %s4409 = scalar_lea.vmem [#allocation3], 76
  %v4410 = vld [vmem:[%s4409] ss:$2 sm:$0xff]
  %s4411 = scalar_lea.vmem [#allocation3], 92
  %v4412 = vld [vmem:[%s4411] ss:$2 sm:$0xff]
  %s4413 = scalar_lea.vmem [#allocation3], 108
  %v4414 = vld [vmem:[%s4413] ss:$2 sm:$0xff]
  %s4415 = scalar_lea.vmem [#allocation3], 124
  %v4416 = vld [vmem:[%s4415] ss:$2 sm:$0xff]
  %s4417 = scalar_lea.vmem [#allocation3], 140
  %v4418 = vld [vmem:[%s4417] ss:$2 sm:$0xff]
  %s4419 = scalar_lea.vmem [#allocation3], 156
  %v4420 = vld [vmem:[%s4419] ss:$2 sm:$0xff]
  %s4421 = scalar_lea.vmem [#allocation3], 172
  %v4422 = vld [vmem:[%s4421] ss:$2 sm:$0xff]
  %4423 = vst.msk [vmem:[#allocation6 + $0x10] sm:$0xff] %vm308, %v4406
  %4424 = vst.msk [vmem:[#allocation6 + $0x30] sm:$0xff] %vm308, %v4408
  %4425 = vst.msk [vmem:[#allocation6 + $0x50] sm:$0xff] %vm308, %v4410
  %4426 = vst.msk [vmem:[#allocation6 + $0x70] sm:$0xff] %vm308, %v4412
  %4427 = vst.msk [vmem:[#allocation6 + $0x90] sm:$0xff] %vm308, %v4414
  %4428 = vst.msk [vmem:[#allocation6 + $0xb0] sm:$0xff] %vm308, %v4416
  %4429 = vst.msk [vmem:[#allocation6 + $0xd0] sm:$0xff] %vm308, %v4418
  %4430 = vst.msk [vmem:[#allocation6 + $0xf0] sm:$0xff] %vm308, %v4420
  %4431 = vst.msk [vmem:[#allocation6 + $0x110] sm:$0xff] %vm308, %v4422
  %v4432 = vld [vmem:[#allocation6] sm:$0xff]
  %v4433 = vld [vmem:[#allocation6 + $0x8] sm:$0xff]
  %v4434 = vld [vmem:[#allocation6 + $0x10] sm:$0xff]
  %v4435 = vld [vmem:[#allocation6 + $0x20] sm:$0xff]
  %v4436 = vld [vmem:[#allocation6 + $0x28] sm:$0xff]
  %v4437 = vld [vmem:[#allocation6 + $0x30] sm:$0xff]
  %v4438 = vld [vmem:[#allocation6 + $0x40] sm:$0xff]
  %v4439 = vld [vmem:[#allocation6 + $0x48] sm:$0xff]
  %v4440 = vld [vmem:[#allocation6 + $0x50] sm:$0xff]
  %v4441 = vld [vmem:[#allocation6 + $0x60] sm:$0xff]
  %v4442 = vld [vmem:[#allocation6 + $0x68] sm:$0xff]
  %v4443 = vld [vmem:[#allocation6 + $0x70] sm:$0xff]
  %v4444 = vld [vmem:[#allocation6 + $0x80] sm:$0xff]
  %v4445 = vld [vmem:[#allocation6 + $0x88] sm:$0xff]
  %v4446 = vld [vmem:[#allocation6 + $0x90] sm:$0xff]
  %v4447 = vld [vmem:[#allocation6 + $0xa0] sm:$0xff]
  %v4448 = vld [vmem:[#allocation6 + $0xa8] sm:$0xff]
  %v4449 = vld [vmem:[#allocation6 + $0xb0] sm:$0xff]
  %v4450 = vld [vmem:[#allocation6 + $0xc0] sm:$0xff]
  %v4451 = vld [vmem:[#allocation6 + $0xc8] sm:$0xff]
  %v4452 = vld [vmem:[#allocation6 + $0xd0] sm:$0xff]
  %v4453 = vld [vmem:[#allocation6 + $0xe0] sm:$0xff]
  %v4454 = vld [vmem:[#allocation6 + $0xe8] sm:$0xff]
  %v4455 = vld [vmem:[#allocation6 + $0xf0] sm:$0xff]
  %v4456 = vld [vmem:[#allocation6 + $0x100] sm:$0xff]
  %v4457 = vld [vmem:[#allocation6 + $0x108] sm:$0xff]
  %v4458 = vld [vmem:[#allocation6 + $0x110] sm:$0xff]
  %v4459 = vld [vmem:[%s1] sm:$0xff]
  %v4460 = vld [vmem:[%s1 + $0x8] sm:$0xff]
  %v4461 = vld [vmem:[%s1 + $0x10] sm:$0xff]
  %v4462 = vld [vmem:[%s1 + $0x18] sm:$0xff]
  %v4463 = vld [vmem:[%s1 + $0x20] sm:$0xff]
  %v4464 = vld [vmem:[%s1 + $0x28] sm:$0xff]
  %v4465 = vld [vmem:[%s1 + $0x30] sm:$0xff]
  %v4466 = vld [vmem:[%s1 + $0x38] sm:$0xff]
  %v4467 = vld [vmem:[%s1 + $0x40] sm:$0xff]
  %v4468 = vld [vmem:[%s1 + $0x48] sm:$0xff]
  %v4469 = vld [vmem:[%s1 + $0x50] sm:$0xff]
  %v4470 = vld [vmem:[%s1 + $0x58] sm:$0xff]
  %v4471 = vld [vmem:[%s1 + $0x60] sm:$0xff]
  %v4472 = vld [vmem:[%s1 + $0x68] sm:$0xff]
  %v4473 = vld [vmem:[%s1 + $0x70] sm:$0xff]
  %v4474 = vld [vmem:[%s1 + $0x78] sm:$0xff]
  %v4475 = vld [vmem:[%s1 + $0x80] sm:$0xff]
  %v4476 = vld [vmem:[%s1 + $0x88] sm:$0xff]
  %v4477 = vld [vmem:[%s1 + $0x90] sm:$0xff]
  %v4478 = vld [vmem:[%s1 + $0x98] sm:$0xff]
  %v4479 = vld [vmem:[%s1 + $0xa0] sm:$0xff]
  %v4480 = vld [vmem:[%s1 + $0xa8] sm:$0xff]
  %v4481 = vld [vmem:[%s1 + $0xb0] sm:$0xff]
  %v4482 = vld [vmem:[%s1 + $0xb8] sm:$0xff]
  %v4483 = vld [vmem:[%s1 + $0xc0] sm:$0xff]
  %v4484 = vld [vmem:[%s1 + $0xc8] sm:$0xff]
  %v4485 = vld [vmem:[%s1 + $0xd0] sm:$0xff]
  %v4486 = vld [vmem:[%s1 + $0xd8] sm:$0xff]
  %v4487 = vld [vmem:[%s1 + $0xe0] sm:$0xff]
  %v4488 = vld [vmem:[%s1 + $0xe8] sm:$0xff]
  %v4489 = vld [vmem:[%s1 + $0xf0] sm:$0xff]
  %v4490 = vld [vmem:[%s1 + $0xf8] sm:$0xff]
  %v4491 = vld [vmem:[%s1 + $0x100] sm:$0xff]
  %v4492 = vld [vmem:[%s1 + $0x108] sm:$0xff]
  %v4493 = vld [vmem:[%s1 + $0x110] sm:$0xff]
  %v4494 = vld [vmem:[%s1 + $0x118] sm:$0xff]
  %v4495 = vld [vmem:[%s2 + $0x12f] sm:$0x1]
  %v4496 = vlaneseq
  %v4497 = vshrl.u32 %v4496, 7
  %v4498 = vsub.s32 0, %v4497
  %v4499 = vrot.slane %v4495, %v4498
  %4536 = vrot.lane.b32.xlu0 %v4459, 96
  %v4537 = vpop.permute.xlu0 %4536
  %4538 = vrot.lane.b32.xlu0 %v4460, 96
  %v4539 = vpop.permute.xlu0 %4538
  %4540 = vrot.lane.b32.xlu0 %v4461, 96
  %v4541 = vpop.permute.xlu0 %4540
  %4542 = vrot.lane.b32.xlu0 %v4462, 96
  %v4543 = vpop.permute.xlu0 %4542
  %4544 = vrot.lane.b32.xlu0 %v4463, 96
  %v4545 = vpop.permute.xlu0 %4544
  %4546 = vrot.lane.b32.xlu0 %v4464, 96
  %v4547 = vpop.permute.xlu0 %4546
  %4548 = vrot.lane.b32.xlu0 %v4465, 96
  %v4549 = vpop.permute.xlu0 %4548
  %4550 = vrot.lane.b32.xlu0 %v4466, 96
  %v4551 = vpop.permute.xlu0 %4550
  %4552 = vrot.lane.b32.xlu0 %v4467, 96
  %v4553 = vpop.permute.xlu0 %4552
  %4554 = vrot.lane.b32.xlu0 %v4468, 96
  %v4555 = vpop.permute.xlu0 %4554
  %4556 = vrot.lane.b32.xlu0 %v4469, 96
  %v4557 = vpop.permute.xlu0 %4556
  %4558 = vrot.lane.b32.xlu0 %v4470, 96
  %v4559 = vpop.permute.xlu0 %4558
  %4560 = vrot.lane.b32.xlu0 %v4471, 96
  %v4561 = vpop.permute.xlu0 %4560
  %4562 = vrot.lane.b32.xlu0 %v4472, 96
  %v4563 = vpop.permute.xlu0 %4562
  %4564 = vrot.lane.b32.xlu0 %v4473, 96
  %v4565 = vpop.permute.xlu0 %4564
  %4566 = vrot.lane.b32.xlu0 %v4474, 96
  %v4567 = vpop.permute.xlu0 %4566
  %4568 = vrot.lane.b32.xlu0 %v4475, 96
  %v4569 = vpop.permute.xlu0 %4568
  %4570 = vrot.lane.b32.xlu0 %v4476, 96
  %v4571 = vpop.permute.xlu0 %4570
  %4572 = vrot.lane.b32.xlu0 %v4477, 96
  %v4573 = vpop.permute.xlu0 %4572
  %4574 = vrot.lane.b32.xlu0 %v4478, 96
  %v4575 = vpop.permute.xlu0 %4574
  %4576 = vrot.lane.b32.xlu0 %v4479, 96
  %v4577 = vpop.permute.xlu0 %4576
  %4578 = vrot.lane.b32.xlu0 %v4480, 96
  %v4579 = vpop.permute.xlu0 %4578
  %4580 = vrot.lane.b32.xlu0 %v4481, 96
  %v4581 = vpop.permute.xlu0 %4580
  %4582 = vrot.lane.b32.xlu0 %v4482, 96
  %v4583 = vpop.permute.xlu0 %4582
  %4584 = vrot.lane.b32.xlu0 %v4483, 96
  %v4585 = vpop.permute.xlu0 %4584
  %4586 = vrot.lane.b32.xlu0 %v4484, 96
  %v4587 = vpop.permute.xlu0 %4586
  %4588 = vrot.lane.b32.xlu0 %v4485, 96
  %v4589 = vpop.permute.xlu0 %4588
  %4590 = vrot.lane.b32.xlu0 %v4486, 96
  %v4591 = vpop.permute.xlu0 %4590
  %4592 = vrot.lane.b32.xlu0 %v4487, 96
  %v4593 = vpop.permute.xlu0 %4592
  %4594 = vrot.lane.b32.xlu0 %v4488, 96
  %v4595 = vpop.permute.xlu0 %4594
  %4596 = vrot.lane.b32.xlu0 %v4489, 96
  %v4597 = vpop.permute.xlu0 %4596
  %4598 = vrot.lane.b32.xlu0 %v4490, 96
  %v4599 = vpop.permute.xlu0 %4598
  %4600 = vrot.lane.b32.xlu0 %v4491, 96
  %v4601 = vpop.permute.xlu0 %4600
  %4602 = vrot.lane.b32.xlu0 %v4492, 96
  %v4603 = vpop.permute.xlu0 %4602
  %4604 = vrot.lane.b32.xlu0 %v4493, 96
  %v4605 = vpop.permute.xlu0 %4604
  %4606 = vrot.lane.b32.xlu0 %v4494, 96
  %v4607 = vpop.permute.xlu0 %4606
  %v4645 = vsel %vm308, %v4434, 0
  %v4648 = vsel %vm308, %v4437, 0
  %v4651 = vsel %vm308, %v4440, 0
  %v4654 = vsel %vm308, %v4443, 0
  %v4657 = vsel %vm308, %v4446, 0
  %v4660 = vsel %vm308, %v4449, 0
  %v4663 = vsel %vm308, %v4452, 0
  %v4666 = vsel %vm308, %v4455, 0
  %v4669 = vsel %vm308, %v4458, 0
  %4671 = vmatprep.subr.mxu0 0.0
  %4672 = vmatpush1.msra.mxu0 %v4537
  %4673 = vmatprep.subr.mxu0 0.0
  %4674 = vmatpush1.msra.mxu0 %v4539
  %4675 = vmatprep.subr.mxu0 0.0
  %4676 = vmatpush1.msra.mxu0 %v4541
  %4677 = vmatprep.subr.mxu0 0.0
  %4678 = vmatpush1.msra.mxu0 %v4543
  %4679 = vmatprep.subr.mxu0 0.0
  %4680 = vmatpush1.msra.mxu0 %v4545
  %4681 = vmatprep.subr.mxu0 0.0
  %4682 = vmatpush1.msra.mxu0 %v4547
  %4683 = vmatprep.subr.mxu0 0.0
  %4684 = vmatpush1.msra.mxu0 %v4549
  %4685 = vmatprep.subr.mxu0 0.0
  %4686 = vmatpush1.msra.mxu0 %v4551
  %4687 = vmatprep.subr.mxu0 0.0
  %4688 = vmatpush1.msra.mxu0 %v4553
  %4689 = vmatprep.subr.mxu0 0.0
  %4690 = vmatpush1.msra.mxu0 %v4555
  %4691 = vmatprep.subr.mxu0 0.0
  %4692 = vmatpush1.msra.mxu0 %v4557
  %4693 = vmatprep.subr.mxu0 0.0
  %4694 = vmatpush1.msra.mxu0 %v4559
  %4695 = vmatprep.subr.mxu0 0.0
  %4696 = vmatpush1.msra.mxu0 %v4561
  %4697 = vmatprep.subr.mxu0 0.0
  %4698 = vmatpush1.msra.mxu0 %v4563
  %4699 = vmatprep.subr.mxu0 0.0
  %4700 = vmatpush1.msra.mxu0 %v4565
  %4701 = vmatprep.subr.mxu0 0.0
  %4702 = vmatpush1.msra.mxu0 %v4567
  %4703 = vmatprep.subr.mxu0 0.0
  %4704 = vmatpush1.msra.mxu0 %v4569
  %4705 = vmatprep.subr.mxu0 0.0
  %4706 = vmatpush1.msra.mxu0 %v4571
  %4707 = vmatprep.subr.mxu0 0.0
  %4708 = vmatpush1.msra.mxu0 %v4573
  %4709 = vmatprep.subr.mxu0 0.0
  %4710 = vmatpush1.msra.mxu0 %v4575
  %4711 = vmatprep.subr.mxu0 0.0
  %4712 = vmatpush1.msra.mxu0 %v4577
  %4713 = vmatprep.subr.mxu0 0.0
  %4714 = vmatpush1.msra.mxu0 %v4579
  %4715 = vmatprep.subr.mxu0 0.0
  %4716 = vmatpush1.msra.mxu0 %v4581
  %4717 = vmatprep.subr.mxu0 0.0
  %4718 = vmatpush1.msra.mxu0 %v4583
  %4719 = vmatprep.subr.mxu0 0.0
  %4720 = vmatpush1.msra.mxu0 %v4585
  %4721 = vmatprep.subr.mxu0 0.0
  %4722 = vmatpush1.msra.mxu0 %v4587
  %4723 = vmatprep.subr.mxu0 0.0
  %4724 = vmatpush1.msra.mxu0 %v4589
  %4725 = vmatprep.subr.mxu0 0.0
  %4726 = vmatpush1.msra.mxu0 %v4591
  %4727 = vmatprep.subr.mxu0 0.0
  %4728 = vmatpush1.msra.mxu0 %v4593
  %4729 = vmatprep.subr.mxu0 0.0
  %4730 = vmatpush1.msra.mxu0 %v4595
  %4731 = vmatprep.subr.mxu0 0.0
  %4732 = vmatpush1.msra.mxu0 %v4597
  %4733 = vmatprep.subr.mxu0 0.0
  %4734 = vmatpush1.msra.mxu0 %v4599
  %4735 = vmatprep.mubr.f32.mxu0 %v4433
  %4736 = vmatmul.mubr.f32.gmra.mrb[0].mxu0 %v4432
  %v4737 = vpop.f32.mrb[0].mxu0
  %v4738 = vadd.f32 %v4499, %v4737
  %v4739 = vpop.f32.mrb[0].mxu0
  %4740 = vmatprep.mubr.f32.mxu0 %v4436
  %4741 = vmatmul.mubr.f32.gmra.mrb[0].mxu0 %v4435
  %v4742 = vpop.f32.mrb[0].mxu0
  %v4743 = vadd.f32 %v4499, %v4742
  %v4744 = vpop.f32.mrb[0].mxu0
  %4745 = vmatprep.mubr.f32.mxu0 %v4439
  %4746 = vmatmul.mubr.f32.gmra.mrb[0].mxu0 %v4438
  %v4747 = vpop.f32.mrb[0].mxu0
  %v4748 = vadd.f32 %v4499, %v4747
  %v4749 = vpop.f32.mrb[0].mxu0
  %4750 = vmatprep.mubr.f32.mxu0 %v4442
  %4751 = vmatmul.mubr.f32.gmra.mrb[0].mxu0 %v4441
  %v4752 = vpop.f32.mrb[0].mxu0
  %v4753 = vadd.f32 %v4499, %v4752
  %v4754 = vpop.f32.mrb[0].mxu0
  %4755 = vmatprep.mubr.f32.mxu0 %v4445
  %4756 = vmatmul.mubr.f32.gmra.mrb[0].mxu0 %v4444
  %v4757 = vpop.f32.mrb[0].mxu0
  %v4758 = vadd.f32 %v4499, %v4757
  %v4759 = vpop.f32.mrb[0].mxu0
  %4760 = vmatprep.mubr.f32.mxu0 %v4448
  %4761 = vmatmul.mubr.f32.gmra.mrb[0].mxu0 %v4447
  %v4762 = vpop.f32.mrb[0].mxu0
  %v4763 = vadd.f32 %v4499, %v4762
  %v4764 = vpop.f32.mrb[0].mxu0
  %4765 = vmatprep.mubr.f32.mxu0 %v4451
  %4766 = vmatmul.mubr.f32.gmra.mrb[0].mxu0 %v4450
  %v4767 = vpop.f32.mrb[0].mxu0
  %v4768 = vadd.f32 %v4499, %v4767
  %v4769 = vpop.f32.mrb[0].mxu0
  %4770 = vmatprep.mubr.f32.mxu0 %v4454
  %4771 = vmatmul.mubr.f32.gmra.mrb[0].mxu0 %v4453
  %v4772 = vpop.f32.mrb[0].mxu0
  %v4773 = vadd.f32 %v4499, %v4772
  %v4774 = vpop.f32.mrb[0].mxu0
  %4775 = vmatprep.mubr.f32.mxu0 %v4457
  %4776 = vmatmul.mubr.f32.gmra.mrb[0].mxu0 %v4456
  %v4777 = vpop.f32.mrb[0].mxu0
  %v4778 = vadd.f32 %v4499, %v4777
  %v4779 = vpop.f32.mrb[0].mxu0
  %4780 = vdwg.mxu0
  %4781 = vmatprep.subr.mxu0 0.0
  %4782 = vmatpush1.msra.mxu0 %v4601
  %4783 = vmatprep.subr.mxu0 0.0
  %4784 = vmatpush1.msra.mxu0 %v4603
  %4785 = vmatprep.subr.mxu0 0.0
  %4786 = vmatpush1.msra.mxu0 %v4605
  %4787 = vmatprep.subr.mxu0 0.0
  %4788 = vmatpush1.msra.mxu0 %v4607
  %4789 = vmatprep.subr.mxu0 0.0
  %4790 = vmatpush1.msra.mxu0 0.0
  %4791 = vmatprep.subr.mxu0 0.0
  %4792 = vmatpush1.msra.mxu0 0.0
  %4793 = vmatprep.subr.mxu0 0.0
  %4794 = vmatpush1.msra.mxu0 0.0
  %4795 = vmatprep.subr.mxu0 0.0
  %4796 = vmatpush1.msra.mxu0 0.0
  %4797 = vmatprep.subr.mxu0 0.0
  %4798 = vmatpush1.msra.mxu0 0.0
  %4799 = vmatprep.subr.mxu0 0.0
  %4800 = vmatpush1.msra.mxu0 0.0
  %4801 = vmatprep.subr.mxu0 0.0
  %4802 = vmatpush1.msra.mxu0 0.0
  %4803 = vmatprep.subr.mxu0 0.0
  %4804 = vmatpush1.msra.mxu0 0.0
  %4805 = vmatprep.subr.mxu0 0.0
  %4806 = vmatpush1.msra.mxu0 0.0
  %4807 = vmatprep.subr.mxu0 0.0
  %4808 = vmatpush1.msra.mxu0 0.0
  %4809 = vmatprep.subr.mxu0 0.0
  %4810 = vmatpush1.msra.mxu0 0.0
  %4811 = vmatprep.subr.mxu0 0.0
  %4812 = vmatpush1.msra.mxu0 0.0
  %4813 = vmatprep.subr.mxu0 0.0
  %4814 = vmatpush1.msra.mxu0 0.0
  %4815 = vmatprep.subr.mxu0 0.0
  %4816 = vmatpush1.msra.mxu0 0.0
  %4817 = vmatprep.subr.mxu0 0.0
  %4818 = vmatpush1.msra.mxu0 0.0
  %4819 = vmatprep.subr.mxu0 0.0
  %4820 = vmatpush1.msra.mxu0 0.0
  %4821 = vmatprep.subr.mxu0 0.0
  %4822 = vmatpush1.msra.mxu0 0.0
  %4823 = vmatprep.subr.mxu0 0.0
  %4824 = vmatpush1.msra.mxu0 0.0
  %4825 = vmatprep.subr.mxu0 0.0
  %4826 = vmatpush1.msra.mxu0 0.0
  %4827 = vmatprep.subr.mxu0 0.0
  %4828 = vmatpush1.msra.mxu0 0.0
  %4829 = vmatprep.subr.mxu0 0.0
  %4830 = vmatpush1.msra.mxu0 0.0
  %4831 = vmatprep.subr.mxu0 0.0
  %4832 = vmatpush1.msra.mxu0 0.0
  %4833 = vmatprep.subr.mxu0 0.0
  %4834 = vmatpush1.msra.mxu0 0.0
  %4835 = vmatprep.subr.mxu0 0.0
  %4836 = vmatpush1.msra.mxu0 0.0
  %4837 = vmatprep.subr.mxu0 0.0
  %4838 = vmatpush1.msra.mxu0 0.0
  %4839 = vmatprep.subr.mxu0 0.0
  %4840 = vmatpush1.msra.mxu0 0.0
  %4841 = vmatprep.subr.mxu0 0.0
  %4842 = vmatpush1.msra.mxu0 0.0
  %4843 = vmatprep.subr.mxu0 0.0
  %4844 = vmatpush1.msra.mxu0 0.0
  %4845 = vmatprep.mubr.f32.mxu0 0.0
  %4846 = vmatmul.mubr.f32.gmra.mrb[0].mxu0 %v4645
  %v4847 = vpop.f32.mrb[0].mxu0
  %v4848 = vadd.f32 %v4738, %v4847
  %v4849 = vpop.f32.mrb[0].mxu0
  %4850 = vmatprep.mubr.f32.mxu0 0.0
  %4851 = vmatmul.mubr.f32.gmra.mrb[0].mxu0 %v4648
  %v4852 = vpop.f32.mrb[0].mxu0
  %v4853 = vadd.f32 %v4743, %v4852
  %v4854 = vpop.f32.mrb[0].mxu0
  %4855 = vmatprep.mubr.f32.mxu0 0.0
  %4856 = vmatmul.mubr.f32.gmra.mrb[0].mxu0 %v4651
  %v4857 = vpop.f32.mrb[0].mxu0
  %v4858 = vadd.f32 %v4748, %v4857
  %v4859 = vpop.f32.mrb[0].mxu0
  %4860 = vmatprep.mubr.f32.mxu0 0.0
  %4861 = vmatmul.mubr.f32.gmra.mrb[0].mxu0 %v4654
  %v4862 = vpop.f32.mrb[0].mxu0
  %v4863 = vadd.f32 %v4753, %v4862
  %v4864 = vpop.f32.mrb[0].mxu0
  %4865 = vmatprep.mubr.f32.mxu0 0.0
  %4866 = vmatmul.mubr.f32.gmra.mrb[0].mxu0 %v4657
  %v4867 = vpop.f32.mrb[0].mxu0
  %v4868 = vadd.f32 %v4758, %v4867
  %v4869 = vpop.f32.mrb[0].mxu0
  %4870 = vmatprep.mubr.f32.mxu0 0.0
  %4871 = vmatmul.mubr.f32.gmra.mrb[0].mxu0 %v4660
  %v4872 = vpop.f32.mrb[0].mxu0
  %v4873 = vadd.f32 %v4763, %v4872
  %v4874 = vpop.f32.mrb[0].mxu0
  %4875 = vmatprep.mubr.f32.mxu0 0.0
  %4876 = vmatmul.mubr.f32.gmra.mrb[0].mxu0 %v4663
  %v4877 = vpop.f32.mrb[0].mxu0
  %v4878 = vadd.f32 %v4768, %v4877
  %v4879 = vpop.f32.mrb[0].mxu0
  %4880 = vmatprep.mubr.f32.mxu0 0.0
  %4881 = vmatmul.mubr.f32.gmra.mrb[0].mxu0 %v4666
  %v4882 = vpop.f32.mrb[0].mxu0
  %v4883 = vadd.f32 %v4773, %v4882
  %v4884 = vpop.f32.mrb[0].mxu0
  %4885 = vmatprep.mubr.f32.mxu0 0.0
  %4886 = vmatmul.mubr.f32.gmra.mrb[0].mxu0 %v4669
  %v4887 = vpop.f32.mrb[0].mxu0
  %v4888 = vadd.f32 %v4778, %v4887
  %v4889 = vpop.f32.mrb[0].mxu0
  %4890 = vdwg.mxu0
  %v4891 = vmax.f32 %v4848, 0.0
  %v4892 = vmax.f32 %v4853, 0.0
  %v4893 = vmax.f32 %v4858, 0.0
  %v4894 = vmax.f32 %v4863, 0.0
  %v4895 = vmax.f32 %v4868, 0.0
  %v4896 = vmax.f32 %v4873, 0.0
  %v4897 = vmax.f32 %v4878, 0.0
  %v4898 = vmax.f32 %v4883, 0.0
  %v4899 = vmax.f32 %v4888, 0.0
  %4900 = vst.msk [vmem:[#allocation4] sm:$0xff] %vm308, %v4891
  %4901 = vst.msk [vmem:[#allocation4 + $0x8] sm:$0xff] %vm308, %v4892
  %4902 = vst.msk [vmem:[#allocation4 + $0x10] sm:$0xff] %vm308, %v4893
  %4903 = vst.msk [vmem:[#allocation4 + $0x18] sm:$0xff] %vm308, %v4894
  %4904 = vst.msk [vmem:[#allocation4 + $0x20] sm:$0xff] %vm308, %v4895
  %4905 = vst.msk [vmem:[#allocation4 + $0x28] sm:$0xff] %vm308, %v4896
  %4906 = vst.msk [vmem:[#allocation4 + $0x30] sm:$0xff] %vm308, %v4897
  %4907 = vst.msk [vmem:[#allocation4 + $0x38] sm:$0xff] %vm308, %v4898
  %4908 = vst.msk [vmem:[#allocation4 + $0x40] sm:$0xff] %vm308, %v4899
  %v4909 = vld [vmem:[#allocation4] ss:$2 sm:$0xff]
  %s4910 = scalar_lea.vmem [#allocation4], 16
  %v4911 = vld [vmem:[%s4910] ss:$2 sm:$0xff]
  %s4912 = scalar_lea.vmem [#allocation4], 32
  %v4913 = vld [vmem:[%s4912] ss:$2 sm:$0xff]
  %4914 = vst.msk [vmem:[#allocation6] sm:$0xff] %vm308, %v4909
  %4915 = vst.msk [vmem:[#allocation6 + $0x20] sm:$0xff] %vm308, %v4911
  %4916 = vst.msk [vmem:[#allocation6 + $0x40] sm:$0xff] %vm308, %v4913
  %s4917 = scalar_lea.vmem [#allocation4], 1
  %v4918 = vld [vmem:[%s4917] ss:$2 sm:$0xff]
  %s4919 = scalar_lea.vmem [#allocation4], 17
  %v4920 = vld [vmem:[%s4919] ss:$2 sm:$0xff]
  %s4921 = scalar_lea.vmem [#allocation4], 33
  %v4922 = vld [vmem:[%s4921] ss:$2 sm:$0xff]
  %4926 = vrot.lane.b32.xlu0 %v4918, 32
  %v4927 = vpop.permute.xlu0 %4926
  %4928 = vrot.lane.b32.xlu0 %v4920, 32
  %v4929 = vpop.permute.xlu0 %4928
  %4930 = vrot.lane.b32.xlu0 %v4922, 32
  %v4931 = vpop.permute.xlu0 %4930
  %4935 = vst.msk [vmem:[#allocation6] sm:$0xff] %vm1161, %v4927
  %4936 = vst.msk [vmem:[#allocation6 + $0x20] sm:$0xff] %vm1161, %v4929
  %4937 = vst.msk [vmem:[#allocation6 + $0x40] sm:$0xff] %vm1161, %v4931
  %s4938 = scalar_lea.vmem [#allocation4], 21
  %v4939 = vld [vmem:[%s4938] ss:$2 sm:$0xff]
  %s4940 = scalar_lea.vmem [#allocation4], 37
  %v4941 = vld [vmem:[%s4940] ss:$2 sm:$0xff]
  %s4942 = scalar_lea.vmem [#allocation4], 53
  %v4943 = vld [vmem:[%s4942] ss:$2 sm:$0xff]
  %4947 = vrot.lane.b32.xlu0 %v4939, 64
  %v4948 = vpop.permute.xlu0 %4947
  %4949 = vrot.lane.b32.xlu0 %v4941, 64
  %v4950 = vpop.permute.xlu0 %4949
  %4951 = vrot.lane.b32.xlu0 %v4943, 64
  %v4952 = vpop.permute.xlu0 %4951
  %4956 = vst.msk [vmem:[#allocation6] sm:$0xff] %vm1330, %v4948
  %4957 = vst.msk [vmem:[#allocation6 + $0x20] sm:$0xff] %vm1330, %v4950
  %4958 = vst.msk [vmem:[#allocation6 + $0x40] sm:$0xff] %vm1330, %v4952
  %s4959 = scalar_lea.vmem [#allocation4], 22
  %v4960 = vld [vmem:[%s4959] ss:$2 sm:$0xff]
  %s4961 = scalar_lea.vmem [#allocation4], 38
  %v4962 = vld [vmem:[%s4961] ss:$2 sm:$0xff]
  %s4963 = scalar_lea.vmem [#allocation4], 54
  %v4964 = vld [vmem:[%s4963] ss:$2 sm:$0xff]
  %4968 = vrot.lane.b32.xlu0 %v4960, 96
  %v4969 = vpop.permute.xlu0 %4968
  %4970 = vrot.lane.b32.xlu0 %v4962, 96
  %v4971 = vpop.permute.xlu0 %4970
  %4972 = vrot.lane.b32.xlu0 %v4964, 96
  %v4973 = vpop.permute.xlu0 %4972
  %4977 = vst.msk [vmem:[#allocation6] sm:$0xff] %vm1499, %v4969
  %4978 = vst.msk [vmem:[#allocation6 + $0x20] sm:$0xff] %vm1499, %v4971
  %4979 = vst.msk [vmem:[#allocation6 + $0x40] sm:$0xff] %vm1499, %v4973
  %v4980 = vld [vmem:[#allocation6] sm:$0xff]
  %v4981 = vld [vmem:[#allocation6 + $0x20] sm:$0xff]
  %v4982 = vld [vmem:[#allocation6 + $0x40] sm:$0xff]
  %v4983 = vld [vmem:[%s1] sm:$0xff]
  %v4984 = vld [vmem:[%s1 + $0x8] sm:$0xff]
  %v4985 = vld [vmem:[%s1 + $0x10] sm:$0xff]
  %v4986 = vld [vmem:[%s1 + $0x18] sm:$0xff]
  %v4987 = vld [vmem:[%s1 + $0x20] sm:$0xff]
  %v4988 = vld [vmem:[%s1 + $0x28] sm:$0xff]
  %v4989 = vld [vmem:[%s1 + $0x30] sm:$0xff]
  %v4990 = vld [vmem:[%s1 + $0x38] sm:$0xff]
  %v4991 = vld [vmem:[%s1 + $0x40] sm:$0xff]
  %v4992 = vld [vmem:[%s1 + $0x48] sm:$0xff]
  %v4993 = vld [vmem:[%s1 + $0x50] sm:$0xff]
  %v4994 = vld [vmem:[%s1 + $0x58] sm:$0xff]
  %v4995 = vld [vmem:[%s1 + $0x60] sm:$0xff]
  %v4996 = vld [vmem:[%s1 + $0x68] sm:$0xff]
  %v4997 = vld [vmem:[%s1 + $0x70] sm:$0xff]
  %v4998 = vld [vmem:[%s1 + $0x78] sm:$0xff]
  %v4999 = vld [vmem:[%s2 + $0x130] sm:$0x1]
  %v5000 = vlaneseq
  %v5001 = vshrl.u32 %v5000, 7
  %v5002 = vsub.s32 0, %v5001
  %v5003 = vrot.slane %v4999, %v5002
  %5020 = vrot.lane.b32.xlu0 %v4983, 64
  %v5021 = vpop.permute.xlu0 %5020
  %5022 = vrot.lane.b32.xlu0 %v4984, 64
  %v5023 = vpop.permute.xlu0 %5022
  %5024 = vrot.lane.b32.xlu0 %v4985, 64
  %v5025 = vpop.permute.xlu0 %5024
  %5026 = vrot.lane.b32.xlu0 %v4986, 64
  %v5027 = vpop.permute.xlu0 %5026
  %5028 = vrot.lane.b32.xlu0 %v4987, 64
  %v5029 = vpop.permute.xlu0 %5028
  %5030 = vrot.lane.b32.xlu0 %v4988, 64
  %v5031 = vpop.permute.xlu0 %5030
  %5032 = vrot.lane.b32.xlu0 %v4989, 64
  %v5033 = vpop.permute.xlu0 %5032
  %5034 = vrot.lane.b32.xlu0 %v4990, 64
  %v5035 = vpop.permute.xlu0 %5034
  %5036 = vrot.lane.b32.xlu0 %v4991, 64
  %v5037 = vpop.permute.xlu0 %5036
  %5038 = vrot.lane.b32.xlu0 %v4992, 64
  %v5039 = vpop.permute.xlu0 %5038
  %5040 = vrot.lane.b32.xlu0 %v4993, 64
  %v5041 = vpop.permute.xlu0 %5040
  %5042 = vrot.lane.b32.xlu0 %v4994, 64
  %v5043 = vpop.permute.xlu0 %5042
  %5044 = vrot.lane.b32.xlu0 %v4995, 64
  %v5045 = vpop.permute.xlu0 %5044
  %5046 = vrot.lane.b32.xlu0 %v4996, 64
  %v5047 = vpop.permute.xlu0 %5046
  %5048 = vrot.lane.b32.xlu0 %v4997, 64
  %v5049 = vpop.permute.xlu0 %5048
  %5050 = vrot.lane.b32.xlu0 %v4998, 64
  %v5051 = vpop.permute.xlu0 %5050
  %5068 = vmatprep.subr.mxu0 0.0
  %5069 = vmatpush1.msra.mxu0 %v5021
  %5070 = vmatprep.subr.mxu0 0.0
  %5071 = vmatpush1.msra.mxu0 %v5023
  %5072 = vmatprep.subr.mxu0 0.0
  %5073 = vmatpush1.msra.mxu0 %v5025
  %5074 = vmatprep.subr.mxu0 0.0
  %5075 = vmatpush1.msra.mxu0 %v5027
  %5076 = vmatprep.subr.mxu0 0.0
  %5077 = vmatpush1.msra.mxu0 %v5029
  %5078 = vmatprep.subr.mxu0 0.0
  %5079 = vmatpush1.msra.mxu0 %v5031
  %5080 = vmatprep.subr.mxu0 0.0
  %5081 = vmatpush1.msra.mxu0 %v5033
  %5082 = vmatprep.subr.mxu0 0.0
  %5083 = vmatpush1.msra.mxu0 %v5035
  %5084 = vmatprep.subr.mxu0 0.0
  %5085 = vmatpush1.msra.mxu0 %v5037
  %5086 = vmatprep.subr.mxu0 0.0
  %5087 = vmatpush1.msra.mxu0 %v5039
  %5088 = vmatprep.subr.mxu0 0.0
  %5089 = vmatpush1.msra.mxu0 %v5041
  %5090 = vmatprep.subr.mxu0 0.0
  %5091 = vmatpush1.msra.mxu0 %v5043
  %5092 = vmatprep.subr.mxu0 0.0
  %5093 = vmatpush1.msra.mxu0 %v5045
  %5094 = vmatprep.subr.mxu0 0.0
  %5095 = vmatpush1.msra.mxu0 %v5047
  %5096 = vmatprep.subr.mxu0 0.0
  %5097 = vmatpush1.msra.mxu0 %v5049
  %5098 = vmatprep.subr.mxu0 0.0
  %5099 = vmatpush1.msra.mxu0 %v5051
  %5100 = vmatprep.subr.mxu0 0.0
  %5101 = vmatpush1.msra.mxu0 0.0
  %5102 = vmatprep.subr.mxu0 0.0
  %5103 = vmatpush1.msra.mxu0 0.0
  %5104 = vmatprep.subr.mxu0 0.0
  %5105 = vmatpush1.msra.mxu0 0.0
  %5106 = vmatprep.subr.mxu0 0.0
  %5107 = vmatpush1.msra.mxu0 0.0
  %5108 = vmatprep.subr.mxu0 0.0
  %5109 = vmatpush1.msra.mxu0 0.0
  %5110 = vmatprep.subr.mxu0 0.0
  %5111 = vmatpush1.msra.mxu0 0.0
  %5112 = vmatprep.subr.mxu0 0.0
  %5113 = vmatpush1.msra.mxu0 0.0
  %5114 = vmatprep.subr.mxu0 0.0
  %5115 = vmatpush1.msra.mxu0 0.0
  %5116 = vmatprep.subr.mxu0 0.0
  %5117 = vmatpush1.msra.mxu0 0.0
  %5118 = vmatprep.subr.mxu0 0.0
  %5119 = vmatpush1.msra.mxu0 0.0
  %5120 = vmatprep.subr.mxu0 0.0
  %5121 = vmatpush1.msra.mxu0 0.0
  %5122 = vmatprep.subr.mxu0 0.0
  %5123 = vmatpush1.msra.mxu0 0.0
  %5124 = vmatprep.subr.mxu0 0.0
  %5125 = vmatpush1.msra.mxu0 0.0
  %5126 = vmatprep.subr.mxu0 0.0
  %5127 = vmatpush1.msra.mxu0 0.0
  %5128 = vmatprep.subr.mxu0 0.0
  %5129 = vmatpush1.msra.mxu0 0.0
  %5130 = vmatprep.subr.mxu0 0.0
  %5131 = vmatpush1.msra.mxu0 0.0
  %5132 = vmatprep.mubr.f32.mxu0 0.0
  %5133 = vmatmul.mubr.f32.gmra.mrb[0].mxu0 %v4980
  %v5134 = vpop.f32.mrb[0].mxu0
  %v5135 = vadd.f32 %v5003, %v5134
  %v5136 = vpop.f32.mrb[0].mxu0
  %5137 = vmatprep.mubr.f32.mxu0 0.0
  %5138 = vmatmul.mubr.f32.gmra.mrb[0].mxu0 %v4981
  %v5139 = vpop.f32.mrb[0].mxu0
  %v5140 = vadd.f32 %v5003, %v5139
  %v5141 = vpop.f32.mrb[0].mxu0
  %5142 = vmatprep.mubr.f32.mxu0 0.0
  %5143 = vmatmul.mubr.f32.gmra.mrb[0].mxu0 %v4982
  %v5144 = vpop.f32.mrb[0].mxu0
  %v5145 = vadd.f32 %v5003, %v5144
  %v5146 = vpop.f32.mrb[0].mxu0
  %5147 = vdwg.mxu0
  %v5148 = vmax.f32 %v5135, 0.0
  %v5149 = vmax.f32 %v5140, 0.0
  %v5150 = vmax.f32 %v5145, 0.0
  %5151 = vst.msk [vmem:[#allocation5] sm:$0xff] %vm308, %v5148
  %5152 = vst.msk [vmem:[#allocation5 + $0x8] sm:$0xff] %vm308, %v5149
  %5153 = vst.msk [vmem:[#allocation5 + $0x10] sm:$0xff] %vm308, %v5150
  %v5154 = vld [vmem:[#allocation5] sm:$0x1]
  %vm5155 = vcmask 253952
  %5156 = vst.msk [vmem:[#allocation7 + $0x2] sm:$0x1] %vm5155, %v5154
  %v5157 = vld [vmem:[#allocation5 + $0x1] sm:$0x1]
  %5159 = vrot.lane.b32.xlu0 %v5157, 32
  %v5160 = vpop.permute.xlu0 %5159
  %vm5162 = vcmask 516352
  %5163 = vst.msk [vmem:[#allocation7 + $0x2] sm:$0x1] %vm5162, %v5160
  %v5164 = vld [vmem:[#allocation5 + $0x15] sm:$0x1]
  %5166 = vrot.lane.b32.xlu0 %v5164, 64
  %v5167 = vpop.permute.xlu0 %5166
  %vm5169 = vcmask 778752
  %5170 = vst.msk [vmem:[#allocation7 + $0x2] sm:$0x1] %vm5169, %v5167
  %v5171 = vld [vmem:[#allocation5 + $0x16] sm:$0x1]
  %5173 = vrot.lane.b32.xlu0 %v5171, 96
  %v5174 = vpop.permute.xlu0 %5173
  %vm5176 = vcmask 1041152
  %5177 = vst.msk [vmem:[#allocation7 + $0x2] sm:$0x1] %vm5176, %v5174
  %v5178 = vld [vmem:[#allocation7 + $0x2] sm:$0x1]
  %v5179 = vld [vmem:[%s2] sm:$0xff]
  %v5180 = vld [vmem:[%s2 + $0x8] sm:$0xff]
  %v5181 = vld [vmem:[%s2 + $0x10] sm:$0xff]
  %v5182 = vld [vmem:[%s2 + $0x18] sm:$0xff]
  %v5183 = vld [vmem:[%s2 + $0x20] sm:$0xff]
  %v5184 = vld [vmem:[%s2 + $0x28] sm:$0xff]
  %v5185 = vld [vmem:[%s2 + $0x30] sm:$0xff]
  %v5186 = vld [vmem:[%s2 + $0x38] sm:$0xff]
  %v5187 = vld [vmem:[%s2 + $0x40] sm:$0xff]
  %v5188 = vld [vmem:[%s2 + $0x48] sm:$0xff]
  %v5189 = vld [vmem:[%s2 + $0x50] sm:$0xff]
  %v5190 = vld [vmem:[%s2 + $0x58] sm:$0xff]
  %v5191 = vld [vmem:[%s2 + $0x60] sm:$0xff]
  %v5192 = vld [vmem:[%s2 + $0x68] sm:$0xff]
  %v5193 = vld [vmem:[%s2 + $0x70] sm:$0xff]
  %v5194 = vld [vmem:[%s2 + $0x78] sm:$0xff]
  %v5195 = vld [vmem:[%s2 + $0x128] sm:$0x1]
  %5196 = vmatprep.subr.mxu0 0.0
  %5197 = vmatpush1.msra.mxu0 %v5179
  %5198 = vmatprep.subr.mxu0 0.0
  %5199 = vmatpush1.msra.mxu0 %v5180
  %5200 = vmatprep.subr.mxu0 0.0
  %5201 = vmatpush1.msra.mxu0 %v5181
  %5202 = vmatprep.subr.mxu0 0.0
  %5203 = vmatpush1.msra.mxu0 %v5182
  %5204 = vmatprep.subr.mxu0 0.0
  %5205 = vmatpush1.msra.mxu0 %v5183
  %5206 = vmatprep.subr.mxu0 0.0
  %5207 = vmatpush1.msra.mxu0 %v5184
  %5208 = vmatprep.subr.mxu0 0.0
  %5209 = vmatpush1.msra.mxu0 %v5185
  %5210 = vmatprep.subr.mxu0 0.0
  %5211 = vmatpush1.msra.mxu0 %v5186
  %5212 = vmatprep.subr.mxu0 0.0
  %5213 = vmatpush1.msra.mxu0 %v5187
  %5214 = vmatprep.subr.mxu0 0.0
  %5215 = vmatpush1.msra.mxu0 %v5188
  %5216 = vmatprep.subr.mxu0 0.0
  %5217 = vmatpush1.msra.mxu0 %v5189
  %5218 = vmatprep.subr.mxu0 0.0
  %5219 = vmatpush1.msra.mxu0 %v5190
  %5220 = vmatprep.subr.mxu0 0.0
  %5221 = vmatpush1.msra.mxu0 %v5191
  %5222 = vmatprep.subr.mxu0 0.0
  %5223 = vmatpush1.msra.mxu0 %v5192
  %5224 = vmatprep.subr.mxu0 0.0
  %5225 = vmatpush1.msra.mxu0 %v5193
  %5226 = vmatprep.subr.mxu0 0.0
  %5227 = vmatpush1.msra.mxu0 %v5194
  %5228 = vmatprep.subr.mxu0 0.0
  %5229 = vmatpush1.msra.mxu0 0.0
  %5230 = vmatprep.subr.mxu0 0.0
  %5231 = vmatpush1.msra.mxu0 0.0
  %5232 = vmatprep.subr.mxu0 0.0
  %5233 = vmatpush1.msra.mxu0 0.0
  %5234 = vmatprep.subr.mxu0 0.0
  %5235 = vmatpush1.msra.mxu0 0.0
  %5236 = vmatprep.subr.mxu0 0.0
  %5237 = vmatpush1.msra.mxu0 0.0
  %5238 = vmatprep.subr.mxu0 0.0
  %5239 = vmatpush1.msra.mxu0 0.0
  %5240 = vmatprep.subr.mxu0 0.0
  %5241 = vmatpush1.msra.mxu0 0.0
  %5242 = vmatprep.subr.mxu0 0.0
  %5243 = vmatpush1.msra.mxu0 0.0
  %5244 = vmatprep.subr.mxu0 0.0
  %5245 = vmatpush1.msra.mxu0 0.0
  %5246 = vmatprep.subr.mxu0 0.0
  %5247 = vmatpush1.msra.mxu0 0.0
  %5248 = vmatprep.subr.mxu0 0.0
  %5249 = vmatpush1.msra.mxu0 0.0
  %5250 = vmatprep.subr.mxu0 0.0
  %5251 = vmatpush1.msra.mxu0 0.0
  %5252 = vmatprep.subr.mxu0 0.0
  %5253 = vmatpush1.msra.mxu0 0.0
  %5254 = vmatprep.subr.mxu0 0.0
  %5255 = vmatpush1.msra.mxu0 0.0
  %5256 = vmatprep.subr.mxu0 0.0
  %5257 = vmatpush1.msra.mxu0 0.0
  %5258 = vmatprep.subr.mxu0 0.0
  %5259 = vmatpush1.msra.mxu0 0.0
  %5260 = vmatprep.mubr.f32.mxu0 0.0
  %5261 = vmatmul.mubr.f32.gmra.mrb[0].mxu0 %v5178
  %v5262 = vpop.f32.mrb[0].mxu0
  %v5263 = vadd.f32 %v5195, %v5262
  %v5264 = vpop.f32.mrb[0].mxu0
  %5265 = vdwg.mxu0
  %v5266 = vld [vmem:[%s3] sm:$0x1]
  %v5267 = vld [vmem:[%s3 + $0x2] sm:$0x1]
  %v5268 = vld [vmem:[%s3 + $0x3] sm:$0x1]
  %v5269 = vld [vmem:[%s3 + $0x4] sm:$0x1]
  %v5270 = vld [vmem:[%s3 + $0x5] sm:$0x1]
  %vm5271 = vcmask 122880
  %5272 = vst.msk [vmem:[#allocation7] sm:$0x1] %vm5271, %v5263
  %5274 = vrot.lane.b32.xlu0 %v5269, 16
  %v5275 = vpop.permute.xlu0 %5274
  %vm5277 = vcmask 385152
  %5278 = vst.msk [vmem:[#allocation7] sm:$0x1] %vm5277, %v5275
  %5280 = vrot.lane.b32.xlu0 %v5267, 48
  %v5281 = vpop.permute.xlu0 %5280
  %vm5283 = vcmask 516480
  %5284 = vst.msk [vmem:[#allocation7] sm:$0x1] %vm5283, %v5281
  %v5285 = vld [vmem:[#allocation7] sm:$0x1]
  %v5286 = vld [vmem:[%s2 + $0x80] sm:$0xff]
  %v5287 = vld [vmem:[%s2 + $0x88] sm:$0xff]
  %v5288 = vld [vmem:[%s2 + $0x90] sm:$0xff]
  %v5289 = vld [vmem:[%s2 + $0x98] sm:$0xff]
  %v5290 = vld [vmem:[%s2 + $0xa0] sm:$0xff]
  %v5291 = vld [vmem:[%s2 + $0xa8] sm:$0xff]
  %v5292 = vld [vmem:[%s2 + $0xb0] sm:$0xff]
  %v5293 = vld [vmem:[%s2 + $0xb8] sm:$0xff]
  %v5294 = vld [vmem:[%s2 + $0x129] sm:$0x1]
  %vm5295 = vcmask 523264
  %v5297 = vsel %vm5295, %v5285, 0
  %5299 = vmatprep.subr.mxu0 0.0
  %5300 = vmatpush1.msra.mxu0 %v5286
  %5301 = vmatprep.subr.mxu0 0.0
  %5302 = vmatpush1.msra.mxu0 %v5287
  %5303 = vmatprep.subr.mxu0 0.0
  %5304 = vmatpush1.msra.mxu0 %v5288
  %5305 = vmatprep.subr.mxu0 0.0
  %5306 = vmatpush1.msra.mxu0 %v5289
  %5307 = vmatprep.subr.mxu0 0.0
  %5308 = vmatpush1.msra.mxu0 %v5290
  %5309 = vmatprep.subr.mxu0 0.0
  %5310 = vmatpush1.msra.mxu0 %v5291
  %5311 = vmatprep.subr.mxu0 0.0
  %5312 = vmatpush1.msra.mxu0 %v5292
  %5313 = vmatprep.subr.mxu0 0.0
  %5314 = vmatpush1.msra.mxu0 %v5293
  %5315 = vmatprep.subr.mxu0 0.0
  %5316 = vmatpush1.msra.mxu0 0.0
  %5317 = vmatprep.subr.mxu0 0.0
  %5318 = vmatpush1.msra.mxu0 0.0
  %5319 = vmatprep.subr.mxu0 0.0
  %5320 = vmatpush1.msra.mxu0 0.0
  %5321 = vmatprep.subr.mxu0 0.0
  %5322 = vmatpush1.msra.mxu0 0.0
  %5323 = vmatprep.subr.mxu0 0.0
  %5324 = vmatpush1.msra.mxu0 0.0
  %5325 = vmatprep.subr.mxu0 0.0
  %5326 = vmatpush1.msra.mxu0 0.0
  %5327 = vmatprep.subr.mxu0 0.0
  %5328 = vmatpush1.msra.mxu0 0.0
  %5329 = vmatprep.subr.mxu0 0.0
  %5330 = vmatpush1.msra.mxu0 0.0
  %5331 = vmatprep.subr.mxu0 0.0
  %5332 = vmatpush1.msra.mxu0 0.0
  %5333 = vmatprep.subr.mxu0 0.0
  %5334 = vmatpush1.msra.mxu0 0.0
  %5335 = vmatprep.subr.mxu0 0.0
  %5336 = vmatpush1.msra.mxu0 0.0
  %5337 = vmatprep.subr.mxu0 0.0
  %5338 = vmatpush1.msra.mxu0 0.0
  %5339 = vmatprep.subr.mxu0 0.0
  %5340 = vmatpush1.msra.mxu0 0.0
  %5341 = vmatprep.subr.mxu0 0.0
  %5342 = vmatpush1.msra.mxu0 0.0
  %5343 = vmatprep.subr.mxu0 0.0
  %5344 = vmatpush1.msra.mxu0 0.0
  %5345 = vmatprep.subr.mxu0 0.0
  %5346 = vmatpush1.msra.mxu0 0.0
  %5347 = vmatprep.subr.mxu0 0.0
  %5348 = vmatpush1.msra.mxu0 0.0
  %5349 = vmatprep.subr.mxu0 0.0
  %5350 = vmatpush1.msra.mxu0 0.0
  %5351 = vmatprep.subr.mxu0 0.0
  %5352 = vmatpush1.msra.mxu0 0.0
  %5353 = vmatprep.subr.mxu0 0.0
  %5354 = vmatpush1.msra.mxu0 0.0
  %5355 = vmatprep.subr.mxu0 0.0
  %5356 = vmatpush1.msra.mxu0 0.0
  %5357 = vmatprep.subr.mxu0 0.0
  %5358 = vmatpush1.msra.mxu0 0.0
  %5359 = vmatprep.subr.mxu0 0.0
  %5360 = vmatpush1.msra.mxu0 0.0
  %5361 = vmatprep.subr.mxu0 0.0
  %5362 = vmatpush1.msra.mxu0 0.0
  %5363 = vmatprep.mubr.f32.mxu0 0.0
  %5364 = vmatmul.mubr.f32.gmra.mrb[0].mxu0 %v5297
  %v5365 = vpop.f32.mrb[0].mxu0
  %v5366 = vadd.f32 %v5294, %v5365
  %v5367 = vpop.f32.mrb[0].mxu0
  %5368 = vdwg.mxu0
  %v5369 = vxor.u32 %v5366, 2147483648
  %v5370 = vmul.f32 %v5369, 1.442695
  %v5371 = vpow.pop %v5370
  %v5372 = vadd.f32 %v5371, 1.0
  %v5373 = vrcp.pop %v5372
  %v5374 = vmul.f32 1.0, %v5373
  %v5375 = vtanh.pop %v5366
  %5377 = vrot.lane.b32.xlu0 %v5268, 16
  %v5378 = vpop.permute.xlu0 %5377
  %v5380 = vmul.f32 %v5374, %v5378
  %5382 = vrot.lane.b32.xlu0 %v5375, 96
  %v5383 = vpop.permute.xlu0 %5382
  %v5385 = vmul.f32 %v5374, %v5383
  %5387 = vrot.lane.b32.xlu0 %v5385, 16
  %v5388 = vpop.permute.xlu0 %5387
  %v5390 = vadd.f32 %v5380, %v5388
  %v5391 = vtanh.pop %v5390
  %5393 = vrot.lane.b32.xlu0 %v5391, 32
  %v5394 = vpop.permute.xlu0 %5393
  %v5396 = vmul.f32 %v5374, %v5394
  %v5397 = vld [vmem:[%s2 + $0xf8] sm:$0xff]
  %v5398 = vld [vmem:[%s2 + $0x100] sm:$0xff]
  %v5399 = vld [vmem:[%s2 + $0x12b] sm:$0x1]
  %5401 = vrot.lane.b32.xlu0 %v5396, 80
  %v5402 = vpop.permute.xlu0 %5401
  %vm5403 = vcmask 130048
  %v5404 = vsel %vm5403, %v5402, 0
  %5406 = vmatprep.subr.mxu0 0.0
  %5407 = vmatpush1.msra.mxu0 %v5397
  %5408 = vmatprep.subr.mxu0 0.0
  %5409 = vmatpush1.msra.mxu0 %v5398
  %5410 = vmatprep.subr.mxu0 0.0
  %5411 = vmatpush1.msra.mxu0 0.0
  %5412 = vmatprep.subr.mxu0 0.0
  %5413 = vmatpush1.msra.mxu0 0.0
  %5414 = vmatprep.subr.mxu0 0.0
  %5415 = vmatpush1.msra.mxu0 0.0
  %5416 = vmatprep.subr.mxu0 0.0
  %5417 = vmatpush1.msra.mxu0 0.0
  %5418 = vmatprep.subr.mxu0 0.0
  %5419 = vmatpush1.msra.mxu0 0.0
  %5420 = vmatprep.subr.mxu0 0.0
  %5421 = vmatpush1.msra.mxu0 0.0
  %5422 = vmatprep.subr.mxu0 0.0
  %5423 = vmatpush1.msra.mxu0 0.0
  %5424 = vmatprep.subr.mxu0 0.0
  %5425 = vmatpush1.msra.mxu0 0.0
  %5426 = vmatprep.subr.mxu0 0.0
  %5427 = vmatpush1.msra.mxu0 0.0
  %5428 = vmatprep.subr.mxu0 0.0
  %5429 = vmatpush1.msra.mxu0 0.0
  %5430 = vmatprep.subr.mxu0 0.0
  %5431 = vmatpush1.msra.mxu0 0.0
  %5432 = vmatprep.subr.mxu0 0.0
  %5433 = vmatpush1.msra.mxu0 0.0
  %5434 = vmatprep.subr.mxu0 0.0
  %5435 = vmatpush1.msra.mxu0 0.0
  %5436 = vmatprep.subr.mxu0 0.0
  %5437 = vmatpush1.msra.mxu0 0.0
  %5438 = vmatprep.subr.mxu0 0.0
  %5439 = vmatpush1.msra.mxu0 0.0
  %5440 = vmatprep.subr.mxu0 0.0
  %5441 = vmatpush1.msra.mxu0 0.0
  %5442 = vmatprep.subr.mxu0 0.0
  %5443 = vmatpush1.msra.mxu0 0.0
  %5444 = vmatprep.subr.mxu0 0.0
  %5445 = vmatpush1.msra.mxu0 0.0
  %5446 = vmatprep.subr.mxu0 0.0
  %5447 = vmatpush1.msra.mxu0 0.0
  %5448 = vmatprep.subr.mxu0 0.0
  %5449 = vmatpush1.msra.mxu0 0.0
  %5450 = vmatprep.subr.mxu0 0.0
  %5451 = vmatpush1.msra.mxu0 0.0
  %5452 = vmatprep.subr.mxu0 0.0
  %5453 = vmatpush1.msra.mxu0 0.0
  %5454 = vmatprep.subr.mxu0 0.0
  %5455 = vmatpush1.msra.mxu0 0.0
  %5456 = vmatprep.subr.mxu0 0.0
  %5457 = vmatpush1.msra.mxu0 0.0
  %5458 = vmatprep.subr.mxu0 0.0
  %5459 = vmatpush1.msra.mxu0 0.0
  %5460 = vmatprep.subr.mxu0 0.0
  %5461 = vmatpush1.msra.mxu0 0.0
  %5462 = vmatprep.subr.mxu0 0.0
  %5463 = vmatpush1.msra.mxu0 0.0
  %5464 = vmatprep.subr.mxu0 0.0
  %5465 = vmatpush1.msra.mxu0 0.0
  %5466 = vmatprep.subr.mxu0 0.0
  %5467 = vmatpush1.msra.mxu0 0.0
  %5468 = vmatprep.subr.mxu0 0.0
  %5469 = vmatpush1.msra.mxu0 0.0
  %5470 = vmatprep.mubr.f32.mxu0 0.0
  %5471 = vmatmul.mubr.f32.gmra.mrb[0].mxu0 %v5404
  %v5472 = vpop.f32.mrb[0].mxu0
  %v5473 = vadd.f32 %v5399, %v5472
  %v5474 = vpop.f32.mrb[0].mxu0
  %5475 = vdwg.mxu0
  %vm5476 = vcmask 16392
  %v5477 = vsel %vm5476, %v5473, -inf
  %5478 = vmax.xlane.f32.xlu0 %v5477
  %v5479 = vpop.xlane.xlu0 %5478
  %v5480 = vsub.f32 %v5473, %v5479
  %v5481 = vmul.f32 %v5480, 1.442695
  %v5482 = vpow.pop %v5481
  %5484 = vrot.lane.b32.xlu0 %v5482, 127
  %v5485 = vpop.permute.xlu0 %5484
  %vm5487 = vcmask 8192
  %v5488 = vsel %vm5487, %v5485, 0.0
  %5489 = vadd.xlane.f32.xlu0 %v5488
  %v5490 = vpop.xlane.xlu0 %5489
  %v5491 = vlog2.pop %v5490
  %v5492 = vmul.f32 %v5491, 0.6931472
  %v5493 = vsub.f32 %v5480, %v5492
  %v5494 = vmul.f32 %v5493, 1.442695
  %v5495 = vpow.pop %v5494
  %5497 = vrot.lane.b32.xlu0 %v5495, 127
  %v5498 = vpop.permute.xlu0 %5497
  %vm5500 = vcmp.ge.f32.partialorder %v5266, %v5498
  %v5501 = vsel %vm5500, 1, 0
  %v5502 = vlaneseq
  %v5503 = vand.u32 %v5502, 127
  %5504 = vset.pattern.permute.xlu0 0
  %5505 = vperm.xlu0 %5504, %v5501
  %v5506 = vpop.permute.xlu0 %5505
  %vm5507 = vcmp.eq.s32.totalorder %v5503, %v5506
  %v5508 = vsel %vm5507, 1, 0
  %v5509 = vcvt.s32.f32 %v5508
  %v5510 = vmul.f32 %v5493, %v5495
  %5512 = vrot.lane.b32.xlu0 %v5510, 127
  %v5513 = vpop.permute.xlu0 %5512
  %v5515 = vsel %vm5487, %v5513, 0.0
  %5516 = vadd.xlane.f32.xlu0 %v5515
  %v5517 = vpop.xlane.xlu0 %5516
  %v5518 = vsub.f32 0.0, %v5517
  %5520 = vrot.lane.b32.xlu0 %v5509, 1
  %v5521 = vpop.permute.xlu0 %5520
  %v5523 = vmul.f32 %v5493, %v5521
  %5525 = vrot.lane.b32.xlu0 %v5523, 127
  %v5526 = vpop.permute.xlu0 %5525
  %v5528 = vsel %vm5487, %v5526, 0.0
  %5529 = vadd.xlane.f32.xlu0 %v5528
  %v5530 = vpop.xlane.xlu0 %5529
  %5531 = vst.msk [vmem:[#allocation7 + $0x1] sm:$0x1] %vm5271, %v5263
  %5532 = vrot.lane.b32.xlu0 %v5509, 16
  %v5533 = vpop.permute.xlu0 %5532
  %vm5535 = vcmask 139392
  %5536 = vst.msk [vmem:[#allocation7 + $0x1] sm:$0x1] %vm5535, %v5533
  %5537 = vrot.lane.b32.xlu0 %v5269, 18
  %v5538 = vpop.permute.xlu0 %5537
  %vm5540 = vcmask 401552
  %5541 = vst.msk [vmem:[#allocation7 + $0x1] sm:$0x1] %vm5540, %v5538
  %v5542 = vld [vmem:[#allocation7 + $0x1] sm:$0x1]
  %v5543 = vld [vmem:[%s2 + $0xc0] sm:$0xff]
  %v5544 = vld [vmem:[%s2 + $0xc8] sm:$0xff]
  %v5545 = vld [vmem:[%s2 + $0xd0] sm:$0xff]
  %v5546 = vld [vmem:[%s2 + $0xd8] sm:$0xff]
  %v5547 = vld [vmem:[%s2 + $0xe0] sm:$0xff]
  %v5548 = vld [vmem:[%s2 + $0xe8] sm:$0xff]
  %v5549 = vld [vmem:[%s2 + $0xf0] sm:$0x3]
  %v5550 = vld [vmem:[%s2 + $0x12a] sm:$0x1]
  %vm5551 = vcmask 408576
  %v5553 = vsel %vm5551, %v5542, 0
  %vm5555 = vcmask 1041408
  %v5557 = vsel %vm5555, %v5549, 0
  %5559 = vmatprep.subr.mxu0 0.0
  %5560 = vmatpush1.msra.mxu0 %v5543
  %5561 = vmatprep.subr.mxu0 0.0
  %5562 = vmatpush1.msra.mxu0 %v5544
  %5563 = vmatprep.subr.mxu0 0.0
  %5564 = vmatpush1.msra.mxu0 %v5545
  %5565 = vmatprep.subr.mxu0 0.0
  %5566 = vmatpush1.msra.mxu0 %v5546
  %5567 = vmatprep.subr.mxu0 0.0
  %5568 = vmatpush1.msra.mxu0 %v5547
  %5569 = vmatprep.subr.mxu0 0.0
  %5570 = vmatpush1.msra.mxu0 %v5548
  %5571 = vmatprep.subr.mxu0 0.0
  %5572 = vmatpush1.msra.mxu0 %v5557
  %5573 = vmatprep.subr.mxu0 0.0
  %5574 = vmatpush1.msra.mxu0 0.0
  %5575 = vmatprep.subr.mxu0 0.0
  %5576 = vmatpush1.msra.mxu0 0.0
  %5577 = vmatprep.subr.mxu0 0.0
  %5578 = vmatpush1.msra.mxu0 0.0
  %5579 = vmatprep.subr.mxu0 0.0
  %5580 = vmatpush1.msra.mxu0 0.0
  %5581 = vmatprep.subr.mxu0 0.0
  %5582 = vmatpush1.msra.mxu0 0.0
  %5583 = vmatprep.subr.mxu0 0.0
  %5584 = vmatpush1.msra.mxu0 0.0
  %5585 = vmatprep.subr.mxu0 0.0
  %5586 = vmatpush1.msra.mxu0 0.0
  %5587 = vmatprep.subr.mxu0 0.0
  %5588 = vmatpush1.msra.mxu0 0.0
  %5589 = vmatprep.subr.mxu0 0.0
  %5590 = vmatpush1.msra.mxu0 0.0
  %5591 = vmatprep.subr.mxu0 0.0
  %5592 = vmatpush1.msra.mxu0 0.0
  %5593 = vmatprep.subr.mxu0 0.0
  %5594 = vmatpush1.msra.mxu0 0.0
  %5595 = vmatprep.subr.mxu0 0.0
  %5596 = vmatpush1.msra.mxu0 0.0
  %5597 = vmatprep.subr.mxu0 0.0
  %5598 = vmatpush1.msra.mxu0 0.0
  %5599 = vmatprep.subr.mxu0 0.0
  %5600 = vmatpush1.msra.mxu0 0.0
  %5601 = vmatprep.subr.mxu0 0.0
  %5602 = vmatpush1.msra.mxu0 0.0
  %5603 = vmatprep.subr.mxu0 0.0
  %5604 = vmatpush1.msra.mxu0 0.0
  %5605 = vmatprep.subr.mxu0 0.0
  %5606 = vmatpush1.msra.mxu0 0.0
  %5607 = vmatprep.subr.mxu0 0.0
  %5608 = vmatpush1.msra.mxu0 0.0
  %5609 = vmatprep.subr.mxu0 0.0
  %5610 = vmatpush1.msra.mxu0 0.0
  %5611 = vmatprep.subr.mxu0 0.0
  %5612 = vmatpush1.msra.mxu0 0.0
  %5613 = vmatprep.subr.mxu0 0.0
  %5614 = vmatpush1.msra.mxu0 0.0
  %5615 = vmatprep.subr.mxu0 0.0
  %5616 = vmatpush1.msra.mxu0 0.0
  %5617 = vmatprep.subr.mxu0 0.0
  %5618 = vmatpush1.msra.mxu0 0.0
  %5619 = vmatprep.subr.mxu0 0.0
  %5620 = vmatpush1.msra.mxu0 0.0
  %5621 = vmatprep.subr.mxu0 0.0
  %5622 = vmatpush1.msra.mxu0 0.0
  %5623 = vmatprep.mubr.f32.mxu0 0.0
  %5624 = vmatmul.mubr.f32.gmra.mrb[0].mxu0 %v5553
  %v5625 = vpop.f32.mrb[0].mxu0
  %v5626 = vadd.f32 %v5550, %v5625
  %v5627 = vpop.f32.mrb[0].mxu0
  %5628 = vdwg.mxu0
  %v5629 = vxor.u32 %v5626, 2147483648
  %v5630 = vmul.f32 %v5629, 1.442695
  %v5631 = vpow.pop %v5630
  %v5632 = vadd.f32 %v5631, 1.0
  %v5633 = vrcp.pop %v5632
  %v5634 = vmul.f32 1.0, %v5633
  %v5635 = vtanh.pop %v5626
  %5637 = vrot.lane.b32.xlu0 %v5270, 32
  %v5638 = vpop.permute.xlu0 %5637
  %v5640 = vmul.f32 %v5634, %v5638
  %5642 = vrot.lane.b32.xlu0 %v5635, 64
  %v5643 = vpop.permute.xlu0 %5642
  %v5645 = vmul.f32 %v5634, %v5643
  %5647 = vrot.lane.b32.xlu0 %v5645, 32
  %v5648 = vpop.permute.xlu0 %5647
  %v5650 = vadd.f32 %v5640, %v5648
  %v5651 = vtanh.pop %v5650
  %5653 = vrot.lane.b32.xlu0 %v5651, 64
  %v5654 = vpop.permute.xlu0 %5653
  %v5656 = vmul.f32 %v5634, %v5654
  %v5657 = vld [vmem:[%s2 + $0x108] sm:$0xff]
  %v5658 = vld [vmem:[%s2 + $0x110] sm:$0xff]
  %v5659 = vld [vmem:[%s2 + $0x118] sm:$0xff]
  %v5660 = vld [vmem:[%s2 + $0x120] sm:$0xff]
  %v5661 = vld [vmem:[%s2 + $0x12c] sm:$0x1]
  %5663 = vrot.lane.b32.xlu0 %v5656, 32
  %v5664 = vpop.permute.xlu0 %5663
  %v5665 = vsel %vm308, %v5664, 0
  %5667 = vmatprep.subr.mxu0 0.0
  %5668 = vmatpush1.msra.mxu0 %v5657
  %5669 = vmatprep.subr.mxu0 0.0
  %5670 = vmatpush1.msra.mxu0 %v5658
  %5671 = vmatprep.subr.mxu0 0.0
  %5672 = vmatpush1.msra.mxu0 %v5659
  %5673 = vmatprep.subr.mxu0 0.0
  %5674 = vmatpush1.msra.mxu0 %v5660
  %5675 = vmatprep.subr.mxu0 0.0
  %5676 = vmatpush1.msra.mxu0 0.0
  %5677 = vmatprep.subr.mxu0 0.0
  %5678 = vmatpush1.msra.mxu0 0.0
  %5679 = vmatprep.subr.mxu0 0.0
  %5680 = vmatpush1.msra.mxu0 0.0
  %5681 = vmatprep.subr.mxu0 0.0
  %5682 = vmatpush1.msra.mxu0 0.0
  %5683 = vmatprep.subr.mxu0 0.0
  %5684 = vmatpush1.msra.mxu0 0.0
  %5685 = vmatprep.subr.mxu0 0.0
  %5686 = vmatpush1.msra.mxu0 0.0
  %5687 = vmatprep.subr.mxu0 0.0
  %5688 = vmatpush1.msra.mxu0 0.0
  %5689 = vmatprep.subr.mxu0 0.0
  %5690 = vmatpush1.msra.mxu0 0.0
  %5691 = vmatprep.subr.mxu0 0.0
  %5692 = vmatpush1.msra.mxu0 0.0
  %5693 = vmatprep.subr.mxu0 0.0
  %5694 = vmatpush1.msra.mxu0 0.0
  %5695 = vmatprep.subr.mxu0 0.0
  %5696 = vmatpush1.msra.mxu0 0.0
  %5697 = vmatprep.subr.mxu0 0.0
  %5698 = vmatpush1.msra.mxu0 0.0
  %5699 = vmatprep.subr.mxu0 0.0
  %5700 = vmatpush1.msra.mxu0 0.0
  %5701 = vmatprep.subr.mxu0 0.0
  %5702 = vmatpush1.msra.mxu0 0.0
  %5703 = vmatprep.subr.mxu0 0.0
  %5704 = vmatpush1.msra.mxu0 0.0
  %5705 = vmatprep.subr.mxu0 0.0
  %5706 = vmatpush1.msra.mxu0 0.0
  %5707 = vmatprep.subr.mxu0 0.0
  %5708 = vmatpush1.msra.mxu0 0.0
  %5709 = vmatprep.subr.mxu0 0.0
  %5710 = vmatpush1.msra.mxu0 0.0
  %5711 = vmatprep.subr.mxu0 0.0
  %5712 = vmatpush1.msra.mxu0 0.0
  %5713 = vmatprep.subr.mxu0 0.0
  %5714 = vmatpush1.msra.mxu0 0.0
  %5715 = vmatprep.subr.mxu0 0.0
  %5716 = vmatpush1.msra.mxu0 0.0
  %5717 = vmatprep.subr.mxu0 0.0
  %5718 = vmatpush1.msra.mxu0 0.0
  %5719 = vmatprep.subr.mxu0 0.0
  %5720 = vmatpush1.msra.mxu0 0.0
  %5721 = vmatprep.subr.mxu0 0.0
  %5722 = vmatpush1.msra.mxu0 0.0
  %5723 = vmatprep.subr.mxu0 0.0
  %5724 = vmatpush1.msra.mxu0 0.0
  %5725 = vmatprep.subr.mxu0 0.0
  %5726 = vmatpush1.msra.mxu0 0.0
  %5727 = vmatprep.subr.mxu0 0.0
  %5728 = vmatpush1.msra.mxu0 0.0
  %5729 = vmatprep.subr.mxu0 0.0
  %5730 = vmatpush1.msra.mxu0 0.0
  %5731 = vmatprep.mubr.f32.mxu0 0.0
  %5732 = vmatmul.mubr.f32.gmra.mrb[0].mxu0 %v5665
  %v5733 = vpop.f32.mrb[0].mxu0
  %v5734 = vadd.f32 %v5661, %v5733
  %v5735 = vpop.f32.mrb[0].mxu0
  %5736 = vdwg.mxu0
  %5738 = vrot.lane.b32.xlu0 %v5734, 112
  %v5739 = vpop.permute.xlu0 %5738
  %v5741 = vmax.f32 %v5734, %v5739
  %v5742 = vsub.f32 %v5734, %v5741
  %v5743 = vmul.f32 %v5742, 1.442695
  %v5744 = vpow.pop %v5743
  %5746 = vrot.lane.b32.xlu0 %v5741, 16
  %v5747 = vpop.permute.xlu0 %5746
  %v5749 = vsub.f32 %v5734, %v5747
  %v5750 = vmul.f32 %v5749, 1.442695
  %v5751 = vpow.pop %v5750
  %5753 = vrot.lane.b32.xlu0 %v5751, 112
  %v5754 = vpop.permute.xlu0 %5753
  %v5756 = vadd.f32 %v5744, %v5754
  %v5757 = vlog2.pop %v5756
  %v5758 = vmul.f32 %v5757, 0.6931472
  %v5759 = vadd.f32 %v5741, %v5758
  %5760 = vst [vmem:[%s4] sm:$0xff] 0.0
  %vm5761 = vcmask 0
  %5762 = vst.msk [vmem:[%s4] sm:$0x1] %vm5761, %v5473
  %vm5763 = vcmask 8200
  %5764 = vst.msk [vmem:[%s4] sm:$0x1] %vm5763, %v5518
  %vm5765 = vcmask 16400
  %5766 = vst.msk [vmem:[%s4] sm:$0x1] %vm5765, %v5530
  %v5767 = vadd.s32 %v5501, 2
  %v5768 = vcvt.s32.f32 %v5767
  %5770 = vrot.lane.b32.xlu0 %v5768, 3
  %v5771 = vpop.permute.xlu0 %5770
  %vm5773 = vcmask 24600
  %5774 = vst.msk [vmem:[%s4] sm:$0x1] %vm5773, %v5771
  %5775 = vrot.lane.b32.xlu0 %v5495, 3
  %v5776 = vpop.permute.xlu0 %5775
  %vm5778 = vcmask 40992
  %5779 = vst.msk [vmem:[%s4] sm:$0x1] %vm5778, %v5776
  %5780 = vrot.lane.b32.xlu0 %v5509, 6
  %v5781 = vpop.permute.xlu0 %5780
  %vm5783 = vcmask 57392
  %5784 = vst.msk [vmem:[%s4] sm:$0x1] %vm5783, %v5781
  %5785 = vst.msk [vmem:[%s4 + $0x1] sm:$0x1] %vm5271, %v5263
  %5787 = vst.msk [vmem:[%s4 + $0x2] sm:$0x1] %vm5271, %v5402
  %5789 = vrot.lane.b32.xlu0 %v5390, 112
  %v5790 = vpop.permute.xlu0 %5789
  %5792 = vst.msk [vmem:[%s4 + $0x3] sm:$0x1] %vm5271, %v5790
  %5794 = vst.msk [vmem:[%s4 + $0x4] sm:$0x1] %vm5155, %v5664
  %5796 = vrot.lane.b32.xlu0 %v5650, 96
  %v5797 = vpop.permute.xlu0 %5796
  %5799 = vst.msk [vmem:[%s4 + $0x5] sm:$0x1] %vm5155, %v5797
  %v5800 = vsub.f32 %v5734, %v5759
  %5801 = vst.msk [vmem:[%s4 + $0x6] sm:$0x1] %vm5271, %v5800
  %5803 = vrot.lane.b32.xlu0 %v5759, 16
  %v5804 = vpop.permute.xlu0 %5803
  %v5806 = vsub.f32 %v5734, %v5804
  %vm5807 = vcmask 254080
  %5808 = vst.msk [vmem:[%s4 + $0x6] sm:$0x1] %vm5807, %v5806
  %vm5809 = vcmask 778496
  %5810 = vst.msk [vmem:[%s4 + $0x6] sm:$0x1] %vm5809, %v5734
  // Predicated region
  $region18: #{model_forward.1} parent=0 // pred_check
    _
  $region19: #{model_forward.1} parent=0 // pred_check_branch
    %5812 = sbr.rel (0) target = $region21
  $region20: #{model_forward.1} parent=0 // pred_region
    _
  $region21: #{model_forward.1} parent=0 // pred_fallthru
    _
  // Predicated region
  $region22: #{model_forward.1} parent=0 // pred_check
    _
  $region23: #{model_forward.1} parent=0 // pred_check_branch
    %5814 = sbr.rel (0) target = $region25
  $region24: #{model_forward.1} parent=0 // pred_region
    _
  $region25: #{model_forward.1} parent=0 // pred_fallthru
    _

</llo_original>
